<compile_context>
chip_gen: v7x
topology: tpu7x:2x2x1
jax: 0.10.0
libtpu: 0.0.40
codegen_flags: <defaults>
</compile_context>

<pallas_src>
import jax
import jax.numpy as jnp
from jax.experimental import pallas as pl
from jax.experimental.pallas import tpu as pltpu

EPS = 1e-3


def _fused_kernel(a_ref, b_ref, w_ref, gamma_ref, beta_ref, o_ref):
    # a_ref, b_ref:        (Cin, M)   -- NCHW inputs free-reshaped (N=1)
    # w_ref:               (bc, Cin)  -- Cout-block of the 1x1 conv weight, natural layout
    # gamma_ref, beta_ref: (bc, 1)
    # o_ref:               (bc, M)
    x = a_ref[...] + b_ref[...]                                        # fused add (tiny)
    y = jnp.dot(w_ref[...], x, preferred_element_type=jnp.float32)     # 1x1 conv on MXU

    inv_m = 1.0 / y.shape[1]
    mean = jnp.sum(y, axis=1, keepdims=True) * inv_m                   # batch mean  (bc, 1)
    centered = y - mean
    var = jnp.sum(centered * centered, axis=1, keepdims=True) * inv_m  # stable biased var
    scale = gamma_ref[...] * jax.lax.rsqrt(var + EPS)                  # (bc, 1)  (EUP rsqrt)
    o_ref[...] = (centered * scale + beta_ref[...]).astype(o_ref.dtype)


def _default_block_cout(cout):
    """grid=1 on single-TC chips (v5e/v6e); grid=2 on v7x (one step per TensorCore)."""
    try:
        kind = jax.devices()[0].device_kind.lower()
    except Exception:
        return cout
    if "v7" in kind and cout % 2 == 0 and (cout // 2) % 8 == 0:
        return cout // 2
    return cout


def fused_add_conv1x1_bn(x378, x363, weight, gamma, beta, *, block_cout=None):
    """x378, x363: (1, Cin, H, W) NCHW.  weight: (Cout, Cin, 1, 1).  Returns (1, Cout, H, W)."""
    n, cin, h, w = x378.shape
    assert n == 1, "kernel specialized for the module's batch=1 input"
    cout = weight.shape[0]
    m = n * h * w

    # All of these are free reshapes (no data movement / no extra XLA transposes).
    a = x378.reshape(cin, m)                 # (Cin, M)
    b = x363.reshape(cin, m)                 # (Cin, M)
    w_mat = weight.reshape(cout, cin)        # (Cout, Cin)  -- PyTorch-natural layout
    gamma2 = gamma.reshape(cout, 1)
    beta2 = beta.reshape(cout, 1)

    if block_cout is None:
        block_cout = _default_block_cout(cout)
    if cout % block_cout != 0 or block_cout % 8 != 0:
        block_cout = cout                    # fall back to a single block
    grid = (cout // block_cout,)

    dtype_bytes = 4
    cost = pl.CostEstimate(
        flops=2 * cout * cin * m,
        transcendentals=0,
        bytes_accessed=(cout * cin + 2 * cin * m + cout * m + 2 * cout) * dtype_bytes,
    )

    out_rows = pl.pallas_call(
        _fused_kernel,
        out_shape=jax.ShapeDtypeStruct((cout, m), jnp.float32),
        grid=grid,
        in_specs=[
            pl.BlockSpec((cin, m), lambda i: (0, 0)),           # fetched once (constant block)
            pl.BlockSpec((cin, m), lambda i: (0, 0)),
            pl.BlockSpec((block_cout, cin), lambda i: (i, 0)),  # weight tile(s)
            pl.BlockSpec((block_cout, 1), lambda i: (i, 0)),
            pl.BlockSpec((block_cout, 1), lambda i: (i, 0)),
        ],
        out_specs=pl.BlockSpec((block_cout, m), lambda i: (i, 0)),
        compiler_params=pltpu.CompilerParams(
            dimension_semantics=("parallel",),                  # BN is per-channel: exact split
        ),
        cost_estimate=cost,
    )(a, b, w_mat, gamma2, beta2)

    # (Cout, M) -> (1, Cout, H, W) is a free reshape (no transpose).
    return out_rows.reshape(n, cout, h, w)


def _reference(x378, x363, weight, gamma, beta):
    """Pure-JAX reference matching PyTorch training-mode forward."""
    x = x378 + x363
    n, cin, h, w = x.shape
    cout = weight.shape[0]
    y = jnp.einsum("nchw,oc->nohw", x, weight.reshape(cout, cin))
    mean = jnp.mean(y, axis=(0, 2, 3), keepdims=True)
    var = jnp.mean((y - mean) ** 2, axis=(0, 2, 3), keepdims=True)
    return (y - mean) / jnp.sqrt(var + EPS) * gamma.reshape(1, cout, 1, 1) + beta.reshape(1, cout, 1, 1)


if __name__ == "__main__":
    key = jax.random.PRNGKey(0)
    k1, k2, k3, k4, k5 = jax.random.split(key, 5)

    N, CIN, H, W = 1, 256, 7, 7
    COUT = 1536

    x378 = jax.random.normal(k1, (N, CIN, H, W), dtype=jnp.float32)
    x363 = jax.random.normal(k2, (N, CIN, H, W), dtype=jnp.float32)

    # Deterministic synthetic parameters (not a checkpoint load).
    weight = jax.random.normal(k3, (COUT, CIN, 1, 1), dtype=jnp.float32) * 0.05
    gamma = 1.0 + 0.1 * jax.random.normal(k4, (COUT,), dtype=jnp.float32)
    beta = 0.1 * jax.random.normal(k5, (COUT,), dtype=jnp.float32)

    fn = jax.jit(fused_add_conv1x1_bn)
    out = jax.block_until_ready(fn(x378, x363, weight, gamma, beta))

    ref = _reference(x378, x363, weight, gamma, beta)
    assert out.shape == (N, COUT, H, W)
    max_err = float(jnp.max(jnp.abs(out - ref)))
    assert jnp.allclose(out, ref, atol=1e-3, rtol=1e-3), max_err

    print("KERNEL_OK")
</pallas_src>

<mosaic_0001>
module attributes {stable_mosaic.version = 11 : i64} {
  func.func @_fused_kernel(%arg0: i32, %arg1: memref<256x49xf32, #tpu.memory_space<vmem>>, %arg2: memref<256x49xf32, #tpu.memory_space<vmem>>, %arg3: memref<1536x256xf32, #tpu.memory_space<vmem>>, %arg4: memref<1536x1xf32, #tpu.memory_space<vmem>>, %arg5: memref<1536x1xf32, #tpu.memory_space<vmem>>, %arg6: memref<1536x49xf32, #tpu.memory_space<vmem>>) attributes {dimension_semantics = [#tpu.dimension_semantics<parallel>], iteration_bounds = array<i64: 1>, scalar_prefetch = 0 : i64, scratch_operands = 0 : i64, tpu.core_type = #tpu.core_type<tc>, window_params = [{pipeline_mode = #tpu.pipeline_mode<synchronous>, transform_indices = @transform_0, window_bounds = array<i64: 256, 49>}, {pipeline_mode = #tpu.pipeline_mode<synchronous>, transform_indices = @transform_1, window_bounds = array<i64: 256, 49>}, {transform_indices = @transform_2, window_bounds = array<i64: 1536, 256>}, {transform_indices = @transform_3, window_bounds = array<i64: 1536, 1>}, {transform_indices = @transform_4, window_bounds = array<i64: 1536, 1>}, {transform_indices = @transform_5, window_bounds = array<i64: 1536, 49>}]} {
    %c0 = arith.constant 0 : index
    %c0_0 = arith.constant 0 : index
    %0 = vector.load %arg1[%c0, %c0_0] : memref<256x49xf32, #tpu.memory_space<vmem>>, vector<256x49xf32>
    %c0_1 = arith.constant 0 : index
    %c0_2 = arith.constant 0 : index
    %1 = vector.load %arg2[%c0_1, %c0_2] : memref<256x49xf32, #tpu.memory_space<vmem>>, vector<256x49xf32>
    %2 = arith.addf %0, %1 : vector<256x49xf32>
    %c0_3 = arith.constant 0 : index
    %c0_4 = arith.constant 0 : index
    %3 = vector.load %arg3[%c0_3, %c0_4] : memref<1536x256xf32, #tpu.memory_space<vmem>>, vector<1536x256xf32>
    %cst = arith.constant dense<0.000000e+00> : vector<1536x49xf32>
    %4 = tpu.matmul %3, %2, %cst {dimension_numbers = #tpu.dot_dimension_numbers<[1], [0], [0], [1], [0, 0, 1, 1], [], []>} : vector<1536x256xf32>, vector<256x49xf32>, vector<1536x49xf32> -> vector<1536x49xf32>
    %cst_5 = arith.constant dense<0.000000e+00> : vector<1536xf32>
    %5 = vector.multi_reduction <add>, %4, %cst_5 [1] : vector<1536x49xf32> to vector<1536xf32>
    %6 = vector.shape_cast %5 : vector<1536xf32> to vector<1536x1xf32>
    %cst_6 = arith.constant 0.0204081628 : f32
    %7 = vector.broadcast %cst_6 : f32 to vector<1536x1xf32>
    %8 = arith.mulf %6, %7 : vector<1536x1xf32>
    %9 = vector.broadcast %8 : vector<1536x1xf32> to vector<1536x49xf32>
    %10 = arith.subf %4, %9 : vector<1536x49xf32>
    %11 = arith.mulf %10, %10 : vector<1536x49xf32>
    %cst_7 = arith.constant dense<0.000000e+00> : vector<1536xf32>
    %12 = vector.multi_reduction <add>, %11, %cst_7 [1] : vector<1536x49xf32> to vector<1536xf32>
    %13 = vector.shape_cast %12 : vector<1536xf32> to vector<1536x1xf32>
    %cst_8 = arith.constant 0.0204081628 : f32
    %14 = vector.broadcast %cst_8 : f32 to vector<1536x1xf32>
    %15 = arith.mulf %13, %14 : vector<1536x1xf32>
    %c0_9 = arith.constant 0 : index
    %c0_10 = arith.constant 0 : index
    %16 = vector.load %arg4[%c0_9, %c0_10] : memref<1536x1xf32, #tpu.memory_space<vmem>>, vector<1536x1xf32>
    %cst_11 = arith.constant 1.000000e-03 : f32
    %17 = vector.broadcast %cst_11 : f32 to vector<1536x1xf32>
    %18 = arith.addf %15, %17 : vector<1536x1xf32>
    %19 = math.rsqrt %18 : vector<1536x1xf32>
    %20 = arith.mulf %16, %19 : vector<1536x1xf32>
    %21 = vector.broadcast %20 : vector<1536x1xf32> to vector<1536x49xf32>
    %22 = arith.mulf %10, %21 : vector<1536x49xf32>
    %c0_12 = arith.constant 0 : index
    %c0_13 = arith.constant 0 : index
    %23 = vector.load %arg5[%c0_12, %c0_13] : memref<1536x1xf32, #tpu.memory_space<vmem>>, vector<1536x1xf32>
    %24 = vector.broadcast %23 : vector<1536x1xf32> to vector<1536x49xf32>
    %25 = arith.addf %22, %24 : vector<1536x49xf32>
    %c0_14 = arith.constant 0 : index
    %c0_15 = arith.constant 0 : index
    %26 = vector.load %arg6[%c0_14, %c0_15] : memref<1536x49xf32, #tpu.memory_space<vmem>>, vector<1536x49xf32>
    tpu.vector_store %arg6[%c0_14, %c0_15], %25 {strides = array<i32>} : memref<1536x49xf32, #tpu.memory_space<vmem>>, vector<1536x49xf32>,
    return
  }
  func.func @transform_0(%arg0: i32) -> (i32, i32) {
    %c0_i32 = arith.constant 0 : i32
    %c0_i32_0 = arith.constant 0 : i32
    %c0_i32_1 = arith.constant 0 : i32
    return %c0_i32, %c0_i32_0 : i32, i32
  }
  func.func @transform_1(%arg0: i32) -> (i32, i32) {
    %c0_i32 = arith.constant 0 : i32
    %c0_i32_0 = arith.constant 0 : i32
    %c0_i32_1 = arith.constant 0 : i32
    return %c0_i32, %c0_i32_0 : i32, i32
  }
  func.func @transform_2(%arg0: i32) -> (i32, i32) {
    %c0_i32 = arith.constant 0 : i32
    %c0_i32_0 = arith.constant 0 : i32
    return %arg0, %c0_i32 : i32, i32
  }
  func.func @transform_3(%arg0: i32) -> (i32, i32) {
    %c0_i32 = arith.constant 0 : i32
    %c0_i32_0 = arith.constant 0 : i32
    return %arg0, %c0_i32 : i32, i32
  }
  func.func @transform_4(%arg0: i32) -> (i32, i32) {
    %c0_i32 = arith.constant 0 : i32
    %c0_i32_0 = arith.constant 0 : i32
    return %arg0, %c0_i32 : i32, i32
  }
  func.func @transform_5(%arg0: i32) -> (i32, i32) {
    %c0_i32 = arith.constant 0 : i32
    %c0_i32_0 = arith.constant 0 : i32
    return %arg0, %c0_i32 : i32, i32
  }
}

</mosaic_0001>

<llo_original>
// kernel: fused_add_conv1x1_bn.1
$region0: #{fused_add_conv1x1_bn.1}
  #allocation0 [shape = 'u32[]', space=smem, size = 0x4, offset = 0x4, fixed_abs, tag = 'smem constant byte address 0x4 - core index']
  #allocation1 [shape = 'u32[144,128]{1,0:T(1,128)}', space=vmem, size = 0x12000, scoped, tag = 'internal scratch']
  %s0 = inlined_call_operand.vmem [shape: f32[256,49], index: 0, kind: input, shape index: {}]
  %s1 = inlined_call_operand.vmem [shape: f32[256,49], index: 1, kind: input, shape index: {}]
  %s2 = inlined_call_operand.vmem [shape: f32[1536,256], index: 2, kind: input, shape index: {}]
  %s3 = inlined_call_operand.vmem [shape: f32[1536,1], index: 3, kind: input, shape index: {}]
  %s4 = inlined_call_operand.vmem [shape: f32[1536,1], index: 4, kind: input, shape index: {}]
  %s5 = inlined_call_operand.vmem [shape: f32[1536,49], index: 5, kind: output, shape index: {}]
  %s6 = sld [smem:[#allocation0]]
  $region30: #{fused_add_conv1x1_bn.1} parent=0
    _
  %s8 = ssub.s32 1, %s6
  %s9 = scalar_select 0, %s8, %s6
  // Predicated region
  $region2: #{fused_add_conv1x1_bn.1} parent=0 // pred_check
    _
  $region3: #{fused_add_conv1x1_bn.1} parent=0 // pred_check_branch
    %11 = sbr.rel (0) target = $region5
  $region4: #{fused_add_conv1x1_bn.1} parent=0 // pred_region
    _
  $region5: #{fused_add_conv1x1_bn.1} parent=0 // pred_fallthru
    _
  // Predicated region
  $region6: #{fused_add_conv1x1_bn.1} parent=0 // pred_check
    _
  $region7: #{fused_add_conv1x1_bn.1} parent=0 // pred_check_branch
    %13 = sbr.rel (0) target = $region9
  $region8: #{fused_add_conv1x1_bn.1} parent=0 // pred_region
    _
  $region9: #{fused_add_conv1x1_bn.1} parent=0 // pred_fallthru
    _
  // Predicated region
  $region10: #{fused_add_conv1x1_bn.1} parent=0 // pred_check
    _
  $region11: #{fused_add_conv1x1_bn.1} parent=0 // pred_check_branch
    %15 = sbr.rel (0) target = $region13
  $region12: #{fused_add_conv1x1_bn.1} parent=0 // pred_region
    _
  $region13: #{fused_add_conv1x1_bn.1} parent=0 // pred_fallthru
    _
  // Predicated region
  $region14: #{fused_add_conv1x1_bn.1} parent=0 // pred_check
    _
  $region15: #{fused_add_conv1x1_bn.1} parent=0 // pred_check_branch
    %17 = sbr.rel (0) target = $region17
  $region16: #{fused_add_conv1x1_bn.1} parent=0 // pred_region
    _
  $region17: #{fused_add_conv1x1_bn.1} parent=0 // pred_fallthru
    _
  // Predicated region
  $region18: #{fused_add_conv1x1_bn.1} parent=0 // pred_check
    _
  $region19: #{fused_add_conv1x1_bn.1} parent=0 // pred_check_branch
    %19 = sbr.rel (0) target = $region21
  $region20: #{fused_add_conv1x1_bn.1} parent=0 // pred_region
    _
  $region21: #{fused_add_conv1x1_bn.1} parent=0 // pred_fallthru
    _
  %v20 = vld [vmem:[%s0] sm:$0xff]
  %v21 = vld [vmem:[%s0 + $0x8] sm:$0xff]
  %v22 = vld [vmem:[%s0 + $0x10] sm:$0xff]
  %v23 = vld [vmem:[%s0 + $0x18] sm:$0xff]
  %v24 = vld [vmem:[%s0 + $0x20] sm:$0xff]
  %v25 = vld [vmem:[%s0 + $0x28] sm:$0xff]
  %v26 = vld [vmem:[%s0 + $0x30] sm:$0xff]
  %v27 = vld [vmem:[%s0 + $0x38] sm:$0xff]
  %v28 = vld [vmem:[%s0 + $0x40] sm:$0xff]
  %v29 = vld [vmem:[%s0 + $0x48] sm:$0xff]
  %v30 = vld [vmem:[%s0 + $0x50] sm:$0xff]
  %v31 = vld [vmem:[%s0 + $0x58] sm:$0xff]
  %v32 = vld [vmem:[%s0 + $0x60] sm:$0xff]
  %v33 = vld [vmem:[%s0 + $0x68] sm:$0xff]
  %v34 = vld [vmem:[%s0 + $0x70] sm:$0xff]
  %v35 = vld [vmem:[%s0 + $0x78] sm:$0xff]
  %v36 = vld [vmem:[%s0 + $0x80] sm:$0xff]
  %v37 = vld [vmem:[%s0 + $0x88] sm:$0xff]
  %v38 = vld [vmem:[%s0 + $0x90] sm:$0xff]
  %v39 = vld [vmem:[%s0 + $0x98] sm:$0xff]
  %v40 = vld [vmem:[%s0 + $0xa0] sm:$0xff]
  %v41 = vld [vmem:[%s0 + $0xa8] sm:$0xff]
  %v42 = vld [vmem:[%s0 + $0xb0] sm:$0xff]
  %v43 = vld [vmem:[%s0 + $0xb8] sm:$0xff]
  %v44 = vld [vmem:[%s0 + $0xc0] sm:$0xff]
  %v45 = vld [vmem:[%s0 + $0xc8] sm:$0xff]
  %v46 = vld [vmem:[%s0 + $0xd0] sm:$0xff]
  %v47 = vld [vmem:[%s0 + $0xd8] sm:$0xff]
  %v48 = vld [vmem:[%s0 + $0xe0] sm:$0xff]
  %v49 = vld [vmem:[%s0 + $0xe8] sm:$0xff]
  %v50 = vld [vmem:[%s0 + $0xf0] sm:$0xff]
  %v51 = vld [vmem:[%s0 + $0xf8] sm:$0xff]
  %v52 = vld [vmem:[%s1] sm:$0xff]
  %v53 = vld [vmem:[%s1 + $0x8] sm:$0xff]
  %v54 = vld [vmem:[%s1 + $0x10] sm:$0xff]
  %v55 = vld [vmem:[%s1 + $0x18] sm:$0xff]
  %v56 = vld [vmem:[%s1 + $0x20] sm:$0xff]
  %v57 = vld [vmem:[%s1 + $0x28] sm:$0xff]
  %v58 = vld [vmem:[%s1 + $0x30] sm:$0xff]
  %v59 = vld [vmem:[%s1 + $0x38] sm:$0xff]
  %v60 = vld [vmem:[%s1 + $0x40] sm:$0xff]
  %v61 = vld [vmem:[%s1 + $0x48] sm:$0xff]
  %v62 = vld [vmem:[%s1 + $0x50] sm:$0xff]
  %v63 = vld [vmem:[%s1 + $0x58] sm:$0xff]
  %v64 = vld [vmem:[%s1 + $0x60] sm:$0xff]
  %v65 = vld [vmem:[%s1 + $0x68] sm:$0xff]
  %v66 = vld [vmem:[%s1 + $0x70] sm:$0xff]
  %v67 = vld [vmem:[%s1 + $0x78] sm:$0xff]
  %v68 = vld [vmem:[%s1 + $0x80] sm:$0xff]
  %v69 = vld [vmem:[%s1 + $0x88] sm:$0xff]
  %v70 = vld [vmem:[%s1 + $0x90] sm:$0xff]
  %v71 = vld [vmem:[%s1 + $0x98] sm:$0xff]
  %v72 = vld [vmem:[%s1 + $0xa0] sm:$0xff]
  %v73 = vld [vmem:[%s1 + $0xa8] sm:$0xff]
  %v74 = vld [vmem:[%s1 + $0xb0] sm:$0xff]
  %v75 = vld [vmem:[%s1 + $0xb8] sm:$0xff]
  %v76 = vld [vmem:[%s1 + $0xc0] sm:$0xff]
  %v77 = vld [vmem:[%s1 + $0xc8] sm:$0xff]
  %v78 = vld [vmem:[%s1 + $0xd0] sm:$0xff]
  %v79 = vld [vmem:[%s1 + $0xd8] sm:$0xff]
  %v80 = vld [vmem:[%s1 + $0xe0] sm:$0xff]
  %v81 = vld [vmem:[%s1 + $0xe8] sm:$0xff]
  %v82 = vld [vmem:[%s1 + $0xf0] sm:$0xff]
  %v83 = vld [vmem:[%s1 + $0xf8] sm:$0xff]
  %v84 = vadd.f32 %v20, %v52
  %v85 = vadd.f32 %v21, %v53
  %v86 = vadd.f32 %v22, %v54
  %v87 = vadd.f32 %v23, %v55
  %v88 = vadd.f32 %v24, %v56
  %v89 = vadd.f32 %v25, %v57
  %v90 = vadd.f32 %v26, %v58
  %v91 = vadd.f32 %v27, %v59
  %v92 = vadd.f32 %v28, %v60
  %v93 = vadd.f32 %v29, %v61
  %v94 = vadd.f32 %v30, %v62
  %v95 = vadd.f32 %v31, %v63
  %v96 = vadd.f32 %v32, %v64
  %v97 = vadd.f32 %v33, %v65
  %v98 = vadd.f32 %v34, %v66
  %v99 = vadd.f32 %v35, %v67
  %v100 = vadd.f32 %v36, %v68
  %v101 = vadd.f32 %v37, %v69
  %v102 = vadd.f32 %v38, %v70
  %v103 = vadd.f32 %v39, %v71
  %v104 = vadd.f32 %v40, %v72
  %v105 = vadd.f32 %v41, %v73
  %v106 = vadd.f32 %v42, %v74
  %v107 = vadd.f32 %v43, %v75
  %v108 = vadd.f32 %v44, %v76
  %v109 = vadd.f32 %v45, %v77
  %v110 = vadd.f32 %v46, %v78
  %v111 = vadd.f32 %v47, %v79
  %v112 = vadd.f32 %v48, %v80
  %v113 = vadd.f32 %v49, %v81
  %v114 = vadd.f32 %v50, %v82
  %v115 = vadd.f32 %v51, %v83
  %v116 = vld [vmem:[%s2] sm:$0xff]
  %v117 = vld [vmem:[%s2 + $0x8] sm:$0xff]
  %v118 = vld [vmem:[%s2 + $0x10] sm:$0xff]
  %v119 = vld [vmem:[%s2 + $0x18] sm:$0xff]
  %v120 = vld [vmem:[%s2 + $0x20] sm:$0xff]
  %v121 = vld [vmem:[%s2 + $0x28] sm:$0xff]
  %v122 = vld [vmem:[%s2 + $0x30] sm:$0xff]
  %v123 = vld [vmem:[%s2 + $0x38] sm:$0xff]
  %v124 = vld [vmem:[%s2 + $0x40] sm:$0xff]
  %v125 = vld [vmem:[%s2 + $0x48] sm:$0xff]
  %v126 = vld [vmem:[%s2 + $0x50] sm:$0xff]
  %v127 = vld [vmem:[%s2 + $0x58] sm:$0xff]
  %v128 = vld [vmem:[%s2 + $0x60] sm:$0xff]
  %v129 = vld [vmem:[%s2 + $0x68] sm:$0xff]
  %v130 = vld [vmem:[%s2 + $0x70] sm:$0xff]
  %v131 = vld [vmem:[%s2 + $0x78] sm:$0xff]
  %v132 = vld [vmem:[%s2 + $0x80] sm:$0xff]
  %v133 = vld [vmem:[%s2 + $0x88] sm:$0xff]
  %v134 = vld [vmem:[%s2 + $0x90] sm:$0xff]
  %v135 = vld [vmem:[%s2 + $0x98] sm:$0xff]
  %v136 = vld [vmem:[%s2 + $0xa0] sm:$0xff]
  %v137 = vld [vmem:[%s2 + $0xa8] sm:$0xff]
  %v138 = vld [vmem:[%s2 + $0xb0] sm:$0xff]
  %v139 = vld [vmem:[%s2 + $0xb8] sm:$0xff]
  %v140 = vld [vmem:[%s2 + $0xc0] sm:$0xff]
  %v141 = vld [vmem:[%s2 + $0xc8] sm:$0xff]
  %v142 = vld [vmem:[%s2 + $0xd0] sm:$0xff]
  %v143 = vld [vmem:[%s2 + $0xd8] sm:$0xff]
  %v144 = vld [vmem:[%s2 + $0xe0] sm:$0xff]
  %v145 = vld [vmem:[%s2 + $0xe8] sm:$0xff]
  %v146 = vld [vmem:[%s2 + $0xf0] sm:$0xff]
  %v147 = vld [vmem:[%s2 + $0xf8] sm:$0xff]
  %v148 = vld [vmem:[%s2 + $0x100] sm:$0xff]
  %v149 = vld [vmem:[%s2 + $0x108] sm:$0xff]
  %v150 = vld [vmem:[%s2 + $0x110] sm:$0xff]
  %v151 = vld [vmem:[%s2 + $0x118] sm:$0xff]
  %v152 = vld [vmem:[%s2 + $0x120] sm:$0xff]
  %v153 = vld [vmem:[%s2 + $0x128] sm:$0xff]
  %v154 = vld [vmem:[%s2 + $0x130] sm:$0xff]
  %v155 = vld [vmem:[%s2 + $0x138] sm:$0xff]
  %v156 = vld [vmem:[%s2 + $0x140] sm:$0xff]
  %v157 = vld [vmem:[%s2 + $0x148] sm:$0xff]
  %v158 = vld [vmem:[%s2 + $0x150] sm:$0xff]
  %v159 = vld [vmem:[%s2 + $0x158] sm:$0xff]
  %v160 = vld [vmem:[%s2 + $0x160] sm:$0xff]
  %v161 = vld [vmem:[%s2 + $0x168] sm:$0xff]
  %v162 = vld [vmem:[%s2 + $0x170] sm:$0xff]
  %v163 = vld [vmem:[%s2 + $0x178] sm:$0xff]
  %v164 = vld [vmem:[%s2 + $0x180] sm:$0xff]
  %v165 = vld [vmem:[%s2 + $0x188] sm:$0xff]
  %v166 = vld [vmem:[%s2 + $0x190] sm:$0xff]
  %v167 = vld [vmem:[%s2 + $0x198] sm:$0xff]
  %v168 = vld [vmem:[%s2 + $0x1a0] sm:$0xff]
  %v169 = vld [vmem:[%s2 + $0x1a8] sm:$0xff]
  %v170 = vld [vmem:[%s2 + $0x1b0] sm:$0xff]
  %v171 = vld [vmem:[%s2 + $0x1b8] sm:$0xff]
  %v172 = vld [vmem:[%s2 + $0x1c0] sm:$0xff]
  %v173 = vld [vmem:[%s2 + $0x1c8] sm:$0xff]
  %v174 = vld [vmem:[%s2 + $0x1d0] sm:$0xff]
  %v175 = vld [vmem:[%s2 + $0x1d8] sm:$0xff]
  %v176 = vld [vmem:[%s2 + $0x1e0] sm:$0xff]
  %v177 = vld [vmem:[%s2 + $0x1e8] sm:$0xff]
  %v178 = vld [vmem:[%s2 + $0x1f0] sm:$0xff]
  %v179 = vld [vmem:[%s2 + $0x1f8] sm:$0xff]
  %v180 = vld [vmem:[%s2 + $0x200] sm:$0xff]
  %v181 = vld [vmem:[%s2 + $0x208] sm:$0xff]
  %v182 = vld [vmem:[%s2 + $0x210] sm:$0xff]
  %v183 = vld [vmem:[%s2 + $0x218] sm:$0xff]
  %v184 = vld [vmem:[%s2 + $0x220] sm:$0xff]
  %v185 = vld [vmem:[%s2 + $0x228] sm:$0xff]
  %v186 = vld [vmem:[%s2 + $0x230] sm:$0xff]
  %v187 = vld [vmem:[%s2 + $0x238] sm:$0xff]
  %v188 = vld [vmem:[%s2 + $0x240] sm:$0xff]
  %v189 = vld [vmem:[%s2 + $0x248] sm:$0xff]
  %v190 = vld [vmem:[%s2 + $0x250] sm:$0xff]
  %v191 = vld [vmem:[%s2 + $0x258] sm:$0xff]
  %v192 = vld [vmem:[%s2 + $0x260] sm:$0xff]
  %v193 = vld [vmem:[%s2 + $0x268] sm:$0xff]
  %v194 = vld [vmem:[%s2 + $0x270] sm:$0xff]
  %v195 = vld [vmem:[%s2 + $0x278] sm:$0xff]
  %v196 = vld [vmem:[%s2 + $0x280] sm:$0xff]
  %v197 = vld [vmem:[%s2 + $0x288] sm:$0xff]
  %v198 = vld [vmem:[%s2 + $0x290] sm:$0xff]
  %v199 = vld [vmem:[%s2 + $0x298] sm:$0xff]
  %v200 = vld [vmem:[%s2 + $0x2a0] sm:$0xff]
  %v201 = vld [vmem:[%s2 + $0x2a8] sm:$0xff]
  %v202 = vld [vmem:[%s2 + $0x2b0] sm:$0xff]
  %v203 = vld [vmem:[%s2 + $0x2b8] sm:$0xff]
  %v204 = vld [vmem:[%s2 + $0x2c0] sm:$0xff]
  %v205 = vld [vmem:[%s2 + $0x2c8] sm:$0xff]
  %v206 = vld [vmem:[%s2 + $0x2d0] sm:$0xff]
  %v207 = vld [vmem:[%s2 + $0x2d8] sm:$0xff]
  %v208 = vld [vmem:[%s2 + $0x2e0] sm:$0xff]
  %v209 = vld [vmem:[%s2 + $0x2e8] sm:$0xff]
  %v210 = vld [vmem:[%s2 + $0x2f0] sm:$0xff]
  %v211 = vld [vmem:[%s2 + $0x2f8] sm:$0xff]
  %v212 = vld [vmem:[%s2 + $0x300] sm:$0xff]
  %v213 = vld [vmem:[%s2 + $0x308] sm:$0xff]
  %v214 = vld [vmem:[%s2 + $0x310] sm:$0xff]
  %v215 = vld [vmem:[%s2 + $0x318] sm:$0xff]
  %v216 = vld [vmem:[%s2 + $0x320] sm:$0xff]
  %v217 = vld [vmem:[%s2 + $0x328] sm:$0xff]
  %v218 = vld [vmem:[%s2 + $0x330] sm:$0xff]
  %v219 = vld [vmem:[%s2 + $0x338] sm:$0xff]
  %v220 = vld [vmem:[%s2 + $0x340] sm:$0xff]
  %v221 = vld [vmem:[%s2 + $0x348] sm:$0xff]
  %v222 = vld [vmem:[%s2 + $0x350] sm:$0xff]
  %v223 = vld [vmem:[%s2 + $0x358] sm:$0xff]
  %v224 = vld [vmem:[%s2 + $0x360] sm:$0xff]
  %v225 = vld [vmem:[%s2 + $0x368] sm:$0xff]
  %v226 = vld [vmem:[%s2 + $0x370] sm:$0xff]
  %v227 = vld [vmem:[%s2 + $0x378] sm:$0xff]
  %v228 = vld [vmem:[%s2 + $0x380] sm:$0xff]
  %v229 = vld [vmem:[%s2 + $0x388] sm:$0xff]
  %v230 = vld [vmem:[%s2 + $0x390] sm:$0xff]
  %v231 = vld [vmem:[%s2 + $0x398] sm:$0xff]
  %v232 = vld [vmem:[%s2 + $0x3a0] sm:$0xff]
  %v233 = vld [vmem:[%s2 + $0x3a8] sm:$0xff]
  %v234 = vld [vmem:[%s2 + $0x3b0] sm:$0xff]
  %v235 = vld [vmem:[%s2 + $0x3b8] sm:$0xff]
  %v236 = vld [vmem:[%s2 + $0x3c0] sm:$0xff]
  %v237 = vld [vmem:[%s2 + $0x3c8] sm:$0xff]
  %v238 = vld [vmem:[%s2 + $0x3d0] sm:$0xff]
  %v239 = vld [vmem:[%s2 + $0x3d8] sm:$0xff]
  %v240 = vld [vmem:[%s2 + $0x3e0] sm:$0xff]
  %v241 = vld [vmem:[%s2 + $0x3e8] sm:$0xff]
  %v242 = vld [vmem:[%s2 + $0x3f0] sm:$0xff]
  %v243 = vld [vmem:[%s2 + $0x3f8] sm:$0xff]
  %v244 = vld [vmem:[%s2 + $0x400] sm:$0xff]
  %v245 = vld [vmem:[%s2 + $0x408] sm:$0xff]
  %v246 = vld [vmem:[%s2 + $0x410] sm:$0xff]
  %v247 = vld [vmem:[%s2 + $0x418] sm:$0xff]
  %v248 = vld [vmem:[%s2 + $0x420] sm:$0xff]
  %v249 = vld [vmem:[%s2 + $0x428] sm:$0xff]
  %v250 = vld [vmem:[%s2 + $0x430] sm:$0xff]
  %v251 = vld [vmem:[%s2 + $0x438] sm:$0xff]
  %v252 = vld [vmem:[%s2 + $0x440] sm:$0xff]
  %v253 = vld [vmem:[%s2 + $0x448] sm:$0xff]
  %v254 = vld [vmem:[%s2 + $0x450] sm:$0xff]
  %v255 = vld [vmem:[%s2 + $0x458] sm:$0xff]
  %v256 = vld [vmem:[%s2 + $0x460] sm:$0xff]
  %v257 = vld [vmem:[%s2 + $0x468] sm:$0xff]
  %v258 = vld [vmem:[%s2 + $0x470] sm:$0xff]
  %v259 = vld [vmem:[%s2 + $0x478] sm:$0xff]
  %v260 = vld [vmem:[%s2 + $0x480] sm:$0xff]
  %v261 = vld [vmem:[%s2 + $0x488] sm:$0xff]
  %v262 = vld [vmem:[%s2 + $0x490] sm:$0xff]
  %v263 = vld [vmem:[%s2 + $0x498] sm:$0xff]
  %v264 = vld [vmem:[%s2 + $0x4a0] sm:$0xff]
  %v265 = vld [vmem:[%s2 + $0x4a8] sm:$0xff]
  %v266 = vld [vmem:[%s2 + $0x4b0] sm:$0xff]
  %v267 = vld [vmem:[%s2 + $0x4b8] sm:$0xff]
  %v268 = vld [vmem:[%s2 + $0x4c0] sm:$0xff]
  %v269 = vld [vmem:[%s2 + $0x4c8] sm:$0xff]
  %v270 = vld [vmem:[%s2 + $0x4d0] sm:$0xff]
  %v271 = vld [vmem:[%s2 + $0x4d8] sm:$0xff]
  %v272 = vld [vmem:[%s2 + $0x4e0] sm:$0xff]
  %v273 = vld [vmem:[%s2 + $0x4e8] sm:$0xff]
  %v274 = vld [vmem:[%s2 + $0x4f0] sm:$0xff]
  %v275 = vld [vmem:[%s2 + $0x4f8] sm:$0xff]
  %v276 = vld [vmem:[%s2 + $0x500] sm:$0xff]
  %v277 = vld [vmem:[%s2 + $0x508] sm:$0xff]
  %v278 = vld [vmem:[%s2 + $0x510] sm:$0xff]
  %v279 = vld [vmem:[%s2 + $0x518] sm:$0xff]
  %v280 = vld [vmem:[%s2 + $0x520] sm:$0xff]
  %v281 = vld [vmem:[%s2 + $0x528] sm:$0xff]
  %v282 = vld [vmem:[%s2 + $0x530] sm:$0xff]
  %v283 = vld [vmem:[%s2 + $0x538] sm:$0xff]
  %v284 = vld [vmem:[%s2 + $0x540] sm:$0xff]
  %v285 = vld [vmem:[%s2 + $0x548] sm:$0xff]
  %v286 = vld [vmem:[%s2 + $0x550] sm:$0xff]
  %v287 = vld [vmem:[%s2 + $0x558] sm:$0xff]
  %v288 = vld [vmem:[%s2 + $0x560] sm:$0xff]
  %v289 = vld [vmem:[%s2 + $0x568] sm:$0xff]
  %v290 = vld [vmem:[%s2 + $0x570] sm:$0xff]
  %v291 = vld [vmem:[%s2 + $0x578] sm:$0xff]
  %v292 = vld [vmem:[%s2 + $0x580] sm:$0xff]
  %v293 = vld [vmem:[%s2 + $0x588] sm:$0xff]
  %v294 = vld [vmem:[%s2 + $0x590] sm:$0xff]
  %v295 = vld [vmem:[%s2 + $0x598] sm:$0xff]
  %v296 = vld [vmem:[%s2 + $0x5a0] sm:$0xff]
  %v297 = vld [vmem:[%s2 + $0x5a8] sm:$0xff]
  %v298 = vld [vmem:[%s2 + $0x5b0] sm:$0xff]
  %v299 = vld [vmem:[%s2 + $0x5b8] sm:$0xff]
  %v300 = vld [vmem:[%s2 + $0x5c0] sm:$0xff]
  %v301 = vld [vmem:[%s2 + $0x5c8] sm:$0xff]
  %v302 = vld [vmem:[%s2 + $0x5d0] sm:$0xff]
  %v303 = vld [vmem:[%s2 + $0x5d8] sm:$0xff]
  %v304 = vld [vmem:[%s2 + $0x5e0] sm:$0xff]
  %v305 = vld [vmem:[%s2 + $0x5e8] sm:$0xff]
  %v306 = vld [vmem:[%s2 + $0x5f0] sm:$0xff]
  %v307 = vld [vmem:[%s2 + $0x5f8] sm:$0xff]
  %v308 = vld [vmem:[%s2 + $0x600] sm:$0xff]
  %v309 = vld [vmem:[%s2 + $0x608] sm:$0xff]
  %v310 = vld [vmem:[%s2 + $0x610] sm:$0xff]
  %v311 = vld [vmem:[%s2 + $0x618] sm:$0xff]
  %v312 = vld [vmem:[%s2 + $0x620] sm:$0xff]
  %v313 = vld [vmem:[%s2 + $0x628] sm:$0xff]
  %v314 = vld [vmem:[%s2 + $0x630] sm:$0xff]
  %v315 = vld [vmem:[%s2 + $0x638] sm:$0xff]
  %v316 = vld [vmem:[%s2 + $0x640] sm:$0xff]
  %v317 = vld [vmem:[%s2 + $0x648] sm:$0xff]
  %v318 = vld [vmem:[%s2 + $0x650] sm:$0xff]
  %v319 = vld [vmem:[%s2 + $0x658] sm:$0xff]
  %v320 = vld [vmem:[%s2 + $0x660] sm:$0xff]
  %v321 = vld [vmem:[%s2 + $0x668] sm:$0xff]
  %v322 = vld [vmem:[%s2 + $0x670] sm:$0xff]
  %v323 = vld [vmem:[%s2 + $0x678] sm:$0xff]
  %v324 = vld [vmem:[%s2 + $0x680] sm:$0xff]
  %v325 = vld [vmem:[%s2 + $0x688] sm:$0xff]
  %v326 = vld [vmem:[%s2 + $0x690] sm:$0xff]
  %v327 = vld [vmem:[%s2 + $0x698] sm:$0xff]
  %v328 = vld [vmem:[%s2 + $0x6a0] sm:$0xff]
  %v329 = vld [vmem:[%s2 + $0x6a8] sm:$0xff]
  %v330 = vld [vmem:[%s2 + $0x6b0] sm:$0xff]
  %v331 = vld [vmem:[%s2 + $0x6b8] sm:$0xff]
  %v332 = vld [vmem:[%s2 + $0x6c0] sm:$0xff]
  %v333 = vld [vmem:[%s2 + $0x6c8] sm:$0xff]
  %v334 = vld [vmem:[%s2 + $0x6d0] sm:$0xff]
  %v335 = vld [vmem:[%s2 + $0x6d8] sm:$0xff]
  %v336 = vld [vmem:[%s2 + $0x6e0] sm:$0xff]
  %v337 = vld [vmem:[%s2 + $0x6e8] sm:$0xff]
  %v338 = vld [vmem:[%s2 + $0x6f0] sm:$0xff]
  %v339 = vld [vmem:[%s2 + $0x6f8] sm:$0xff]
  %v340 = vld [vmem:[%s2 + $0x700] sm:$0xff]
  %v341 = vld [vmem:[%s2 + $0x708] sm:$0xff]
  %v342 = vld [vmem:[%s2 + $0x710] sm:$0xff]
  %v343 = vld [vmem:[%s2 + $0x718] sm:$0xff]
  %v344 = vld [vmem:[%s2 + $0x720] sm:$0xff]
  %v345 = vld [vmem:[%s2 + $0x728] sm:$0xff]
  %v346 = vld [vmem:[%s2 + $0x730] sm:$0xff]
  %v347 = vld [vmem:[%s2 + $0x738] sm:$0xff]
  %v348 = vld [vmem:[%s2 + $0x740] sm:$0xff]
  %v349 = vld [vmem:[%s2 + $0x748] sm:$0xff]
  %v350 = vld [vmem:[%s2 + $0x750] sm:$0xff]
  %v351 = vld [vmem:[%s2 + $0x758] sm:$0xff]
  %v352 = vld [vmem:[%s2 + $0x760] sm:$0xff]
  %v353 = vld [vmem:[%s2 + $0x768] sm:$0xff]
  %v354 = vld [vmem:[%s2 + $0x770] sm:$0xff]
  %v355 = vld [vmem:[%s2 + $0x778] sm:$0xff]
  %v356 = vld [vmem:[%s2 + $0x780] sm:$0xff]
  %v357 = vld [vmem:[%s2 + $0x788] sm:$0xff]
  %v358 = vld [vmem:[%s2 + $0x790] sm:$0xff]
  %v359 = vld [vmem:[%s2 + $0x798] sm:$0xff]
  %v360 = vld [vmem:[%s2 + $0x7a0] sm:$0xff]
  %v361 = vld [vmem:[%s2 + $0x7a8] sm:$0xff]
  %v362 = vld [vmem:[%s2 + $0x7b0] sm:$0xff]
  %v363 = vld [vmem:[%s2 + $0x7b8] sm:$0xff]
  %v364 = vld [vmem:[%s2 + $0x7c0] sm:$0xff]
  %v365 = vld [vmem:[%s2 + $0x7c8] sm:$0xff]
  %v366 = vld [vmem:[%s2 + $0x7d0] sm:$0xff]
  %v367 = vld [vmem:[%s2 + $0x7d8] sm:$0xff]
  %v368 = vld [vmem:[%s2 + $0x7e0] sm:$0xff]
  %v369 = vld [vmem:[%s2 + $0x7e8] sm:$0xff]
  %v370 = vld [vmem:[%s2 + $0x7f0] sm:$0xff]
  %v371 = vld [vmem:[%s2 + $0x7f8] sm:$0xff]
  %v372 = vld [vmem:[%s2 + $0x800] sm:$0xff]
  %v373 = vld [vmem:[%s2 + $0x808] sm:$0xff]
  %v374 = vld [vmem:[%s2 + $0x810] sm:$0xff]
  %v375 = vld [vmem:[%s2 + $0x818] sm:$0xff]
  %v376 = vld [vmem:[%s2 + $0x820] sm:$0xff]
  %v377 = vld [vmem:[%s2 + $0x828] sm:$0xff]
  %v378 = vld [vmem:[%s2 + $0x830] sm:$0xff]
  %v379 = vld [vmem:[%s2 + $0x838] sm:$0xff]
  %v380 = vld [vmem:[%s2 + $0x840] sm:$0xff]
  %v381 = vld [vmem:[%s2 + $0x848] sm:$0xff]
  %v382 = vld [vmem:[%s2 + $0x850] sm:$0xff]
  %v383 = vld [vmem:[%s2 + $0x858] sm:$0xff]
  %v384 = vld [vmem:[%s2 + $0x860] sm:$0xff]
  %v385 = vld [vmem:[%s2 + $0x868] sm:$0xff]
  %v386 = vld [vmem:[%s2 + $0x870] sm:$0xff]
  %v387 = vld [vmem:[%s2 + $0x878] sm:$0xff]
  %v388 = vld [vmem:[%s2 + $0x880] sm:$0xff]
  %v389 = vld [vmem:[%s2 + $0x888] sm:$0xff]
  %v390 = vld [vmem:[%s2 + $0x890] sm:$0xff]
  %v391 = vld [vmem:[%s2 + $0x898] sm:$0xff]
  %v392 = vld [vmem:[%s2 + $0x8a0] sm:$0xff]
  %v393 = vld [vmem:[%s2 + $0x8a8] sm:$0xff]
  %v394 = vld [vmem:[%s2 + $0x8b0] sm:$0xff]
  %v395 = vld [vmem:[%s2 + $0x8b8] sm:$0xff]
  %v396 = vld [vmem:[%s2 + $0x8c0] sm:$0xff]
  %v397 = vld [vmem:[%s2 + $0x8c8] sm:$0xff]
  %v398 = vld [vmem:[%s2 + $0x8d0] sm:$0xff]
  %v399 = vld [vmem:[%s2 + $0x8d8] sm:$0xff]
  %v400 = vld [vmem:[%s2 + $0x8e0] sm:$0xff]
  %v401 = vld [vmem:[%s2 + $0x8e8] sm:$0xff]
  %v402 = vld [vmem:[%s2 + $0x8f0] sm:$0xff]
  %v403 = vld [vmem:[%s2 + $0x8f8] sm:$0xff]
  %v404 = vld [vmem:[%s2 + $0x900] sm:$0xff]
  %v405 = vld [vmem:[%s2 + $0x908] sm:$0xff]
  %v406 = vld [vmem:[%s2 + $0x910] sm:$0xff]
  %v407 = vld [vmem:[%s2 + $0x918] sm:$0xff]
  %v408 = vld [vmem:[%s2 + $0x920] sm:$0xff]
  %v409 = vld [vmem:[%s2 + $0x928] sm:$0xff]
  %v410 = vld [vmem:[%s2 + $0x930] sm:$0xff]
  %v411 = vld [vmem:[%s2 + $0x938] sm:$0xff]
  %v412 = vld [vmem:[%s2 + $0x940] sm:$0xff]
  %v413 = vld [vmem:[%s2 + $0x948] sm:$0xff]
  %v414 = vld [vmem:[%s2 + $0x950] sm:$0xff]
  %v415 = vld [vmem:[%s2 + $0x958] sm:$0xff]
  %v416 = vld [vmem:[%s2 + $0x960] sm:$0xff]
  %v417 = vld [vmem:[%s2 + $0x968] sm:$0xff]
  %v418 = vld [vmem:[%s2 + $0x970] sm:$0xff]
  %v419 = vld [vmem:[%s2 + $0x978] sm:$0xff]
  %v420 = vld [vmem:[%s2 + $0x980] sm:$0xff]
  %v421 = vld [vmem:[%s2 + $0x988] sm:$0xff]
  %v422 = vld [vmem:[%s2 + $0x990] sm:$0xff]
  %v423 = vld [vmem:[%s2 + $0x998] sm:$0xff]
  %v424 = vld [vmem:[%s2 + $0x9a0] sm:$0xff]
  %v425 = vld [vmem:[%s2 + $0x9a8] sm:$0xff]
  %v426 = vld [vmem:[%s2 + $0x9b0] sm:$0xff]
  %v427 = vld [vmem:[%s2 + $0x9b8] sm:$0xff]
  %v428 = vld [vmem:[%s2 + $0x9c0] sm:$0xff]
  %v429 = vld [vmem:[%s2 + $0x9c8] sm:$0xff]
  %v430 = vld [vmem:[%s2 + $0x9d0] sm:$0xff]
  %v431 = vld [vmem:[%s2 + $0x9d8] sm:$0xff]
  %v432 = vld [vmem:[%s2 + $0x9e0] sm:$0xff]
  %v433 = vld [vmem:[%s2 + $0x9e8] sm:$0xff]
  %v434 = vld [vmem:[%s2 + $0x9f0] sm:$0xff]
  %v435 = vld [vmem:[%s2 + $0x9f8] sm:$0xff]
  %v436 = vld [vmem:[%s2 + $0xa00] sm:$0xff]
  %v437 = vld [vmem:[%s2 + $0xa08] sm:$0xff]
  %v438 = vld [vmem:[%s2 + $0xa10] sm:$0xff]
  %v439 = vld [vmem:[%s2 + $0xa18] sm:$0xff]
  %v440 = vld [vmem:[%s2 + $0xa20] sm:$0xff]
  %v441 = vld [vmem:[%s2 + $0xa28] sm:$0xff]
  %v442 = vld [vmem:[%s2 + $0xa30] sm:$0xff]
  %v443 = vld [vmem:[%s2 + $0xa38] sm:$0xff]
  %v444 = vld [vmem:[%s2 + $0xa40] sm:$0xff]
  %v445 = vld [vmem:[%s2 + $0xa48] sm:$0xff]
  %v446 = vld [vmem:[%s2 + $0xa50] sm:$0xff]
  %v447 = vld [vmem:[%s2 + $0xa58] sm:$0xff]
  %v448 = vld [vmem:[%s2 + $0xa60] sm:$0xff]
  %v449 = vld [vmem:[%s2 + $0xa68] sm:$0xff]
  %v450 = vld [vmem:[%s2 + $0xa70] sm:$0xff]
  %v451 = vld [vmem:[%s2 + $0xa78] sm:$0xff]
  %v452 = vld [vmem:[%s2 + $0xa80] sm:$0xff]
  %v453 = vld [vmem:[%s2 + $0xa88] sm:$0xff]
  %v454 = vld [vmem:[%s2 + $0xa90] sm:$0xff]
  %v455 = vld [vmem:[%s2 + $0xa98] sm:$0xff]
  %v456 = vld [vmem:[%s2 + $0xaa0] sm:$0xff]
  %v457 = vld [vmem:[%s2 + $0xaa8] sm:$0xff]
  %v458 = vld [vmem:[%s2 + $0xab0] sm:$0xff]
  %v459 = vld [vmem:[%s2 + $0xab8] sm:$0xff]
  %v460 = vld [vmem:[%s2 + $0xac0] sm:$0xff]
  %v461 = vld [vmem:[%s2 + $0xac8] sm:$0xff]
  %v462 = vld [vmem:[%s2 + $0xad0] sm:$0xff]
  %v463 = vld [vmem:[%s2 + $0xad8] sm:$0xff]
  %v464 = vld [vmem:[%s2 + $0xae0] sm:$0xff]
  %v465 = vld [vmem:[%s2 + $0xae8] sm:$0xff]
  %v466 = vld [vmem:[%s2 + $0xaf0] sm:$0xff]
  %v467 = vld [vmem:[%s2 + $0xaf8] sm:$0xff]
  %v468 = vld [vmem:[%s2 + $0xb00] sm:$0xff]
  %v469 = vld [vmem:[%s2 + $0xb08] sm:$0xff]
  %v470 = vld [vmem:[%s2 + $0xb10] sm:$0xff]
  %v471 = vld [vmem:[%s2 + $0xb18] sm:$0xff]
  %v472 = vld [vmem:[%s2 + $0xb20] sm:$0xff]
  %v473 = vld [vmem:[%s2 + $0xb28] sm:$0xff]
  %v474 = vld [vmem:[%s2 + $0xb30] sm:$0xff]
  %v475 = vld [vmem:[%s2 + $0xb38] sm:$0xff]
  %v476 = vld [vmem:[%s2 + $0xb40] sm:$0xff]
  %v477 = vld [vmem:[%s2 + $0xb48] sm:$0xff]
  %v478 = vld [vmem:[%s2 + $0xb50] sm:$0xff]
  %v479 = vld [vmem:[%s2 + $0xb58] sm:$0xff]
  %v480 = vld [vmem:[%s2 + $0xb60] sm:$0xff]
  %v481 = vld [vmem:[%s2 + $0xb68] sm:$0xff]
  %v482 = vld [vmem:[%s2 + $0xb70] sm:$0xff]
  %v483 = vld [vmem:[%s2 + $0xb78] sm:$0xff]
  %v484 = vld [vmem:[%s2 + $0xb80] sm:$0xff]
  %v485 = vld [vmem:[%s2 + $0xb88] sm:$0xff]
  %v486 = vld [vmem:[%s2 + $0xb90] sm:$0xff]
  %v487 = vld [vmem:[%s2 + $0xb98] sm:$0xff]
  %v488 = vld [vmem:[%s2 + $0xba0] sm:$0xff]
  %v489 = vld [vmem:[%s2 + $0xba8] sm:$0xff]
  %v490 = vld [vmem:[%s2 + $0xbb0] sm:$0xff]
  %v491 = vld [vmem:[%s2 + $0xbb8] sm:$0xff]
  %v492 = vld [vmem:[%s2 + $0xbc0] sm:$0xff]
  %v493 = vld [vmem:[%s2 + $0xbc8] sm:$0xff]
  %v494 = vld [vmem:[%s2 + $0xbd0] sm:$0xff]
  %v495 = vld [vmem:[%s2 + $0xbd8] sm:$0xff]
  %v496 = vld [vmem:[%s2 + $0xbe0] sm:$0xff]
  %v497 = vld [vmem:[%s2 + $0xbe8] sm:$0xff]
  %v498 = vld [vmem:[%s2 + $0xbf0] sm:$0xff]
  %v499 = vld [vmem:[%s2 + $0xbf8] sm:$0xff]
  %500 = vmatprep.subr.mxu0 0.0
  %501 = vmatpush1.msra.mxu0 %v84
  %502 = vmatprep.subr.mxu0 0.0
  %503 = vmatpush1.msra.mxu0 %v85
  %504 = vmatprep.subr.mxu0 0.0
  %505 = vmatpush1.msra.mxu0 %v86
  %506 = vmatprep.subr.mxu0 0.0
  %507 = vmatpush1.msra.mxu0 %v87
  %508 = vmatprep.subr.mxu0 0.0
  %509 = vmatpush1.msra.mxu0 %v88
  %510 = vmatprep.subr.mxu0 0.0
  %511 = vmatpush1.msra.mxu0 %v89
  %512 = vmatprep.subr.mxu0 0.0
  %513 = vmatpush1.msra.mxu0 %v90
  %514 = vmatprep.subr.mxu0 0.0
  %515 = vmatpush1.msra.mxu0 %v91
  %516 = vmatprep.subr.mxu0 0.0
  %517 = vmatpush1.msra.mxu0 %v92
  %518 = vmatprep.subr.mxu0 0.0
  %519 = vmatpush1.msra.mxu0 %v93
  %520 = vmatprep.subr.mxu0 0.0
  %521 = vmatpush1.msra.mxu0 %v94
  %522 = vmatprep.subr.mxu0 0.0
  %523 = vmatpush1.msra.mxu0 %v95
  %524 = vmatprep.subr.mxu0 0.0
  %525 = vmatpush1.msra.mxu0 %v96
  %526 = vmatprep.subr.mxu0 0.0
  %527 = vmatpush1.msra.mxu0 %v97
  %528 = vmatprep.subr.mxu0 0.0
  %529 = vmatpush1.msra.mxu0 %v98
  %530 = vmatprep.subr.mxu0 0.0
  %531 = vmatpush1.msra.mxu0 %v99
  %532 = vmatprep.subr.mxu0 0.0
  %533 = vmatpush1.msra.mxu0 %v100
  %534 = vmatprep.subr.mxu0 0.0
  %535 = vmatpush1.msra.mxu0 %v101
  %536 = vmatprep.subr.mxu0 0.0
  %537 = vmatpush1.msra.mxu0 %v102
  %538 = vmatprep.subr.mxu0 0.0
  %539 = vmatpush1.msra.mxu0 %v103
  %540 = vmatprep.subr.mxu0 0.0
  %541 = vmatpush1.msra.mxu0 %v104
  %542 = vmatprep.subr.mxu0 0.0
  %543 = vmatpush1.msra.mxu0 %v105
  %544 = vmatprep.subr.mxu0 0.0
  %545 = vmatpush1.msra.mxu0 %v106
  %546 = vmatprep.subr.mxu0 0.0
  %547 = vmatpush1.msra.mxu0 %v107
  %548 = vmatprep.subr.mxu0 0.0
  %549 = vmatpush1.msra.mxu0 %v108
  %550 = vmatprep.subr.mxu0 0.0
  %551 = vmatpush1.msra.mxu0 %v109
  %552 = vmatprep.subr.mxu0 0.0
  %553 = vmatpush1.msra.mxu0 %v110
  %554 = vmatprep.subr.mxu0 0.0
  %555 = vmatpush1.msra.mxu0 %v111
  %556 = vmatprep.subr.mxu0 0.0
  %557 = vmatpush1.msra.mxu0 %v112
  %558 = vmatprep.subr.mxu0 0.0
  %559 = vmatpush1.msra.mxu0 %v113
  %560 = vmatprep.subr.mxu0 0.0
  %561 = vmatpush1.msra.mxu0 %v114
  %562 = vmatprep.subr.mxu0 0.0
  %563 = vmatpush1.msra.mxu0 %v115
  %564 = vmatprep.mubr.f32.mxu0 %v117
  %565 = vmatmul.mubr.f32.gmra.mrb[0].mxu0 %v116
  %v566 = vpop.f32.mrb[0].mxu0
  %v567 = vadd.f32 0.0, %v566
  %v568 = vpop.f32.mrb[0].mxu0
  %569 = vmatprep.mubr.f32.mxu0 %v119
  %570 = vmatmul.mubr.f32.gmra.mrb[0].mxu0 %v118
  %v571 = vpop.f32.mrb[0].mxu0
  %v572 = vadd.f32 0.0, %v571
  %v573 = vpop.f32.mrb[0].mxu0
  %574 = vmatprep.mubr.f32.mxu0 %v121
  %575 = vmatmul.mubr.f32.gmra.mrb[0].mxu0 %v120
  %v576 = vpop.f32.mrb[0].mxu0
  %v577 = vadd.f32 0.0, %v576
  %v578 = vpop.f32.mrb[0].mxu0
  %579 = vmatprep.mubr.f32.mxu0 %v123
  %580 = vmatmul.mubr.f32.gmra.mrb[0].mxu0 %v122
  %v581 = vpop.f32.mrb[0].mxu0
  %v582 = vadd.f32 0.0, %v581
  %v583 = vpop.f32.mrb[0].mxu0
  %584 = vmatprep.mubr.f32.mxu0 %v125
  %585 = vmatmul.mubr.f32.gmra.mrb[0].mxu0 %v124
  %v586 = vpop.f32.mrb[0].mxu0
  %v587 = vadd.f32 0.0, %v586
  %v588 = vpop.f32.mrb[0].mxu0
  %589 = vmatprep.mubr.f32.mxu0 %v127
  %590 = vmatmul.mubr.f32.gmra.mrb[0].mxu0 %v126
  %v591 = vpop.f32.mrb[0].mxu0
  %v592 = vadd.f32 0.0, %v591
  %v593 = vpop.f32.mrb[0].mxu0
  %594 = vmatprep.mubr.f32.mxu0 %v129
  %595 = vmatmul.mubr.f32.gmra.mrb[0].mxu0 %v128
  %v596 = vpop.f32.mrb[0].mxu0
  %v597 = vadd.f32 0.0, %v596
  %v598 = vpop.f32.mrb[0].mxu0
  %599 = vmatprep.mubr.f32.mxu0 %v131
  %600 = vmatmul.mubr.f32.gmra.mrb[0].mxu0 %v130
  %v601 = vpop.f32.mrb[0].mxu0
  %v602 = vadd.f32 0.0, %v601
  %v603 = vpop.f32.mrb[0].mxu0
  %604 = vmatprep.mubr.f32.mxu0 %v133
  %605 = vmatmul.mubr.f32.gmra.mrb[0].mxu0 %v132
  %v606 = vpop.f32.mrb[0].mxu0
  %v607 = vadd.f32 0.0, %v606
  %v608 = vpop.f32.mrb[0].mxu0
  %609 = vmatprep.mubr.f32.mxu0 %v135
  %610 = vmatmul.mubr.f32.gmra.mrb[0].mxu0 %v134
  %v611 = vpop.f32.mrb[0].mxu0
  %v612 = vadd.f32 0.0, %v611
  %v613 = vpop.f32.mrb[0].mxu0
  %614 = vmatprep.mubr.f32.mxu0 %v137
  %615 = vmatmul.mubr.f32.gmra.mrb[0].mxu0 %v136
  %v616 = vpop.f32.mrb[0].mxu0
  %v617 = vadd.f32 0.0, %v616
  %v618 = vpop.f32.mrb[0].mxu0
  %619 = vmatprep.mubr.f32.mxu0 %v139
  %620 = vmatmul.mubr.f32.gmra.mrb[0].mxu0 %v138
  %v621 = vpop.f32.mrb[0].mxu0
  %v622 = vadd.f32 0.0, %v621
  %v623 = vpop.f32.mrb[0].mxu0
  %624 = vmatprep.mubr.f32.mxu0 %v141
  %625 = vmatmul.mubr.f32.gmra.mrb[0].mxu0 %v140
  %v626 = vpop.f32.mrb[0].mxu0
  %v627 = vadd.f32 0.0, %v626
  %v628 = vpop.f32.mrb[0].mxu0
  %629 = vmatprep.mubr.f32.mxu0 %v143
  %630 = vmatmul.mubr.f32.gmra.mrb[0].mxu0 %v142
  %v631 = vpop.f32.mrb[0].mxu0
  %v632 = vadd.f32 0.0, %v631
  %v633 = vpop.f32.mrb[0].mxu0
  %634 = vmatprep.mubr.f32.mxu0 %v145
  %635 = vmatmul.mubr.f32.gmra.mrb[0].mxu0 %v144
  %v636 = vpop.f32.mrb[0].mxu0
  %v637 = vadd.f32 0.0, %v636
  %v638 = vpop.f32.mrb[0].mxu0
  %639 = vmatprep.mubr.f32.mxu0 %v147
  %640 = vmatmul.mubr.f32.gmra.mrb[0].mxu0 %v146
  %v641 = vpop.f32.mrb[0].mxu0
  %v642 = vadd.f32 0.0, %v641
  %v643 = vpop.f32.mrb[0].mxu0
  %644 = vmatprep.mubr.f32.mxu0 %v149
  %645 = vmatmul.mubr.f32.gmra.mrb[0].mxu0 %v148
  %v646 = vpop.f32.mrb[0].mxu0
  %v647 = vadd.f32 0.0, %v646
  %v648 = vpop.f32.mrb[0].mxu0
  %649 = vmatprep.mubr.f32.mxu0 %v151
  %650 = vmatmul.mubr.f32.gmra.mrb[0].mxu0 %v150
  %v651 = vpop.f32.mrb[0].mxu0
  %v652 = vadd.f32 0.0, %v651
  %v653 = vpop.f32.mrb[0].mxu0
  %654 = vmatprep.mubr.f32.mxu0 %v153
  %655 = vmatmul.mubr.f32.gmra.mrb[0].mxu0 %v152
  %v656 = vpop.f32.mrb[0].mxu0
  %v657 = vadd.f32 0.0, %v656
  %v658 = vpop.f32.mrb[0].mxu0
  %659 = vmatprep.mubr.f32.mxu0 %v155
  %660 = vmatmul.mubr.f32.gmra.mrb[0].mxu0 %v154
  %v661 = vpop.f32.mrb[0].mxu0
  %v662 = vadd.f32 0.0, %v661
  %v663 = vpop.f32.mrb[0].mxu0
  %664 = vmatprep.mubr.f32.mxu0 %v157
  %665 = vmatmul.mubr.f32.gmra.mrb[0].mxu0 %v156
  %v666 = vpop.f32.mrb[0].mxu0
  %v667 = vadd.f32 0.0, %v666
  %v668 = vpop.f32.mrb[0].mxu0
  %669 = vmatprep.mubr.f32.mxu0 %v159
  %670 = vmatmul.mubr.f32.gmra.mrb[0].mxu0 %v158
  %v671 = vpop.f32.mrb[0].mxu0
  %v672 = vadd.f32 0.0, %v671
  %v673 = vpop.f32.mrb[0].mxu0
  %674 = vmatprep.mubr.f32.mxu0 %v161
  %675 = vmatmul.mubr.f32.gmra.mrb[0].mxu0 %v160
  %v676 = vpop.f32.mrb[0].mxu0
  %v677 = vadd.f32 0.0, %v676
  %v678 = vpop.f32.mrb[0].mxu0
  %679 = vmatprep.mubr.f32.mxu0 %v163
  %680 = vmatmul.mubr.f32.gmra.mrb[0].mxu0 %v162
  %v681 = vpop.f32.mrb[0].mxu0
  %v682 = vadd.f32 0.0, %v681
  %v683 = vpop.f32.mrb[0].mxu0
  %684 = vmatprep.mubr.f32.mxu0 %v165
  %685 = vmatmul.mubr.f32.gmra.mrb[0].mxu0 %v164
  %v686 = vpop.f32.mrb[0].mxu0
  %v687 = vadd.f32 0.0, %v686
  %v688 = vpop.f32.mrb[0].mxu0
  %689 = vmatprep.mubr.f32.mxu0 %v167
  %690 = vmatmul.mubr.f32.gmra.mrb[0].mxu0 %v166
  %v691 = vpop.f32.mrb[0].mxu0
  %v692 = vadd.f32 0.0, %v691
  %v693 = vpop.f32.mrb[0].mxu0
  %694 = vmatprep.mubr.f32.mxu0 %v169
  %695 = vmatmul.mubr.f32.gmra.mrb[0].mxu0 %v168
  %v696 = vpop.f32.mrb[0].mxu0
  %v697 = vadd.f32 0.0, %v696
  %v698 = vpop.f32.mrb[0].mxu0
  %699 = vmatprep.mubr.f32.mxu0 %v171
  %700 = vmatmul.mubr.f32.gmra.mrb[0].mxu0 %v170
  %v701 = vpop.f32.mrb[0].mxu0
  %v702 = vadd.f32 0.0, %v701
  %v703 = vpop.f32.mrb[0].mxu0
  %704 = vmatprep.mubr.f32.mxu0 %v173
  %705 = vmatmul.mubr.f32.gmra.mrb[0].mxu0 %v172
  %v706 = vpop.f32.mrb[0].mxu0
  %v707 = vadd.f32 0.0, %v706
  %v708 = vpop.f32.mrb[0].mxu0
  %709 = vmatprep.mubr.f32.mxu0 %v175
  %710 = vmatmul.mubr.f32.gmra.mrb[0].mxu0 %v174
  %v711 = vpop.f32.mrb[0].mxu0
  %v712 = vadd.f32 0.0, %v711
  %v713 = vpop.f32.mrb[0].mxu0
  %714 = vmatprep.mubr.f32.mxu0 %v177
  %715 = vmatmul.mubr.f32.gmra.mrb[0].mxu0 %v176
  %v716 = vpop.f32.mrb[0].mxu0
  %v717 = vadd.f32 0.0, %v716
  %v718 = vpop.f32.mrb[0].mxu0
  %719 = vmatprep.mubr.f32.mxu0 %v179
  %720 = vmatmul.mubr.f32.gmra.mrb[0].mxu0 %v178
  %v721 = vpop.f32.mrb[0].mxu0
  %v722 = vadd.f32 0.0, %v721
  %v723 = vpop.f32.mrb[0].mxu0
  %724 = vmatprep.mubr.f32.mxu0 %v181
  %725 = vmatmul.mubr.f32.gmra.mrb[0].mxu0 %v180
  %v726 = vpop.f32.mrb[0].mxu0
  %v727 = vadd.f32 0.0, %v726
  %v728 = vpop.f32.mrb[0].mxu0
  %729 = vmatprep.mubr.f32.mxu0 %v183
  %730 = vmatmul.mubr.f32.gmra.mrb[0].mxu0 %v182
  %v731 = vpop.f32.mrb[0].mxu0
  %v732 = vadd.f32 0.0, %v731
  %v733 = vpop.f32.mrb[0].mxu0
  %734 = vmatprep.mubr.f32.mxu0 %v185
  %735 = vmatmul.mubr.f32.gmra.mrb[0].mxu0 %v184
  %v736 = vpop.f32.mrb[0].mxu0
  %v737 = vadd.f32 0.0, %v736
  %v738 = vpop.f32.mrb[0].mxu0
  %739 = vmatprep.mubr.f32.mxu0 %v187
  %740 = vmatmul.mubr.f32.gmra.mrb[0].mxu0 %v186
  %v741 = vpop.f32.mrb[0].mxu0
  %v742 = vadd.f32 0.0, %v741
  %v743 = vpop.f32.mrb[0].mxu0
  %744 = vmatprep.mubr.f32.mxu0 %v189
  %745 = vmatmul.mubr.f32.gmra.mrb[0].mxu0 %v188
  %v746 = vpop.f32.mrb[0].mxu0
  %v747 = vadd.f32 0.0, %v746
  %v748 = vpop.f32.mrb[0].mxu0
  %749 = vmatprep.mubr.f32.mxu0 %v191
  %750 = vmatmul.mubr.f32.gmra.mrb[0].mxu0 %v190
  %v751 = vpop.f32.mrb[0].mxu0
  %v752 = vadd.f32 0.0, %v751
  %v753 = vpop.f32.mrb[0].mxu0
  %754 = vmatprep.mubr.f32.mxu0 %v193
  %755 = vmatmul.mubr.f32.gmra.mrb[0].mxu0 %v192
  %v756 = vpop.f32.mrb[0].mxu0
  %v757 = vadd.f32 0.0, %v756
  %v758 = vpop.f32.mrb[0].mxu0
  %759 = vmatprep.mubr.f32.mxu0 %v195
  %760 = vmatmul.mubr.f32.gmra.mrb[0].mxu0 %v194
  %v761 = vpop.f32.mrb[0].mxu0
  %v762 = vadd.f32 0.0, %v761
  %v763 = vpop.f32.mrb[0].mxu0
  %764 = vmatprep.mubr.f32.mxu0 %v197
  %765 = vmatmul.mubr.f32.gmra.mrb[0].mxu0 %v196
  %v766 = vpop.f32.mrb[0].mxu0
  %v767 = vadd.f32 0.0, %v766
  %v768 = vpop.f32.mrb[0].mxu0
  %769 = vmatprep.mubr.f32.mxu0 %v199
  %770 = vmatmul.mubr.f32.gmra.mrb[0].mxu0 %v198
  %v771 = vpop.f32.mrb[0].mxu0
  %v772 = vadd.f32 0.0, %v771
  %v773 = vpop.f32.mrb[0].mxu0
  %774 = vmatprep.mubr.f32.mxu0 %v201
  %775 = vmatmul.mubr.f32.gmra.mrb[0].mxu0 %v200
  %v776 = vpop.f32.mrb[0].mxu0
  %v777 = vadd.f32 0.0, %v776
  %v778 = vpop.f32.mrb[0].mxu0
  %779 = vmatprep.mubr.f32.mxu0 %v203
  %780 = vmatmul.mubr.f32.gmra.mrb[0].mxu0 %v202
  %v781 = vpop.f32.mrb[0].mxu0
  %v782 = vadd.f32 0.0, %v781
  %v783 = vpop.f32.mrb[0].mxu0
  %784 = vmatprep.mubr.f32.mxu0 %v205
  %785 = vmatmul.mubr.f32.gmra.mrb[0].mxu0 %v204
  %v786 = vpop.f32.mrb[0].mxu0
  %v787 = vadd.f32 0.0, %v786
  %v788 = vpop.f32.mrb[0].mxu0
  %789 = vmatprep.mubr.f32.mxu0 %v207
  %790 = vmatmul.mubr.f32.gmra.mrb[0].mxu0 %v206
  %v791 = vpop.f32.mrb[0].mxu0
  %v792 = vadd.f32 0.0, %v791
  %v793 = vpop.f32.mrb[0].mxu0
  %794 = vmatprep.mubr.f32.mxu0 %v209
  %795 = vmatmul.mubr.f32.gmra.mrb[0].mxu0 %v208
  %v796 = vpop.f32.mrb[0].mxu0
  %v797 = vadd.f32 0.0, %v796
  %v798 = vpop.f32.mrb[0].mxu0
  %799 = vmatprep.mubr.f32.mxu0 %v211
  %800 = vmatmul.mubr.f32.gmra.mrb[0].mxu0 %v210
  %v801 = vpop.f32.mrb[0].mxu0
  %v802 = vadd.f32 0.0, %v801
  %v803 = vpop.f32.mrb[0].mxu0
  %804 = vmatprep.mubr.f32.mxu0 %v213
  %805 = vmatmul.mubr.f32.gmra.mrb[0].mxu0 %v212
  %v806 = vpop.f32.mrb[0].mxu0
  %v807 = vadd.f32 0.0, %v806
  %v808 = vpop.f32.mrb[0].mxu0
  %809 = vmatprep.mubr.f32.mxu0 %v215
  %810 = vmatmul.mubr.f32.gmra.mrb[0].mxu0 %v214
  %v811 = vpop.f32.mrb[0].mxu0
  %v812 = vadd.f32 0.0, %v811
  %v813 = vpop.f32.mrb[0].mxu0
  %814 = vmatprep.mubr.f32.mxu0 %v217
  %815 = vmatmul.mubr.f32.gmra.mrb[0].mxu0 %v216
  %v816 = vpop.f32.mrb[0].mxu0
  %v817 = vadd.f32 0.0, %v816
  %v818 = vpop.f32.mrb[0].mxu0
  %819 = vmatprep.mubr.f32.mxu0 %v219
  %820 = vmatmul.mubr.f32.gmra.mrb[0].mxu0 %v218
  %v821 = vpop.f32.mrb[0].mxu0
  %v822 = vadd.f32 0.0, %v821
  %v823 = vpop.f32.mrb[0].mxu0
  %824 = vmatprep.mubr.f32.mxu0 %v221
  %825 = vmatmul.mubr.f32.gmra.mrb[0].mxu0 %v220
  %v826 = vpop.f32.mrb[0].mxu0
  %v827 = vadd.f32 0.0, %v826
  %v828 = vpop.f32.mrb[0].mxu0
  %829 = vmatprep.mubr.f32.mxu0 %v223
  %830 = vmatmul.mubr.f32.gmra.mrb[0].mxu0 %v222
  %v831 = vpop.f32.mrb[0].mxu0
  %v832 = vadd.f32 0.0, %v831
  %v833 = vpop.f32.mrb[0].mxu0
  %834 = vmatprep.mubr.f32.mxu0 %v225
  %835 = vmatmul.mubr.f32.gmra.mrb[0].mxu0 %v224
  %v836 = vpop.f32.mrb[0].mxu0
  %v837 = vadd.f32 0.0, %v836
  %v838 = vpop.f32.mrb[0].mxu0
  %839 = vmatprep.mubr.f32.mxu0 %v227
  %840 = vmatmul.mubr.f32.gmra.mrb[0].mxu0 %v226
  %v841 = vpop.f32.mrb[0].mxu0
  %v842 = vadd.f32 0.0, %v841
  %v843 = vpop.f32.mrb[0].mxu0
  %844 = vmatprep.mubr.f32.mxu0 %v229
  %845 = vmatmul.mubr.f32.gmra.mrb[0].mxu0 %v228
  %v846 = vpop.f32.mrb[0].mxu0
  %v847 = vadd.f32 0.0, %v846
  %v848 = vpop.f32.mrb[0].mxu0
  %849 = vmatprep.mubr.f32.mxu0 %v231
  %850 = vmatmul.mubr.f32.gmra.mrb[0].mxu0 %v230
  %v851 = vpop.f32.mrb[0].mxu0
  %v852 = vadd.f32 0.0, %v851
  %v853 = vpop.f32.mrb[0].mxu0
  %854 = vmatprep.mubr.f32.mxu0 %v233
  %855 = vmatmul.mubr.f32.gmra.mrb[0].mxu0 %v232
  %v856 = vpop.f32.mrb[0].mxu0
  %v857 = vadd.f32 0.0, %v856
  %v858 = vpop.f32.mrb[0].mxu0
  %859 = vmatprep.mubr.f32.mxu0 %v235
  %860 = vmatmul.mubr.f32.gmra.mrb[0].mxu0 %v234
  %v861 = vpop.f32.mrb[0].mxu0
  %v862 = vadd.f32 0.0, %v861
  %v863 = vpop.f32.mrb[0].mxu0
  %864 = vmatprep.mubr.f32.mxu0 %v237
  %865 = vmatmul.mubr.f32.gmra.mrb[0].mxu0 %v236
  %v866 = vpop.f32.mrb[0].mxu0
  %v867 = vadd.f32 0.0, %v866
  %v868 = vpop.f32.mrb[0].mxu0
  %869 = vmatprep.mubr.f32.mxu0 %v239
  %870 = vmatmul.mubr.f32.gmra.mrb[0].mxu0 %v238
  %v871 = vpop.f32.mrb[0].mxu0
  %v872 = vadd.f32 0.0, %v871
  %v873 = vpop.f32.mrb[0].mxu0
  %874 = vmatprep.mubr.f32.mxu0 %v241
  %875 = vmatmul.mubr.f32.gmra.mrb[0].mxu0 %v240
  %v876 = vpop.f32.mrb[0].mxu0
  %v877 = vadd.f32 0.0, %v876
  %v878 = vpop.f32.mrb[0].mxu0
  %879 = vmatprep.mubr.f32.mxu0 %v243
  %880 = vmatmul.mubr.f32.gmra.mrb[0].mxu0 %v242
  %v881 = vpop.f32.mrb[0].mxu0
  %v882 = vadd.f32 0.0, %v881
  %v883 = vpop.f32.mrb[0].mxu0
  %884 = vmatprep.mubr.f32.mxu0 %v245
  %885 = vmatmul.mubr.f32.gmra.mrb[0].mxu0 %v244
  %v886 = vpop.f32.mrb[0].mxu0
  %v887 = vadd.f32 0.0, %v886
  %v888 = vpop.f32.mrb[0].mxu0
  %889 = vmatprep.mubr.f32.mxu0 %v247
  %890 = vmatmul.mubr.f32.gmra.mrb[0].mxu0 %v246
  %v891 = vpop.f32.mrb[0].mxu0
  %v892 = vadd.f32 0.0, %v891
  %v893 = vpop.f32.mrb[0].mxu0
  %894 = vmatprep.mubr.f32.mxu0 %v249
  %895 = vmatmul.mubr.f32.gmra.mrb[0].mxu0 %v248
  %v896 = vpop.f32.mrb[0].mxu0
  %v897 = vadd.f32 0.0, %v896
  %v898 = vpop.f32.mrb[0].mxu0
  %899 = vmatprep.mubr.f32.mxu0 %v251
  %900 = vmatmul.mubr.f32.gmra.mrb[0].mxu0 %v250
  %v901 = vpop.f32.mrb[0].mxu0
  %v902 = vadd.f32 0.0, %v901
  %v903 = vpop.f32.mrb[0].mxu0
  %904 = vmatprep.mubr.f32.mxu0 %v253
  %905 = vmatmul.mubr.f32.gmra.mrb[0].mxu0 %v252
  %v906 = vpop.f32.mrb[0].mxu0
  %v907 = vadd.f32 0.0, %v906
  %v908 = vpop.f32.mrb[0].mxu0
  %909 = vmatprep.mubr.f32.mxu0 %v255
  %910 = vmatmul.mubr.f32.gmra.mrb[0].mxu0 %v254
  %v911 = vpop.f32.mrb[0].mxu0
  %v912 = vadd.f32 0.0, %v911
  %v913 = vpop.f32.mrb[0].mxu0
  %914 = vmatprep.mubr.f32.mxu0 %v257
  %915 = vmatmul.mubr.f32.gmra.mrb[0].mxu0 %v256
  %v916 = vpop.f32.mrb[0].mxu0
  %v917 = vadd.f32 0.0, %v916
  %v918 = vpop.f32.mrb[0].mxu0
  %919 = vmatprep.mubr.f32.mxu0 %v259
  %920 = vmatmul.mubr.f32.gmra.mrb[0].mxu0 %v258
  %v921 = vpop.f32.mrb[0].mxu0
  %v922 = vadd.f32 0.0, %v921
  %v923 = vpop.f32.mrb[0].mxu0
  %924 = vmatprep.mubr.f32.mxu0 %v261
  %925 = vmatmul.mubr.f32.gmra.mrb[0].mxu0 %v260
  %v926 = vpop.f32.mrb[0].mxu0
  %v927 = vadd.f32 0.0, %v926
  %v928 = vpop.f32.mrb[0].mxu0
  %929 = vmatprep.mubr.f32.mxu0 %v263
  %930 = vmatmul.mubr.f32.gmra.mrb[0].mxu0 %v262
  %v931 = vpop.f32.mrb[0].mxu0
  %v932 = vadd.f32 0.0, %v931
  %v933 = vpop.f32.mrb[0].mxu0
  %934 = vmatprep.mubr.f32.mxu0 %v265
  %935 = vmatmul.mubr.f32.gmra.mrb[0].mxu0 %v264
  %v936 = vpop.f32.mrb[0].mxu0
  %v937 = vadd.f32 0.0, %v936
  %v938 = vpop.f32.mrb[0].mxu0
  %939 = vmatprep.mubr.f32.mxu0 %v267
  %940 = vmatmul.mubr.f32.gmra.mrb[0].mxu0 %v266
  %v941 = vpop.f32.mrb[0].mxu0
  %v942 = vadd.f32 0.0, %v941
  %v943 = vpop.f32.mrb[0].mxu0
  %944 = vmatprep.mubr.f32.mxu0 %v269
  %945 = vmatmul.mubr.f32.gmra.mrb[0].mxu0 %v268
  %v946 = vpop.f32.mrb[0].mxu0
  %v947 = vadd.f32 0.0, %v946
  %v948 = vpop.f32.mrb[0].mxu0
  %949 = vmatprep.mubr.f32.mxu0 %v271
  %950 = vmatmul.mubr.f32.gmra.mrb[0].mxu0 %v270
  %v951 = vpop.f32.mrb[0].mxu0
  %v952 = vadd.f32 0.0, %v951
  %v953 = vpop.f32.mrb[0].mxu0
  %954 = vmatprep.mubr.f32.mxu0 %v273
  %955 = vmatmul.mubr.f32.gmra.mrb[0].mxu0 %v272
  %v956 = vpop.f32.mrb[0].mxu0
  %v957 = vadd.f32 0.0, %v956
  %v958 = vpop.f32.mrb[0].mxu0
  %959 = vmatprep.mubr.f32.mxu0 %v275
  %960 = vmatmul.mubr.f32.gmra.mrb[0].mxu0 %v274
  %v961 = vpop.f32.mrb[0].mxu0
  %v962 = vadd.f32 0.0, %v961
  %v963 = vpop.f32.mrb[0].mxu0
  %964 = vmatprep.mubr.f32.mxu0 %v277
  %965 = vmatmul.mubr.f32.gmra.mrb[0].mxu0 %v276
  %v966 = vpop.f32.mrb[0].mxu0
  %v967 = vadd.f32 0.0, %v966
  %v968 = vpop.f32.mrb[0].mxu0
  %969 = vmatprep.mubr.f32.mxu0 %v279
  %970 = vmatmul.mubr.f32.gmra.mrb[0].mxu0 %v278
  %v971 = vpop.f32.mrb[0].mxu0
  %v972 = vadd.f32 0.0, %v971
  %v973 = vpop.f32.mrb[0].mxu0
  %974 = vmatprep.mubr.f32.mxu0 %v281
  %975 = vmatmul.mubr.f32.gmra.mrb[0].mxu0 %v280
  %v976 = vpop.f32.mrb[0].mxu0
  %v977 = vadd.f32 0.0, %v976
  %v978 = vpop.f32.mrb[0].mxu0
  %979 = vmatprep.mubr.f32.mxu0 %v283
  %980 = vmatmul.mubr.f32.gmra.mrb[0].mxu0 %v282
  %v981 = vpop.f32.mrb[0].mxu0
  %v982 = vadd.f32 0.0, %v981
  %v983 = vpop.f32.mrb[0].mxu0
  %984 = vmatprep.mubr.f32.mxu0 %v285
  %985 = vmatmul.mubr.f32.gmra.mrb[0].mxu0 %v284
  %v986 = vpop.f32.mrb[0].mxu0
  %v987 = vadd.f32 0.0, %v986
  %v988 = vpop.f32.mrb[0].mxu0
  %989 = vmatprep.mubr.f32.mxu0 %v287
  %990 = vmatmul.mubr.f32.gmra.mrb[0].mxu0 %v286
  %v991 = vpop.f32.mrb[0].mxu0
  %v992 = vadd.f32 0.0, %v991
  %v993 = vpop.f32.mrb[0].mxu0
  %994 = vmatprep.mubr.f32.mxu0 %v289
  %995 = vmatmul.mubr.f32.gmra.mrb[0].mxu0 %v288
  %v996 = vpop.f32.mrb[0].mxu0
  %v997 = vadd.f32 0.0, %v996
  %v998 = vpop.f32.mrb[0].mxu0
  %999 = vmatprep.mubr.f32.mxu0 %v291
  %1000 = vmatmul.mubr.f32.gmra.mrb[0].mxu0 %v290
  %v1001 = vpop.f32.mrb[0].mxu0
  %v1002 = vadd.f32 0.0, %v1001
  %v1003 = vpop.f32.mrb[0].mxu0
  %1004 = vmatprep.mubr.f32.mxu0 %v293
  %1005 = vmatmul.mubr.f32.gmra.mrb[0].mxu0 %v292
  %v1006 = vpop.f32.mrb[0].mxu0
  %v1007 = vadd.f32 0.0, %v1006
  %v1008 = vpop.f32.mrb[0].mxu0
  %1009 = vmatprep.mubr.f32.mxu0 %v295
  %1010 = vmatmul.mubr.f32.gmra.mrb[0].mxu0 %v294
  %v1011 = vpop.f32.mrb[0].mxu0
  %v1012 = vadd.f32 0.0, %v1011
  %v1013 = vpop.f32.mrb[0].mxu0
  %1014 = vmatprep.mubr.f32.mxu0 %v297
  %1015 = vmatmul.mubr.f32.gmra.mrb[0].mxu0 %v296
  %v1016 = vpop.f32.mrb[0].mxu0
  %v1017 = vadd.f32 0.0, %v1016
  %v1018 = vpop.f32.mrb[0].mxu0
  %1019 = vmatprep.mubr.f32.mxu0 %v299
  %1020 = vmatmul.mubr.f32.gmra.mrb[0].mxu0 %v298
  %v1021 = vpop.f32.mrb[0].mxu0
  %v1022 = vadd.f32 0.0, %v1021
  %v1023 = vpop.f32.mrb[0].mxu0
  %1024 = vmatprep.mubr.f32.mxu0 %v301
  %1025 = vmatmul.mubr.f32.gmra.mrb[0].mxu0 %v300
  %v1026 = vpop.f32.mrb[0].mxu0
  %v1027 = vadd.f32 0.0, %v1026
  %v1028 = vpop.f32.mrb[0].mxu0
  %1029 = vmatprep.mubr.f32.mxu0 %v303
  %1030 = vmatmul.mubr.f32.gmra.mrb[0].mxu0 %v302
  %v1031 = vpop.f32.mrb[0].mxu0
  %v1032 = vadd.f32 0.0, %v1031
  %v1033 = vpop.f32.mrb[0].mxu0
  %1034 = vmatprep.mubr.f32.mxu0 %v305
  %1035 = vmatmul.mubr.f32.gmra.mrb[0].mxu0 %v304
  %v1036 = vpop.f32.mrb[0].mxu0
  %v1037 = vadd.f32 0.0, %v1036
  %v1038 = vpop.f32.mrb[0].mxu0
  %1039 = vmatprep.mubr.f32.mxu0 %v307
  %1040 = vmatmul.mubr.f32.gmra.mrb[0].mxu0 %v306
  %v1041 = vpop.f32.mrb[0].mxu0
  %v1042 = vadd.f32 0.0, %v1041
  %v1043 = vpop.f32.mrb[0].mxu0
  %1044 = vmatprep.mubr.f32.mxu0 %v309
  %1045 = vmatmul.mubr.f32.gmra.mrb[0].mxu0 %v308
  %v1046 = vpop.f32.mrb[0].mxu0
  %v1047 = vadd.f32 0.0, %v1046
  %v1048 = vpop.f32.mrb[0].mxu0
  %1049 = vmatprep.mubr.f32.mxu0 %v311
  %1050 = vmatmul.mubr.f32.gmra.mrb[0].mxu0 %v310
  %v1051 = vpop.f32.mrb[0].mxu0
  %v1052 = vadd.f32 0.0, %v1051
  %v1053 = vpop.f32.mrb[0].mxu0
  %1054 = vmatprep.mubr.f32.mxu0 %v313
  %1055 = vmatmul.mubr.f32.gmra.mrb[0].mxu0 %v312
  %v1056 = vpop.f32.mrb[0].mxu0
  %v1057 = vadd.f32 0.0, %v1056
  %v1058 = vpop.f32.mrb[0].mxu0
  %1059 = vmatprep.mubr.f32.mxu0 %v315
  %1060 = vmatmul.mubr.f32.gmra.mrb[0].mxu0 %v314
  %v1061 = vpop.f32.mrb[0].mxu0
  %v1062 = vadd.f32 0.0, %v1061
  %v1063 = vpop.f32.mrb[0].mxu0
  %1064 = vmatprep.mubr.f32.mxu0 %v317
  %1065 = vmatmul.mubr.f32.gmra.mrb[0].mxu0 %v316
  %v1066 = vpop.f32.mrb[0].mxu0
  %v1067 = vadd.f32 0.0, %v1066
  %v1068 = vpop.f32.mrb[0].mxu0
  %1069 = vmatprep.mubr.f32.mxu0 %v319
  %1070 = vmatmul.mubr.f32.gmra.mrb[0].mxu0 %v318
  %v1071 = vpop.f32.mrb[0].mxu0
  %v1072 = vadd.f32 0.0, %v1071
  %v1073 = vpop.f32.mrb[0].mxu0
  %1074 = vmatprep.mubr.f32.mxu0 %v321
  %1075 = vmatmul.mubr.f32.gmra.mrb[0].mxu0 %v320
  %v1076 = vpop.f32.mrb[0].mxu0
  %v1077 = vadd.f32 0.0, %v1076
  %v1078 = vpop.f32.mrb[0].mxu0
  %1079 = vmatprep.mubr.f32.mxu0 %v323
  %1080 = vmatmul.mubr.f32.gmra.mrb[0].mxu0 %v322
  %v1081 = vpop.f32.mrb[0].mxu0
  %v1082 = vadd.f32 0.0, %v1081
  %v1083 = vpop.f32.mrb[0].mxu0
  %1084 = vmatprep.mubr.f32.mxu0 %v325
  %1085 = vmatmul.mubr.f32.gmra.mrb[0].mxu0 %v324
  %v1086 = vpop.f32.mrb[0].mxu0
  %v1087 = vadd.f32 0.0, %v1086
  %v1088 = vpop.f32.mrb[0].mxu0
  %1089 = vmatprep.mubr.f32.mxu0 %v327
  %1090 = vmatmul.mubr.f32.gmra.mrb[0].mxu0 %v326
  %v1091 = vpop.f32.mrb[0].mxu0
  %v1092 = vadd.f32 0.0, %v1091
  %v1093 = vpop.f32.mrb[0].mxu0
  %1094 = vmatprep.mubr.f32.mxu0 %v329
  %1095 = vmatmul.mubr.f32.gmra.mrb[0].mxu0 %v328
  %v1096 = vpop.f32.mrb[0].mxu0
  %v1097 = vadd.f32 0.0, %v1096
  %v1098 = vpop.f32.mrb[0].mxu0
  %1099 = vmatprep.mubr.f32.mxu0 %v331
  %1100 = vmatmul.mubr.f32.gmra.mrb[0].mxu0 %v330
  %v1101 = vpop.f32.mrb[0].mxu0
  %v1102 = vadd.f32 0.0, %v1101
  %v1103 = vpop.f32.mrb[0].mxu0
  %1104 = vmatprep.mubr.f32.mxu0 %v333
  %1105 = vmatmul.mubr.f32.gmra.mrb[0].mxu0 %v332
  %v1106 = vpop.f32.mrb[0].mxu0
  %v1107 = vadd.f32 0.0, %v1106
  %v1108 = vpop.f32.mrb[0].mxu0
  %1109 = vmatprep.mubr.f32.mxu0 %v335
  %1110 = vmatmul.mubr.f32.gmra.mrb[0].mxu0 %v334
  %v1111 = vpop.f32.mrb[0].mxu0
  %v1112 = vadd.f32 0.0, %v1111
  %v1113 = vpop.f32.mrb[0].mxu0
  %1114 = vmatprep.mubr.f32.mxu0 %v337
  %1115 = vmatmul.mubr.f32.gmra.mrb[0].mxu0 %v336
  %v1116 = vpop.f32.mrb[0].mxu0
  %v1117 = vadd.f32 0.0, %v1116
  %v1118 = vpop.f32.mrb[0].mxu0
  %1119 = vmatprep.mubr.f32.mxu0 %v339
  %1120 = vmatmul.mubr.f32.gmra.mrb[0].mxu0 %v338
  %v1121 = vpop.f32.mrb[0].mxu0
  %v1122 = vadd.f32 0.0, %v1121
  %v1123 = vpop.f32.mrb[0].mxu0
  %1124 = vmatprep.mubr.f32.mxu0 %v341
  %1125 = vmatmul.mubr.f32.gmra.mrb[0].mxu0 %v340
  %v1126 = vpop.f32.mrb[0].mxu0
  %v1127 = vadd.f32 0.0, %v1126
  %v1128 = vpop.f32.mrb[0].mxu0
  %1129 = vmatprep.mubr.f32.mxu0 %v343
  %1130 = vmatmul.mubr.f32.gmra.mrb[0].mxu0 %v342
  %v1131 = vpop.f32.mrb[0].mxu0
  %v1132 = vadd.f32 0.0, %v1131
  %v1133 = vpop.f32.mrb[0].mxu0
  %1134 = vmatprep.mubr.f32.mxu0 %v345
  %1135 = vmatmul.mubr.f32.gmra.mrb[0].mxu0 %v344
  %v1136 = vpop.f32.mrb[0].mxu0
  %v1137 = vadd.f32 0.0, %v1136
  %v1138 = vpop.f32.mrb[0].mxu0
  %1139 = vmatprep.mubr.f32.mxu0 %v347
  %1140 = vmatmul.mubr.f32.gmra.mrb[0].mxu0 %v346
  %v1141 = vpop.f32.mrb[0].mxu0
  %v1142 = vadd.f32 0.0, %v1141
  %v1143 = vpop.f32.mrb[0].mxu0
  %1144 = vmatprep.mubr.f32.mxu0 %v349
  %1145 = vmatmul.mubr.f32.gmra.mrb[0].mxu0 %v348
  %v1146 = vpop.f32.mrb[0].mxu0
  %v1147 = vadd.f32 0.0, %v1146
  %v1148 = vpop.f32.mrb[0].mxu0
  %1149 = vmatprep.mubr.f32.mxu0 %v351
  %1150 = vmatmul.mubr.f32.gmra.mrb[0].mxu0 %v350
  %v1151 = vpop.f32.mrb[0].mxu0
  %v1152 = vadd.f32 0.0, %v1151
  %v1153 = vpop.f32.mrb[0].mxu0
  %1154 = vmatprep.mubr.f32.mxu0 %v353
  %1155 = vmatmul.mubr.f32.gmra.mrb[0].mxu0 %v352
  %v1156 = vpop.f32.mrb[0].mxu0
  %v1157 = vadd.f32 0.0, %v1156
  %v1158 = vpop.f32.mrb[0].mxu0
  %1159 = vmatprep.mubr.f32.mxu0 %v355
  %1160 = vmatmul.mubr.f32.gmra.mrb[0].mxu0 %v354
  %v1161 = vpop.f32.mrb[0].mxu0
  %v1162 = vadd.f32 0.0, %v1161
  %v1163 = vpop.f32.mrb[0].mxu0
  %1164 = vmatprep.mubr.f32.mxu0 %v357
  %1165 = vmatmul.mubr.f32.gmra.mrb[0].mxu0 %v356
  %v1166 = vpop.f32.mrb[0].mxu0
  %v1167 = vadd.f32 0.0, %v1166
  %v1168 = vpop.f32.mrb[0].mxu0
  %1169 = vmatprep.mubr.f32.mxu0 %v359
  %1170 = vmatmul.mubr.f32.gmra.mrb[0].mxu0 %v358
  %v1171 = vpop.f32.mrb[0].mxu0
  %v1172 = vadd.f32 0.0, %v1171
  %v1173 = vpop.f32.mrb[0].mxu0
  %1174 = vmatprep.mubr.f32.mxu0 %v361
  %1175 = vmatmul.mubr.f32.gmra.mrb[0].mxu0 %v360
  %v1176 = vpop.f32.mrb[0].mxu0
  %v1177 = vadd.f32 0.0, %v1176
  %v1178 = vpop.f32.mrb[0].mxu0
  %1179 = vmatprep.mubr.f32.mxu0 %v363
  %1180 = vmatmul.mubr.f32.gmra.mrb[0].mxu0 %v362
  %v1181 = vpop.f32.mrb[0].mxu0
  %v1182 = vadd.f32 0.0, %v1181
  %v1183 = vpop.f32.mrb[0].mxu0
  %1184 = vmatprep.mubr.f32.mxu0 %v365
  %1185 = vmatmul.mubr.f32.gmra.mrb[0].mxu0 %v364
  %v1186 = vpop.f32.mrb[0].mxu0
  %v1187 = vadd.f32 0.0, %v1186
  %v1188 = vpop.f32.mrb[0].mxu0
  %1189 = vmatprep.mubr.f32.mxu0 %v367
  %1190 = vmatmul.mubr.f32.gmra.mrb[0].mxu0 %v366
  %v1191 = vpop.f32.mrb[0].mxu0
  %v1192 = vadd.f32 0.0, %v1191
  %v1193 = vpop.f32.mrb[0].mxu0
  %1194 = vmatprep.mubr.f32.mxu0 %v369
  %1195 = vmatmul.mubr.f32.gmra.mrb[0].mxu0 %v368
  %v1196 = vpop.f32.mrb[0].mxu0
  %v1197 = vadd.f32 0.0, %v1196
  %v1198 = vpop.f32.mrb[0].mxu0
  %1199 = vmatprep.mubr.f32.mxu0 %v371
  %1200 = vmatmul.mubr.f32.gmra.mrb[0].mxu0 %v370
  %v1201 = vpop.f32.mrb[0].mxu0
  %v1202 = vadd.f32 0.0, %v1201
  %v1203 = vpop.f32.mrb[0].mxu0
  %1204 = vmatprep.mubr.f32.mxu0 %v373
  %1205 = vmatmul.mubr.f32.gmra.mrb[0].mxu0 %v372
  %v1206 = vpop.f32.mrb[0].mxu0
  %v1207 = vadd.f32 0.0, %v1206
  %v1208 = vpop.f32.mrb[0].mxu0
  %1209 = vmatprep.mubr.f32.mxu0 %v375
  %1210 = vmatmul.mubr.f32.gmra.mrb[0].mxu0 %v374
  %v1211 = vpop.f32.mrb[0].mxu0
  %v1212 = vadd.f32 0.0, %v1211
  %v1213 = vpop.f32.mrb[0].mxu0
  %1214 = vmatprep.mubr.f32.mxu0 %v377
  %1215 = vmatmul.mubr.f32.gmra.mrb[0].mxu0 %v376
  %v1216 = vpop.f32.mrb[0].mxu0
  %v1217 = vadd.f32 0.0, %v1216
  %v1218 = vpop.f32.mrb[0].mxu0
  %1219 = vmatprep.mubr.f32.mxu0 %v379
  %1220 = vmatmul.mubr.f32.gmra.mrb[0].mxu0 %v378
  %v1221 = vpop.f32.mrb[0].mxu0
  %v1222 = vadd.f32 0.0, %v1221
  %v1223 = vpop.f32.mrb[0].mxu0
  %1224 = vmatprep.mubr.f32.mxu0 %v381
  %1225 = vmatmul.mubr.f32.gmra.mrb[0].mxu0 %v380
  %v1226 = vpop.f32.mrb[0].mxu0
  %v1227 = vadd.f32 0.0, %v1226
  %v1228 = vpop.f32.mrb[0].mxu0
  %1229 = vmatprep.mubr.f32.mxu0 %v383
  %1230 = vmatmul.mubr.f32.gmra.mrb[0].mxu0 %v382
  %v1231 = vpop.f32.mrb[0].mxu0
  %v1232 = vadd.f32 0.0, %v1231
  %v1233 = vpop.f32.mrb[0].mxu0
  %1234 = vmatprep.mubr.f32.mxu0 %v385
  %1235 = vmatmul.mubr.f32.gmra.mrb[0].mxu0 %v384
  %v1236 = vpop.f32.mrb[0].mxu0
  %v1237 = vadd.f32 0.0, %v1236
  %v1238 = vpop.f32.mrb[0].mxu0
  %1239 = vmatprep.mubr.f32.mxu0 %v387
  %1240 = vmatmul.mubr.f32.gmra.mrb[0].mxu0 %v386
  %v1241 = vpop.f32.mrb[0].mxu0
  %v1242 = vadd.f32 0.0, %v1241
  %v1243 = vpop.f32.mrb[0].mxu0
  %1244 = vmatprep.mubr.f32.mxu0 %v389
  %1245 = vmatmul.mubr.f32.gmra.mrb[0].mxu0 %v388
  %v1246 = vpop.f32.mrb[0].mxu0
  %v1247 = vadd.f32 0.0, %v1246
  %v1248 = vpop.f32.mrb[0].mxu0
  %1249 = vmatprep.mubr.f32.mxu0 %v391
  %1250 = vmatmul.mubr.f32.gmra.mrb[0].mxu0 %v390
  %v1251 = vpop.f32.mrb[0].mxu0
  %v1252 = vadd.f32 0.0, %v1251
  %v1253 = vpop.f32.mrb[0].mxu0
  %1254 = vmatprep.mubr.f32.mxu0 %v393
  %1255 = vmatmul.mubr.f32.gmra.mrb[0].mxu0 %v392
  %v1256 = vpop.f32.mrb[0].mxu0
  %v1257 = vadd.f32 0.0, %v1256
  %v1258 = vpop.f32.mrb[0].mxu0
  %1259 = vmatprep.mubr.f32.mxu0 %v395
  %1260 = vmatmul.mubr.f32.gmra.mrb[0].mxu0 %v394
  %v1261 = vpop.f32.mrb[0].mxu0
  %v1262 = vadd.f32 0.0, %v1261
  %v1263 = vpop.f32.mrb[0].mxu0
  %1264 = vmatprep.mubr.f32.mxu0 %v397
  %1265 = vmatmul.mubr.f32.gmra.mrb[0].mxu0 %v396
  %v1266 = vpop.f32.mrb[0].mxu0
  %v1267 = vadd.f32 0.0, %v1266
  %v1268 = vpop.f32.mrb[0].mxu0
  %1269 = vmatprep.mubr.f32.mxu0 %v399
  %1270 = vmatmul.mubr.f32.gmra.mrb[0].mxu0 %v398
  %v1271 = vpop.f32.mrb[0].mxu0
  %v1272 = vadd.f32 0.0, %v1271
  %v1273 = vpop.f32.mrb[0].mxu0
  %1274 = vmatprep.mubr.f32.mxu0 %v401
  %1275 = vmatmul.mubr.f32.gmra.mrb[0].mxu0 %v400
  %v1276 = vpop.f32.mrb[0].mxu0
  %v1277 = vadd.f32 0.0, %v1276
  %v1278 = vpop.f32.mrb[0].mxu0
  %1279 = vmatprep.mubr.f32.mxu0 %v403
  %1280 = vmatmul.mubr.f32.gmra.mrb[0].mxu0 %v402
  %v1281 = vpop.f32.mrb[0].mxu0
  %v1282 = vadd.f32 0.0, %v1281
  %v1283 = vpop.f32.mrb[0].mxu0
  %1284 = vmatprep.mubr.f32.mxu0 %v405
  %1285 = vmatmul.mubr.f32.gmra.mrb[0].mxu0 %v404
  %v1286 = vpop.f32.mrb[0].mxu0
  %v1287 = vadd.f32 0.0, %v1286
  %v1288 = vpop.f32.mrb[0].mxu0
  %1289 = vmatprep.mubr.f32.mxu0 %v407
  %1290 = vmatmul.mubr.f32.gmra.mrb[0].mxu0 %v406
  %v1291 = vpop.f32.mrb[0].mxu0
  %v1292 = vadd.f32 0.0, %v1291
  %v1293 = vpop.f32.mrb[0].mxu0
  %1294 = vmatprep.mubr.f32.mxu0 %v409
  %1295 = vmatmul.mubr.f32.gmra.mrb[0].mxu0 %v408
  %v1296 = vpop.f32.mrb[0].mxu0
  %v1297 = vadd.f32 0.0, %v1296
  %v1298 = vpop.f32.mrb[0].mxu0
  %1299 = vmatprep.mubr.f32.mxu0 %v411
  %1300 = vmatmul.mubr.f32.gmra.mrb[0].mxu0 %v410
  %v1301 = vpop.f32.mrb[0].mxu0
  %v1302 = vadd.f32 0.0, %v1301
  %v1303 = vpop.f32.mrb[0].mxu0
  %1304 = vmatprep.mubr.f32.mxu0 %v413
  %1305 = vmatmul.mubr.f32.gmra.mrb[0].mxu0 %v412
  %v1306 = vpop.f32.mrb[0].mxu0
  %v1307 = vadd.f32 0.0, %v1306
  %v1308 = vpop.f32.mrb[0].mxu0
  %1309 = vmatprep.mubr.f32.mxu0 %v415
  %1310 = vmatmul.mubr.f32.gmra.mrb[0].mxu0 %v414
  %v1311 = vpop.f32.mrb[0].mxu0
  %v1312 = vadd.f32 0.0, %v1311
  %v1313 = vpop.f32.mrb[0].mxu0
  %1314 = vmatprep.mubr.f32.mxu0 %v417
  %1315 = vmatmul.mubr.f32.gmra.mrb[0].mxu0 %v416
  %v1316 = vpop.f32.mrb[0].mxu0
  %v1317 = vadd.f32 0.0, %v1316
  %v1318 = vpop.f32.mrb[0].mxu0
  %1319 = vmatprep.mubr.f32.mxu0 %v419
  %1320 = vmatmul.mubr.f32.gmra.mrb[0].mxu0 %v418
  %v1321 = vpop.f32.mrb[0].mxu0
  %v1322 = vadd.f32 0.0, %v1321
  %v1323 = vpop.f32.mrb[0].mxu0
  %1324 = vmatprep.mubr.f32.mxu0 %v421
  %1325 = vmatmul.mubr.f32.gmra.mrb[0].mxu0 %v420
  %v1326 = vpop.f32.mrb[0].mxu0
  %v1327 = vadd.f32 0.0, %v1326
  %v1328 = vpop.f32.mrb[0].mxu0
  %1329 = vmatprep.mubr.f32.mxu0 %v423
  %1330 = vmatmul.mubr.f32.gmra.mrb[0].mxu0 %v422
  %v1331 = vpop.f32.mrb[0].mxu0
  %v1332 = vadd.f32 0.0, %v1331
  %v1333 = vpop.f32.mrb[0].mxu0
  %1334 = vmatprep.mubr.f32.mxu0 %v425
  %1335 = vmatmul.mubr.f32.gmra.mrb[0].mxu0 %v424
  %v1336 = vpop.f32.mrb[0].mxu0
  %v1337 = vadd.f32 0.0, %v1336
  %v1338 = vpop.f32.mrb[0].mxu0
  %1339 = vmatprep.mubr.f32.mxu0 %v427
  %1340 = vmatmul.mubr.f32.gmra.mrb[0].mxu0 %v426
  %v1341 = vpop.f32.mrb[0].mxu0
  %v1342 = vadd.f32 0.0, %v1341
  %v1343 = vpop.f32.mrb[0].mxu0
  %1344 = vmatprep.mubr.f32.mxu0 %v429
  %1345 = vmatmul.mubr.f32.gmra.mrb[0].mxu0 %v428
  %v1346 = vpop.f32.mrb[0].mxu0
  %v1347 = vadd.f32 0.0, %v1346
  %v1348 = vpop.f32.mrb[0].mxu0
  %1349 = vmatprep.mubr.f32.mxu0 %v431
  %1350 = vmatmul.mubr.f32.gmra.mrb[0].mxu0 %v430
  %v1351 = vpop.f32.mrb[0].mxu0
  %v1352 = vadd.f32 0.0, %v1351
  %v1353 = vpop.f32.mrb[0].mxu0
  %1354 = vmatprep.mubr.f32.mxu0 %v433
  %1355 = vmatmul.mubr.f32.gmra.mrb[0].mxu0 %v432
  %v1356 = vpop.f32.mrb[0].mxu0
  %v1357 = vadd.f32 0.0, %v1356
  %v1358 = vpop.f32.mrb[0].mxu0
  %1359 = vmatprep.mubr.f32.mxu0 %v435
  %1360 = vmatmul.mubr.f32.gmra.mrb[0].mxu0 %v434
  %v1361 = vpop.f32.mrb[0].mxu0
  %v1362 = vadd.f32 0.0, %v1361
  %v1363 = vpop.f32.mrb[0].mxu0
  %1364 = vmatprep.mubr.f32.mxu0 %v437
  %1365 = vmatmul.mubr.f32.gmra.mrb[0].mxu0 %v436
  %v1366 = vpop.f32.mrb[0].mxu0
  %v1367 = vadd.f32 0.0, %v1366
  %v1368 = vpop.f32.mrb[0].mxu0
  %1369 = vmatprep.mubr.f32.mxu0 %v439
  %1370 = vmatmul.mubr.f32.gmra.mrb[0].mxu0 %v438
  %v1371 = vpop.f32.mrb[0].mxu0
  %v1372 = vadd.f32 0.0, %v1371
  %v1373 = vpop.f32.mrb[0].mxu0
  %1374 = vmatprep.mubr.f32.mxu0 %v441
  %1375 = vmatmul.mubr.f32.gmra.mrb[0].mxu0 %v440
  %v1376 = vpop.f32.mrb[0].mxu0
  %v1377 = vadd.f32 0.0, %v1376
  %v1378 = vpop.f32.mrb[0].mxu0
  %1379 = vmatprep.mubr.f32.mxu0 %v443
  %1380 = vmatmul.mubr.f32.gmra.mrb[0].mxu0 %v442
  %v1381 = vpop.f32.mrb[0].mxu0
  %v1382 = vadd.f32 0.0, %v1381
  %v1383 = vpop.f32.mrb[0].mxu0
  %1384 = vmatprep.mubr.f32.mxu0 %v445
  %1385 = vmatmul.mubr.f32.gmra.mrb[0].mxu0 %v444
  %v1386 = vpop.f32.mrb[0].mxu0
  %v1387 = vadd.f32 0.0, %v1386
  %v1388 = vpop.f32.mrb[0].mxu0
  %1389 = vmatprep.mubr.f32.mxu0 %v447
  %1390 = vmatmul.mubr.f32.gmra.mrb[0].mxu0 %v446
  %v1391 = vpop.f32.mrb[0].mxu0
  %v1392 = vadd.f32 0.0, %v1391
  %v1393 = vpop.f32.mrb[0].mxu0
  %1394 = vmatprep.mubr.f32.mxu0 %v449
  %1395 = vmatmul.mubr.f32.gmra.mrb[0].mxu0 %v448
  %v1396 = vpop.f32.mrb[0].mxu0
  %v1397 = vadd.f32 0.0, %v1396
  %v1398 = vpop.f32.mrb[0].mxu0
  %1399 = vmatprep.mubr.f32.mxu0 %v451
  %1400 = vmatmul.mubr.f32.gmra.mrb[0].mxu0 %v450
  %v1401 = vpop.f32.mrb[0].mxu0
  %v1402 = vadd.f32 0.0, %v1401
  %v1403 = vpop.f32.mrb[0].mxu0
  %1404 = vmatprep.mubr.f32.mxu0 %v453
  %1405 = vmatmul.mubr.f32.gmra.mrb[0].mxu0 %v452
  %v1406 = vpop.f32.mrb[0].mxu0
  %v1407 = vadd.f32 0.0, %v1406
  %v1408 = vpop.f32.mrb[0].mxu0
  %1409 = vmatprep.mubr.f32.mxu0 %v455
  %1410 = vmatmul.mubr.f32.gmra.mrb[0].mxu0 %v454
  %v1411 = vpop.f32.mrb[0].mxu0
  %v1412 = vadd.f32 0.0, %v1411
  %v1413 = vpop.f32.mrb[0].mxu0
  %1414 = vmatprep.mubr.f32.mxu0 %v457
  %1415 = vmatmul.mubr.f32.gmra.mrb[0].mxu0 %v456
  %v1416 = vpop.f32.mrb[0].mxu0
  %v1417 = vadd.f32 0.0, %v1416
  %v1418 = vpop.f32.mrb[0].mxu0
  %1419 = vmatprep.mubr.f32.mxu0 %v459
  %1420 = vmatmul.mubr.f32.gmra.mrb[0].mxu0 %v458
  %v1421 = vpop.f32.mrb[0].mxu0
  %v1422 = vadd.f32 0.0, %v1421
  %v1423 = vpop.f32.mrb[0].mxu0
  %1424 = vmatprep.mubr.f32.mxu0 %v461
  %1425 = vmatmul.mubr.f32.gmra.mrb[0].mxu0 %v460
  %v1426 = vpop.f32.mrb[0].mxu0
  %v1427 = vadd.f32 0.0, %v1426
  %v1428 = vpop.f32.mrb[0].mxu0
  %1429 = vmatprep.mubr.f32.mxu0 %v463
  %1430 = vmatmul.mubr.f32.gmra.mrb[0].mxu0 %v462
  %v1431 = vpop.f32.mrb[0].mxu0
  %v1432 = vadd.f32 0.0, %v1431
  %v1433 = vpop.f32.mrb[0].mxu0
  %1434 = vmatprep.mubr.f32.mxu0 %v465
  %1435 = vmatmul.mubr.f32.gmra.mrb[0].mxu0 %v464
  %v1436 = vpop.f32.mrb[0].mxu0
  %v1437 = vadd.f32 0.0, %v1436
  %v1438 = vpop.f32.mrb[0].mxu0
  %1439 = vmatprep.mubr.f32.mxu0 %v467
  %1440 = vmatmul.mubr.f32.gmra.mrb[0].mxu0 %v466
  %v1441 = vpop.f32.mrb[0].mxu0
  %v1442 = vadd.f32 0.0, %v1441
  %v1443 = vpop.f32.mrb[0].mxu0
  %1444 = vmatprep.mubr.f32.mxu0 %v469
  %1445 = vmatmul.mubr.f32.gmra.mrb[0].mxu0 %v468
  %v1446 = vpop.f32.mrb[0].mxu0
  %v1447 = vadd.f32 0.0, %v1446
  %v1448 = vpop.f32.mrb[0].mxu0
  %1449 = vmatprep.mubr.f32.mxu0 %v471
  %1450 = vmatmul.mubr.f32.gmra.mrb[0].mxu0 %v470
  %v1451 = vpop.f32.mrb[0].mxu0
  %v1452 = vadd.f32 0.0, %v1451
  %v1453 = vpop.f32.mrb[0].mxu0
  %1454 = vmatprep.mubr.f32.mxu0 %v473
  %1455 = vmatmul.mubr.f32.gmra.mrb[0].mxu0 %v472
  %v1456 = vpop.f32.mrb[0].mxu0
  %v1457 = vadd.f32 0.0, %v1456
  %v1458 = vpop.f32.mrb[0].mxu0
  %1459 = vmatprep.mubr.f32.mxu0 %v475
  %1460 = vmatmul.mubr.f32.gmra.mrb[0].mxu0 %v474
  %v1461 = vpop.f32.mrb[0].mxu0
  %v1462 = vadd.f32 0.0, %v1461
  %v1463 = vpop.f32.mrb[0].mxu0
  %1464 = vmatprep.mubr.f32.mxu0 %v477
  %1465 = vmatmul.mubr.f32.gmra.mrb[0].mxu0 %v476
  %v1466 = vpop.f32.mrb[0].mxu0
  %v1467 = vadd.f32 0.0, %v1466
  %v1468 = vpop.f32.mrb[0].mxu0
  %1469 = vmatprep.mubr.f32.mxu0 %v479
  %1470 = vmatmul.mubr.f32.gmra.mrb[0].mxu0 %v478
  %v1471 = vpop.f32.mrb[0].mxu0
  %v1472 = vadd.f32 0.0, %v1471
  %v1473 = vpop.f32.mrb[0].mxu0
  %1474 = vmatprep.mubr.f32.mxu0 %v481
  %1475 = vmatmul.mubr.f32.gmra.mrb[0].mxu0 %v480
  %v1476 = vpop.f32.mrb[0].mxu0
  %v1477 = vadd.f32 0.0, %v1476
  %v1478 = vpop.f32.mrb[0].mxu0
  %1479 = vmatprep.mubr.f32.mxu0 %v483
  %1480 = vmatmul.mubr.f32.gmra.mrb[0].mxu0 %v482
  %v1481 = vpop.f32.mrb[0].mxu0
  %v1482 = vadd.f32 0.0, %v1481
  %v1483 = vpop.f32.mrb[0].mxu0
  %1484 = vmatprep.mubr.f32.mxu0 %v485
  %1485 = vmatmul.mubr.f32.gmra.mrb[0].mxu0 %v484
  %v1486 = vpop.f32.mrb[0].mxu0
  %v1487 = vadd.f32 0.0, %v1486
  %v1488 = vpop.f32.mrb[0].mxu0
  %1489 = vmatprep.mubr.f32.mxu0 %v487
  %1490 = vmatmul.mubr.f32.gmra.mrb[0].mxu0 %v486
  %v1491 = vpop.f32.mrb[0].mxu0
  %v1492 = vadd.f32 0.0, %v1491
  %v1493 = vpop.f32.mrb[0].mxu0
  %1494 = vmatprep.mubr.f32.mxu0 %v489
  %1495 = vmatmul.mubr.f32.gmra.mrb[0].mxu0 %v488
  %v1496 = vpop.f32.mrb[0].mxu0
  %v1497 = vadd.f32 0.0, %v1496
  %v1498 = vpop.f32.mrb[0].mxu0
  %1499 = vmatprep.mubr.f32.mxu0 %v491
  %1500 = vmatmul.mubr.f32.gmra.mrb[0].mxu0 %v490
  %v1501 = vpop.f32.mrb[0].mxu0
  %v1502 = vadd.f32 0.0, %v1501
  %v1503 = vpop.f32.mrb[0].mxu0
  %1504 = vmatprep.mubr.f32.mxu0 %v493
  %1505 = vmatmul.mubr.f32.gmra.mrb[0].mxu0 %v492
  %v1506 = vpop.f32.mrb[0].mxu0
  %v1507 = vadd.f32 0.0, %v1506
  %v1508 = vpop.f32.mrb[0].mxu0
  %1509 = vmatprep.mubr.f32.mxu0 %v495
  %1510 = vmatmul.mubr.f32.gmra.mrb[0].mxu0 %v494
  %v1511 = vpop.f32.mrb[0].mxu0
  %v1512 = vadd.f32 0.0, %v1511
  %v1513 = vpop.f32.mrb[0].mxu0
  %1514 = vmatprep.mubr.f32.mxu0 %v497
  %1515 = vmatmul.mubr.f32.gmra.mrb[0].mxu0 %v496
  %v1516 = vpop.f32.mrb[0].mxu0
  %v1517 = vadd.f32 0.0, %v1516
  %v1518 = vpop.f32.mrb[0].mxu0
  %1519 = vmatprep.mubr.f32.mxu0 %v499
  %1520 = vmatmul.mubr.f32.gmra.mrb[0].mxu0 %v498
  %v1521 = vpop.f32.mrb[0].mxu0
  %v1522 = vadd.f32 0.0, %v1521
  %v1523 = vpop.f32.mrb[0].mxu0
  %1524 = vdwg.mxu0
  %vm1525 = vcmask 400384
  %v1526 = vsel %vm1525, %v567, 0.0
  %1527 = vadd.xlane.f32.xlu0 %v1526
  %v1528 = vpop.xlane.xlu0 %1527
  %v1529 = vsel %vm1525, %v572, 0.0
  %1530 = vadd.xlane.f32.xlu0 %v1529
  %v1531 = vpop.xlane.xlu0 %1530
  %v1532 = vsel %vm1525, %v577, 0.0
  %1533 = vadd.xlane.f32.xlu0 %v1532
  %v1534 = vpop.xlane.xlu0 %1533
  %v1535 = vsel %vm1525, %v582, 0.0
  %1536 = vadd.xlane.f32.xlu0 %v1535
  %v1537 = vpop.xlane.xlu0 %1536
  %v1538 = vsel %vm1525, %v587, 0.0
  %1539 = vadd.xlane.f32.xlu0 %v1538
  %v1540 = vpop.xlane.xlu0 %1539
  %v1541 = vsel %vm1525, %v592, 0.0
  %1542 = vadd.xlane.f32.xlu0 %v1541
  %v1543 = vpop.xlane.xlu0 %1542
  %v1544 = vsel %vm1525, %v597, 0.0
  %1545 = vadd.xlane.f32.xlu0 %v1544
  %v1546 = vpop.xlane.xlu0 %1545
  %v1547 = vsel %vm1525, %v602, 0.0
  %1548 = vadd.xlane.f32.xlu0 %v1547
  %v1549 = vpop.xlane.xlu0 %1548
  %v1550 = vsel %vm1525, %v607, 0.0
  %1551 = vadd.xlane.f32.xlu0 %v1550
  %v1552 = vpop.xlane.xlu0 %1551
  %v1553 = vsel %vm1525, %v612, 0.0
  %1554 = vadd.xlane.f32.xlu0 %v1553
  %v1555 = vpop.xlane.xlu0 %1554
  %v1556 = vsel %vm1525, %v617, 0.0
  %1557 = vadd.xlane.f32.xlu0 %v1556
  %v1558 = vpop.xlane.xlu0 %1557
  %v1559 = vsel %vm1525, %v622, 0.0
  %1560 = vadd.xlane.f32.xlu0 %v1559
  %v1561 = vpop.xlane.xlu0 %1560
  %v1562 = vsel %vm1525, %v627, 0.0
  %1563 = vadd.xlane.f32.xlu0 %v1562
  %v1564 = vpop.xlane.xlu0 %1563
  %v1565 = vsel %vm1525, %v632, 0.0
  %1566 = vadd.xlane.f32.xlu0 %v1565
  %v1567 = vpop.xlane.xlu0 %1566
  %v1568 = vsel %vm1525, %v637, 0.0
  %1569 = vadd.xlane.f32.xlu0 %v1568
  %v1570 = vpop.xlane.xlu0 %1569
  %v1571 = vsel %vm1525, %v642, 0.0
  %1572 = vadd.xlane.f32.xlu0 %v1571
  %v1573 = vpop.xlane.xlu0 %1572
  %v1574 = vsel %vm1525, %v647, 0.0
  %1575 = vadd.xlane.f32.xlu0 %v1574
  %v1576 = vpop.xlane.xlu0 %1575
  %v1577 = vsel %vm1525, %v652, 0.0
  %1578 = vadd.xlane.f32.xlu0 %v1577
  %v1579 = vpop.xlane.xlu0 %1578
  %v1580 = vsel %vm1525, %v657, 0.0
  %1581 = vadd.xlane.f32.xlu0 %v1580
  %v1582 = vpop.xlane.xlu0 %1581
  %v1583 = vsel %vm1525, %v662, 0.0
  %1584 = vadd.xlane.f32.xlu0 %v1583
  %v1585 = vpop.xlane.xlu0 %1584
  %v1586 = vsel %vm1525, %v667, 0.0
  %1587 = vadd.xlane.f32.xlu0 %v1586
  %v1588 = vpop.xlane.xlu0 %1587
  %v1589 = vsel %vm1525, %v672, 0.0
  %1590 = vadd.xlane.f32.xlu0 %v1589
  %v1591 = vpop.xlane.xlu0 %1590
  %v1592 = vsel %vm1525, %v677, 0.0
  %1593 = vadd.xlane.f32.xlu0 %v1592
  %v1594 = vpop.xlane.xlu0 %1593
  %v1595 = vsel %vm1525, %v682, 0.0
  %1596 = vadd.xlane.f32.xlu0 %v1595
  %v1597 = vpop.xlane.xlu0 %1596
  %v1598 = vsel %vm1525, %v687, 0.0
  %1599 = vadd.xlane.f32.xlu0 %v1598
  %v1600 = vpop.xlane.xlu0 %1599
  %v1601 = vsel %vm1525, %v692, 0.0
  %1602 = vadd.xlane.f32.xlu0 %v1601
  %v1603 = vpop.xlane.xlu0 %1602
  %v1604 = vsel %vm1525, %v697, 0.0
  %1605 = vadd.xlane.f32.xlu0 %v1604
  %v1606 = vpop.xlane.xlu0 %1605
  %v1607 = vsel %vm1525, %v702, 0.0
  %1608 = vadd.xlane.f32.xlu0 %v1607
  %v1609 = vpop.xlane.xlu0 %1608
  %v1610 = vsel %vm1525, %v707, 0.0
  %1611 = vadd.xlane.f32.xlu0 %v1610
  %v1612 = vpop.xlane.xlu0 %1611
  %v1613 = vsel %vm1525, %v712, 0.0
  %1614 = vadd.xlane.f32.xlu0 %v1613
  %v1615 = vpop.xlane.xlu0 %1614
  %v1616 = vsel %vm1525, %v717, 0.0
  %1617 = vadd.xlane.f32.xlu0 %v1616
  %v1618 = vpop.xlane.xlu0 %1617
  %v1619 = vsel %vm1525, %v722, 0.0
  %1620 = vadd.xlane.f32.xlu0 %v1619
  %v1621 = vpop.xlane.xlu0 %1620
  %v1622 = vsel %vm1525, %v727, 0.0
  %1623 = vadd.xlane.f32.xlu0 %v1622
  %v1624 = vpop.xlane.xlu0 %1623
  %v1625 = vsel %vm1525, %v732, 0.0
  %1626 = vadd.xlane.f32.xlu0 %v1625
  %v1627 = vpop.xlane.xlu0 %1626
  %v1628 = vsel %vm1525, %v737, 0.0
  %1629 = vadd.xlane.f32.xlu0 %v1628
  %v1630 = vpop.xlane.xlu0 %1629
  %v1631 = vsel %vm1525, %v742, 0.0
  %1632 = vadd.xlane.f32.xlu0 %v1631
  %v1633 = vpop.xlane.xlu0 %1632
  %v1634 = vsel %vm1525, %v747, 0.0
  %1635 = vadd.xlane.f32.xlu0 %v1634
  %v1636 = vpop.xlane.xlu0 %1635
  %v1637 = vsel %vm1525, %v752, 0.0
  %1638 = vadd.xlane.f32.xlu0 %v1637
  %v1639 = vpop.xlane.xlu0 %1638
  %v1640 = vsel %vm1525, %v757, 0.0
  %1641 = vadd.xlane.f32.xlu0 %v1640
  %v1642 = vpop.xlane.xlu0 %1641
  %v1643 = vsel %vm1525, %v762, 0.0
  %1644 = vadd.xlane.f32.xlu0 %v1643
  %v1645 = vpop.xlane.xlu0 %1644
  %v1646 = vsel %vm1525, %v767, 0.0
  %1647 = vadd.xlane.f32.xlu0 %v1646
  %v1648 = vpop.xlane.xlu0 %1647
  %v1649 = vsel %vm1525, %v772, 0.0
  %1650 = vadd.xlane.f32.xlu0 %v1649
  %v1651 = vpop.xlane.xlu0 %1650
  %v1652 = vsel %vm1525, %v777, 0.0
  %1653 = vadd.xlane.f32.xlu0 %v1652
  %v1654 = vpop.xlane.xlu0 %1653
  %v1655 = vsel %vm1525, %v782, 0.0
  %1656 = vadd.xlane.f32.xlu0 %v1655
  %v1657 = vpop.xlane.xlu0 %1656
  %v1658 = vsel %vm1525, %v787, 0.0
  %1659 = vadd.xlane.f32.xlu0 %v1658
  %v1660 = vpop.xlane.xlu0 %1659
  %v1661 = vsel %vm1525, %v792, 0.0
  %1662 = vadd.xlane.f32.xlu0 %v1661
  %v1663 = vpop.xlane.xlu0 %1662
  %v1664 = vsel %vm1525, %v797, 0.0
  %1665 = vadd.xlane.f32.xlu0 %v1664
  %v1666 = vpop.xlane.xlu0 %1665
  %v1667 = vsel %vm1525, %v802, 0.0
  %1668 = vadd.xlane.f32.xlu0 %v1667
  %v1669 = vpop.xlane.xlu0 %1668
  %v1670 = vsel %vm1525, %v807, 0.0
  %1671 = vadd.xlane.f32.xlu0 %v1670
  %v1672 = vpop.xlane.xlu0 %1671
  %v1673 = vsel %vm1525, %v812, 0.0
  %1674 = vadd.xlane.f32.xlu0 %v1673
  %v1675 = vpop.xlane.xlu0 %1674
  %v1676 = vsel %vm1525, %v817, 0.0
  %1677 = vadd.xlane.f32.xlu0 %v1676
  %v1678 = vpop.xlane.xlu0 %1677
  %v1679 = vsel %vm1525, %v822, 0.0
  %1680 = vadd.xlane.f32.xlu0 %v1679
  %v1681 = vpop.xlane.xlu0 %1680
  %v1682 = vsel %vm1525, %v827, 0.0
  %1683 = vadd.xlane.f32.xlu0 %v1682
  %v1684 = vpop.xlane.xlu0 %1683
  %v1685 = vsel %vm1525, %v832, 0.0
  %1686 = vadd.xlane.f32.xlu0 %v1685
  %v1687 = vpop.xlane.xlu0 %1686
  %v1688 = vsel %vm1525, %v837, 0.0
  %1689 = vadd.xlane.f32.xlu0 %v1688
  %v1690 = vpop.xlane.xlu0 %1689
  %v1691 = vsel %vm1525, %v842, 0.0
  %1692 = vadd.xlane.f32.xlu0 %v1691
  %v1693 = vpop.xlane.xlu0 %1692
  %v1694 = vsel %vm1525, %v847, 0.0
  %1695 = vadd.xlane.f32.xlu0 %v1694
  %v1696 = vpop.xlane.xlu0 %1695
  %v1697 = vsel %vm1525, %v852, 0.0
  %1698 = vadd.xlane.f32.xlu0 %v1697
  %v1699 = vpop.xlane.xlu0 %1698
  %v1700 = vsel %vm1525, %v857, 0.0
  %1701 = vadd.xlane.f32.xlu0 %v1700
  %v1702 = vpop.xlane.xlu0 %1701
  %v1703 = vsel %vm1525, %v862, 0.0
  %1704 = vadd.xlane.f32.xlu0 %v1703
  %v1705 = vpop.xlane.xlu0 %1704
  %v1706 = vsel %vm1525, %v867, 0.0
  %1707 = vadd.xlane.f32.xlu0 %v1706
  %v1708 = vpop.xlane.xlu0 %1707
  %v1709 = vsel %vm1525, %v872, 0.0
  %1710 = vadd.xlane.f32.xlu0 %v1709
  %v1711 = vpop.xlane.xlu0 %1710
  %v1712 = vsel %vm1525, %v877, 0.0
  %1713 = vadd.xlane.f32.xlu0 %v1712
  %v1714 = vpop.xlane.xlu0 %1713
  %v1715 = vsel %vm1525, %v882, 0.0
  %1716 = vadd.xlane.f32.xlu0 %v1715
  %v1717 = vpop.xlane.xlu0 %1716
  %v1718 = vsel %vm1525, %v887, 0.0
  %1719 = vadd.xlane.f32.xlu0 %v1718
  %v1720 = vpop.xlane.xlu0 %1719
  %v1721 = vsel %vm1525, %v892, 0.0
  %1722 = vadd.xlane.f32.xlu0 %v1721
  %v1723 = vpop.xlane.xlu0 %1722
  %v1724 = vsel %vm1525, %v897, 0.0
  %1725 = vadd.xlane.f32.xlu0 %v1724
  %v1726 = vpop.xlane.xlu0 %1725
  %v1727 = vsel %vm1525, %v902, 0.0
  %1728 = vadd.xlane.f32.xlu0 %v1727
  %v1729 = vpop.xlane.xlu0 %1728
  %v1730 = vsel %vm1525, %v907, 0.0
  %1731 = vadd.xlane.f32.xlu0 %v1730
  %v1732 = vpop.xlane.xlu0 %1731
  %v1733 = vsel %vm1525, %v912, 0.0
  %1734 = vadd.xlane.f32.xlu0 %v1733
  %v1735 = vpop.xlane.xlu0 %1734
  %v1736 = vsel %vm1525, %v917, 0.0
  %1737 = vadd.xlane.f32.xlu0 %v1736
  %v1738 = vpop.xlane.xlu0 %1737
  %v1739 = vsel %vm1525, %v922, 0.0
  %1740 = vadd.xlane.f32.xlu0 %v1739
  %v1741 = vpop.xlane.xlu0 %1740
  %v1742 = vsel %vm1525, %v927, 0.0
  %1743 = vadd.xlane.f32.xlu0 %v1742
  %v1744 = vpop.xlane.xlu0 %1743
  %v1745 = vsel %vm1525, %v932, 0.0
  %1746 = vadd.xlane.f32.xlu0 %v1745
  %v1747 = vpop.xlane.xlu0 %1746
  %v1748 = vsel %vm1525, %v937, 0.0
  %1749 = vadd.xlane.f32.xlu0 %v1748
  %v1750 = vpop.xlane.xlu0 %1749
  %v1751 = vsel %vm1525, %v942, 0.0
  %1752 = vadd.xlane.f32.xlu0 %v1751
  %v1753 = vpop.xlane.xlu0 %1752
  %v1754 = vsel %vm1525, %v947, 0.0
  %1755 = vadd.xlane.f32.xlu0 %v1754
  %v1756 = vpop.xlane.xlu0 %1755
  %v1757 = vsel %vm1525, %v952, 0.0
  %1758 = vadd.xlane.f32.xlu0 %v1757
  %v1759 = vpop.xlane.xlu0 %1758
  %v1760 = vsel %vm1525, %v957, 0.0
  %1761 = vadd.xlane.f32.xlu0 %v1760
  %v1762 = vpop.xlane.xlu0 %1761
  %v1763 = vsel %vm1525, %v962, 0.0
  %1764 = vadd.xlane.f32.xlu0 %v1763
  %v1765 = vpop.xlane.xlu0 %1764
  %v1766 = vsel %vm1525, %v967, 0.0
  %1767 = vadd.xlane.f32.xlu0 %v1766
  %v1768 = vpop.xlane.xlu0 %1767
  %v1769 = vsel %vm1525, %v972, 0.0
  %1770 = vadd.xlane.f32.xlu0 %v1769
  %v1771 = vpop.xlane.xlu0 %1770
  %v1772 = vsel %vm1525, %v977, 0.0
  %1773 = vadd.xlane.f32.xlu0 %v1772
  %v1774 = vpop.xlane.xlu0 %1773
  %v1775 = vsel %vm1525, %v982, 0.0
  %1776 = vadd.xlane.f32.xlu0 %v1775
  %v1777 = vpop.xlane.xlu0 %1776
  %v1778 = vsel %vm1525, %v987, 0.0
  %1779 = vadd.xlane.f32.xlu0 %v1778
  %v1780 = vpop.xlane.xlu0 %1779
  %v1781 = vsel %vm1525, %v992, 0.0
  %1782 = vadd.xlane.f32.xlu0 %v1781
  %v1783 = vpop.xlane.xlu0 %1782
  %v1784 = vsel %vm1525, %v997, 0.0
  %1785 = vadd.xlane.f32.xlu0 %v1784
  %v1786 = vpop.xlane.xlu0 %1785
  %v1787 = vsel %vm1525, %v1002, 0.0
  %1788 = vadd.xlane.f32.xlu0 %v1787
  %v1789 = vpop.xlane.xlu0 %1788
  %v1790 = vsel %vm1525, %v1007, 0.0
  %1791 = vadd.xlane.f32.xlu0 %v1790
  %v1792 = vpop.xlane.xlu0 %1791
  %v1793 = vsel %vm1525, %v1012, 0.0
  %1794 = vadd.xlane.f32.xlu0 %v1793
  %v1795 = vpop.xlane.xlu0 %1794
  %v1796 = vsel %vm1525, %v1017, 0.0
  %1797 = vadd.xlane.f32.xlu0 %v1796
  %v1798 = vpop.xlane.xlu0 %1797
  %v1799 = vsel %vm1525, %v1022, 0.0
  %1800 = vadd.xlane.f32.xlu0 %v1799
  %v1801 = vpop.xlane.xlu0 %1800
  %v1802 = vsel %vm1525, %v1027, 0.0
  %1803 = vadd.xlane.f32.xlu0 %v1802
  %v1804 = vpop.xlane.xlu0 %1803
  %v1805 = vsel %vm1525, %v1032, 0.0
  %1806 = vadd.xlane.f32.xlu0 %v1805
  %v1807 = vpop.xlane.xlu0 %1806
  %v1808 = vsel %vm1525, %v1037, 0.0
  %1809 = vadd.xlane.f32.xlu0 %v1808
  %v1810 = vpop.xlane.xlu0 %1809
  %v1811 = vsel %vm1525, %v1042, 0.0
  %1812 = vadd.xlane.f32.xlu0 %v1811
  %v1813 = vpop.xlane.xlu0 %1812
  %v1814 = vsel %vm1525, %v1047, 0.0
  %1815 = vadd.xlane.f32.xlu0 %v1814
  %v1816 = vpop.xlane.xlu0 %1815
  %v1817 = vsel %vm1525, %v1052, 0.0
  %1818 = vadd.xlane.f32.xlu0 %v1817
  %v1819 = vpop.xlane.xlu0 %1818
  %v1820 = vsel %vm1525, %v1057, 0.0
  %1821 = vadd.xlane.f32.xlu0 %v1820
  %v1822 = vpop.xlane.xlu0 %1821
  %v1823 = vsel %vm1525, %v1062, 0.0
  %1824 = vadd.xlane.f32.xlu0 %v1823
  %v1825 = vpop.xlane.xlu0 %1824
  %v1826 = vsel %vm1525, %v1067, 0.0
  %1827 = vadd.xlane.f32.xlu0 %v1826
  %v1828 = vpop.xlane.xlu0 %1827
  %v1829 = vsel %vm1525, %v1072, 0.0
  %1830 = vadd.xlane.f32.xlu0 %v1829
  %v1831 = vpop.xlane.xlu0 %1830
  %v1832 = vsel %vm1525, %v1077, 0.0
  %1833 = vadd.xlane.f32.xlu0 %v1832
  %v1834 = vpop.xlane.xlu0 %1833
  %v1835 = vsel %vm1525, %v1082, 0.0
  %1836 = vadd.xlane.f32.xlu0 %v1835
  %v1837 = vpop.xlane.xlu0 %1836
  %v1838 = vsel %vm1525, %v1087, 0.0
  %1839 = vadd.xlane.f32.xlu0 %v1838
  %v1840 = vpop.xlane.xlu0 %1839
  %v1841 = vsel %vm1525, %v1092, 0.0
  %1842 = vadd.xlane.f32.xlu0 %v1841
  %v1843 = vpop.xlane.xlu0 %1842
  %v1844 = vsel %vm1525, %v1097, 0.0
  %1845 = vadd.xlane.f32.xlu0 %v1844
  %v1846 = vpop.xlane.xlu0 %1845
  %v1847 = vsel %vm1525, %v1102, 0.0
  %1848 = vadd.xlane.f32.xlu0 %v1847
  %v1849 = vpop.xlane.xlu0 %1848
  %v1850 = vsel %vm1525, %v1107, 0.0
  %1851 = vadd.xlane.f32.xlu0 %v1850
  %v1852 = vpop.xlane.xlu0 %1851
  %v1853 = vsel %vm1525, %v1112, 0.0
  %1854 = vadd.xlane.f32.xlu0 %v1853
  %v1855 = vpop.xlane.xlu0 %1854
  %v1856 = vsel %vm1525, %v1117, 0.0
  %1857 = vadd.xlane.f32.xlu0 %v1856
  %v1858 = vpop.xlane.xlu0 %1857
  %v1859 = vsel %vm1525, %v1122, 0.0
  %1860 = vadd.xlane.f32.xlu0 %v1859
  %v1861 = vpop.xlane.xlu0 %1860
  %v1862 = vsel %vm1525, %v1127, 0.0
  %1863 = vadd.xlane.f32.xlu0 %v1862
  %v1864 = vpop.xlane.xlu0 %1863
  %v1865 = vsel %vm1525, %v1132, 0.0
  %1866 = vadd.xlane.f32.xlu0 %v1865
  %v1867 = vpop.xlane.xlu0 %1866
  %v1868 = vsel %vm1525, %v1137, 0.0
  %1869 = vadd.xlane.f32.xlu0 %v1868
  %v1870 = vpop.xlane.xlu0 %1869
  %v1871 = vsel %vm1525, %v1142, 0.0
  %1872 = vadd.xlane.f32.xlu0 %v1871
  %v1873 = vpop.xlane.xlu0 %1872
  %v1874 = vsel %vm1525, %v1147, 0.0
  %1875 = vadd.xlane.f32.xlu0 %v1874
  %v1876 = vpop.xlane.xlu0 %1875
  %v1877 = vsel %vm1525, %v1152, 0.0
  %1878 = vadd.xlane.f32.xlu0 %v1877
  %v1879 = vpop.xlane.xlu0 %1878
  %v1880 = vsel %vm1525, %v1157, 0.0
  %1881 = vadd.xlane.f32.xlu0 %v1880
  %v1882 = vpop.xlane.xlu0 %1881
  %v1883 = vsel %vm1525, %v1162, 0.0
  %1884 = vadd.xlane.f32.xlu0 %v1883
  %v1885 = vpop.xlane.xlu0 %1884
  %v1886 = vsel %vm1525, %v1167, 0.0
  %1887 = vadd.xlane.f32.xlu0 %v1886
  %v1888 = vpop.xlane.xlu0 %1887
  %v1889 = vsel %vm1525, %v1172, 0.0
  %1890 = vadd.xlane.f32.xlu0 %v1889
  %v1891 = vpop.xlane.xlu0 %1890
  %v1892 = vsel %vm1525, %v1177, 0.0
  %1893 = vadd.xlane.f32.xlu0 %v1892
  %v1894 = vpop.xlane.xlu0 %1893
  %v1895 = vsel %vm1525, %v1182, 0.0
  %1896 = vadd.xlane.f32.xlu0 %v1895
  %v1897 = vpop.xlane.xlu0 %1896
  %v1898 = vsel %vm1525, %v1187, 0.0
  %1899 = vadd.xlane.f32.xlu0 %v1898
  %v1900 = vpop.xlane.xlu0 %1899
  %v1901 = vsel %vm1525, %v1192, 0.0
  %1902 = vadd.xlane.f32.xlu0 %v1901
  %v1903 = vpop.xlane.xlu0 %1902
  %v1904 = vsel %vm1525, %v1197, 0.0
  %1905 = vadd.xlane.f32.xlu0 %v1904
  %v1906 = vpop.xlane.xlu0 %1905
  %v1907 = vsel %vm1525, %v1202, 0.0
  %1908 = vadd.xlane.f32.xlu0 %v1907
  %v1909 = vpop.xlane.xlu0 %1908
  %v1910 = vsel %vm1525, %v1207, 0.0
  %1911 = vadd.xlane.f32.xlu0 %v1910
  %v1912 = vpop.xlane.xlu0 %1911
  %v1913 = vsel %vm1525, %v1212, 0.0
  %1914 = vadd.xlane.f32.xlu0 %v1913
  %v1915 = vpop.xlane.xlu0 %1914
  %v1916 = vsel %vm1525, %v1217, 0.0
  %1917 = vadd.xlane.f32.xlu0 %v1916
  %v1918 = vpop.xlane.xlu0 %1917
  %v1919 = vsel %vm1525, %v1222, 0.0
  %1920 = vadd.xlane.f32.xlu0 %v1919
  %v1921 = vpop.xlane.xlu0 %1920
  %v1922 = vsel %vm1525, %v1227, 0.0
  %1923 = vadd.xlane.f32.xlu0 %v1922
  %v1924 = vpop.xlane.xlu0 %1923
  %v1925 = vsel %vm1525, %v1232, 0.0
  %1926 = vadd.xlane.f32.xlu0 %v1925
  %v1927 = vpop.xlane.xlu0 %1926
  %v1928 = vsel %vm1525, %v1237, 0.0
  %1929 = vadd.xlane.f32.xlu0 %v1928
  %v1930 = vpop.xlane.xlu0 %1929
  %v1931 = vsel %vm1525, %v1242, 0.0
  %1932 = vadd.xlane.f32.xlu0 %v1931
  %v1933 = vpop.xlane.xlu0 %1932
  %v1934 = vsel %vm1525, %v1247, 0.0
  %1935 = vadd.xlane.f32.xlu0 %v1934
  %v1936 = vpop.xlane.xlu0 %1935
  %v1937 = vsel %vm1525, %v1252, 0.0
  %1938 = vadd.xlane.f32.xlu0 %v1937
  %v1939 = vpop.xlane.xlu0 %1938
  %v1940 = vsel %vm1525, %v1257, 0.0
  %1941 = vadd.xlane.f32.xlu0 %v1940
  %v1942 = vpop.xlane.xlu0 %1941
  %v1943 = vsel %vm1525, %v1262, 0.0
  %1944 = vadd.xlane.f32.xlu0 %v1943
  %v1945 = vpop.xlane.xlu0 %1944
  %v1946 = vsel %vm1525, %v1267, 0.0
  %1947 = vadd.xlane.f32.xlu0 %v1946
  %v1948 = vpop.xlane.xlu0 %1947
  %v1949 = vsel %vm1525, %v1272, 0.0
  %1950 = vadd.xlane.f32.xlu0 %v1949
  %v1951 = vpop.xlane.xlu0 %1950
  %v1952 = vsel %vm1525, %v1277, 0.0
  %1953 = vadd.xlane.f32.xlu0 %v1952
  %v1954 = vpop.xlane.xlu0 %1953
  %v1955 = vsel %vm1525, %v1282, 0.0
  %1956 = vadd.xlane.f32.xlu0 %v1955
  %v1957 = vpop.xlane.xlu0 %1956
  %v1958 = vsel %vm1525, %v1287, 0.0
  %1959 = vadd.xlane.f32.xlu0 %v1958
  %v1960 = vpop.xlane.xlu0 %1959
  %v1961 = vsel %vm1525, %v1292, 0.0
  %1962 = vadd.xlane.f32.xlu0 %v1961
  %v1963 = vpop.xlane.xlu0 %1962
  %v1964 = vsel %vm1525, %v1297, 0.0
  %1965 = vadd.xlane.f32.xlu0 %v1964
  %v1966 = vpop.xlane.xlu0 %1965
  %v1967 = vsel %vm1525, %v1302, 0.0
  %1968 = vadd.xlane.f32.xlu0 %v1967
  %v1969 = vpop.xlane.xlu0 %1968
  %v1970 = vsel %vm1525, %v1307, 0.0
  %1971 = vadd.xlane.f32.xlu0 %v1970
  %v1972 = vpop.xlane.xlu0 %1971
  %v1973 = vsel %vm1525, %v1312, 0.0
  %1974 = vadd.xlane.f32.xlu0 %v1973
  %v1975 = vpop.xlane.xlu0 %1974
  %v1976 = vsel %vm1525, %v1317, 0.0
  %1977 = vadd.xlane.f32.xlu0 %v1976
  %v1978 = vpop.xlane.xlu0 %1977
  %v1979 = vsel %vm1525, %v1322, 0.0
  %1980 = vadd.xlane.f32.xlu0 %v1979
  %v1981 = vpop.xlane.xlu0 %1980
  %v1982 = vsel %vm1525, %v1327, 0.0
  %1983 = vadd.xlane.f32.xlu0 %v1982
  %v1984 = vpop.xlane.xlu0 %1983
  %v1985 = vsel %vm1525, %v1332, 0.0
  %1986 = vadd.xlane.f32.xlu0 %v1985
  %v1987 = vpop.xlane.xlu0 %1986
  %v1988 = vsel %vm1525, %v1337, 0.0
  %1989 = vadd.xlane.f32.xlu0 %v1988
  %v1990 = vpop.xlane.xlu0 %1989
  %v1991 = vsel %vm1525, %v1342, 0.0
  %1992 = vadd.xlane.f32.xlu0 %v1991
  %v1993 = vpop.xlane.xlu0 %1992
  %v1994 = vsel %vm1525, %v1347, 0.0
  %1995 = vadd.xlane.f32.xlu0 %v1994
  %v1996 = vpop.xlane.xlu0 %1995
  %v1997 = vsel %vm1525, %v1352, 0.0
  %1998 = vadd.xlane.f32.xlu0 %v1997
  %v1999 = vpop.xlane.xlu0 %1998
  %v2000 = vsel %vm1525, %v1357, 0.0
  %2001 = vadd.xlane.f32.xlu0 %v2000
  %v2002 = vpop.xlane.xlu0 %2001
  %v2003 = vsel %vm1525, %v1362, 0.0
  %2004 = vadd.xlane.f32.xlu0 %v2003
  %v2005 = vpop.xlane.xlu0 %2004
  %v2006 = vsel %vm1525, %v1367, 0.0
  %2007 = vadd.xlane.f32.xlu0 %v2006
  %v2008 = vpop.xlane.xlu0 %2007
  %v2009 = vsel %vm1525, %v1372, 0.0
  %2010 = vadd.xlane.f32.xlu0 %v2009
  %v2011 = vpop.xlane.xlu0 %2010
  %v2012 = vsel %vm1525, %v1377, 0.0
  %2013 = vadd.xlane.f32.xlu0 %v2012
  %v2014 = vpop.xlane.xlu0 %2013
  %v2015 = vsel %vm1525, %v1382, 0.0
  %2016 = vadd.xlane.f32.xlu0 %v2015
  %v2017 = vpop.xlane.xlu0 %2016
  %v2018 = vsel %vm1525, %v1387, 0.0
  %2019 = vadd.xlane.f32.xlu0 %v2018
  %v2020 = vpop.xlane.xlu0 %2019
  %v2021 = vsel %vm1525, %v1392, 0.0
  %2022 = vadd.xlane.f32.xlu0 %v2021
  %v2023 = vpop.xlane.xlu0 %2022
  %v2024 = vsel %vm1525, %v1397, 0.0
  %2025 = vadd.xlane.f32.xlu0 %v2024
  %v2026 = vpop.xlane.xlu0 %2025
  %v2027 = vsel %vm1525, %v1402, 0.0
  %2028 = vadd.xlane.f32.xlu0 %v2027
  %v2029 = vpop.xlane.xlu0 %2028
  %v2030 = vsel %vm1525, %v1407, 0.0
  %2031 = vadd.xlane.f32.xlu0 %v2030
  %v2032 = vpop.xlane.xlu0 %2031
  %v2033 = vsel %vm1525, %v1412, 0.0
  %2034 = vadd.xlane.f32.xlu0 %v2033
  %v2035 = vpop.xlane.xlu0 %2034
  %v2036 = vsel %vm1525, %v1417, 0.0
  %2037 = vadd.xlane.f32.xlu0 %v2036
  %v2038 = vpop.xlane.xlu0 %2037
  %v2039 = vsel %vm1525, %v1422, 0.0
  %2040 = vadd.xlane.f32.xlu0 %v2039
  %v2041 = vpop.xlane.xlu0 %2040
  %v2042 = vsel %vm1525, %v1427, 0.0
  %2043 = vadd.xlane.f32.xlu0 %v2042
  %v2044 = vpop.xlane.xlu0 %2043
  %v2045 = vsel %vm1525, %v1432, 0.0
  %2046 = vadd.xlane.f32.xlu0 %v2045
  %v2047 = vpop.xlane.xlu0 %2046
  %v2048 = vsel %vm1525, %v1437, 0.0
  %2049 = vadd.xlane.f32.xlu0 %v2048
  %v2050 = vpop.xlane.xlu0 %2049
  %v2051 = vsel %vm1525, %v1442, 0.0
  %2052 = vadd.xlane.f32.xlu0 %v2051
  %v2053 = vpop.xlane.xlu0 %2052
  %v2054 = vsel %vm1525, %v1447, 0.0
  %2055 = vadd.xlane.f32.xlu0 %v2054
  %v2056 = vpop.xlane.xlu0 %2055
  %v2057 = vsel %vm1525, %v1452, 0.0
  %2058 = vadd.xlane.f32.xlu0 %v2057
  %v2059 = vpop.xlane.xlu0 %2058
  %v2060 = vsel %vm1525, %v1457, 0.0
  %2061 = vadd.xlane.f32.xlu0 %v2060
  %v2062 = vpop.xlane.xlu0 %2061
  %v2063 = vsel %vm1525, %v1462, 0.0
  %2064 = vadd.xlane.f32.xlu0 %v2063
  %v2065 = vpop.xlane.xlu0 %2064
  %v2066 = vsel %vm1525, %v1467, 0.0
  %2067 = vadd.xlane.f32.xlu0 %v2066
  %v2068 = vpop.xlane.xlu0 %2067
  %v2069 = vsel %vm1525, %v1472, 0.0
  %2070 = vadd.xlane.f32.xlu0 %v2069
  %v2071 = vpop.xlane.xlu0 %2070
  %v2072 = vsel %vm1525, %v1477, 0.0
  %2073 = vadd.xlane.f32.xlu0 %v2072
  %v2074 = vpop.xlane.xlu0 %2073
  %v2075 = vsel %vm1525, %v1482, 0.0
  %2076 = vadd.xlane.f32.xlu0 %v2075
  %v2077 = vpop.xlane.xlu0 %2076
  %v2078 = vsel %vm1525, %v1487, 0.0
  %2079 = vadd.xlane.f32.xlu0 %v2078
  %v2080 = vpop.xlane.xlu0 %2079
  %v2081 = vsel %vm1525, %v1492, 0.0
  %2082 = vadd.xlane.f32.xlu0 %v2081
  %v2083 = vpop.xlane.xlu0 %2082
  %v2084 = vsel %vm1525, %v1497, 0.0
  %2085 = vadd.xlane.f32.xlu0 %v2084
  %v2086 = vpop.xlane.xlu0 %2085
  %v2087 = vsel %vm1525, %v1502, 0.0
  %2088 = vadd.xlane.f32.xlu0 %v2087
  %v2089 = vpop.xlane.xlu0 %2088
  %v2090 = vsel %vm1525, %v1507, 0.0
  %2091 = vadd.xlane.f32.xlu0 %v2090
  %v2092 = vpop.xlane.xlu0 %2091
  %v2093 = vsel %vm1525, %v1512, 0.0
  %2094 = vadd.xlane.f32.xlu0 %v2093
  %v2095 = vpop.xlane.xlu0 %2094
  %v2096 = vsel %vm1525, %v1517, 0.0
  %2097 = vadd.xlane.f32.xlu0 %v2096
  %v2098 = vpop.xlane.xlu0 %2097
  %v2099 = vsel %vm1525, %v1522, 0.0
  %2100 = vadd.xlane.f32.xlu0 %v2099
  %v2101 = vpop.xlane.xlu0 %2100
  %v2102 = vmul.f32 %v1528, 0.020408163
  %v2103 = vmul.f32 %v1531, 0.020408163
  %v2104 = vmul.f32 %v1534, 0.020408163
  %v2105 = vmul.f32 %v1537, 0.020408163
  %v2106 = vmul.f32 %v1540, 0.020408163
  %v2107 = vmul.f32 %v1543, 0.020408163
  %v2108 = vmul.f32 %v1546, 0.020408163
  %v2109 = vmul.f32 %v1549, 0.020408163
  %v2110 = vmul.f32 %v1552, 0.020408163
  %v2111 = vmul.f32 %v1555, 0.020408163
  %v2112 = vmul.f32 %v1558, 0.020408163
  %v2113 = vmul.f32 %v1561, 0.020408163
  %v2114 = vmul.f32 %v1564, 0.020408163
  %v2115 = vmul.f32 %v1567, 0.020408163
  %v2116 = vmul.f32 %v1570, 0.020408163
  %v2117 = vmul.f32 %v1573, 0.020408163
  %v2118 = vmul.f32 %v1576, 0.020408163
  %v2119 = vmul.f32 %v1579, 0.020408163
  %v2120 = vmul.f32 %v1582, 0.020408163
  %v2121 = vmul.f32 %v1585, 0.020408163
  %v2122 = vmul.f32 %v1588, 0.020408163
  %v2123 = vmul.f32 %v1591, 0.020408163
  %v2124 = vmul.f32 %v1594, 0.020408163
  %v2125 = vmul.f32 %v1597, 0.020408163
  %v2126 = vmul.f32 %v1600, 0.020408163
  %v2127 = vmul.f32 %v1603, 0.020408163
  %v2128 = vmul.f32 %v1606, 0.020408163
  %v2129 = vmul.f32 %v1609, 0.020408163
  %v2130 = vmul.f32 %v1612, 0.020408163
  %v2131 = vmul.f32 %v1615, 0.020408163
  %v2132 = vmul.f32 %v1618, 0.020408163
  %v2133 = vmul.f32 %v1621, 0.020408163
  %v2134 = vmul.f32 %v1624, 0.020408163
  %v2135 = vmul.f32 %v1627, 0.020408163
  %v2136 = vmul.f32 %v1630, 0.020408163
  %v2137 = vmul.f32 %v1633, 0.020408163
  %v2138 = vmul.f32 %v1636, 0.020408163
  %v2139 = vmul.f32 %v1639, 0.020408163
  %v2140 = vmul.f32 %v1642, 0.020408163
  %v2141 = vmul.f32 %v1645, 0.020408163
  %v2142 = vmul.f32 %v1648, 0.020408163
  %v2143 = vmul.f32 %v1651, 0.020408163
  %v2144 = vmul.f32 %v1654, 0.020408163
  %v2145 = vmul.f32 %v1657, 0.020408163
  %v2146 = vmul.f32 %v1660, 0.020408163
  %v2147 = vmul.f32 %v1663, 0.020408163
  %v2148 = vmul.f32 %v1666, 0.020408163
  %v2149 = vmul.f32 %v1669, 0.020408163
  %v2150 = vmul.f32 %v1672, 0.020408163
  %v2151 = vmul.f32 %v1675, 0.020408163
  %v2152 = vmul.f32 %v1678, 0.020408163
  %v2153 = vmul.f32 %v1681, 0.020408163
  %v2154 = vmul.f32 %v1684, 0.020408163
  %v2155 = vmul.f32 %v1687, 0.020408163
  %v2156 = vmul.f32 %v1690, 0.020408163
  %v2157 = vmul.f32 %v1693, 0.020408163
  %v2158 = vmul.f32 %v1696, 0.020408163
  %v2159 = vmul.f32 %v1699, 0.020408163
  %v2160 = vmul.f32 %v1702, 0.020408163
  %v2161 = vmul.f32 %v1705, 0.020408163
  %v2162 = vmul.f32 %v1708, 0.020408163
  %v2163 = vmul.f32 %v1711, 0.020408163
  %v2164 = vmul.f32 %v1714, 0.020408163
  %v2165 = vmul.f32 %v1717, 0.020408163
  %v2166 = vmul.f32 %v1720, 0.020408163
  %v2167 = vmul.f32 %v1723, 0.020408163
  %v2168 = vmul.f32 %v1726, 0.020408163
  %v2169 = vmul.f32 %v1729, 0.020408163
  %v2170 = vmul.f32 %v1732, 0.020408163
  %v2171 = vmul.f32 %v1735, 0.020408163
  %v2172 = vmul.f32 %v1738, 0.020408163
  %v2173 = vmul.f32 %v1741, 0.020408163
  %v2174 = vmul.f32 %v1744, 0.020408163
  %v2175 = vmul.f32 %v1747, 0.020408163
  %v2176 = vmul.f32 %v1750, 0.020408163
  %v2177 = vmul.f32 %v1753, 0.020408163
  %v2178 = vmul.f32 %v1756, 0.020408163
  %v2179 = vmul.f32 %v1759, 0.020408163
  %v2180 = vmul.f32 %v1762, 0.020408163
  %v2181 = vmul.f32 %v1765, 0.020408163
  %v2182 = vmul.f32 %v1768, 0.020408163
  %v2183 = vmul.f32 %v1771, 0.020408163
  %v2184 = vmul.f32 %v1774, 0.020408163
  %v2185 = vmul.f32 %v1777, 0.020408163
  %v2186 = vmul.f32 %v1780, 0.020408163
  %v2187 = vmul.f32 %v1783, 0.020408163
  %v2188 = vmul.f32 %v1786, 0.020408163
  %v2189 = vmul.f32 %v1789, 0.020408163
  %v2190 = vmul.f32 %v1792, 0.020408163
  %v2191 = vmul.f32 %v1795, 0.020408163
  %v2192 = vmul.f32 %v1798, 0.020408163
  %v2193 = vmul.f32 %v1801, 0.020408163
  %v2194 = vmul.f32 %v1804, 0.020408163
  %v2195 = vmul.f32 %v1807, 0.020408163
  %v2196 = vmul.f32 %v1810, 0.020408163
  %v2197 = vmul.f32 %v1813, 0.020408163
  %v2198 = vmul.f32 %v1816, 0.020408163
  %v2199 = vmul.f32 %v1819, 0.020408163
  %v2200 = vmul.f32 %v1822, 0.020408163
  %v2201 = vmul.f32 %v1825, 0.020408163
  %v2202 = vmul.f32 %v1828, 0.020408163
  %v2203 = vmul.f32 %v1831, 0.020408163
  %v2204 = vmul.f32 %v1834, 0.020408163
  %v2205 = vmul.f32 %v1837, 0.020408163
  %v2206 = vmul.f32 %v1840, 0.020408163
  %v2207 = vmul.f32 %v1843, 0.020408163
  %v2208 = vmul.f32 %v1846, 0.020408163
  %v2209 = vmul.f32 %v1849, 0.020408163
  %v2210 = vmul.f32 %v1852, 0.020408163
  %v2211 = vmul.f32 %v1855, 0.020408163
  %v2212 = vmul.f32 %v1858, 0.020408163
  %v2213 = vmul.f32 %v1861, 0.020408163
  %v2214 = vmul.f32 %v1864, 0.020408163
  %v2215 = vmul.f32 %v1867, 0.020408163
  %v2216 = vmul.f32 %v1870, 0.020408163
  %v2217 = vmul.f32 %v1873, 0.020408163
  %v2218 = vmul.f32 %v1876, 0.020408163
  %v2219 = vmul.f32 %v1879, 0.020408163
  %v2220 = vmul.f32 %v1882, 0.020408163
  %v2221 = vmul.f32 %v1885, 0.020408163
  %v2222 = vmul.f32 %v1888, 0.020408163
  %v2223 = vmul.f32 %v1891, 0.020408163
  %v2224 = vmul.f32 %v1894, 0.020408163
  %v2225 = vmul.f32 %v1897, 0.020408163
  %v2226 = vmul.f32 %v1900, 0.020408163
  %v2227 = vmul.f32 %v1903, 0.020408163
  %v2228 = vmul.f32 %v1906, 0.020408163
  %v2229 = vmul.f32 %v1909, 0.020408163
  %v2230 = vmul.f32 %v1912, 0.020408163
  %v2231 = vmul.f32 %v1915, 0.020408163
  %v2232 = vmul.f32 %v1918, 0.020408163
  %v2233 = vmul.f32 %v1921, 0.020408163
  %v2234 = vmul.f32 %v1924, 0.020408163
  %v2235 = vmul.f32 %v1927, 0.020408163
  %v2236 = vmul.f32 %v1930, 0.020408163
  %v2237 = vmul.f32 %v1933, 0.020408163
  %v2238 = vmul.f32 %v1936, 0.020408163
  %v2239 = vmul.f32 %v1939, 0.020408163
  %v2240 = vmul.f32 %v1942, 0.020408163
  %v2241 = vmul.f32 %v1945, 0.020408163
  %v2242 = vmul.f32 %v1948, 0.020408163
  %v2243 = vmul.f32 %v1951, 0.020408163
  %v2244 = vmul.f32 %v1954, 0.020408163
  %v2245 = vmul.f32 %v1957, 0.020408163
  %v2246 = vmul.f32 %v1960, 0.020408163
  %v2247 = vmul.f32 %v1963, 0.020408163
  %v2248 = vmul.f32 %v1966, 0.020408163
  %v2249 = vmul.f32 %v1969, 0.020408163
  %v2250 = vmul.f32 %v1972, 0.020408163
  %v2251 = vmul.f32 %v1975, 0.020408163
  %v2252 = vmul.f32 %v1978, 0.020408163
  %v2253 = vmul.f32 %v1981, 0.020408163
  %v2254 = vmul.f32 %v1984, 0.020408163
  %v2255 = vmul.f32 %v1987, 0.020408163
  %v2256 = vmul.f32 %v1990, 0.020408163
  %v2257 = vmul.f32 %v1993, 0.020408163
  %v2258 = vmul.f32 %v1996, 0.020408163
  %v2259 = vmul.f32 %v1999, 0.020408163
  %v2260 = vmul.f32 %v2002, 0.020408163
  %v2261 = vmul.f32 %v2005, 0.020408163
  %v2262 = vmul.f32 %v2008, 0.020408163
  %v2263 = vmul.f32 %v2011, 0.020408163
  %v2264 = vmul.f32 %v2014, 0.020408163
  %v2265 = vmul.f32 %v2017, 0.020408163
  %v2266 = vmul.f32 %v2020, 0.020408163
  %v2267 = vmul.f32 %v2023, 0.020408163
  %v2268 = vmul.f32 %v2026, 0.020408163
  %v2269 = vmul.f32 %v2029, 0.020408163
  %v2270 = vmul.f32 %v2032, 0.020408163
  %v2271 = vmul.f32 %v2035, 0.020408163
  %v2272 = vmul.f32 %v2038, 0.020408163
  %v2273 = vmul.f32 %v2041, 0.020408163
  %v2274 = vmul.f32 %v2044, 0.020408163
  %v2275 = vmul.f32 %v2047, 0.020408163
  %v2276 = vmul.f32 %v2050, 0.020408163
  %v2277 = vmul.f32 %v2053, 0.020408163
  %v2278 = vmul.f32 %v2056, 0.020408163
  %v2279 = vmul.f32 %v2059, 0.020408163
  %v2280 = vmul.f32 %v2062, 0.020408163
  %v2281 = vmul.f32 %v2065, 0.020408163
  %v2282 = vmul.f32 %v2068, 0.020408163
  %v2283 = vmul.f32 %v2071, 0.020408163
  %v2284 = vmul.f32 %v2074, 0.020408163
  %v2285 = vmul.f32 %v2077, 0.020408163
  %v2286 = vmul.f32 %v2080, 0.020408163
  %v2287 = vmul.f32 %v2083, 0.020408163
  %v2288 = vmul.f32 %v2086, 0.020408163
  %v2289 = vmul.f32 %v2089, 0.020408163
  %v2290 = vmul.f32 %v2092, 0.020408163
  %v2291 = vmul.f32 %v2095, 0.020408163
  %v2292 = vmul.f32 %v2098, 0.020408163
  %v2293 = vmul.f32 %v2101, 0.020408163
  %v2294 = vsub.f32 %v567, %v2102
  %v2295 = vsub.f32 %v572, %v2103
  %v2296 = vsub.f32 %v577, %v2104
  %v2297 = vsub.f32 %v582, %v2105
  %v2298 = vsub.f32 %v587, %v2106
  %v2299 = vsub.f32 %v592, %v2107
  %v2300 = vsub.f32 %v597, %v2108
  %v2301 = vsub.f32 %v602, %v2109
  %v2302 = vsub.f32 %v607, %v2110
  %v2303 = vsub.f32 %v612, %v2111
  %v2304 = vsub.f32 %v617, %v2112
  %v2305 = vsub.f32 %v622, %v2113
  %v2306 = vsub.f32 %v627, %v2114
  %v2307 = vsub.f32 %v632, %v2115
  %v2308 = vsub.f32 %v637, %v2116
  %v2309 = vsub.f32 %v642, %v2117
  %v2310 = vsub.f32 %v647, %v2118
  %v2311 = vsub.f32 %v652, %v2119
  %v2312 = vsub.f32 %v657, %v2120
  %v2313 = vsub.f32 %v662, %v2121
  %v2314 = vsub.f32 %v667, %v2122
  %v2315 = vsub.f32 %v672, %v2123
  %v2316 = vsub.f32 %v677, %v2124
  %v2317 = vsub.f32 %v682, %v2125
  %v2318 = vsub.f32 %v687, %v2126
  %v2319 = vsub.f32 %v692, %v2127
  %v2320 = vsub.f32 %v697, %v2128
  %v2321 = vsub.f32 %v702, %v2129
  %v2322 = vsub.f32 %v707, %v2130
  %v2323 = vsub.f32 %v712, %v2131
  %v2324 = vsub.f32 %v717, %v2132
  %v2325 = vsub.f32 %v722, %v2133
  %v2326 = vsub.f32 %v727, %v2134
  %v2327 = vsub.f32 %v732, %v2135
  %v2328 = vsub.f32 %v737, %v2136
  %v2329 = vsub.f32 %v742, %v2137
  %v2330 = vsub.f32 %v747, %v2138
  %v2331 = vsub.f32 %v752, %v2139
  %v2332 = vsub.f32 %v757, %v2140
  %v2333 = vsub.f32 %v762, %v2141
  %v2334 = vsub.f32 %v767, %v2142
  %v2335 = vsub.f32 %v772, %v2143
  %v2336 = vsub.f32 %v777, %v2144
  %v2337 = vsub.f32 %v782, %v2145
  %v2338 = vsub.f32 %v787, %v2146
  %v2339 = vsub.f32 %v792, %v2147
  %v2340 = vsub.f32 %v797, %v2148
  %v2341 = vsub.f32 %v802, %v2149
  %v2342 = vsub.f32 %v807, %v2150
  %v2343 = vsub.f32 %v812, %v2151
  %v2344 = vsub.f32 %v817, %v2152
  %v2345 = vsub.f32 %v822, %v2153
  %v2346 = vsub.f32 %v827, %v2154
  %v2347 = vsub.f32 %v832, %v2155
  %v2348 = vsub.f32 %v837, %v2156
  %v2349 = vsub.f32 %v842, %v2157
  %v2350 = vsub.f32 %v847, %v2158
  %v2351 = vsub.f32 %v852, %v2159
  %v2352 = vsub.f32 %v857, %v2160
  %v2353 = vsub.f32 %v862, %v2161
  %v2354 = vsub.f32 %v867, %v2162
  %v2355 = vsub.f32 %v872, %v2163
  %v2356 = vsub.f32 %v877, %v2164
  %v2357 = vsub.f32 %v882, %v2165
  %v2358 = vsub.f32 %v887, %v2166
  %v2359 = vsub.f32 %v892, %v2167
  %v2360 = vsub.f32 %v897, %v2168
  %v2361 = vsub.f32 %v902, %v2169
  %v2362 = vsub.f32 %v907, %v2170
  %v2363 = vsub.f32 %v912, %v2171
  %v2364 = vsub.f32 %v917, %v2172
  %v2365 = vsub.f32 %v922, %v2173
  %v2366 = vsub.f32 %v927, %v2174
  %v2367 = vsub.f32 %v932, %v2175
  %v2368 = vsub.f32 %v937, %v2176
  %v2369 = vsub.f32 %v942, %v2177
  %v2370 = vsub.f32 %v947, %v2178
  %v2371 = vsub.f32 %v952, %v2179
  %v2372 = vsub.f32 %v957, %v2180
  %v2373 = vsub.f32 %v962, %v2181
  %v2374 = vsub.f32 %v967, %v2182
  %v2375 = vsub.f32 %v972, %v2183
  %v2376 = vsub.f32 %v977, %v2184
  %v2377 = vsub.f32 %v982, %v2185
  %v2378 = vsub.f32 %v987, %v2186
  %v2379 = vsub.f32 %v992, %v2187
  %v2380 = vsub.f32 %v997, %v2188
  %v2381 = vsub.f32 %v1002, %v2189
  %v2382 = vsub.f32 %v1007, %v2190
  %v2383 = vsub.f32 %v1012, %v2191
  %v2384 = vsub.f32 %v1017, %v2192
  %v2385 = vsub.f32 %v1022, %v2193
  %v2386 = vsub.f32 %v1027, %v2194
  %v2387 = vsub.f32 %v1032, %v2195
  %v2388 = vsub.f32 %v1037, %v2196
  %v2389 = vsub.f32 %v1042, %v2197
  %v2390 = vsub.f32 %v1047, %v2198
  %v2391 = vsub.f32 %v1052, %v2199
  %v2392 = vsub.f32 %v1057, %v2200
  %v2393 = vsub.f32 %v1062, %v2201
  %v2394 = vsub.f32 %v1067, %v2202
  %v2395 = vsub.f32 %v1072, %v2203
  %v2396 = vsub.f32 %v1077, %v2204
  %v2397 = vsub.f32 %v1082, %v2205
  %v2398 = vsub.f32 %v1087, %v2206
  %v2399 = vsub.f32 %v1092, %v2207
  %v2400 = vsub.f32 %v1097, %v2208
  %v2401 = vsub.f32 %v1102, %v2209
  %v2402 = vsub.f32 %v1107, %v2210
  %v2403 = vsub.f32 %v1112, %v2211
  %v2404 = vsub.f32 %v1117, %v2212
  %v2405 = vsub.f32 %v1122, %v2213
  %v2406 = vsub.f32 %v1127, %v2214
  %v2407 = vsub.f32 %v1132, %v2215
  %v2408 = vsub.f32 %v1137, %v2216
  %v2409 = vsub.f32 %v1142, %v2217
  %v2410 = vsub.f32 %v1147, %v2218
  %v2411 = vsub.f32 %v1152, %v2219
  %v2412 = vsub.f32 %v1157, %v2220
  %v2413 = vsub.f32 %v1162, %v2221
  %v2414 = vsub.f32 %v1167, %v2222
  %v2415 = vsub.f32 %v1172, %v2223
  %v2416 = vsub.f32 %v1177, %v2224
  %v2417 = vsub.f32 %v1182, %v2225
  %v2418 = vsub.f32 %v1187, %v2226
  %v2419 = vsub.f32 %v1192, %v2227
  %v2420 = vsub.f32 %v1197, %v2228
  %v2421 = vsub.f32 %v1202, %v2229
  %v2422 = vsub.f32 %v1207, %v2230
  %v2423 = vsub.f32 %v1212, %v2231
  %v2424 = vsub.f32 %v1217, %v2232
  %v2425 = vsub.f32 %v1222, %v2233
  %v2426 = vsub.f32 %v1227, %v2234
  %v2427 = vsub.f32 %v1232, %v2235
  %v2428 = vsub.f32 %v1237, %v2236
  %v2429 = vsub.f32 %v1242, %v2237
  %v2430 = vsub.f32 %v1247, %v2238
  %v2431 = vsub.f32 %v1252, %v2239
  %v2432 = vsub.f32 %v1257, %v2240
  %v2433 = vsub.f32 %v1262, %v2241
  %v2434 = vsub.f32 %v1267, %v2242
  %v2435 = vsub.f32 %v1272, %v2243
  %v2436 = vsub.f32 %v1277, %v2244
  %v2437 = vsub.f32 %v1282, %v2245
  %v2438 = vsub.f32 %v1287, %v2246
  %v2439 = vsub.f32 %v1292, %v2247
  %v2440 = vsub.f32 %v1297, %v2248
  %v2441 = vsub.f32 %v1302, %v2249
  %v2442 = vsub.f32 %v1307, %v2250
  %v2443 = vsub.f32 %v1312, %v2251
  %v2444 = vsub.f32 %v1317, %v2252
  %v2445 = vsub.f32 %v1322, %v2253
  %v2446 = vsub.f32 %v1327, %v2254
  %v2447 = vsub.f32 %v1332, %v2255
  %v2448 = vsub.f32 %v1337, %v2256
  %v2449 = vsub.f32 %v1342, %v2257
  %v2450 = vsub.f32 %v1347, %v2258
  %v2451 = vsub.f32 %v1352, %v2259
  %v2452 = vsub.f32 %v1357, %v2260
  %v2453 = vsub.f32 %v1362, %v2261
  %v2454 = vsub.f32 %v1367, %v2262
  %v2455 = vsub.f32 %v1372, %v2263
  %v2456 = vsub.f32 %v1377, %v2264
  %v2457 = vsub.f32 %v1382, %v2265
  %v2458 = vsub.f32 %v1387, %v2266
  %v2459 = vsub.f32 %v1392, %v2267
  %v2460 = vsub.f32 %v1397, %v2268
  %v2461 = vsub.f32 %v1402, %v2269
  %v2462 = vsub.f32 %v1407, %v2270
  %v2463 = vsub.f32 %v1412, %v2271
  %v2464 = vsub.f32 %v1417, %v2272
  %v2465 = vsub.f32 %v1422, %v2273
  %v2466 = vsub.f32 %v1427, %v2274
  %v2467 = vsub.f32 %v1432, %v2275
  %v2468 = vsub.f32 %v1437, %v2276
  %v2469 = vsub.f32 %v1442, %v2277
  %v2470 = vsub.f32 %v1447, %v2278
  %v2471 = vsub.f32 %v1452, %v2279
  %v2472 = vsub.f32 %v1457, %v2280
  %v2473 = vsub.f32 %v1462, %v2281
  %v2474 = vsub.f32 %v1467, %v2282
  %v2475 = vsub.f32 %v1472, %v2283
  %v2476 = vsub.f32 %v1477, %v2284
  %v2477 = vsub.f32 %v1482, %v2285
  %v2478 = vsub.f32 %v1487, %v2286
  %v2479 = vsub.f32 %v1492, %v2287
  %v2480 = vsub.f32 %v1497, %v2288
  %v2481 = vsub.f32 %v1502, %v2289
  %v2482 = vsub.f32 %v1507, %v2290
  %v2483 = vsub.f32 %v1512, %v2291
  %v2484 = vsub.f32 %v1517, %v2292
  %v2485 = vsub.f32 %v1522, %v2293
  %v2486 = vmul.f32 %v2294, %v2294
  %v2487 = vmul.f32 %v2295, %v2295
  %v2488 = vmul.f32 %v2296, %v2296
  %v2489 = vmul.f32 %v2297, %v2297
  %v2490 = vmul.f32 %v2298, %v2298
  %v2491 = vmul.f32 %v2299, %v2299
  %v2492 = vmul.f32 %v2300, %v2300
  %v2493 = vmul.f32 %v2301, %v2301
  %v2494 = vmul.f32 %v2302, %v2302
  %v2495 = vmul.f32 %v2303, %v2303
  %v2496 = vmul.f32 %v2304, %v2304
  %v2497 = vmul.f32 %v2305, %v2305
  %v2498 = vmul.f32 %v2306, %v2306
  %v2499 = vmul.f32 %v2307, %v2307
  %v2500 = vmul.f32 %v2308, %v2308
  %v2501 = vmul.f32 %v2309, %v2309
  %v2502 = vmul.f32 %v2310, %v2310
  %v2503 = vmul.f32 %v2311, %v2311
  %v2504 = vmul.f32 %v2312, %v2312
  %v2505 = vmul.f32 %v2313, %v2313
  %v2506 = vmul.f32 %v2314, %v2314
  %v2507 = vmul.f32 %v2315, %v2315
  %v2508 = vmul.f32 %v2316, %v2316
  %v2509 = vmul.f32 %v2317, %v2317
  %v2510 = vmul.f32 %v2318, %v2318
  %v2511 = vmul.f32 %v2319, %v2319
  %v2512 = vmul.f32 %v2320, %v2320
  %v2513 = vmul.f32 %v2321, %v2321
  %v2514 = vmul.f32 %v2322, %v2322
  %v2515 = vmul.f32 %v2323, %v2323
  %v2516 = vmul.f32 %v2324, %v2324
  %v2517 = vmul.f32 %v2325, %v2325
  %v2518 = vmul.f32 %v2326, %v2326
  %v2519 = vmul.f32 %v2327, %v2327
  %v2520 = vmul.f32 %v2328, %v2328
  %v2521 = vmul.f32 %v2329, %v2329
  %v2522 = vmul.f32 %v2330, %v2330
  %v2523 = vmul.f32 %v2331, %v2331
  %v2524 = vmul.f32 %v2332, %v2332
  %v2525 = vmul.f32 %v2333, %v2333
  %v2526 = vmul.f32 %v2334, %v2334
  %v2527 = vmul.f32 %v2335, %v2335
  %v2528 = vmul.f32 %v2336, %v2336
  %v2529 = vmul.f32 %v2337, %v2337
  %v2530 = vmul.f32 %v2338, %v2338
  %v2531 = vmul.f32 %v2339, %v2339
  %v2532 = vmul.f32 %v2340, %v2340
  %v2533 = vmul.f32 %v2341, %v2341
  %v2534 = vmul.f32 %v2342, %v2342
  %v2535 = vmul.f32 %v2343, %v2343
  %v2536 = vmul.f32 %v2344, %v2344
  %v2537 = vmul.f32 %v2345, %v2345
  %v2538 = vmul.f32 %v2346, %v2346
  %v2539 = vmul.f32 %v2347, %v2347
  %v2540 = vmul.f32 %v2348, %v2348
  %v2541 = vmul.f32 %v2349, %v2349
  %v2542 = vmul.f32 %v2350, %v2350
  %v2543 = vmul.f32 %v2351, %v2351
  %v2544 = vmul.f32 %v2352, %v2352
  %v2545 = vmul.f32 %v2353, %v2353
  %v2546 = vmul.f32 %v2354, %v2354
  %v2547 = vmul.f32 %v2355, %v2355
  %v2548 = vmul.f32 %v2356, %v2356
  %v2549 = vmul.f32 %v2357, %v2357
  %v2550 = vmul.f32 %v2358, %v2358
  %v2551 = vmul.f32 %v2359, %v2359
  %v2552 = vmul.f32 %v2360, %v2360
  %v2553 = vmul.f32 %v2361, %v2361
  %v2554 = vmul.f32 %v2362, %v2362
  %v2555 = vmul.f32 %v2363, %v2363
  %v2556 = vmul.f32 %v2364, %v2364
  %v2557 = vmul.f32 %v2365, %v2365
  %v2558 = vmul.f32 %v2366, %v2366
  %v2559 = vmul.f32 %v2367, %v2367
  %v2560 = vmul.f32 %v2368, %v2368
  %v2561 = vmul.f32 %v2369, %v2369
  %v2562 = vmul.f32 %v2370, %v2370
  %v2563 = vmul.f32 %v2371, %v2371
  %v2564 = vmul.f32 %v2372, %v2372
  %v2565 = vmul.f32 %v2373, %v2373
  %v2566 = vmul.f32 %v2374, %v2374
  %v2567 = vmul.f32 %v2375, %v2375
  %v2568 = vmul.f32 %v2376, %v2376
  %v2569 = vmul.f32 %v2377, %v2377
  %v2570 = vmul.f32 %v2378, %v2378
  %v2571 = vmul.f32 %v2379, %v2379
  %v2572 = vmul.f32 %v2380, %v2380
  %v2573 = vmul.f32 %v2381, %v2381
  %v2574 = vmul.f32 %v2382, %v2382
  %v2575 = vmul.f32 %v2383, %v2383
  %v2576 = vmul.f32 %v2384, %v2384
  %v2577 = vmul.f32 %v2385, %v2385
  %v2578 = vmul.f32 %v2386, %v2386
  %v2579 = vmul.f32 %v2387, %v2387
  %v2580 = vmul.f32 %v2388, %v2388
  %v2581 = vmul.f32 %v2389, %v2389
  %v2582 = vmul.f32 %v2390, %v2390
  %v2583 = vmul.f32 %v2391, %v2391
  %v2584 = vmul.f32 %v2392, %v2392
  %v2585 = vmul.f32 %v2393, %v2393
  %v2586 = vmul.f32 %v2394, %v2394
  %v2587 = vmul.f32 %v2395, %v2395
  %v2588 = vmul.f32 %v2396, %v2396
  %v2589 = vmul.f32 %v2397, %v2397
  %v2590 = vmul.f32 %v2398, %v2398
  %v2591 = vmul.f32 %v2399, %v2399
  %v2592 = vmul.f32 %v2400, %v2400
  %v2593 = vmul.f32 %v2401, %v2401
  %v2594 = vmul.f32 %v2402, %v2402
  %v2595 = vmul.f32 %v2403, %v2403
  %v2596 = vmul.f32 %v2404, %v2404
  %v2597 = vmul.f32 %v2405, %v2405
  %v2598 = vmul.f32 %v2406, %v2406
  %v2599 = vmul.f32 %v2407, %v2407
  %v2600 = vmul.f32 %v2408, %v2408
  %v2601 = vmul.f32 %v2409, %v2409
  %v2602 = vmul.f32 %v2410, %v2410
  %v2603 = vmul.f32 %v2411, %v2411
  %v2604 = vmul.f32 %v2412, %v2412
  %v2605 = vmul.f32 %v2413, %v2413
  %v2606 = vmul.f32 %v2414, %v2414
  %v2607 = vmul.f32 %v2415, %v2415
  %v2608 = vmul.f32 %v2416, %v2416
  %v2609 = vmul.f32 %v2417, %v2417
  %v2610 = vmul.f32 %v2418, %v2418
  %v2611 = vmul.f32 %v2419, %v2419
  %v2612 = vmul.f32 %v2420, %v2420
  %v2613 = vmul.f32 %v2421, %v2421
  %v2614 = vmul.f32 %v2422, %v2422
  %v2615 = vmul.f32 %v2423, %v2423
  %v2616 = vmul.f32 %v2424, %v2424
  %v2617 = vmul.f32 %v2425, %v2425
  %v2618 = vmul.f32 %v2426, %v2426
  %v2619 = vmul.f32 %v2427, %v2427
  %v2620 = vmul.f32 %v2428, %v2428
  %v2621 = vmul.f32 %v2429, %v2429
  %v2622 = vmul.f32 %v2430, %v2430
  %v2623 = vmul.f32 %v2431, %v2431
  %v2624 = vmul.f32 %v2432, %v2432
  %v2625 = vmul.f32 %v2433, %v2433
  %v2626 = vmul.f32 %v2434, %v2434
  %v2627 = vmul.f32 %v2435, %v2435
  %v2628 = vmul.f32 %v2436, %v2436
  %v2629 = vmul.f32 %v2437, %v2437
  %v2630 = vmul.f32 %v2438, %v2438
  %v2631 = vmul.f32 %v2439, %v2439
  %v2632 = vmul.f32 %v2440, %v2440
  %v2633 = vmul.f32 %v2441, %v2441
  %v2634 = vmul.f32 %v2442, %v2442
  %v2635 = vmul.f32 %v2443, %v2443
  %v2636 = vmul.f32 %v2444, %v2444
  %v2637 = vmul.f32 %v2445, %v2445
  %v2638 = vmul.f32 %v2446, %v2446
  %v2639 = vmul.f32 %v2447, %v2447
  %v2640 = vmul.f32 %v2448, %v2448
  %v2641 = vmul.f32 %v2449, %v2449
  %v2642 = vmul.f32 %v2450, %v2450
  %v2643 = vmul.f32 %v2451, %v2451
  %v2644 = vmul.f32 %v2452, %v2452
  %v2645 = vmul.f32 %v2453, %v2453
  %v2646 = vmul.f32 %v2454, %v2454
  %v2647 = vmul.f32 %v2455, %v2455
  %v2648 = vmul.f32 %v2456, %v2456
  %v2649 = vmul.f32 %v2457, %v2457
  %v2650 = vmul.f32 %v2458, %v2458
  %v2651 = vmul.f32 %v2459, %v2459
  %v2652 = vmul.f32 %v2460, %v2460
  %v2653 = vmul.f32 %v2461, %v2461
  %v2654 = vmul.f32 %v2462, %v2462
  %v2655 = vmul.f32 %v2463, %v2463
  %v2656 = vmul.f32 %v2464, %v2464
  %v2657 = vmul.f32 %v2465, %v2465
  %v2658 = vmul.f32 %v2466, %v2466
  %v2659 = vmul.f32 %v2467, %v2467
  %v2660 = vmul.f32 %v2468, %v2468
  %v2661 = vmul.f32 %v2469, %v2469
  %v2662 = vmul.f32 %v2470, %v2470
  %v2663 = vmul.f32 %v2471, %v2471
  %v2664 = vmul.f32 %v2472, %v2472
  %v2665 = vmul.f32 %v2473, %v2473
  %v2666 = vmul.f32 %v2474, %v2474
  %v2667 = vmul.f32 %v2475, %v2475
  %v2668 = vmul.f32 %v2476, %v2476
  %v2669 = vmul.f32 %v2477, %v2477
  %v2670 = vmul.f32 %v2478, %v2478
  %v2671 = vmul.f32 %v2479, %v2479
  %v2672 = vmul.f32 %v2480, %v2480
  %v2673 = vmul.f32 %v2481, %v2481
  %v2674 = vmul.f32 %v2482, %v2482
  %v2675 = vmul.f32 %v2483, %v2483
  %v2676 = vmul.f32 %v2484, %v2484
  %v2677 = vmul.f32 %v2485, %v2485
  %v2678 = vsel %vm1525, %v2486, 0.0
  %2679 = vadd.xlane.f32.xlu0 %v2678
  %v2680 = vpop.xlane.xlu0 %2679
  %v2681 = vsel %vm1525, %v2487, 0.0
  %2682 = vadd.xlane.f32.xlu0 %v2681
  %v2683 = vpop.xlane.xlu0 %2682
  %v2684 = vsel %vm1525, %v2488, 0.0
  %2685 = vadd.xlane.f32.xlu0 %v2684
  %v2686 = vpop.xlane.xlu0 %2685
  %v2687 = vsel %vm1525, %v2489, 0.0
  %2688 = vadd.xlane.f32.xlu0 %v2687
  %v2689 = vpop.xlane.xlu0 %2688
  %v2690 = vsel %vm1525, %v2490, 0.0
  %2691 = vadd.xlane.f32.xlu0 %v2690
  %v2692 = vpop.xlane.xlu0 %2691
  %v2693 = vsel %vm1525, %v2491, 0.0
  %2694 = vadd.xlane.f32.xlu0 %v2693
  %v2695 = vpop.xlane.xlu0 %2694
  %v2696 = vsel %vm1525, %v2492, 0.0
  %2697 = vadd.xlane.f32.xlu0 %v2696
  %v2698 = vpop.xlane.xlu0 %2697
  %v2699 = vsel %vm1525, %v2493, 0.0
  %2700 = vadd.xlane.f32.xlu0 %v2699
  %v2701 = vpop.xlane.xlu0 %2700
  %v2702 = vsel %vm1525, %v2494, 0.0
  %2703 = vadd.xlane.f32.xlu0 %v2702
  %v2704 = vpop.xlane.xlu0 %2703
  %v2705 = vsel %vm1525, %v2495, 0.0
  %2706 = vadd.xlane.f32.xlu0 %v2705
  %v2707 = vpop.xlane.xlu0 %2706
  %v2708 = vsel %vm1525, %v2496, 0.0
  %2709 = vadd.xlane.f32.xlu0 %v2708
  %v2710 = vpop.xlane.xlu0 %2709
  %v2711 = vsel %vm1525, %v2497, 0.0
  %2712 = vadd.xlane.f32.xlu0 %v2711
  %v2713 = vpop.xlane.xlu0 %2712
  %v2714 = vsel %vm1525, %v2498, 0.0
  %2715 = vadd.xlane.f32.xlu0 %v2714
  %v2716 = vpop.xlane.xlu0 %2715
  %v2717 = vsel %vm1525, %v2499, 0.0
  %2718 = vadd.xlane.f32.xlu0 %v2717
  %v2719 = vpop.xlane.xlu0 %2718
  %v2720 = vsel %vm1525, %v2500, 0.0
  %2721 = vadd.xlane.f32.xlu0 %v2720
  %v2722 = vpop.xlane.xlu0 %2721
  %v2723 = vsel %vm1525, %v2501, 0.0
  %2724 = vadd.xlane.f32.xlu0 %v2723
  %v2725 = vpop.xlane.xlu0 %2724
  %v2726 = vsel %vm1525, %v2502, 0.0
  %2727 = vadd.xlane.f32.xlu0 %v2726
  %v2728 = vpop.xlane.xlu0 %2727
  %v2729 = vsel %vm1525, %v2503, 0.0
  %2730 = vadd.xlane.f32.xlu0 %v2729
  %v2731 = vpop.xlane.xlu0 %2730
  %v2732 = vsel %vm1525, %v2504, 0.0
  %2733 = vadd.xlane.f32.xlu0 %v2732
  %v2734 = vpop.xlane.xlu0 %2733
  %v2735 = vsel %vm1525, %v2505, 0.0
  %2736 = vadd.xlane.f32.xlu0 %v2735
  %v2737 = vpop.xlane.xlu0 %2736
  %v2738 = vsel %vm1525, %v2506, 0.0
  %2739 = vadd.xlane.f32.xlu0 %v2738
  %v2740 = vpop.xlane.xlu0 %2739
  %v2741 = vsel %vm1525, %v2507, 0.0
  %2742 = vadd.xlane.f32.xlu0 %v2741
  %v2743 = vpop.xlane.xlu0 %2742
  %v2744 = vsel %vm1525, %v2508, 0.0
  %2745 = vadd.xlane.f32.xlu0 %v2744
  %v2746 = vpop.xlane.xlu0 %2745
  %v2747 = vsel %vm1525, %v2509, 0.0
  %2748 = vadd.xlane.f32.xlu0 %v2747
  %v2749 = vpop.xlane.xlu0 %2748
  %v2750 = vsel %vm1525, %v2510, 0.0
  %2751 = vadd.xlane.f32.xlu0 %v2750
  %v2752 = vpop.xlane.xlu0 %2751
  %v2753 = vsel %vm1525, %v2511, 0.0
  %2754 = vadd.xlane.f32.xlu0 %v2753
  %v2755 = vpop.xlane.xlu0 %2754
  %v2756 = vsel %vm1525, %v2512, 0.0
  %2757 = vadd.xlane.f32.xlu0 %v2756
  %v2758 = vpop.xlane.xlu0 %2757
  %v2759 = vsel %vm1525, %v2513, 0.0
  %2760 = vadd.xlane.f32.xlu0 %v2759
  %v2761 = vpop.xlane.xlu0 %2760
  %v2762 = vsel %vm1525, %v2514, 0.0
  %2763 = vadd.xlane.f32.xlu0 %v2762
  %v2764 = vpop.xlane.xlu0 %2763
  %v2765 = vsel %vm1525, %v2515, 0.0
  %2766 = vadd.xlane.f32.xlu0 %v2765
  %v2767 = vpop.xlane.xlu0 %2766
  %v2768 = vsel %vm1525, %v2516, 0.0
  %2769 = vadd.xlane.f32.xlu0 %v2768
  %v2770 = vpop.xlane.xlu0 %2769
  %v2771 = vsel %vm1525, %v2517, 0.0
  %2772 = vadd.xlane.f32.xlu0 %v2771
  %v2773 = vpop.xlane.xlu0 %2772
  %v2774 = vsel %vm1525, %v2518, 0.0
  %2775 = vadd.xlane.f32.xlu0 %v2774
  %v2776 = vpop.xlane.xlu0 %2775
  %v2777 = vsel %vm1525, %v2519, 0.0
  %2778 = vadd.xlane.f32.xlu0 %v2777
  %v2779 = vpop.xlane.xlu0 %2778
  %v2780 = vsel %vm1525, %v2520, 0.0
  %2781 = vadd.xlane.f32.xlu0 %v2780
  %v2782 = vpop.xlane.xlu0 %2781
  %v2783 = vsel %vm1525, %v2521, 0.0
  %2784 = vadd.xlane.f32.xlu0 %v2783
  %v2785 = vpop.xlane.xlu0 %2784
  %v2786 = vsel %vm1525, %v2522, 0.0
  %2787 = vadd.xlane.f32.xlu0 %v2786
  %v2788 = vpop.xlane.xlu0 %2787
  %v2789 = vsel %vm1525, %v2523, 0.0
  %2790 = vadd.xlane.f32.xlu0 %v2789
  %v2791 = vpop.xlane.xlu0 %2790
  %v2792 = vsel %vm1525, %v2524, 0.0
  %2793 = vadd.xlane.f32.xlu0 %v2792
  %v2794 = vpop.xlane.xlu0 %2793
  %v2795 = vsel %vm1525, %v2525, 0.0
  %2796 = vadd.xlane.f32.xlu0 %v2795
  %v2797 = vpop.xlane.xlu0 %2796
  %v2798 = vsel %vm1525, %v2526, 0.0
  %2799 = vadd.xlane.f32.xlu0 %v2798
  %v2800 = vpop.xlane.xlu0 %2799
  %v2801 = vsel %vm1525, %v2527, 0.0
  %2802 = vadd.xlane.f32.xlu0 %v2801
  %v2803 = vpop.xlane.xlu0 %2802
  %v2804 = vsel %vm1525, %v2528, 0.0
  %2805 = vadd.xlane.f32.xlu0 %v2804
  %v2806 = vpop.xlane.xlu0 %2805
  %v2807 = vsel %vm1525, %v2529, 0.0
  %2808 = vadd.xlane.f32.xlu0 %v2807
  %v2809 = vpop.xlane.xlu0 %2808
  %v2810 = vsel %vm1525, %v2530, 0.0
  %2811 = vadd.xlane.f32.xlu0 %v2810
  %v2812 = vpop.xlane.xlu0 %2811
  %v2813 = vsel %vm1525, %v2531, 0.0
  %2814 = vadd.xlane.f32.xlu0 %v2813
  %v2815 = vpop.xlane.xlu0 %2814
  %v2816 = vsel %vm1525, %v2532, 0.0
  %2817 = vadd.xlane.f32.xlu0 %v2816
  %v2818 = vpop.xlane.xlu0 %2817
  %v2819 = vsel %vm1525, %v2533, 0.0
  %2820 = vadd.xlane.f32.xlu0 %v2819
  %v2821 = vpop.xlane.xlu0 %2820
  %v2822 = vsel %vm1525, %v2534, 0.0
  %2823 = vadd.xlane.f32.xlu0 %v2822
  %v2824 = vpop.xlane.xlu0 %2823
  %v2825 = vsel %vm1525, %v2535, 0.0
  %2826 = vadd.xlane.f32.xlu0 %v2825
  %v2827 = vpop.xlane.xlu0 %2826
  %v2828 = vsel %vm1525, %v2536, 0.0
  %2829 = vadd.xlane.f32.xlu0 %v2828
  %v2830 = vpop.xlane.xlu0 %2829
  %v2831 = vsel %vm1525, %v2537, 0.0
  %2832 = vadd.xlane.f32.xlu0 %v2831
  %v2833 = vpop.xlane.xlu0 %2832
  %v2834 = vsel %vm1525, %v2538, 0.0
  %2835 = vadd.xlane.f32.xlu0 %v2834
  %v2836 = vpop.xlane.xlu0 %2835
  %v2837 = vsel %vm1525, %v2539, 0.0
  %2838 = vadd.xlane.f32.xlu0 %v2837
  %v2839 = vpop.xlane.xlu0 %2838
  %v2840 = vsel %vm1525, %v2540, 0.0
  %2841 = vadd.xlane.f32.xlu0 %v2840
  %v2842 = vpop.xlane.xlu0 %2841
  %v2843 = vsel %vm1525, %v2541, 0.0
  %2844 = vadd.xlane.f32.xlu0 %v2843
  %v2845 = vpop.xlane.xlu0 %2844
  %v2846 = vsel %vm1525, %v2542, 0.0
  %2847 = vadd.xlane.f32.xlu0 %v2846
  %v2848 = vpop.xlane.xlu0 %2847
  %v2849 = vsel %vm1525, %v2543, 0.0
  %2850 = vadd.xlane.f32.xlu0 %v2849
  %v2851 = vpop.xlane.xlu0 %2850
  %v2852 = vsel %vm1525, %v2544, 0.0
  %2853 = vadd.xlane.f32.xlu0 %v2852
  %v2854 = vpop.xlane.xlu0 %2853
  %v2855 = vsel %vm1525, %v2545, 0.0
  %2856 = vadd.xlane.f32.xlu0 %v2855
  %v2857 = vpop.xlane.xlu0 %2856
  %v2858 = vsel %vm1525, %v2546, 0.0
  %2859 = vadd.xlane.f32.xlu0 %v2858
  %v2860 = vpop.xlane.xlu0 %2859
  %v2861 = vsel %vm1525, %v2547, 0.0
  %2862 = vadd.xlane.f32.xlu0 %v2861
  %v2863 = vpop.xlane.xlu0 %2862
  %v2864 = vsel %vm1525, %v2548, 0.0
  %2865 = vadd.xlane.f32.xlu0 %v2864
  %v2866 = vpop.xlane.xlu0 %2865
  %v2867 = vsel %vm1525, %v2549, 0.0
  %2868 = vadd.xlane.f32.xlu0 %v2867
  %v2869 = vpop.xlane.xlu0 %2868
  %v2870 = vsel %vm1525, %v2550, 0.0
  %2871 = vadd.xlane.f32.xlu0 %v2870
  %v2872 = vpop.xlane.xlu0 %2871
  %v2873 = vsel %vm1525, %v2551, 0.0
  %2874 = vadd.xlane.f32.xlu0 %v2873
  %v2875 = vpop.xlane.xlu0 %2874
  %v2876 = vsel %vm1525, %v2552, 0.0
  %2877 = vadd.xlane.f32.xlu0 %v2876
  %v2878 = vpop.xlane.xlu0 %2877
  %v2879 = vsel %vm1525, %v2553, 0.0
  %2880 = vadd.xlane.f32.xlu0 %v2879
  %v2881 = vpop.xlane.xlu0 %2880
  %v2882 = vsel %vm1525, %v2554, 0.0
  %2883 = vadd.xlane.f32.xlu0 %v2882
  %v2884 = vpop.xlane.xlu0 %2883
  %v2885 = vsel %vm1525, %v2555, 0.0
  %2886 = vadd.xlane.f32.xlu0 %v2885
  %v2887 = vpop.xlane.xlu0 %2886
  %v2888 = vsel %vm1525, %v2556, 0.0
  %2889 = vadd.xlane.f32.xlu0 %v2888
  %v2890 = vpop.xlane.xlu0 %2889
  %v2891 = vsel %vm1525, %v2557, 0.0
  %2892 = vadd.xlane.f32.xlu0 %v2891
  %v2893 = vpop.xlane.xlu0 %2892
  %v2894 = vsel %vm1525, %v2558, 0.0
  %2895 = vadd.xlane.f32.xlu0 %v2894
  %v2896 = vpop.xlane.xlu0 %2895
  %v2897 = vsel %vm1525, %v2559, 0.0
  %2898 = vadd.xlane.f32.xlu0 %v2897
  %v2899 = vpop.xlane.xlu0 %2898
  %v2900 = vsel %vm1525, %v2560, 0.0
  %2901 = vadd.xlane.f32.xlu0 %v2900
  %v2902 = vpop.xlane.xlu0 %2901
  %v2903 = vsel %vm1525, %v2561, 0.0
  %2904 = vadd.xlane.f32.xlu0 %v2903
  %v2905 = vpop.xlane.xlu0 %2904
  %v2906 = vsel %vm1525, %v2562, 0.0
  %2907 = vadd.xlane.f32.xlu0 %v2906
  %v2908 = vpop.xlane.xlu0 %2907
  %v2909 = vsel %vm1525, %v2563, 0.0
  %2910 = vadd.xlane.f32.xlu0 %v2909
  %v2911 = vpop.xlane.xlu0 %2910
  %v2912 = vsel %vm1525, %v2564, 0.0
  %2913 = vadd.xlane.f32.xlu0 %v2912
  %v2914 = vpop.xlane.xlu0 %2913
  %v2915 = vsel %vm1525, %v2565, 0.0
  %2916 = vadd.xlane.f32.xlu0 %v2915
  %v2917 = vpop.xlane.xlu0 %2916
  %v2918 = vsel %vm1525, %v2566, 0.0
  %2919 = vadd.xlane.f32.xlu0 %v2918
  %v2920 = vpop.xlane.xlu0 %2919
  %v2921 = vsel %vm1525, %v2567, 0.0
  %2922 = vadd.xlane.f32.xlu0 %v2921
  %v2923 = vpop.xlane.xlu0 %2922
  %v2924 = vsel %vm1525, %v2568, 0.0
  %2925 = vadd.xlane.f32.xlu0 %v2924
  %v2926 = vpop.xlane.xlu0 %2925
  %v2927 = vsel %vm1525, %v2569, 0.0
  %2928 = vadd.xlane.f32.xlu0 %v2927
  %v2929 = vpop.xlane.xlu0 %2928
  %v2930 = vsel %vm1525, %v2570, 0.0
  %2931 = vadd.xlane.f32.xlu0 %v2930
  %v2932 = vpop.xlane.xlu0 %2931
  %v2933 = vsel %vm1525, %v2571, 0.0
  %2934 = vadd.xlane.f32.xlu0 %v2933
  %v2935 = vpop.xlane.xlu0 %2934
  %v2936 = vsel %vm1525, %v2572, 0.0
  %2937 = vadd.xlane.f32.xlu0 %v2936
  %v2938 = vpop.xlane.xlu0 %2937
  %v2939 = vsel %vm1525, %v2573, 0.0
  %2940 = vadd.xlane.f32.xlu0 %v2939
  %v2941 = vpop.xlane.xlu0 %2940
  %v2942 = vsel %vm1525, %v2574, 0.0
  %2943 = vadd.xlane.f32.xlu0 %v2942
  %v2944 = vpop.xlane.xlu0 %2943
  %v2945 = vsel %vm1525, %v2575, 0.0
  %2946 = vadd.xlane.f32.xlu0 %v2945
  %v2947 = vpop.xlane.xlu0 %2946
  %v2948 = vsel %vm1525, %v2576, 0.0
  %2949 = vadd.xlane.f32.xlu0 %v2948
  %v2950 = vpop.xlane.xlu0 %2949
  %v2951 = vsel %vm1525, %v2577, 0.0
  %2952 = vadd.xlane.f32.xlu0 %v2951
  %v2953 = vpop.xlane.xlu0 %2952
  %v2954 = vsel %vm1525, %v2578, 0.0
  %2955 = vadd.xlane.f32.xlu0 %v2954
  %v2956 = vpop.xlane.xlu0 %2955
  %v2957 = vsel %vm1525, %v2579, 0.0
  %2958 = vadd.xlane.f32.xlu0 %v2957
  %v2959 = vpop.xlane.xlu0 %2958
  %v2960 = vsel %vm1525, %v2580, 0.0
  %2961 = vadd.xlane.f32.xlu0 %v2960
  %v2962 = vpop.xlane.xlu0 %2961
  %v2963 = vsel %vm1525, %v2581, 0.0
  %2964 = vadd.xlane.f32.xlu0 %v2963
  %v2965 = vpop.xlane.xlu0 %2964
  %v2966 = vsel %vm1525, %v2582, 0.0
  %2967 = vadd.xlane.f32.xlu0 %v2966
  %v2968 = vpop.xlane.xlu0 %2967
  %v2969 = vsel %vm1525, %v2583, 0.0
  %2970 = vadd.xlane.f32.xlu0 %v2969
  %v2971 = vpop.xlane.xlu0 %2970
  %v2972 = vsel %vm1525, %v2584, 0.0
  %2973 = vadd.xlane.f32.xlu0 %v2972
  %v2974 = vpop.xlane.xlu0 %2973
  %v2975 = vsel %vm1525, %v2585, 0.0
  %2976 = vadd.xlane.f32.xlu0 %v2975
  %v2977 = vpop.xlane.xlu0 %2976
  %v2978 = vsel %vm1525, %v2586, 0.0
  %2979 = vadd.xlane.f32.xlu0 %v2978
  %v2980 = vpop.xlane.xlu0 %2979
  %v2981 = vsel %vm1525, %v2587, 0.0
  %2982 = vadd.xlane.f32.xlu0 %v2981
  %v2983 = vpop.xlane.xlu0 %2982
  %v2984 = vsel %vm1525, %v2588, 0.0
  %2985 = vadd.xlane.f32.xlu0 %v2984
  %v2986 = vpop.xlane.xlu0 %2985
  %v2987 = vsel %vm1525, %v2589, 0.0
  %2988 = vadd.xlane.f32.xlu0 %v2987
  %v2989 = vpop.xlane.xlu0 %2988
  %v2990 = vsel %vm1525, %v2590, 0.0
  %2991 = vadd.xlane.f32.xlu0 %v2990
  %v2992 = vpop.xlane.xlu0 %2991
  %v2993 = vsel %vm1525, %v2591, 0.0
  %2994 = vadd.xlane.f32.xlu0 %v2993
  %v2995 = vpop.xlane.xlu0 %2994
  %v2996 = vsel %vm1525, %v2592, 0.0
  %2997 = vadd.xlane.f32.xlu0 %v2996
  %v2998 = vpop.xlane.xlu0 %2997
  %v2999 = vsel %vm1525, %v2593, 0.0
  %3000 = vadd.xlane.f32.xlu0 %v2999
  %v3001 = vpop.xlane.xlu0 %3000
  %v3002 = vsel %vm1525, %v2594, 0.0
  %3003 = vadd.xlane.f32.xlu0 %v3002
  %v3004 = vpop.xlane.xlu0 %3003
  %v3005 = vsel %vm1525, %v2595, 0.0
  %3006 = vadd.xlane.f32.xlu0 %v3005
  %v3007 = vpop.xlane.xlu0 %3006
  %v3008 = vsel %vm1525, %v2596, 0.0
  %3009 = vadd.xlane.f32.xlu0 %v3008
  %v3010 = vpop.xlane.xlu0 %3009
  %v3011 = vsel %vm1525, %v2597, 0.0
  %3012 = vadd.xlane.f32.xlu0 %v3011
  %v3013 = vpop.xlane.xlu0 %3012
  %v3014 = vsel %vm1525, %v2598, 0.0
  %3015 = vadd.xlane.f32.xlu0 %v3014
  %v3016 = vpop.xlane.xlu0 %3015
  %v3017 = vsel %vm1525, %v2599, 0.0
  %3018 = vadd.xlane.f32.xlu0 %v3017
  %v3019 = vpop.xlane.xlu0 %3018
  %v3020 = vsel %vm1525, %v2600, 0.0
  %3021 = vadd.xlane.f32.xlu0 %v3020
  %v3022 = vpop.xlane.xlu0 %3021
  %v3023 = vsel %vm1525, %v2601, 0.0
  %3024 = vadd.xlane.f32.xlu0 %v3023
  %v3025 = vpop.xlane.xlu0 %3024
  %v3026 = vsel %vm1525, %v2602, 0.0
  %3027 = vadd.xlane.f32.xlu0 %v3026
  %v3028 = vpop.xlane.xlu0 %3027
  %v3029 = vsel %vm1525, %v2603, 0.0
  %3030 = vadd.xlane.f32.xlu0 %v3029
  %v3031 = vpop.xlane.xlu0 %3030
  %v3032 = vsel %vm1525, %v2604, 0.0
  %3033 = vadd.xlane.f32.xlu0 %v3032
  %v3034 = vpop.xlane.xlu0 %3033
  %v3035 = vsel %vm1525, %v2605, 0.0
  %3036 = vadd.xlane.f32.xlu0 %v3035
  %v3037 = vpop.xlane.xlu0 %3036
  %v3038 = vsel %vm1525, %v2606, 0.0
  %3039 = vadd.xlane.f32.xlu0 %v3038
  %v3040 = vpop.xlane.xlu0 %3039
  %v3041 = vsel %vm1525, %v2607, 0.0
  %3042 = vadd.xlane.f32.xlu0 %v3041
  %v3043 = vpop.xlane.xlu0 %3042
  %v3044 = vsel %vm1525, %v2608, 0.0
  %3045 = vadd.xlane.f32.xlu0 %v3044
  %v3046 = vpop.xlane.xlu0 %3045
  %v3047 = vsel %vm1525, %v2609, 0.0
  %3048 = vadd.xlane.f32.xlu0 %v3047
  %v3049 = vpop.xlane.xlu0 %3048
  %v3050 = vsel %vm1525, %v2610, 0.0
  %3051 = vadd.xlane.f32.xlu0 %v3050
  %v3052 = vpop.xlane.xlu0 %3051
  %v3053 = vsel %vm1525, %v2611, 0.0
  %3054 = vadd.xlane.f32.xlu0 %v3053
  %v3055 = vpop.xlane.xlu0 %3054
  %v3056 = vsel %vm1525, %v2612, 0.0
  %3057 = vadd.xlane.f32.xlu0 %v3056
  %v3058 = vpop.xlane.xlu0 %3057
  %v3059 = vsel %vm1525, %v2613, 0.0
  %3060 = vadd.xlane.f32.xlu0 %v3059
  %v3061 = vpop.xlane.xlu0 %3060
  %v3062 = vsel %vm1525, %v2614, 0.0
  %3063 = vadd.xlane.f32.xlu0 %v3062
  %v3064 = vpop.xlane.xlu0 %3063
  %v3065 = vsel %vm1525, %v2615, 0.0
  %3066 = vadd.xlane.f32.xlu0 %v3065
  %v3067 = vpop.xlane.xlu0 %3066
  %v3068 = vsel %vm1525, %v2616, 0.0
  %3069 = vadd.xlane.f32.xlu0 %v3068
  %v3070 = vpop.xlane.xlu0 %3069
  %v3071 = vsel %vm1525, %v2617, 0.0
  %3072 = vadd.xlane.f32.xlu0 %v3071
  %v3073 = vpop.xlane.xlu0 %3072
  %v3074 = vsel %vm1525, %v2618, 0.0
  %3075 = vadd.xlane.f32.xlu0 %v3074
  %v3076 = vpop.xlane.xlu0 %3075
  %v3077 = vsel %vm1525, %v2619, 0.0
  %3078 = vadd.xlane.f32.xlu0 %v3077
  %v3079 = vpop.xlane.xlu0 %3078
  %v3080 = vsel %vm1525, %v2620, 0.0
  %3081 = vadd.xlane.f32.xlu0 %v3080
  %v3082 = vpop.xlane.xlu0 %3081
  %v3083 = vsel %vm1525, %v2621, 0.0
  %3084 = vadd.xlane.f32.xlu0 %v3083
  %v3085 = vpop.xlane.xlu0 %3084
  %v3086 = vsel %vm1525, %v2622, 0.0
  %3087 = vadd.xlane.f32.xlu0 %v3086
  %v3088 = vpop.xlane.xlu0 %3087
  %v3089 = vsel %vm1525, %v2623, 0.0
  %3090 = vadd.xlane.f32.xlu0 %v3089
  %v3091 = vpop.xlane.xlu0 %3090
  %v3092 = vsel %vm1525, %v2624, 0.0
  %3093 = vadd.xlane.f32.xlu0 %v3092
  %v3094 = vpop.xlane.xlu0 %3093
  %v3095 = vsel %vm1525, %v2625, 0.0
  %3096 = vadd.xlane.f32.xlu0 %v3095
  %v3097 = vpop.xlane.xlu0 %3096
  %v3098 = vsel %vm1525, %v2626, 0.0
  %3099 = vadd.xlane.f32.xlu0 %v3098
  %v3100 = vpop.xlane.xlu0 %3099
  %v3101 = vsel %vm1525, %v2627, 0.0
  %3102 = vadd.xlane.f32.xlu0 %v3101
  %v3103 = vpop.xlane.xlu0 %3102
  %v3104 = vsel %vm1525, %v2628, 0.0
  %3105 = vadd.xlane.f32.xlu0 %v3104
  %v3106 = vpop.xlane.xlu0 %3105
  %v3107 = vsel %vm1525, %v2629, 0.0
  %3108 = vadd.xlane.f32.xlu0 %v3107
  %v3109 = vpop.xlane.xlu0 %3108
  %v3110 = vsel %vm1525, %v2630, 0.0
  %3111 = vadd.xlane.f32.xlu0 %v3110
  %v3112 = vpop.xlane.xlu0 %3111
  %v3113 = vsel %vm1525, %v2631, 0.0
  %3114 = vadd.xlane.f32.xlu0 %v3113
  %v3115 = vpop.xlane.xlu0 %3114
  %v3116 = vsel %vm1525, %v2632, 0.0
  %3117 = vadd.xlane.f32.xlu0 %v3116
  %v3118 = vpop.xlane.xlu0 %3117
  %v3119 = vsel %vm1525, %v2633, 0.0
  %3120 = vadd.xlane.f32.xlu0 %v3119
  %v3121 = vpop.xlane.xlu0 %3120
  %v3122 = vsel %vm1525, %v2634, 0.0
  %3123 = vadd.xlane.f32.xlu0 %v3122
  %v3124 = vpop.xlane.xlu0 %3123
  %v3125 = vsel %vm1525, %v2635, 0.0
  %3126 = vadd.xlane.f32.xlu0 %v3125
  %v3127 = vpop.xlane.xlu0 %3126
  %v3128 = vsel %vm1525, %v2636, 0.0
  %3129 = vadd.xlane.f32.xlu0 %v3128
  %v3130 = vpop.xlane.xlu0 %3129
  %v3131 = vsel %vm1525, %v2637, 0.0
  %3132 = vadd.xlane.f32.xlu0 %v3131
  %v3133 = vpop.xlane.xlu0 %3132
  %v3134 = vsel %vm1525, %v2638, 0.0
  %3135 = vadd.xlane.f32.xlu0 %v3134
  %v3136 = vpop.xlane.xlu0 %3135
  %v3137 = vsel %vm1525, %v2639, 0.0
  %3138 = vadd.xlane.f32.xlu0 %v3137
  %v3139 = vpop.xlane.xlu0 %3138
  %v3140 = vsel %vm1525, %v2640, 0.0
  %3141 = vadd.xlane.f32.xlu0 %v3140
  %v3142 = vpop.xlane.xlu0 %3141
  %v3143 = vsel %vm1525, %v2641, 0.0
  %3144 = vadd.xlane.f32.xlu0 %v3143
  %v3145 = vpop.xlane.xlu0 %3144
  %v3146 = vsel %vm1525, %v2642, 0.0
  %3147 = vadd.xlane.f32.xlu0 %v3146
  %v3148 = vpop.xlane.xlu0 %3147
  %v3149 = vsel %vm1525, %v2643, 0.0
  %3150 = vadd.xlane.f32.xlu0 %v3149
  %v3151 = vpop.xlane.xlu0 %3150
  %v3152 = vsel %vm1525, %v2644, 0.0
  %3153 = vadd.xlane.f32.xlu0 %v3152
  %v3154 = vpop.xlane.xlu0 %3153
  %v3155 = vsel %vm1525, %v2645, 0.0
  %3156 = vadd.xlane.f32.xlu0 %v3155
  %v3157 = vpop.xlane.xlu0 %3156
  %v3158 = vsel %vm1525, %v2646, 0.0
  %3159 = vadd.xlane.f32.xlu0 %v3158
  %v3160 = vpop.xlane.xlu0 %3159
  %v3161 = vsel %vm1525, %v2647, 0.0
  %3162 = vadd.xlane.f32.xlu0 %v3161
  %v3163 = vpop.xlane.xlu0 %3162
  %v3164 = vsel %vm1525, %v2648, 0.0
  %3165 = vadd.xlane.f32.xlu0 %v3164
  %v3166 = vpop.xlane.xlu0 %3165
  %v3167 = vsel %vm1525, %v2649, 0.0
  %3168 = vadd.xlane.f32.xlu0 %v3167
  %v3169 = vpop.xlane.xlu0 %3168
  %v3170 = vsel %vm1525, %v2650, 0.0
  %3171 = vadd.xlane.f32.xlu0 %v3170
  %v3172 = vpop.xlane.xlu0 %3171
  %v3173 = vsel %vm1525, %v2651, 0.0
  %3174 = vadd.xlane.f32.xlu0 %v3173
  %v3175 = vpop.xlane.xlu0 %3174
  %v3176 = vsel %vm1525, %v2652, 0.0
  %3177 = vadd.xlane.f32.xlu0 %v3176
  %v3178 = vpop.xlane.xlu0 %3177
  %v3179 = vsel %vm1525, %v2653, 0.0
  %3180 = vadd.xlane.f32.xlu0 %v3179
  %v3181 = vpop.xlane.xlu0 %3180
  %v3182 = vsel %vm1525, %v2654, 0.0
  %3183 = vadd.xlane.f32.xlu0 %v3182
  %v3184 = vpop.xlane.xlu0 %3183
  %v3185 = vsel %vm1525, %v2655, 0.0
  %3186 = vadd.xlane.f32.xlu0 %v3185
  %v3187 = vpop.xlane.xlu0 %3186
  %v3188 = vsel %vm1525, %v2656, 0.0
  %3189 = vadd.xlane.f32.xlu0 %v3188
  %v3190 = vpop.xlane.xlu0 %3189
  %v3191 = vsel %vm1525, %v2657, 0.0
  %3192 = vadd.xlane.f32.xlu0 %v3191
  %v3193 = vpop.xlane.xlu0 %3192
  %v3194 = vsel %vm1525, %v2658, 0.0
  %3195 = vadd.xlane.f32.xlu0 %v3194
  %v3196 = vpop.xlane.xlu0 %3195
  %v3197 = vsel %vm1525, %v2659, 0.0
  %3198 = vadd.xlane.f32.xlu0 %v3197
  %v3199 = vpop.xlane.xlu0 %3198
  %v3200 = vsel %vm1525, %v2660, 0.0
  %3201 = vadd.xlane.f32.xlu0 %v3200
  %v3202 = vpop.xlane.xlu0 %3201
  %v3203 = vsel %vm1525, %v2661, 0.0
  %3204 = vadd.xlane.f32.xlu0 %v3203
  %v3205 = vpop.xlane.xlu0 %3204
  %v3206 = vsel %vm1525, %v2662, 0.0
  %3207 = vadd.xlane.f32.xlu0 %v3206
  %v3208 = vpop.xlane.xlu0 %3207
  %v3209 = vsel %vm1525, %v2663, 0.0
  %3210 = vadd.xlane.f32.xlu0 %v3209
  %v3211 = vpop.xlane.xlu0 %3210
  %v3212 = vsel %vm1525, %v2664, 0.0
  %3213 = vadd.xlane.f32.xlu0 %v3212
  %v3214 = vpop.xlane.xlu0 %3213
  %v3215 = vsel %vm1525, %v2665, 0.0
  %3216 = vadd.xlane.f32.xlu0 %v3215
  %v3217 = vpop.xlane.xlu0 %3216
  %v3218 = vsel %vm1525, %v2666, 0.0
  %3219 = vadd.xlane.f32.xlu0 %v3218
  %v3220 = vpop.xlane.xlu0 %3219
  %v3221 = vsel %vm1525, %v2667, 0.0
  %3222 = vadd.xlane.f32.xlu0 %v3221
  %v3223 = vpop.xlane.xlu0 %3222
  %v3224 = vsel %vm1525, %v2668, 0.0
  %3225 = vadd.xlane.f32.xlu0 %v3224
  %v3226 = vpop.xlane.xlu0 %3225
  %v3227 = vsel %vm1525, %v2669, 0.0
  %3228 = vadd.xlane.f32.xlu0 %v3227
  %v3229 = vpop.xlane.xlu0 %3228
  %v3230 = vsel %vm1525, %v2670, 0.0
  %3231 = vadd.xlane.f32.xlu0 %v3230
  %v3232 = vpop.xlane.xlu0 %3231
  %v3233 = vsel %vm1525, %v2671, 0.0
  %3234 = vadd.xlane.f32.xlu0 %v3233
  %v3235 = vpop.xlane.xlu0 %3234
  %v3236 = vsel %vm1525, %v2672, 0.0
  %3237 = vadd.xlane.f32.xlu0 %v3236
  %v3238 = vpop.xlane.xlu0 %3237
  %v3239 = vsel %vm1525, %v2673, 0.0
  %3240 = vadd.xlane.f32.xlu0 %v3239
  %v3241 = vpop.xlane.xlu0 %3240
  %v3242 = vsel %vm1525, %v2674, 0.0
  %3243 = vadd.xlane.f32.xlu0 %v3242
  %v3244 = vpop.xlane.xlu0 %3243
  %v3245 = vsel %vm1525, %v2675, 0.0
  %3246 = vadd.xlane.f32.xlu0 %v3245
  %v3247 = vpop.xlane.xlu0 %3246
  %v3248 = vsel %vm1525, %v2676, 0.0
  %3249 = vadd.xlane.f32.xlu0 %v3248
  %v3250 = vpop.xlane.xlu0 %3249
  %v3251 = vsel %vm1525, %v2677, 0.0
  %3252 = vadd.xlane.f32.xlu0 %v3251
  %v3253 = vpop.xlane.xlu0 %3252
  %v3254 = vmul.f32 %v2680, 0.020408163
  %v3255 = vmul.f32 %v2683, 0.020408163
  %v3256 = vmul.f32 %v2686, 0.020408163
  %v3257 = vmul.f32 %v2689, 0.020408163
  %v3258 = vmul.f32 %v2692, 0.020408163
  %v3259 = vmul.f32 %v2695, 0.020408163
  %v3260 = vmul.f32 %v2698, 0.020408163
  %v3261 = vmul.f32 %v2701, 0.020408163
  %v3262 = vmul.f32 %v2704, 0.020408163
  %v3263 = vmul.f32 %v2707, 0.020408163
  %v3264 = vmul.f32 %v2710, 0.020408163
  %v3265 = vmul.f32 %v2713, 0.020408163
  %v3266 = vmul.f32 %v2716, 0.020408163
  %v3267 = vmul.f32 %v2719, 0.020408163
  %v3268 = vmul.f32 %v2722, 0.020408163
  %v3269 = vmul.f32 %v2725, 0.020408163
  %v3270 = vmul.f32 %v2728, 0.020408163
  %v3271 = vmul.f32 %v2731, 0.020408163
  %v3272 = vmul.f32 %v2734, 0.020408163
  %v3273 = vmul.f32 %v2737, 0.020408163
  %v3274 = vmul.f32 %v2740, 0.020408163
  %v3275 = vmul.f32 %v2743, 0.020408163
  %v3276 = vmul.f32 %v2746, 0.020408163
  %v3277 = vmul.f32 %v2749, 0.020408163
  %v3278 = vmul.f32 %v2752, 0.020408163
  %v3279 = vmul.f32 %v2755, 0.020408163
  %v3280 = vmul.f32 %v2758, 0.020408163
  %v3281 = vmul.f32 %v2761, 0.020408163
  %v3282 = vmul.f32 %v2764, 0.020408163
  %v3283 = vmul.f32 %v2767, 0.020408163
  %v3284 = vmul.f32 %v2770, 0.020408163
  %v3285 = vmul.f32 %v2773, 0.020408163
  %v3286 = vmul.f32 %v2776, 0.020408163
  %v3287 = vmul.f32 %v2779, 0.020408163
  %v3288 = vmul.f32 %v2782, 0.020408163
  %v3289 = vmul.f32 %v2785, 0.020408163
  %v3290 = vmul.f32 %v2788, 0.020408163
  %v3291 = vmul.f32 %v2791, 0.020408163
  %v3292 = vmul.f32 %v2794, 0.020408163
  %v3293 = vmul.f32 %v2797, 0.020408163
  %v3294 = vmul.f32 %v2800, 0.020408163
  %v3295 = vmul.f32 %v2803, 0.020408163
  %v3296 = vmul.f32 %v2806, 0.020408163
  %v3297 = vmul.f32 %v2809, 0.020408163
  %v3298 = vmul.f32 %v2812, 0.020408163
  %v3299 = vmul.f32 %v2815, 0.020408163
  %v3300 = vmul.f32 %v2818, 0.020408163
  %v3301 = vmul.f32 %v2821, 0.020408163
  %v3302 = vmul.f32 %v2824, 0.020408163
  %v3303 = vmul.f32 %v2827, 0.020408163
  %v3304 = vmul.f32 %v2830, 0.020408163
  %v3305 = vmul.f32 %v2833, 0.020408163
  %v3306 = vmul.f32 %v2836, 0.020408163
  %v3307 = vmul.f32 %v2839, 0.020408163
  %v3308 = vmul.f32 %v2842, 0.020408163
  %v3309 = vmul.f32 %v2845, 0.020408163
  %v3310 = vmul.f32 %v2848, 0.020408163
  %v3311 = vmul.f32 %v2851, 0.020408163
  %v3312 = vmul.f32 %v2854, 0.020408163
  %v3313 = vmul.f32 %v2857, 0.020408163
  %v3314 = vmul.f32 %v2860, 0.020408163
  %v3315 = vmul.f32 %v2863, 0.020408163
  %v3316 = vmul.f32 %v2866, 0.020408163
  %v3317 = vmul.f32 %v2869, 0.020408163
  %v3318 = vmul.f32 %v2872, 0.020408163
  %v3319 = vmul.f32 %v2875, 0.020408163
  %v3320 = vmul.f32 %v2878, 0.020408163
  %v3321 = vmul.f32 %v2881, 0.020408163
  %v3322 = vmul.f32 %v2884, 0.020408163
  %v3323 = vmul.f32 %v2887, 0.020408163
  %v3324 = vmul.f32 %v2890, 0.020408163
  %v3325 = vmul.f32 %v2893, 0.020408163
  %v3326 = vmul.f32 %v2896, 0.020408163
  %v3327 = vmul.f32 %v2899, 0.020408163
  %v3328 = vmul.f32 %v2902, 0.020408163
  %v3329 = vmul.f32 %v2905, 0.020408163
  %v3330 = vmul.f32 %v2908, 0.020408163
  %v3331 = vmul.f32 %v2911, 0.020408163
  %v3332 = vmul.f32 %v2914, 0.020408163
  %v3333 = vmul.f32 %v2917, 0.020408163
  %v3334 = vmul.f32 %v2920, 0.020408163
  %v3335 = vmul.f32 %v2923, 0.020408163
  %v3336 = vmul.f32 %v2926, 0.020408163
  %v3337 = vmul.f32 %v2929, 0.020408163
  %v3338 = vmul.f32 %v2932, 0.020408163
  %v3339 = vmul.f32 %v2935, 0.020408163
  %v3340 = vmul.f32 %v2938, 0.020408163
  %v3341 = vmul.f32 %v2941, 0.020408163
  %v3342 = vmul.f32 %v2944, 0.020408163
  %v3343 = vmul.f32 %v2947, 0.020408163
  %v3344 = vmul.f32 %v2950, 0.020408163
  %v3345 = vmul.f32 %v2953, 0.020408163
  %v3346 = vmul.f32 %v2956, 0.020408163
  %v3347 = vmul.f32 %v2959, 0.020408163
  %v3348 = vmul.f32 %v2962, 0.020408163
  %v3349 = vmul.f32 %v2965, 0.020408163
  %v3350 = vmul.f32 %v2968, 0.020408163
  %v3351 = vmul.f32 %v2971, 0.020408163
  %v3352 = vmul.f32 %v2974, 0.020408163
  %v3353 = vmul.f32 %v2977, 0.020408163
  %v3354 = vmul.f32 %v2980, 0.020408163
  %v3355 = vmul.f32 %v2983, 0.020408163
  %v3356 = vmul.f32 %v2986, 0.020408163
  %v3357 = vmul.f32 %v2989, 0.020408163
  %v3358 = vmul.f32 %v2992, 0.020408163
  %v3359 = vmul.f32 %v2995, 0.020408163
  %v3360 = vmul.f32 %v2998, 0.020408163
  %v3361 = vmul.f32 %v3001, 0.020408163
  %v3362 = vmul.f32 %v3004, 0.020408163
  %v3363 = vmul.f32 %v3007, 0.020408163
  %v3364 = vmul.f32 %v3010, 0.020408163
  %v3365 = vmul.f32 %v3013, 0.020408163
  %v3366 = vmul.f32 %v3016, 0.020408163
  %v3367 = vmul.f32 %v3019, 0.020408163
  %v3368 = vmul.f32 %v3022, 0.020408163
  %v3369 = vmul.f32 %v3025, 0.020408163
  %v3370 = vmul.f32 %v3028, 0.020408163
  %v3371 = vmul.f32 %v3031, 0.020408163
  %v3372 = vmul.f32 %v3034, 0.020408163
  %v3373 = vmul.f32 %v3037, 0.020408163
  %v3374 = vmul.f32 %v3040, 0.020408163
  %v3375 = vmul.f32 %v3043, 0.020408163
  %v3376 = vmul.f32 %v3046, 0.020408163
  %v3377 = vmul.f32 %v3049, 0.020408163
  %v3378 = vmul.f32 %v3052, 0.020408163
  %v3379 = vmul.f32 %v3055, 0.020408163
  %v3380 = vmul.f32 %v3058, 0.020408163
  %v3381 = vmul.f32 %v3061, 0.020408163
  %v3382 = vmul.f32 %v3064, 0.020408163
  %v3383 = vmul.f32 %v3067, 0.020408163
  %v3384 = vmul.f32 %v3070, 0.020408163
  %v3385 = vmul.f32 %v3073, 0.020408163
  %v3386 = vmul.f32 %v3076, 0.020408163
  %v3387 = vmul.f32 %v3079, 0.020408163
  %v3388 = vmul.f32 %v3082, 0.020408163
  %v3389 = vmul.f32 %v3085, 0.020408163
  %v3390 = vmul.f32 %v3088, 0.020408163
  %v3391 = vmul.f32 %v3091, 0.020408163
  %v3392 = vmul.f32 %v3094, 0.020408163
  %v3393 = vmul.f32 %v3097, 0.020408163
  %v3394 = vmul.f32 %v3100, 0.020408163
  %v3395 = vmul.f32 %v3103, 0.020408163
  %v3396 = vmul.f32 %v3106, 0.020408163
  %v3397 = vmul.f32 %v3109, 0.020408163
  %v3398 = vmul.f32 %v3112, 0.020408163
  %v3399 = vmul.f32 %v3115, 0.020408163
  %v3400 = vmul.f32 %v3118, 0.020408163
  %v3401 = vmul.f32 %v3121, 0.020408163
  %v3402 = vmul.f32 %v3124, 0.020408163
  %v3403 = vmul.f32 %v3127, 0.020408163
  %v3404 = vmul.f32 %v3130, 0.020408163
  %v3405 = vmul.f32 %v3133, 0.020408163
  %v3406 = vmul.f32 %v3136, 0.020408163
  %v3407 = vmul.f32 %v3139, 0.020408163
  %v3408 = vmul.f32 %v3142, 0.020408163
  %v3409 = vmul.f32 %v3145, 0.020408163
  %v3410 = vmul.f32 %v3148, 0.020408163
  %v3411 = vmul.f32 %v3151, 0.020408163
  %v3412 = vmul.f32 %v3154, 0.020408163
  %v3413 = vmul.f32 %v3157, 0.020408163
  %v3414 = vmul.f32 %v3160, 0.020408163
  %v3415 = vmul.f32 %v3163, 0.020408163
  %v3416 = vmul.f32 %v3166, 0.020408163
  %v3417 = vmul.f32 %v3169, 0.020408163
  %v3418 = vmul.f32 %v3172, 0.020408163
  %v3419 = vmul.f32 %v3175, 0.020408163
  %v3420 = vmul.f32 %v3178, 0.020408163
  %v3421 = vmul.f32 %v3181, 0.020408163
  %v3422 = vmul.f32 %v3184, 0.020408163
  %v3423 = vmul.f32 %v3187, 0.020408163
  %v3424 = vmul.f32 %v3190, 0.020408163
  %v3425 = vmul.f32 %v3193, 0.020408163
  %v3426 = vmul.f32 %v3196, 0.020408163
  %v3427 = vmul.f32 %v3199, 0.020408163
  %v3428 = vmul.f32 %v3202, 0.020408163
  %v3429 = vmul.f32 %v3205, 0.020408163
  %v3430 = vmul.f32 %v3208, 0.020408163
  %v3431 = vmul.f32 %v3211, 0.020408163
  %v3432 = vmul.f32 %v3214, 0.020408163
  %v3433 = vmul.f32 %v3217, 0.020408163
  %v3434 = vmul.f32 %v3220, 0.020408163
  %v3435 = vmul.f32 %v3223, 0.020408163
  %v3436 = vmul.f32 %v3226, 0.020408163
  %v3437 = vmul.f32 %v3229, 0.020408163
  %v3438 = vmul.f32 %v3232, 0.020408163
  %v3439 = vmul.f32 %v3235, 0.020408163
  %v3440 = vmul.f32 %v3238, 0.020408163
  %v3441 = vmul.f32 %v3241, 0.020408163
  %v3442 = vmul.f32 %v3244, 0.020408163
  %v3443 = vmul.f32 %v3247, 0.020408163
  %v3444 = vmul.f32 %v3250, 0.020408163
  %v3445 = vmul.f32 %v3253, 0.020408163
  %v3446 = vld [vmem:[%s3] sm:$0xff]
  %v3447 = vld [vmem:[%s3 + $0x8] sm:$0xff]
  %v3448 = vld [vmem:[%s3 + $0x10] sm:$0xff]
  %v3449 = vld [vmem:[%s3 + $0x18] sm:$0xff]
  %v3450 = vld [vmem:[%s3 + $0x20] sm:$0xff]
  %v3451 = vld [vmem:[%s3 + $0x28] sm:$0xff]
  %v3452 = vld [vmem:[%s3 + $0x30] sm:$0xff]
  %v3453 = vld [vmem:[%s3 + $0x38] sm:$0xff]
  %v3454 = vld [vmem:[%s3 + $0x40] sm:$0xff]
  %v3455 = vld [vmem:[%s3 + $0x48] sm:$0xff]
  %v3456 = vld [vmem:[%s3 + $0x50] sm:$0xff]
  %v3457 = vld [vmem:[%s3 + $0x58] sm:$0xff]
  %v3458 = vld [vmem:[%s3 + $0x60] sm:$0xff]
  %v3459 = vld [vmem:[%s3 + $0x68] sm:$0xff]
  %v3460 = vld [vmem:[%s3 + $0x70] sm:$0xff]
  %v3461 = vld [vmem:[%s3 + $0x78] sm:$0xff]
  %v3462 = vld [vmem:[%s3 + $0x80] sm:$0xff]
  %v3463 = vld [vmem:[%s3 + $0x88] sm:$0xff]
  %v3464 = vld [vmem:[%s3 + $0x90] sm:$0xff]
  %v3465 = vld [vmem:[%s3 + $0x98] sm:$0xff]
  %v3466 = vld [vmem:[%s3 + $0xa0] sm:$0xff]
  %v3467 = vld [vmem:[%s3 + $0xa8] sm:$0xff]
  %v3468 = vld [vmem:[%s3 + $0xb0] sm:$0xff]
  %v3469 = vld [vmem:[%s3 + $0xb8] sm:$0xff]
  %v3470 = vld [vmem:[%s3 + $0xc0] sm:$0xff]
  %v3471 = vld [vmem:[%s3 + $0xc8] sm:$0xff]
  %v3472 = vld [vmem:[%s3 + $0xd0] sm:$0xff]
  %v3473 = vld [vmem:[%s3 + $0xd8] sm:$0xff]
  %v3474 = vld [vmem:[%s3 + $0xe0] sm:$0xff]
  %v3475 = vld [vmem:[%s3 + $0xe8] sm:$0xff]
  %v3476 = vld [vmem:[%s3 + $0xf0] sm:$0xff]
  %v3477 = vld [vmem:[%s3 + $0xf8] sm:$0xff]
  %v3478 = vld [vmem:[%s3 + $0x100] sm:$0xff]
  %v3479 = vld [vmem:[%s3 + $0x108] sm:$0xff]
  %v3480 = vld [vmem:[%s3 + $0x110] sm:$0xff]
  %v3481 = vld [vmem:[%s3 + $0x118] sm:$0xff]
  %v3482 = vld [vmem:[%s3 + $0x120] sm:$0xff]
  %v3483 = vld [vmem:[%s3 + $0x128] sm:$0xff]
  %v3484 = vld [vmem:[%s3 + $0x130] sm:$0xff]
  %v3485 = vld [vmem:[%s3 + $0x138] sm:$0xff]
  %v3486 = vld [vmem:[%s3 + $0x140] sm:$0xff]
  %v3487 = vld [vmem:[%s3 + $0x148] sm:$0xff]
  %v3488 = vld [vmem:[%s3 + $0x150] sm:$0xff]
  %v3489 = vld [vmem:[%s3 + $0x158] sm:$0xff]
  %v3490 = vld [vmem:[%s3 + $0x160] sm:$0xff]
  %v3491 = vld [vmem:[%s3 + $0x168] sm:$0xff]
  %v3492 = vld [vmem:[%s3 + $0x170] sm:$0xff]
  %v3493 = vld [vmem:[%s3 + $0x178] sm:$0xff]
  %v3494 = vld [vmem:[%s3 + $0x180] sm:$0xff]
  %v3495 = vld [vmem:[%s3 + $0x188] sm:$0xff]
  %v3496 = vld [vmem:[%s3 + $0x190] sm:$0xff]
  %v3497 = vld [vmem:[%s3 + $0x198] sm:$0xff]
  %v3498 = vld [vmem:[%s3 + $0x1a0] sm:$0xff]
  %v3499 = vld [vmem:[%s3 + $0x1a8] sm:$0xff]
  %v3500 = vld [vmem:[%s3 + $0x1b0] sm:$0xff]
  %v3501 = vld [vmem:[%s3 + $0x1b8] sm:$0xff]
  %v3502 = vld [vmem:[%s3 + $0x1c0] sm:$0xff]
  %v3503 = vld [vmem:[%s3 + $0x1c8] sm:$0xff]
  %v3504 = vld [vmem:[%s3 + $0x1d0] sm:$0xff]
  %v3505 = vld [vmem:[%s3 + $0x1d8] sm:$0xff]
  %v3506 = vld [vmem:[%s3 + $0x1e0] sm:$0xff]
  %v3507 = vld [vmem:[%s3 + $0x1e8] sm:$0xff]
  %v3508 = vld [vmem:[%s3 + $0x1f0] sm:$0xff]
  %v3509 = vld [vmem:[%s3 + $0x1f8] sm:$0xff]
  %v3510 = vld [vmem:[%s3 + $0x200] sm:$0xff]
  %v3511 = vld [vmem:[%s3 + $0x208] sm:$0xff]
  %v3512 = vld [vmem:[%s3 + $0x210] sm:$0xff]
  %v3513 = vld [vmem:[%s3 + $0x218] sm:$0xff]
  %v3514 = vld [vmem:[%s3 + $0x220] sm:$0xff]
  %v3515 = vld [vmem:[%s3 + $0x228] sm:$0xff]
  %v3516 = vld [vmem:[%s3 + $0x230] sm:$0xff]
  %v3517 = vld [vmem:[%s3 + $0x238] sm:$0xff]
  %v3518 = vld [vmem:[%s3 + $0x240] sm:$0xff]
  %v3519 = vld [vmem:[%s3 + $0x248] sm:$0xff]
  %v3520 = vld [vmem:[%s3 + $0x250] sm:$0xff]
  %v3521 = vld [vmem:[%s3 + $0x258] sm:$0xff]
  %v3522 = vld [vmem:[%s3 + $0x260] sm:$0xff]
  %v3523 = vld [vmem:[%s3 + $0x268] sm:$0xff]
  %v3524 = vld [vmem:[%s3 + $0x270] sm:$0xff]
  %v3525 = vld [vmem:[%s3 + $0x278] sm:$0xff]
  %v3526 = vld [vmem:[%s3 + $0x280] sm:$0xff]
  %v3527 = vld [vmem:[%s3 + $0x288] sm:$0xff]
  %v3528 = vld [vmem:[%s3 + $0x290] sm:$0xff]
  %v3529 = vld [vmem:[%s3 + $0x298] sm:$0xff]
  %v3530 = vld [vmem:[%s3 + $0x2a0] sm:$0xff]
  %v3531 = vld [vmem:[%s3 + $0x2a8] sm:$0xff]
  %v3532 = vld [vmem:[%s3 + $0x2b0] sm:$0xff]
  %v3533 = vld [vmem:[%s3 + $0x2b8] sm:$0xff]
  %v3534 = vld [vmem:[%s3 + $0x2c0] sm:$0xff]
  %v3535 = vld [vmem:[%s3 + $0x2c8] sm:$0xff]
  %v3536 = vld [vmem:[%s3 + $0x2d0] sm:$0xff]
  %v3537 = vld [vmem:[%s3 + $0x2d8] sm:$0xff]
  %v3538 = vld [vmem:[%s3 + $0x2e0] sm:$0xff]
  %v3539 = vld [vmem:[%s3 + $0x2e8] sm:$0xff]
  %v3540 = vld [vmem:[%s3 + $0x2f0] sm:$0xff]
  %v3541 = vld [vmem:[%s3 + $0x2f8] sm:$0xff]
  %v3542 = vld [vmem:[%s3 + $0x300] sm:$0xff]
  %v3543 = vld [vmem:[%s3 + $0x308] sm:$0xff]
  %v3544 = vld [vmem:[%s3 + $0x310] sm:$0xff]
  %v3545 = vld [vmem:[%s3 + $0x318] sm:$0xff]
  %v3546 = vld [vmem:[%s3 + $0x320] sm:$0xff]
  %v3547 = vld [vmem:[%s3 + $0x328] sm:$0xff]
  %v3548 = vld [vmem:[%s3 + $0x330] sm:$0xff]
  %v3549 = vld [vmem:[%s3 + $0x338] sm:$0xff]
  %v3550 = vld [vmem:[%s3 + $0x340] sm:$0xff]
  %v3551 = vld [vmem:[%s3 + $0x348] sm:$0xff]
  %v3552 = vld [vmem:[%s3 + $0x350] sm:$0xff]
  %v3553 = vld [vmem:[%s3 + $0x358] sm:$0xff]
  %v3554 = vld [vmem:[%s3 + $0x360] sm:$0xff]
  %v3555 = vld [vmem:[%s3 + $0x368] sm:$0xff]
  %v3556 = vld [vmem:[%s3 + $0x370] sm:$0xff]
  %v3557 = vld [vmem:[%s3 + $0x378] sm:$0xff]
  %v3558 = vld [vmem:[%s3 + $0x380] sm:$0xff]
  %v3559 = vld [vmem:[%s3 + $0x388] sm:$0xff]
  %v3560 = vld [vmem:[%s3 + $0x390] sm:$0xff]
  %v3561 = vld [vmem:[%s3 + $0x398] sm:$0xff]
  %v3562 = vld [vmem:[%s3 + $0x3a0] sm:$0xff]
  %v3563 = vld [vmem:[%s3 + $0x3a8] sm:$0xff]
  %v3564 = vld [vmem:[%s3 + $0x3b0] sm:$0xff]
  %v3565 = vld [vmem:[%s3 + $0x3b8] sm:$0xff]
  %v3566 = vld [vmem:[%s3 + $0x3c0] sm:$0xff]
  %v3567 = vld [vmem:[%s3 + $0x3c8] sm:$0xff]
  %v3568 = vld [vmem:[%s3 + $0x3d0] sm:$0xff]
  %v3569 = vld [vmem:[%s3 + $0x3d8] sm:$0xff]
  %v3570 = vld [vmem:[%s3 + $0x3e0] sm:$0xff]
  %v3571 = vld [vmem:[%s3 + $0x3e8] sm:$0xff]
  %v3572 = vld [vmem:[%s3 + $0x3f0] sm:$0xff]
  %v3573 = vld [vmem:[%s3 + $0x3f8] sm:$0xff]
  %v3574 = vld [vmem:[%s3 + $0x400] sm:$0xff]
  %v3575 = vld [vmem:[%s3 + $0x408] sm:$0xff]
  %v3576 = vld [vmem:[%s3 + $0x410] sm:$0xff]
  %v3577 = vld [vmem:[%s3 + $0x418] sm:$0xff]
  %v3578 = vld [vmem:[%s3 + $0x420] sm:$0xff]
  %v3579 = vld [vmem:[%s3 + $0x428] sm:$0xff]
  %v3580 = vld [vmem:[%s3 + $0x430] sm:$0xff]
  %v3581 = vld [vmem:[%s3 + $0x438] sm:$0xff]
  %v3582 = vld [vmem:[%s3 + $0x440] sm:$0xff]
  %v3583 = vld [vmem:[%s3 + $0x448] sm:$0xff]
  %v3584 = vld [vmem:[%s3 + $0x450] sm:$0xff]
  %v3585 = vld [vmem:[%s3 + $0x458] sm:$0xff]
  %v3586 = vld [vmem:[%s3 + $0x460] sm:$0xff]
  %v3587 = vld [vmem:[%s3 + $0x468] sm:$0xff]
  %v3588 = vld [vmem:[%s3 + $0x470] sm:$0xff]
  %v3589 = vld [vmem:[%s3 + $0x478] sm:$0xff]
  %v3590 = vld [vmem:[%s3 + $0x480] sm:$0xff]
  %v3591 = vld [vmem:[%s3 + $0x488] sm:$0xff]
  %v3592 = vld [vmem:[%s3 + $0x490] sm:$0xff]
  %v3593 = vld [vmem:[%s3 + $0x498] sm:$0xff]
  %v3594 = vld [vmem:[%s3 + $0x4a0] sm:$0xff]
  %v3595 = vld [vmem:[%s3 + $0x4a8] sm:$0xff]
  %v3596 = vld [vmem:[%s3 + $0x4b0] sm:$0xff]
  %v3597 = vld [vmem:[%s3 + $0x4b8] sm:$0xff]
  %v3598 = vld [vmem:[%s3 + $0x4c0] sm:$0xff]
  %v3599 = vld [vmem:[%s3 + $0x4c8] sm:$0xff]
  %v3600 = vld [vmem:[%s3 + $0x4d0] sm:$0xff]
  %v3601 = vld [vmem:[%s3 + $0x4d8] sm:$0xff]
  %v3602 = vld [vmem:[%s3 + $0x4e0] sm:$0xff]
  %v3603 = vld [vmem:[%s3 + $0x4e8] sm:$0xff]
  %v3604 = vld [vmem:[%s3 + $0x4f0] sm:$0xff]
  %v3605 = vld [vmem:[%s3 + $0x4f8] sm:$0xff]
  %v3606 = vld [vmem:[%s3 + $0x500] sm:$0xff]
  %v3607 = vld [vmem:[%s3 + $0x508] sm:$0xff]
  %v3608 = vld [vmem:[%s3 + $0x510] sm:$0xff]
  %v3609 = vld [vmem:[%s3 + $0x518] sm:$0xff]
  %v3610 = vld [vmem:[%s3 + $0x520] sm:$0xff]
  %v3611 = vld [vmem:[%s3 + $0x528] sm:$0xff]
  %v3612 = vld [vmem:[%s3 + $0x530] sm:$0xff]
  %v3613 = vld [vmem:[%s3 + $0x538] sm:$0xff]
  %v3614 = vld [vmem:[%s3 + $0x540] sm:$0xff]
  %v3615 = vld [vmem:[%s3 + $0x548] sm:$0xff]
  %v3616 = vld [vmem:[%s3 + $0x550] sm:$0xff]
  %v3617 = vld [vmem:[%s3 + $0x558] sm:$0xff]
  %v3618 = vld [vmem:[%s3 + $0x560] sm:$0xff]
  %v3619 = vld [vmem:[%s3 + $0x568] sm:$0xff]
  %v3620 = vld [vmem:[%s3 + $0x570] sm:$0xff]
  %v3621 = vld [vmem:[%s3 + $0x578] sm:$0xff]
  %v3622 = vld [vmem:[%s3 + $0x580] sm:$0xff]
  %v3623 = vld [vmem:[%s3 + $0x588] sm:$0xff]
  %v3624 = vld [vmem:[%s3 + $0x590] sm:$0xff]
  %v3625 = vld [vmem:[%s3 + $0x598] sm:$0xff]
  %v3626 = vld [vmem:[%s3 + $0x5a0] sm:$0xff]
  %v3627 = vld [vmem:[%s3 + $0x5a8] sm:$0xff]
  %v3628 = vld [vmem:[%s3 + $0x5b0] sm:$0xff]
  %v3629 = vld [vmem:[%s3 + $0x5b8] sm:$0xff]
  %v3630 = vld [vmem:[%s3 + $0x5c0] sm:$0xff]
  %v3631 = vld [vmem:[%s3 + $0x5c8] sm:$0xff]
  %v3632 = vld [vmem:[%s3 + $0x5d0] sm:$0xff]
  %v3633 = vld [vmem:[%s3 + $0x5d8] sm:$0xff]
  %v3634 = vld [vmem:[%s3 + $0x5e0] sm:$0xff]
  %v3635 = vld [vmem:[%s3 + $0x5e8] sm:$0xff]
  %v3636 = vld [vmem:[%s3 + $0x5f0] sm:$0xff]
  %v3637 = vld [vmem:[%s3 + $0x5f8] sm:$0xff]
  %v3638 = vadd.f32 %v3254, 0.001
  %v3639 = vadd.f32 %v3255, 0.001
  %v3640 = vadd.f32 %v3256, 0.001
  %v3641 = vadd.f32 %v3257, 0.001
  %v3642 = vadd.f32 %v3258, 0.001
  %v3643 = vadd.f32 %v3259, 0.001
  %v3644 = vadd.f32 %v3260, 0.001
  %v3645 = vadd.f32 %v3261, 0.001
  %v3646 = vadd.f32 %v3262, 0.001
  %v3647 = vadd.f32 %v3263, 0.001
  %v3648 = vadd.f32 %v3264, 0.001
  %v3649 = vadd.f32 %v3265, 0.001
  %v3650 = vadd.f32 %v3266, 0.001
  %v3651 = vadd.f32 %v3267, 0.001
  %v3652 = vadd.f32 %v3268, 0.001
  %v3653 = vadd.f32 %v3269, 0.001
  %v3654 = vadd.f32 %v3270, 0.001
  %v3655 = vadd.f32 %v3271, 0.001
  %v3656 = vadd.f32 %v3272, 0.001
  %v3657 = vadd.f32 %v3273, 0.001
  %v3658 = vadd.f32 %v3274, 0.001
  %v3659 = vadd.f32 %v3275, 0.001
  %v3660 = vadd.f32 %v3276, 0.001
  %v3661 = vadd.f32 %v3277, 0.001
  %v3662 = vadd.f32 %v3278, 0.001
  %v3663 = vadd.f32 %v3279, 0.001
  %v3664 = vadd.f32 %v3280, 0.001
  %v3665 = vadd.f32 %v3281, 0.001
  %v3666 = vadd.f32 %v3282, 0.001
  %v3667 = vadd.f32 %v3283, 0.001
  %v3668 = vadd.f32 %v3284, 0.001
  %v3669 = vadd.f32 %v3285, 0.001
  %v3670 = vadd.f32 %v3286, 0.001
  %v3671 = vadd.f32 %v3287, 0.001
  %v3672 = vadd.f32 %v3288, 0.001
  %v3673 = vadd.f32 %v3289, 0.001
  %v3674 = vadd.f32 %v3290, 0.001
  %v3675 = vadd.f32 %v3291, 0.001
  %v3676 = vadd.f32 %v3292, 0.001
  %v3677 = vadd.f32 %v3293, 0.001
  %v3678 = vadd.f32 %v3294, 0.001
  %v3679 = vadd.f32 %v3295, 0.001
  %v3680 = vadd.f32 %v3296, 0.001
  %v3681 = vadd.f32 %v3297, 0.001
  %v3682 = vadd.f32 %v3298, 0.001
  %v3683 = vadd.f32 %v3299, 0.001
  %v3684 = vadd.f32 %v3300, 0.001
  %v3685 = vadd.f32 %v3301, 0.001
  %v3686 = vadd.f32 %v3302, 0.001
  %v3687 = vadd.f32 %v3303, 0.001
  %v3688 = vadd.f32 %v3304, 0.001
  %v3689 = vadd.f32 %v3305, 0.001
  %v3690 = vadd.f32 %v3306, 0.001
  %v3691 = vadd.f32 %v3307, 0.001
  %v3692 = vadd.f32 %v3308, 0.001
  %v3693 = vadd.f32 %v3309, 0.001
  %v3694 = vadd.f32 %v3310, 0.001
  %v3695 = vadd.f32 %v3311, 0.001
  %v3696 = vadd.f32 %v3312, 0.001
  %v3697 = vadd.f32 %v3313, 0.001
  %v3698 = vadd.f32 %v3314, 0.001
  %v3699 = vadd.f32 %v3315, 0.001
  %v3700 = vadd.f32 %v3316, 0.001
  %v3701 = vadd.f32 %v3317, 0.001
  %v3702 = vadd.f32 %v3318, 0.001
  %v3703 = vadd.f32 %v3319, 0.001
  %v3704 = vadd.f32 %v3320, 0.001
  %v3705 = vadd.f32 %v3321, 0.001
  %v3706 = vadd.f32 %v3322, 0.001
  %v3707 = vadd.f32 %v3323, 0.001
  %v3708 = vadd.f32 %v3324, 0.001
  %v3709 = vadd.f32 %v3325, 0.001
  %v3710 = vadd.f32 %v3326, 0.001
  %v3711 = vadd.f32 %v3327, 0.001
  %v3712 = vadd.f32 %v3328, 0.001
  %v3713 = vadd.f32 %v3329, 0.001
  %v3714 = vadd.f32 %v3330, 0.001
  %v3715 = vadd.f32 %v3331, 0.001
  %v3716 = vadd.f32 %v3332, 0.001
  %v3717 = vadd.f32 %v3333, 0.001
  %v3718 = vadd.f32 %v3334, 0.001
  %v3719 = vadd.f32 %v3335, 0.001
  %v3720 = vadd.f32 %v3336, 0.001
  %v3721 = vadd.f32 %v3337, 0.001
  %v3722 = vadd.f32 %v3338, 0.001
  %v3723 = vadd.f32 %v3339, 0.001
  %v3724 = vadd.f32 %v3340, 0.001
  %v3725 = vadd.f32 %v3341, 0.001
  %v3726 = vadd.f32 %v3342, 0.001
  %v3727 = vadd.f32 %v3343, 0.001
  %v3728 = vadd.f32 %v3344, 0.001
  %v3729 = vadd.f32 %v3345, 0.001
  %v3730 = vadd.f32 %v3346, 0.001
  %v3731 = vadd.f32 %v3347, 0.001
  %v3732 = vadd.f32 %v3348, 0.001
  %v3733 = vadd.f32 %v3349, 0.001
  %v3734 = vadd.f32 %v3350, 0.001
  %v3735 = vadd.f32 %v3351, 0.001
  %v3736 = vadd.f32 %v3352, 0.001
  %v3737 = vadd.f32 %v3353, 0.001
  %v3738 = vadd.f32 %v3354, 0.001
  %v3739 = vadd.f32 %v3355, 0.001
  %v3740 = vadd.f32 %v3356, 0.001
  %v3741 = vadd.f32 %v3357, 0.001
  %v3742 = vadd.f32 %v3358, 0.001
  %v3743 = vadd.f32 %v3359, 0.001
  %v3744 = vadd.f32 %v3360, 0.001
  %v3745 = vadd.f32 %v3361, 0.001
  %v3746 = vadd.f32 %v3362, 0.001
  %v3747 = vadd.f32 %v3363, 0.001
  %v3748 = vadd.f32 %v3364, 0.001
  %v3749 = vadd.f32 %v3365, 0.001
  %v3750 = vadd.f32 %v3366, 0.001
  %v3751 = vadd.f32 %v3367, 0.001
  %v3752 = vadd.f32 %v3368, 0.001
  %v3753 = vadd.f32 %v3369, 0.001
  %v3754 = vadd.f32 %v3370, 0.001
  %v3755 = vadd.f32 %v3371, 0.001
  %v3756 = vadd.f32 %v3372, 0.001
  %v3757 = vadd.f32 %v3373, 0.001
  %v3758 = vadd.f32 %v3374, 0.001
  %v3759 = vadd.f32 %v3375, 0.001
  %v3760 = vadd.f32 %v3376, 0.001
  %v3761 = vadd.f32 %v3377, 0.001
  %v3762 = vadd.f32 %v3378, 0.001
  %v3763 = vadd.f32 %v3379, 0.001
  %v3764 = vadd.f32 %v3380, 0.001
  %v3765 = vadd.f32 %v3381, 0.001
  %v3766 = vadd.f32 %v3382, 0.001
  %v3767 = vadd.f32 %v3383, 0.001
  %v3768 = vadd.f32 %v3384, 0.001
  %v3769 = vadd.f32 %v3385, 0.001
  %v3770 = vadd.f32 %v3386, 0.001
  %v3771 = vadd.f32 %v3387, 0.001
  %v3772 = vadd.f32 %v3388, 0.001
  %v3773 = vadd.f32 %v3389, 0.001
  %v3774 = vadd.f32 %v3390, 0.001
  %v3775 = vadd.f32 %v3391, 0.001
  %v3776 = vadd.f32 %v3392, 0.001
  %v3777 = vadd.f32 %v3393, 0.001
  %v3778 = vadd.f32 %v3394, 0.001
  %v3779 = vadd.f32 %v3395, 0.001
  %v3780 = vadd.f32 %v3396, 0.001
  %v3781 = vadd.f32 %v3397, 0.001
  %v3782 = vadd.f32 %v3398, 0.001
  %v3783 = vadd.f32 %v3399, 0.001
  %v3784 = vadd.f32 %v3400, 0.001
  %v3785 = vadd.f32 %v3401, 0.001
  %v3786 = vadd.f32 %v3402, 0.001
  %v3787 = vadd.f32 %v3403, 0.001
  %v3788 = vadd.f32 %v3404, 0.001
  %v3789 = vadd.f32 %v3405, 0.001
  %v3790 = vadd.f32 %v3406, 0.001
  %v3791 = vadd.f32 %v3407, 0.001
  %v3792 = vadd.f32 %v3408, 0.001
  %v3793 = vadd.f32 %v3409, 0.001
  %v3794 = vadd.f32 %v3410, 0.001
  %v3795 = vadd.f32 %v3411, 0.001
  %v3796 = vadd.f32 %v3412, 0.001
  %v3797 = vadd.f32 %v3413, 0.001
  %v3798 = vadd.f32 %v3414, 0.001
  %v3799 = vadd.f32 %v3415, 0.001
  %v3800 = vadd.f32 %v3416, 0.001
  %v3801 = vadd.f32 %v3417, 0.001
  %v3802 = vadd.f32 %v3418, 0.001
  %v3803 = vadd.f32 %v3419, 0.001
  %v3804 = vadd.f32 %v3420, 0.001
  %v3805 = vadd.f32 %v3421, 0.001
  %v3806 = vadd.f32 %v3422, 0.001
  %v3807 = vadd.f32 %v3423, 0.001
  %v3808 = vadd.f32 %v3424, 0.001
  %v3809 = vadd.f32 %v3425, 0.001
  %v3810 = vadd.f32 %v3426, 0.001
  %v3811 = vadd.f32 %v3427, 0.001
  %v3812 = vadd.f32 %v3428, 0.001
  %v3813 = vadd.f32 %v3429, 0.001
  %v3814 = vadd.f32 %v3430, 0.001
  %v3815 = vadd.f32 %v3431, 0.001
  %v3816 = vadd.f32 %v3432, 0.001
  %v3817 = vadd.f32 %v3433, 0.001
  %v3818 = vadd.f32 %v3434, 0.001
  %v3819 = vadd.f32 %v3435, 0.001
  %v3820 = vadd.f32 %v3436, 0.001
  %v3821 = vadd.f32 %v3437, 0.001
  %v3822 = vadd.f32 %v3438, 0.001
  %v3823 = vadd.f32 %v3439, 0.001
  %v3824 = vadd.f32 %v3440, 0.001
  %v3825 = vadd.f32 %v3441, 0.001
  %v3826 = vadd.f32 %v3442, 0.001
  %v3827 = vadd.f32 %v3443, 0.001
  %v3828 = vadd.f32 %v3444, 0.001
  %v3829 = vadd.f32 %v3445, 0.001
  %v3830 = vrsqrt.pop %v3638
  %v3831 = vrsqrt.pop %v3639
  %v3832 = vrsqrt.pop %v3640
  %v3833 = vrsqrt.pop %v3641
  %v3834 = vrsqrt.pop %v3642
  %v3835 = vrsqrt.pop %v3643
  %v3836 = vrsqrt.pop %v3644
  %v3837 = vrsqrt.pop %v3645
  %v3838 = vrsqrt.pop %v3646
  %v3839 = vrsqrt.pop %v3647
  %v3840 = vrsqrt.pop %v3648
  %v3841 = vrsqrt.pop %v3649
  %v3842 = vrsqrt.pop %v3650
  %v3843 = vrsqrt.pop %v3651
  %v3844 = vrsqrt.pop %v3652
  %v3845 = vrsqrt.pop %v3653
  %v3846 = vrsqrt.pop %v3654
  %v3847 = vrsqrt.pop %v3655
  %v3848 = vrsqrt.pop %v3656
  %v3849 = vrsqrt.pop %v3657
  %v3850 = vrsqrt.pop %v3658
  %v3851 = vrsqrt.pop %v3659
  %v3852 = vrsqrt.pop %v3660
  %v3853 = vrsqrt.pop %v3661
  %v3854 = vrsqrt.pop %v3662
  %v3855 = vrsqrt.pop %v3663
  %v3856 = vrsqrt.pop %v3664
  %v3857 = vrsqrt.pop %v3665
  %v3858 = vrsqrt.pop %v3666
  %v3859 = vrsqrt.pop %v3667
  %v3860 = vrsqrt.pop %v3668
  %v3861 = vrsqrt.pop %v3669
  %v3862 = vrsqrt.pop %v3670
  %v3863 = vrsqrt.pop %v3671
  %v3864 = vrsqrt.pop %v3672
  %v3865 = vrsqrt.pop %v3673
  %v3866 = vrsqrt.pop %v3674
  %v3867 = vrsqrt.pop %v3675
  %v3868 = vrsqrt.pop %v3676
  %v3869 = vrsqrt.pop %v3677
  %v3870 = vrsqrt.pop %v3678
  %v3871 = vrsqrt.pop %v3679
  %v3872 = vrsqrt.pop %v3680
  %v3873 = vrsqrt.pop %v3681
  %v3874 = vrsqrt.pop %v3682
  %v3875 = vrsqrt.pop %v3683
  %v3876 = vrsqrt.pop %v3684
  %v3877 = vrsqrt.pop %v3685
  %v3878 = vrsqrt.pop %v3686
  %v3879 = vrsqrt.pop %v3687
  %v3880 = vrsqrt.pop %v3688
  %v3881 = vrsqrt.pop %v3689
  %v3882 = vrsqrt.pop %v3690
  %v3883 = vrsqrt.pop %v3691
  %v3884 = vrsqrt.pop %v3692
  %v3885 = vrsqrt.pop %v3693
  %v3886 = vrsqrt.pop %v3694
  %v3887 = vrsqrt.pop %v3695
  %v3888 = vrsqrt.pop %v3696
  %v3889 = vrsqrt.pop %v3697
  %v3890 = vrsqrt.pop %v3698
  %v3891 = vrsqrt.pop %v3699
  %v3892 = vrsqrt.pop %v3700
  %v3893 = vrsqrt.pop %v3701
  %v3894 = vrsqrt.pop %v3702
  %v3895 = vrsqrt.pop %v3703
  %v3896 = vrsqrt.pop %v3704
  %v3897 = vrsqrt.pop %v3705
  %v3898 = vrsqrt.pop %v3706
  %v3899 = vrsqrt.pop %v3707
  %v3900 = vrsqrt.pop %v3708
  %v3901 = vrsqrt.pop %v3709
  %v3902 = vrsqrt.pop %v3710
  %v3903 = vrsqrt.pop %v3711
  %v3904 = vrsqrt.pop %v3712
  %v3905 = vrsqrt.pop %v3713
  %v3906 = vrsqrt.pop %v3714
  %v3907 = vrsqrt.pop %v3715
  %v3908 = vrsqrt.pop %v3716
  %v3909 = vrsqrt.pop %v3717
  %v3910 = vrsqrt.pop %v3718
  %v3911 = vrsqrt.pop %v3719
  %v3912 = vrsqrt.pop %v3720
  %v3913 = vrsqrt.pop %v3721
  %v3914 = vrsqrt.pop %v3722
  %v3915 = vrsqrt.pop %v3723
  %v3916 = vrsqrt.pop %v3724
  %v3917 = vrsqrt.pop %v3725
  %v3918 = vrsqrt.pop %v3726
  %v3919 = vrsqrt.pop %v3727
  %v3920 = vrsqrt.pop %v3728
  %v3921 = vrsqrt.pop %v3729
  %v3922 = vrsqrt.pop %v3730
  %v3923 = vrsqrt.pop %v3731
  %v3924 = vrsqrt.pop %v3732
  %v3925 = vrsqrt.pop %v3733
  %v3926 = vrsqrt.pop %v3734
  %v3927 = vrsqrt.pop %v3735
  %v3928 = vrsqrt.pop %v3736
  %v3929 = vrsqrt.pop %v3737
  %v3930 = vrsqrt.pop %v3738
  %v3931 = vrsqrt.pop %v3739
  %v3932 = vrsqrt.pop %v3740
  %v3933 = vrsqrt.pop %v3741
  %v3934 = vrsqrt.pop %v3742
  %v3935 = vrsqrt.pop %v3743
  %v3936 = vrsqrt.pop %v3744
  %v3937 = vrsqrt.pop %v3745
  %v3938 = vrsqrt.pop %v3746
  %v3939 = vrsqrt.pop %v3747
  %v3940 = vrsqrt.pop %v3748
  %v3941 = vrsqrt.pop %v3749
  %v3942 = vrsqrt.pop %v3750
  %v3943 = vrsqrt.pop %v3751
  %v3944 = vrsqrt.pop %v3752
  %v3945 = vrsqrt.pop %v3753
  %v3946 = vrsqrt.pop %v3754
  %v3947 = vrsqrt.pop %v3755
  %v3948 = vrsqrt.pop %v3756
  %v3949 = vrsqrt.pop %v3757
  %v3950 = vrsqrt.pop %v3758
  %v3951 = vrsqrt.pop %v3759
  %v3952 = vrsqrt.pop %v3760
  %v3953 = vrsqrt.pop %v3761
  %v3954 = vrsqrt.pop %v3762
  %v3955 = vrsqrt.pop %v3763
  %v3956 = vrsqrt.pop %v3764
  %v3957 = vrsqrt.pop %v3765
  %v3958 = vrsqrt.pop %v3766
  %v3959 = vrsqrt.pop %v3767
  %v3960 = vrsqrt.pop %v3768
  %v3961 = vrsqrt.pop %v3769
  %v3962 = vrsqrt.pop %v3770
  %v3963 = vrsqrt.pop %v3771
  %v3964 = vrsqrt.pop %v3772
  %v3965 = vrsqrt.pop %v3773
  %v3966 = vrsqrt.pop %v3774
  %v3967 = vrsqrt.pop %v3775
  %v3968 = vrsqrt.pop %v3776
  %v3969 = vrsqrt.pop %v3777
  %v3970 = vrsqrt.pop %v3778
  %v3971 = vrsqrt.pop %v3779
  %v3972 = vrsqrt.pop %v3780
  %v3973 = vrsqrt.pop %v3781
  %v3974 = vrsqrt.pop %v3782
  %v3975 = vrsqrt.pop %v3783
  %v3976 = vrsqrt.pop %v3784
  %v3977 = vrsqrt.pop %v3785
  %v3978 = vrsqrt.pop %v3786
  %v3979 = vrsqrt.pop %v3787
  %v3980 = vrsqrt.pop %v3788
  %v3981 = vrsqrt.pop %v3789
  %v3982 = vrsqrt.pop %v3790
  %v3983 = vrsqrt.pop %v3791
  %v3984 = vrsqrt.pop %v3792
  %v3985 = vrsqrt.pop %v3793
  %v3986 = vrsqrt.pop %v3794
  %v3987 = vrsqrt.pop %v3795
  %v3988 = vrsqrt.pop %v3796
  %v3989 = vrsqrt.pop %v3797
  %v3990 = vrsqrt.pop %v3798
  %v3991 = vrsqrt.pop %v3799
  %v3992 = vrsqrt.pop %v3800
  %v3993 = vrsqrt.pop %v3801
  %v3994 = vrsqrt.pop %v3802
  %v3995 = vrsqrt.pop %v3803
  %v3996 = vrsqrt.pop %v3804
  %v3997 = vrsqrt.pop %v3805
  %v3998 = vrsqrt.pop %v3806
  %v3999 = vrsqrt.pop %v3807
  %v4000 = vrsqrt.pop %v3808
  %v4001 = vrsqrt.pop %v3809
  %v4002 = vrsqrt.pop %v3810
  %v4003 = vrsqrt.pop %v3811
  %v4004 = vrsqrt.pop %v3812
  %v4005 = vrsqrt.pop %v3813
  %v4006 = vrsqrt.pop %v3814
  %v4007 = vrsqrt.pop %v3815
  %v4008 = vrsqrt.pop %v3816
  %v4009 = vrsqrt.pop %v3817
  %v4010 = vrsqrt.pop %v3818
  %v4011 = vrsqrt.pop %v3819
  %v4012 = vrsqrt.pop %v3820
  %v4013 = vrsqrt.pop %v3821
  %v4014 = vrsqrt.pop %v3822
  %v4015 = vrsqrt.pop %v3823
  %v4016 = vrsqrt.pop %v3824
  %v4017 = vrsqrt.pop %v3825
  %v4018 = vrsqrt.pop %v3826
  %v4019 = vrsqrt.pop %v3827
  %v4020 = vrsqrt.pop %v3828
  %v4021 = vrsqrt.pop %v3829
  %v4022 = vmul.f32 %v3446, %v3830
  %v4023 = vmul.f32 %v3447, %v3831
  %v4024 = vmul.f32 %v3448, %v3832
  %v4025 = vmul.f32 %v3449, %v3833
  %v4026 = vmul.f32 %v3450, %v3834
  %v4027 = vmul.f32 %v3451, %v3835
  %v4028 = vmul.f32 %v3452, %v3836
  %v4029 = vmul.f32 %v3453, %v3837
  %v4030 = vmul.f32 %v3454, %v3838
  %v4031 = vmul.f32 %v3455, %v3839
  %v4032 = vmul.f32 %v3456, %v3840
  %v4033 = vmul.f32 %v3457, %v3841
  %v4034 = vmul.f32 %v3458, %v3842
  %v4035 = vmul.f32 %v3459, %v3843
  %v4036 = vmul.f32 %v3460, %v3844
  %v4037 = vmul.f32 %v3461, %v3845
  %v4038 = vmul.f32 %v3462, %v3846
  %v4039 = vmul.f32 %v3463, %v3847
  %v4040 = vmul.f32 %v3464, %v3848
  %v4041 = vmul.f32 %v3465, %v3849
  %v4042 = vmul.f32 %v3466, %v3850
  %v4043 = vmul.f32 %v3467, %v3851
  %v4044 = vmul.f32 %v3468, %v3852
  %v4045 = vmul.f32 %v3469, %v3853
  %v4046 = vmul.f32 %v3470, %v3854
  %v4047 = vmul.f32 %v3471, %v3855
  %v4048 = vmul.f32 %v3472, %v3856
  %v4049 = vmul.f32 %v3473, %v3857
  %v4050 = vmul.f32 %v3474, %v3858
  %v4051 = vmul.f32 %v3475, %v3859
  %v4052 = vmul.f32 %v3476, %v3860
  %v4053 = vmul.f32 %v3477, %v3861
  %v4054 = vmul.f32 %v3478, %v3862
  %v4055 = vmul.f32 %v3479, %v3863
  %v4056 = vmul.f32 %v3480, %v3864
  %v4057 = vmul.f32 %v3481, %v3865
  %v4058 = vmul.f32 %v3482, %v3866
  %v4059 = vmul.f32 %v3483, %v3867
  %v4060 = vmul.f32 %v3484, %v3868
  %v4061 = vmul.f32 %v3485, %v3869
  %v4062 = vmul.f32 %v3486, %v3870
  %v4063 = vmul.f32 %v3487, %v3871
  %v4064 = vmul.f32 %v3488, %v3872
  %v4065 = vmul.f32 %v3489, %v3873
  %v4066 = vmul.f32 %v3490, %v3874
  %v4067 = vmul.f32 %v3491, %v3875
  %v4068 = vmul.f32 %v3492, %v3876
  %v4069 = vmul.f32 %v3493, %v3877
  %v4070 = vmul.f32 %v3494, %v3878
  %v4071 = vmul.f32 %v3495, %v3879
  %v4072 = vmul.f32 %v3496, %v3880
  %v4073 = vmul.f32 %v3497, %v3881
  %v4074 = vmul.f32 %v3498, %v3882
  %v4075 = vmul.f32 %v3499, %v3883
  %v4076 = vmul.f32 %v3500, %v3884
  %v4077 = vmul.f32 %v3501, %v3885
  %v4078 = vmul.f32 %v3502, %v3886
  %v4079 = vmul.f32 %v3503, %v3887
  %v4080 = vmul.f32 %v3504, %v3888
  %v4081 = vmul.f32 %v3505, %v3889
  %v4082 = vmul.f32 %v3506, %v3890
  %v4083 = vmul.f32 %v3507, %v3891
  %v4084 = vmul.f32 %v3508, %v3892
  %v4085 = vmul.f32 %v3509, %v3893
  %v4086 = vmul.f32 %v3510, %v3894
  %v4087 = vmul.f32 %v3511, %v3895
  %v4088 = vmul.f32 %v3512, %v3896
  %v4089 = vmul.f32 %v3513, %v3897
  %v4090 = vmul.f32 %v3514, %v3898
  %v4091 = vmul.f32 %v3515, %v3899
  %v4092 = vmul.f32 %v3516, %v3900
  %v4093 = vmul.f32 %v3517, %v3901
  %v4094 = vmul.f32 %v3518, %v3902
  %v4095 = vmul.f32 %v3519, %v3903
  %v4096 = vmul.f32 %v3520, %v3904
  %v4097 = vmul.f32 %v3521, %v3905
  %v4098 = vmul.f32 %v3522, %v3906
  %v4099 = vmul.f32 %v3523, %v3907
  %v4100 = vmul.f32 %v3524, %v3908
  %v4101 = vmul.f32 %v3525, %v3909
  %v4102 = vmul.f32 %v3526, %v3910
  %v4103 = vmul.f32 %v3527, %v3911
  %v4104 = vmul.f32 %v3528, %v3912
  %v4105 = vmul.f32 %v3529, %v3913
  %v4106 = vmul.f32 %v3530, %v3914
  %v4107 = vmul.f32 %v3531, %v3915
  %v4108 = vmul.f32 %v3532, %v3916
  %v4109 = vmul.f32 %v3533, %v3917
  %v4110 = vmul.f32 %v3534, %v3918
  %v4111 = vmul.f32 %v3535, %v3919
  %v4112 = vmul.f32 %v3536, %v3920
  %v4113 = vmul.f32 %v3537, %v3921
  %v4114 = vmul.f32 %v3538, %v3922
  %v4115 = vmul.f32 %v3539, %v3923
  %v4116 = vmul.f32 %v3540, %v3924
  %v4117 = vmul.f32 %v3541, %v3925
  %v4118 = vmul.f32 %v3542, %v3926
  %v4119 = vmul.f32 %v3543, %v3927
  %v4120 = vmul.f32 %v3544, %v3928
  %v4121 = vmul.f32 %v3545, %v3929
  %v4122 = vmul.f32 %v3546, %v3930
  %v4123 = vmul.f32 %v3547, %v3931
  %v4124 = vmul.f32 %v3548, %v3932
  %v4125 = vmul.f32 %v3549, %v3933
  %v4126 = vmul.f32 %v3550, %v3934
  %v4127 = vmul.f32 %v3551, %v3935
  %v4128 = vmul.f32 %v3552, %v3936
  %v4129 = vmul.f32 %v3553, %v3937
  %v4130 = vmul.f32 %v3554, %v3938
  %v4131 = vmul.f32 %v3555, %v3939
  %v4132 = vmul.f32 %v3556, %v3940
  %v4133 = vmul.f32 %v3557, %v3941
  %v4134 = vmul.f32 %v3558, %v3942
  %v4135 = vmul.f32 %v3559, %v3943
  %v4136 = vmul.f32 %v3560, %v3944
  %v4137 = vmul.f32 %v3561, %v3945
  %v4138 = vmul.f32 %v3562, %v3946
  %v4139 = vmul.f32 %v3563, %v3947
  %v4140 = vmul.f32 %v3564, %v3948
  %v4141 = vmul.f32 %v3565, %v3949
  %v4142 = vmul.f32 %v3566, %v3950
  %v4143 = vmul.f32 %v3567, %v3951
  %v4144 = vmul.f32 %v3568, %v3952
  %v4145 = vmul.f32 %v3569, %v3953
  %v4146 = vmul.f32 %v3570, %v3954
  %v4147 = vmul.f32 %v3571, %v3955
  %v4148 = vmul.f32 %v3572, %v3956
  %v4149 = vmul.f32 %v3573, %v3957
  %v4150 = vmul.f32 %v3574, %v3958
  %v4151 = vmul.f32 %v3575, %v3959
  %v4152 = vmul.f32 %v3576, %v3960
  %v4153 = vmul.f32 %v3577, %v3961
  %v4154 = vmul.f32 %v3578, %v3962
  %v4155 = vmul.f32 %v3579, %v3963
  %v4156 = vmul.f32 %v3580, %v3964
  %v4157 = vmul.f32 %v3581, %v3965
  %v4158 = vmul.f32 %v3582, %v3966
  %v4159 = vmul.f32 %v3583, %v3967
  %v4160 = vmul.f32 %v3584, %v3968
  %v4161 = vmul.f32 %v3585, %v3969
  %v4162 = vmul.f32 %v3586, %v3970
  %v4163 = vmul.f32 %v3587, %v3971
  %v4164 = vmul.f32 %v3588, %v3972
  %v4165 = vmul.f32 %v3589, %v3973
  %v4166 = vmul.f32 %v3590, %v3974
  %v4167 = vmul.f32 %v3591, %v3975
  %v4168 = vmul.f32 %v3592, %v3976
  %v4169 = vmul.f32 %v3593, %v3977
  %v4170 = vmul.f32 %v3594, %v3978
  %v4171 = vmul.f32 %v3595, %v3979
  %v4172 = vmul.f32 %v3596, %v3980
  %v4173 = vmul.f32 %v3597, %v3981
  %v4174 = vmul.f32 %v3598, %v3982
  %v4175 = vmul.f32 %v3599, %v3983
  %v4176 = vmul.f32 %v3600, %v3984
  %v4177 = vmul.f32 %v3601, %v3985
  %v4178 = vmul.f32 %v3602, %v3986
  %v4179 = vmul.f32 %v3603, %v3987
  %v4180 = vmul.f32 %v3604, %v3988
  %v4181 = vmul.f32 %v3605, %v3989
  %v4182 = vmul.f32 %v3606, %v3990
  %v4183 = vmul.f32 %v3607, %v3991
  %v4184 = vmul.f32 %v3608, %v3992
  %v4185 = vmul.f32 %v3609, %v3993
  %v4186 = vmul.f32 %v3610, %v3994
  %v4187 = vmul.f32 %v3611, %v3995
  %v4188 = vmul.f32 %v3612, %v3996
  %v4189 = vmul.f32 %v3613, %v3997
  %v4190 = vmul.f32 %v3614, %v3998
  %v4191 = vmul.f32 %v3615, %v3999
  %v4192 = vmul.f32 %v3616, %v4000
  %v4193 = vmul.f32 %v3617, %v4001
  %v4194 = vmul.f32 %v3618, %v4002
  %v4195 = vmul.f32 %v3619, %v4003
  %v4196 = vmul.f32 %v3620, %v4004
  %v4197 = vmul.f32 %v3621, %v4005
  %v4198 = vmul.f32 %v3622, %v4006
  %v4199 = vmul.f32 %v3623, %v4007
  %v4200 = vmul.f32 %v3624, %v4008
  %v4201 = vmul.f32 %v3625, %v4009
  %v4202 = vmul.f32 %v3626, %v4010
  %v4203 = vmul.f32 %v3627, %v4011
  %v4204 = vmul.f32 %v3628, %v4012
  %v4205 = vmul.f32 %v3629, %v4013
  %v4206 = vmul.f32 %v3630, %v4014
  %v4207 = vmul.f32 %v3631, %v4015
  %v4208 = vmul.f32 %v3632, %v4016
  %v4209 = vmul.f32 %v3633, %v4017
  %v4210 = vmul.f32 %v3634, %v4018
  %v4211 = vmul.f32 %v3635, %v4019
  %v4212 = vmul.f32 %v3636, %v4020
  %v4213 = vmul.f32 %v3637, %v4021
  %4215 = vset.pattern.permute.xlu0 0
  %4216 = vperm.xlu0 %4215, %v4022
  %v4217 = vpop.permute.xlu0 %4216
  %4220 = vset.pattern.permute.xlu0 0
  %4221 = vperm.xlu0 %4220, %v4023
  %v4222 = vpop.permute.xlu0 %4221
  %4225 = vset.pattern.permute.xlu0 0
  %4226 = vperm.xlu0 %4225, %v4024
  %v4227 = vpop.permute.xlu0 %4226
  %4230 = vset.pattern.permute.xlu0 0
  %4231 = vperm.xlu0 %4230, %v4025
  %v4232 = vpop.permute.xlu0 %4231
  %4235 = vset.pattern.permute.xlu0 0
  %4236 = vperm.xlu0 %4235, %v4026
  %v4237 = vpop.permute.xlu0 %4236
  %4240 = vset.pattern.permute.xlu0 0
  %4241 = vperm.xlu0 %4240, %v4027
  %v4242 = vpop.permute.xlu0 %4241
  %4245 = vset.pattern.permute.xlu0 0
  %4246 = vperm.xlu0 %4245, %v4028
  %v4247 = vpop.permute.xlu0 %4246
  %4250 = vset.pattern.permute.xlu0 0
  %4251 = vperm.xlu0 %4250, %v4029
  %v4252 = vpop.permute.xlu0 %4251
  %4255 = vset.pattern.permute.xlu0 0
  %4256 = vperm.xlu0 %4255, %v4030
  %v4257 = vpop.permute.xlu0 %4256
  %4260 = vset.pattern.permute.xlu0 0
  %4261 = vperm.xlu0 %4260, %v4031
  %v4262 = vpop.permute.xlu0 %4261
  %4265 = vset.pattern.permute.xlu0 0
  %4266 = vperm.xlu0 %4265, %v4032
  %v4267 = vpop.permute.xlu0 %4266
  %4270 = vset.pattern.permute.xlu0 0
  %4271 = vperm.xlu0 %4270, %v4033
  %v4272 = vpop.permute.xlu0 %4271
  %4275 = vset.pattern.permute.xlu0 0
  %4276 = vperm.xlu0 %4275, %v4034
  %v4277 = vpop.permute.xlu0 %4276
  %4280 = vset.pattern.permute.xlu0 0
  %4281 = vperm.xlu0 %4280, %v4035
  %v4282 = vpop.permute.xlu0 %4281
  %4285 = vset.pattern.permute.xlu0 0
  %4286 = vperm.xlu0 %4285, %v4036
  %v4287 = vpop.permute.xlu0 %4286
  %4290 = vset.pattern.permute.xlu0 0
  %4291 = vperm.xlu0 %4290, %v4037
  %v4292 = vpop.permute.xlu0 %4291
  %4295 = vset.pattern.permute.xlu0 0
  %4296 = vperm.xlu0 %4295, %v4038
  %v4297 = vpop.permute.xlu0 %4296
  %4300 = vset.pattern.permute.xlu0 0
  %4301 = vperm.xlu0 %4300, %v4039
  %v4302 = vpop.permute.xlu0 %4301
  %4305 = vset.pattern.permute.xlu0 0
  %4306 = vperm.xlu0 %4305, %v4040
  %v4307 = vpop.permute.xlu0 %4306
  %4310 = vset.pattern.permute.xlu0 0
  %4311 = vperm.xlu0 %4310, %v4041
  %v4312 = vpop.permute.xlu0 %4311
  %4315 = vset.pattern.permute.xlu0 0
  %4316 = vperm.xlu0 %4315, %v4042
  %v4317 = vpop.permute.xlu0 %4316
  %4320 = vset.pattern.permute.xlu0 0
  %4321 = vperm.xlu0 %4320, %v4043
  %v4322 = vpop.permute.xlu0 %4321
  %4325 = vset.pattern.permute.xlu0 0
  %4326 = vperm.xlu0 %4325, %v4044
  %v4327 = vpop.permute.xlu0 %4326
  %4330 = vset.pattern.permute.xlu0 0
  %4331 = vperm.xlu0 %4330, %v4045
  %v4332 = vpop.permute.xlu0 %4331
  %4335 = vset.pattern.permute.xlu0 0
  %4336 = vperm.xlu0 %4335, %v4046
  %v4337 = vpop.permute.xlu0 %4336
  %4340 = vset.pattern.permute.xlu0 0
  %4341 = vperm.xlu0 %4340, %v4047
  %v4342 = vpop.permute.xlu0 %4341
  %4345 = vset.pattern.permute.xlu0 0
  %4346 = vperm.xlu0 %4345, %v4048
  %v4347 = vpop.permute.xlu0 %4346
  %4350 = vset.pattern.permute.xlu0 0
  %4351 = vperm.xlu0 %4350, %v4049
  %v4352 = vpop.permute.xlu0 %4351
  %4355 = vset.pattern.permute.xlu0 0
  %4356 = vperm.xlu0 %4355, %v4050
  %v4357 = vpop.permute.xlu0 %4356
  %4360 = vset.pattern.permute.xlu0 0
  %4361 = vperm.xlu0 %4360, %v4051
  %v4362 = vpop.permute.xlu0 %4361
  %4365 = vset.pattern.permute.xlu0 0
  %4366 = vperm.xlu0 %4365, %v4052
  %v4367 = vpop.permute.xlu0 %4366
  %4370 = vset.pattern.permute.xlu0 0
  %4371 = vperm.xlu0 %4370, %v4053
  %v4372 = vpop.permute.xlu0 %4371
  %4375 = vset.pattern.permute.xlu0 0
  %4376 = vperm.xlu0 %4375, %v4054
  %v4377 = vpop.permute.xlu0 %4376
  %4380 = vset.pattern.permute.xlu0 0
  %4381 = vperm.xlu0 %4380, %v4055
  %v4382 = vpop.permute.xlu0 %4381
  %4385 = vset.pattern.permute.xlu0 0
  %4386 = vperm.xlu0 %4385, %v4056
  %v4387 = vpop.permute.xlu0 %4386
  %4390 = vset.pattern.permute.xlu0 0
  %4391 = vperm.xlu0 %4390, %v4057
  %v4392 = vpop.permute.xlu0 %4391
  %4395 = vset.pattern.permute.xlu0 0
  %4396 = vperm.xlu0 %4395, %v4058
  %v4397 = vpop.permute.xlu0 %4396
  %4400 = vset.pattern.permute.xlu0 0
  %4401 = vperm.xlu0 %4400, %v4059
  %v4402 = vpop.permute.xlu0 %4401
  %4405 = vset.pattern.permute.xlu0 0
  %4406 = vperm.xlu0 %4405, %v4060
  %v4407 = vpop.permute.xlu0 %4406
  %4410 = vset.pattern.permute.xlu0 0
  %4411 = vperm.xlu0 %4410, %v4061
  %v4412 = vpop.permute.xlu0 %4411
  %4415 = vset.pattern.permute.xlu0 0
  %4416 = vperm.xlu0 %4415, %v4062
  %v4417 = vpop.permute.xlu0 %4416
  %4420 = vset.pattern.permute.xlu0 0
  %4421 = vperm.xlu0 %4420, %v4063
  %v4422 = vpop.permute.xlu0 %4421
  %4425 = vset.pattern.permute.xlu0 0
  %4426 = vperm.xlu0 %4425, %v4064
  %v4427 = vpop.permute.xlu0 %4426
  %4430 = vset.pattern.permute.xlu0 0
  %4431 = vperm.xlu0 %4430, %v4065
  %v4432 = vpop.permute.xlu0 %4431
  %4435 = vset.pattern.permute.xlu0 0
  %4436 = vperm.xlu0 %4435, %v4066
  %v4437 = vpop.permute.xlu0 %4436
  %4440 = vset.pattern.permute.xlu0 0
  %4441 = vperm.xlu0 %4440, %v4067
  %v4442 = vpop.permute.xlu0 %4441
  %4445 = vset.pattern.permute.xlu0 0
  %4446 = vperm.xlu0 %4445, %v4068
  %v4447 = vpop.permute.xlu0 %4446
  %4450 = vset.pattern.permute.xlu0 0
  %4451 = vperm.xlu0 %4450, %v4069
  %v4452 = vpop.permute.xlu0 %4451
  %4455 = vset.pattern.permute.xlu0 0
  %4456 = vperm.xlu0 %4455, %v4070
  %v4457 = vpop.permute.xlu0 %4456
  %4460 = vset.pattern.permute.xlu0 0
  %4461 = vperm.xlu0 %4460, %v4071
  %v4462 = vpop.permute.xlu0 %4461
  %4465 = vset.pattern.permute.xlu0 0
  %4466 = vperm.xlu0 %4465, %v4072
  %v4467 = vpop.permute.xlu0 %4466
  %4470 = vset.pattern.permute.xlu0 0
  %4471 = vperm.xlu0 %4470, %v4073
  %v4472 = vpop.permute.xlu0 %4471
  %4475 = vset.pattern.permute.xlu0 0
  %4476 = vperm.xlu0 %4475, %v4074
  %v4477 = vpop.permute.xlu0 %4476
  %4480 = vset.pattern.permute.xlu0 0
  %4481 = vperm.xlu0 %4480, %v4075
  %v4482 = vpop.permute.xlu0 %4481
  %4485 = vset.pattern.permute.xlu0 0
  %4486 = vperm.xlu0 %4485, %v4076
  %v4487 = vpop.permute.xlu0 %4486
  %4490 = vset.pattern.permute.xlu0 0
  %4491 = vperm.xlu0 %4490, %v4077
  %v4492 = vpop.permute.xlu0 %4491
  %4495 = vset.pattern.permute.xlu0 0
  %4496 = vperm.xlu0 %4495, %v4078
  %v4497 = vpop.permute.xlu0 %4496
  %4500 = vset.pattern.permute.xlu0 0
  %4501 = vperm.xlu0 %4500, %v4079
  %v4502 = vpop.permute.xlu0 %4501
  %4505 = vset.pattern.permute.xlu0 0
  %4506 = vperm.xlu0 %4505, %v4080
  %v4507 = vpop.permute.xlu0 %4506
  %4510 = vset.pattern.permute.xlu0 0
  %4511 = vperm.xlu0 %4510, %v4081
  %v4512 = vpop.permute.xlu0 %4511
  %4515 = vset.pattern.permute.xlu0 0
  %4516 = vperm.xlu0 %4515, %v4082
  %v4517 = vpop.permute.xlu0 %4516
  %4520 = vset.pattern.permute.xlu0 0
  %4521 = vperm.xlu0 %4520, %v4083
  %v4522 = vpop.permute.xlu0 %4521
  %4525 = vset.pattern.permute.xlu0 0
  %4526 = vperm.xlu0 %4525, %v4084
  %v4527 = vpop.permute.xlu0 %4526
  %4530 = vset.pattern.permute.xlu0 0
  %4531 = vperm.xlu0 %4530, %v4085
  %v4532 = vpop.permute.xlu0 %4531
  %4535 = vset.pattern.permute.xlu0 0
  %4536 = vperm.xlu0 %4535, %v4086
  %v4537 = vpop.permute.xlu0 %4536
  %4540 = vset.pattern.permute.xlu0 0
  %4541 = vperm.xlu0 %4540, %v4087
  %v4542 = vpop.permute.xlu0 %4541
  %4545 = vset.pattern.permute.xlu0 0
  %4546 = vperm.xlu0 %4545, %v4088
  %v4547 = vpop.permute.xlu0 %4546
  %4550 = vset.pattern.permute.xlu0 0
  %4551 = vperm.xlu0 %4550, %v4089
  %v4552 = vpop.permute.xlu0 %4551
  %4555 = vset.pattern.permute.xlu0 0
  %4556 = vperm.xlu0 %4555, %v4090
  %v4557 = vpop.permute.xlu0 %4556
  %4560 = vset.pattern.permute.xlu0 0
  %4561 = vperm.xlu0 %4560, %v4091
  %v4562 = vpop.permute.xlu0 %4561
  %4565 = vset.pattern.permute.xlu0 0
  %4566 = vperm.xlu0 %4565, %v4092
  %v4567 = vpop.permute.xlu0 %4566
  %4570 = vset.pattern.permute.xlu0 0
  %4571 = vperm.xlu0 %4570, %v4093
  %v4572 = vpop.permute.xlu0 %4571
  %4575 = vset.pattern.permute.xlu0 0
  %4576 = vperm.xlu0 %4575, %v4094
  %v4577 = vpop.permute.xlu0 %4576
  %4580 = vset.pattern.permute.xlu0 0
  %4581 = vperm.xlu0 %4580, %v4095
  %v4582 = vpop.permute.xlu0 %4581
  %4585 = vset.pattern.permute.xlu0 0
  %4586 = vperm.xlu0 %4585, %v4096
  %v4587 = vpop.permute.xlu0 %4586
  %4590 = vset.pattern.permute.xlu0 0
  %4591 = vperm.xlu0 %4590, %v4097
  %v4592 = vpop.permute.xlu0 %4591
  %4595 = vset.pattern.permute.xlu0 0
  %4596 = vperm.xlu0 %4595, %v4098
  %v4597 = vpop.permute.xlu0 %4596
  %4600 = vset.pattern.permute.xlu0 0
  %4601 = vperm.xlu0 %4600, %v4099
  %v4602 = vpop.permute.xlu0 %4601
  %4605 = vset.pattern.permute.xlu0 0
  %4606 = vperm.xlu0 %4605, %v4100
  %v4607 = vpop.permute.xlu0 %4606
  %4610 = vset.pattern.permute.xlu0 0
  %4611 = vperm.xlu0 %4610, %v4101
  %v4612 = vpop.permute.xlu0 %4611
  %4615 = vset.pattern.permute.xlu0 0
  %4616 = vperm.xlu0 %4615, %v4102
  %v4617 = vpop.permute.xlu0 %4616
  %4620 = vset.pattern.permute.xlu0 0
  %4621 = vperm.xlu0 %4620, %v4103
  %v4622 = vpop.permute.xlu0 %4621
  %4625 = vset.pattern.permute.xlu0 0
  %4626 = vperm.xlu0 %4625, %v4104
  %v4627 = vpop.permute.xlu0 %4626
  %4630 = vset.pattern.permute.xlu0 0
  %4631 = vperm.xlu0 %4630, %v4105
  %v4632 = vpop.permute.xlu0 %4631
  %4635 = vset.pattern.permute.xlu0 0
  %4636 = vperm.xlu0 %4635, %v4106
  %v4637 = vpop.permute.xlu0 %4636
  %4640 = vset.pattern.permute.xlu0 0
  %4641 = vperm.xlu0 %4640, %v4107
  %v4642 = vpop.permute.xlu0 %4641
  %4645 = vset.pattern.permute.xlu0 0
  %4646 = vperm.xlu0 %4645, %v4108
  %v4647 = vpop.permute.xlu0 %4646
  %4650 = vset.pattern.permute.xlu0 0
  %4651 = vperm.xlu0 %4650, %v4109
  %v4652 = vpop.permute.xlu0 %4651
  %4655 = vset.pattern.permute.xlu0 0
  %4656 = vperm.xlu0 %4655, %v4110
  %v4657 = vpop.permute.xlu0 %4656
  %4660 = vset.pattern.permute.xlu0 0
  %4661 = vperm.xlu0 %4660, %v4111
  %v4662 = vpop.permute.xlu0 %4661
  %4665 = vset.pattern.permute.xlu0 0
  %4666 = vperm.xlu0 %4665, %v4112
  %v4667 = vpop.permute.xlu0 %4666
  %4670 = vset.pattern.permute.xlu0 0
  %4671 = vperm.xlu0 %4670, %v4113
  %v4672 = vpop.permute.xlu0 %4671
  %4675 = vset.pattern.permute.xlu0 0
  %4676 = vperm.xlu0 %4675, %v4114
  %v4677 = vpop.permute.xlu0 %4676
  %4680 = vset.pattern.permute.xlu0 0
  %4681 = vperm.xlu0 %4680, %v4115
  %v4682 = vpop.permute.xlu0 %4681
  %4685 = vset.pattern.permute.xlu0 0
  %4686 = vperm.xlu0 %4685, %v4116
  %v4687 = vpop.permute.xlu0 %4686
  %4690 = vset.pattern.permute.xlu0 0
  %4691 = vperm.xlu0 %4690, %v4117
  %v4692 = vpop.permute.xlu0 %4691
  %4695 = vset.pattern.permute.xlu0 0
  %4696 = vperm.xlu0 %4695, %v4118
  %v4697 = vpop.permute.xlu0 %4696
  %4700 = vset.pattern.permute.xlu0 0
  %4701 = vperm.xlu0 %4700, %v4119
  %v4702 = vpop.permute.xlu0 %4701
  %4705 = vset.pattern.permute.xlu0 0
  %4706 = vperm.xlu0 %4705, %v4120
  %v4707 = vpop.permute.xlu0 %4706
  %4710 = vset.pattern.permute.xlu0 0
  %4711 = vperm.xlu0 %4710, %v4121
  %v4712 = vpop.permute.xlu0 %4711
  %4715 = vset.pattern.permute.xlu0 0
  %4716 = vperm.xlu0 %4715, %v4122
  %v4717 = vpop.permute.xlu0 %4716
  %4720 = vset.pattern.permute.xlu0 0
  %4721 = vperm.xlu0 %4720, %v4123
  %v4722 = vpop.permute.xlu0 %4721
  %4725 = vset.pattern.permute.xlu0 0
  %4726 = vperm.xlu0 %4725, %v4124
  %v4727 = vpop.permute.xlu0 %4726
  %4730 = vset.pattern.permute.xlu0 0
  %4731 = vperm.xlu0 %4730, %v4125
  %v4732 = vpop.permute.xlu0 %4731
  %4735 = vset.pattern.permute.xlu0 0
  %4736 = vperm.xlu0 %4735, %v4126
  %v4737 = vpop.permute.xlu0 %4736
  %4740 = vset.pattern.permute.xlu0 0
  %4741 = vperm.xlu0 %4740, %v4127
  %v4742 = vpop.permute.xlu0 %4741
  %4745 = vset.pattern.permute.xlu0 0
  %4746 = vperm.xlu0 %4745, %v4128
  %v4747 = vpop.permute.xlu0 %4746
  %4750 = vset.pattern.permute.xlu0 0
  %4751 = vperm.xlu0 %4750, %v4129
  %v4752 = vpop.permute.xlu0 %4751
  %4755 = vset.pattern.permute.xlu0 0
  %4756 = vperm.xlu0 %4755, %v4130
  %v4757 = vpop.permute.xlu0 %4756
  %4760 = vset.pattern.permute.xlu0 0
  %4761 = vperm.xlu0 %4760, %v4131
  %v4762 = vpop.permute.xlu0 %4761
  %4765 = vset.pattern.permute.xlu0 0
  %4766 = vperm.xlu0 %4765, %v4132
  %v4767 = vpop.permute.xlu0 %4766
  %4770 = vset.pattern.permute.xlu0 0
  %4771 = vperm.xlu0 %4770, %v4133
  %v4772 = vpop.permute.xlu0 %4771
  %4775 = vset.pattern.permute.xlu0 0
  %4776 = vperm.xlu0 %4775, %v4134
  %v4777 = vpop.permute.xlu0 %4776
  %4780 = vset.pattern.permute.xlu0 0
  %4781 = vperm.xlu0 %4780, %v4135
  %v4782 = vpop.permute.xlu0 %4781
  %4785 = vset.pattern.permute.xlu0 0
  %4786 = vperm.xlu0 %4785, %v4136
  %v4787 = vpop.permute.xlu0 %4786
  %4790 = vset.pattern.permute.xlu0 0
  %4791 = vperm.xlu0 %4790, %v4137
  %v4792 = vpop.permute.xlu0 %4791
  %4795 = vset.pattern.permute.xlu0 0
  %4796 = vperm.xlu0 %4795, %v4138
  %v4797 = vpop.permute.xlu0 %4796
  %4800 = vset.pattern.permute.xlu0 0
  %4801 = vperm.xlu0 %4800, %v4139
  %v4802 = vpop.permute.xlu0 %4801
  %4805 = vset.pattern.permute.xlu0 0
  %4806 = vperm.xlu0 %4805, %v4140
  %v4807 = vpop.permute.xlu0 %4806
  %4810 = vset.pattern.permute.xlu0 0
  %4811 = vperm.xlu0 %4810, %v4141
  %v4812 = vpop.permute.xlu0 %4811
  %4815 = vset.pattern.permute.xlu0 0
  %4816 = vperm.xlu0 %4815, %v4142
  %v4817 = vpop.permute.xlu0 %4816
  %4820 = vset.pattern.permute.xlu0 0
  %4821 = vperm.xlu0 %4820, %v4143
  %v4822 = vpop.permute.xlu0 %4821
  %4825 = vset.pattern.permute.xlu0 0
  %4826 = vperm.xlu0 %4825, %v4144
  %v4827 = vpop.permute.xlu0 %4826
  %4830 = vset.pattern.permute.xlu0 0
  %4831 = vperm.xlu0 %4830, %v4145
  %v4832 = vpop.permute.xlu0 %4831
  %4835 = vset.pattern.permute.xlu0 0
  %4836 = vperm.xlu0 %4835, %v4146
  %v4837 = vpop.permute.xlu0 %4836
  %4840 = vset.pattern.permute.xlu0 0
  %4841 = vperm.xlu0 %4840, %v4147
  %v4842 = vpop.permute.xlu0 %4841
  %4845 = vset.pattern.permute.xlu0 0
  %4846 = vperm.xlu0 %4845, %v4148
  %v4847 = vpop.permute.xlu0 %4846
  %4850 = vset.pattern.permute.xlu0 0
  %4851 = vperm.xlu0 %4850, %v4149
  %v4852 = vpop.permute.xlu0 %4851
  %4855 = vset.pattern.permute.xlu0 0
  %4856 = vperm.xlu0 %4855, %v4150
  %v4857 = vpop.permute.xlu0 %4856
  %4860 = vset.pattern.permute.xlu0 0
  %4861 = vperm.xlu0 %4860, %v4151
  %v4862 = vpop.permute.xlu0 %4861
  %4865 = vset.pattern.permute.xlu0 0
  %4866 = vperm.xlu0 %4865, %v4152
  %v4867 = vpop.permute.xlu0 %4866
  %4870 = vset.pattern.permute.xlu0 0
  %4871 = vperm.xlu0 %4870, %v4153
  %v4872 = vpop.permute.xlu0 %4871
  %4875 = vset.pattern.permute.xlu0 0
  %4876 = vperm.xlu0 %4875, %v4154
  %v4877 = vpop.permute.xlu0 %4876
  %4880 = vset.pattern.permute.xlu0 0
  %4881 = vperm.xlu0 %4880, %v4155
  %v4882 = vpop.permute.xlu0 %4881
  %4885 = vset.pattern.permute.xlu0 0
  %4886 = vperm.xlu0 %4885, %v4156
  %v4887 = vpop.permute.xlu0 %4886
  %4890 = vset.pattern.permute.xlu0 0
  %4891 = vperm.xlu0 %4890, %v4157
  %v4892 = vpop.permute.xlu0 %4891
  %4895 = vset.pattern.permute.xlu0 0
  %4896 = vperm.xlu0 %4895, %v4158
  %v4897 = vpop.permute.xlu0 %4896
  %4900 = vset.pattern.permute.xlu0 0
  %4901 = vperm.xlu0 %4900, %v4159
  %v4902 = vpop.permute.xlu0 %4901
  %4905 = vset.pattern.permute.xlu0 0
  %4906 = vperm.xlu0 %4905, %v4160
  %v4907 = vpop.permute.xlu0 %4906
  %4910 = vset.pattern.permute.xlu0 0
  %4911 = vperm.xlu0 %4910, %v4161
  %v4912 = vpop.permute.xlu0 %4911
  %4915 = vset.pattern.permute.xlu0 0
  %4916 = vperm.xlu0 %4915, %v4162
  %v4917 = vpop.permute.xlu0 %4916
  %4920 = vset.pattern.permute.xlu0 0
  %4921 = vperm.xlu0 %4920, %v4163
  %v4922 = vpop.permute.xlu0 %4921
  %4925 = vset.pattern.permute.xlu0 0
  %4926 = vperm.xlu0 %4925, %v4164
  %v4927 = vpop.permute.xlu0 %4926
  %4930 = vset.pattern.permute.xlu0 0
  %4931 = vperm.xlu0 %4930, %v4165
  %v4932 = vpop.permute.xlu0 %4931
  %4935 = vset.pattern.permute.xlu0 0
  %4936 = vperm.xlu0 %4935, %v4166
  %v4937 = vpop.permute.xlu0 %4936
  %4940 = vset.pattern.permute.xlu0 0
  %4941 = vperm.xlu0 %4940, %v4167
  %v4942 = vpop.permute.xlu0 %4941
  %4945 = vset.pattern.permute.xlu0 0
  %4946 = vperm.xlu0 %4945, %v4168
  %v4947 = vpop.permute.xlu0 %4946
  %4950 = vset.pattern.permute.xlu0 0
  %4951 = vperm.xlu0 %4950, %v4169
  %v4952 = vpop.permute.xlu0 %4951
  %4955 = vset.pattern.permute.xlu0 0
  %4956 = vperm.xlu0 %4955, %v4170
  %v4957 = vpop.permute.xlu0 %4956
  %4960 = vset.pattern.permute.xlu0 0
  %4961 = vperm.xlu0 %4960, %v4171
  %v4962 = vpop.permute.xlu0 %4961
  %4965 = vset.pattern.permute.xlu0 0
  %4966 = vperm.xlu0 %4965, %v4172
  %v4967 = vpop.permute.xlu0 %4966
  %4970 = vset.pattern.permute.xlu0 0
  %4971 = vperm.xlu0 %4970, %v4173
  %v4972 = vpop.permute.xlu0 %4971
  %4975 = vset.pattern.permute.xlu0 0
  %4976 = vperm.xlu0 %4975, %v4174
  %v4977 = vpop.permute.xlu0 %4976
  %4980 = vset.pattern.permute.xlu0 0
  %4981 = vperm.xlu0 %4980, %v4175
  %v4982 = vpop.permute.xlu0 %4981
  %4985 = vset.pattern.permute.xlu0 0
  %4986 = vperm.xlu0 %4985, %v4176
  %v4987 = vpop.permute.xlu0 %4986
  %4990 = vset.pattern.permute.xlu0 0
  %4991 = vperm.xlu0 %4990, %v4177
  %v4992 = vpop.permute.xlu0 %4991
  %4995 = vset.pattern.permute.xlu0 0
  %4996 = vperm.xlu0 %4995, %v4178
  %v4997 = vpop.permute.xlu0 %4996
  %5000 = vset.pattern.permute.xlu0 0
  %5001 = vperm.xlu0 %5000, %v4179
  %v5002 = vpop.permute.xlu0 %5001
  %5005 = vset.pattern.permute.xlu0 0
  %5006 = vperm.xlu0 %5005, %v4180
  %v5007 = vpop.permute.xlu0 %5006
  %5010 = vset.pattern.permute.xlu0 0
  %5011 = vperm.xlu0 %5010, %v4181
  %v5012 = vpop.permute.xlu0 %5011
  %5015 = vset.pattern.permute.xlu0 0
  %5016 = vperm.xlu0 %5015, %v4182
  %v5017 = vpop.permute.xlu0 %5016
  %5020 = vset.pattern.permute.xlu0 0
  %5021 = vperm.xlu0 %5020, %v4183
  %v5022 = vpop.permute.xlu0 %5021
  %5025 = vset.pattern.permute.xlu0 0
  %5026 = vperm.xlu0 %5025, %v4184
  %v5027 = vpop.permute.xlu0 %5026
  %5030 = vset.pattern.permute.xlu0 0
  %5031 = vperm.xlu0 %5030, %v4185
  %v5032 = vpop.permute.xlu0 %5031
  %5035 = vset.pattern.permute.xlu0 0
  %5036 = vperm.xlu0 %5035, %v4186
  %v5037 = vpop.permute.xlu0 %5036
  %5040 = vset.pattern.permute.xlu0 0
  %5041 = vperm.xlu0 %5040, %v4187
  %v5042 = vpop.permute.xlu0 %5041
  %5045 = vset.pattern.permute.xlu0 0
  %5046 = vperm.xlu0 %5045, %v4188
  %v5047 = vpop.permute.xlu0 %5046
  %5050 = vset.pattern.permute.xlu0 0
  %5051 = vperm.xlu0 %5050, %v4189
  %v5052 = vpop.permute.xlu0 %5051
  %5055 = vset.pattern.permute.xlu0 0
  %5056 = vperm.xlu0 %5055, %v4190
  %v5057 = vpop.permute.xlu0 %5056
  %5060 = vset.pattern.permute.xlu0 0
  %5061 = vperm.xlu0 %5060, %v4191
  %v5062 = vpop.permute.xlu0 %5061
  %5065 = vset.pattern.permute.xlu0 0
  %5066 = vperm.xlu0 %5065, %v4192
  %v5067 = vpop.permute.xlu0 %5066
  %5070 = vset.pattern.permute.xlu0 0
  %5071 = vperm.xlu0 %5070, %v4193
  %v5072 = vpop.permute.xlu0 %5071
  %5075 = vset.pattern.permute.xlu0 0
  %5076 = vperm.xlu0 %5075, %v4194
  %v5077 = vpop.permute.xlu0 %5076
  %5080 = vset.pattern.permute.xlu0 0
  %5081 = vperm.xlu0 %5080, %v4195
  %v5082 = vpop.permute.xlu0 %5081
  %5085 = vset.pattern.permute.xlu0 0
  %5086 = vperm.xlu0 %5085, %v4196
  %v5087 = vpop.permute.xlu0 %5086
  %5090 = vset.pattern.permute.xlu0 0
  %5091 = vperm.xlu0 %5090, %v4197
  %v5092 = vpop.permute.xlu0 %5091
  %5095 = vset.pattern.permute.xlu0 0
  %5096 = vperm.xlu0 %5095, %v4198
  %v5097 = vpop.permute.xlu0 %5096
  %5100 = vset.pattern.permute.xlu0 0
  %5101 = vperm.xlu0 %5100, %v4199
  %v5102 = vpop.permute.xlu0 %5101
  %5105 = vset.pattern.permute.xlu0 0
  %5106 = vperm.xlu0 %5105, %v4200
  %v5107 = vpop.permute.xlu0 %5106
  %5110 = vset.pattern.permute.xlu0 0
  %5111 = vperm.xlu0 %5110, %v4201
  %v5112 = vpop.permute.xlu0 %5111
  %5115 = vset.pattern.permute.xlu0 0
  %5116 = vperm.xlu0 %5115, %v4202
  %v5117 = vpop.permute.xlu0 %5116
  %5120 = vset.pattern.permute.xlu0 0
  %5121 = vperm.xlu0 %5120, %v4203
  %v5122 = vpop.permute.xlu0 %5121
  %5125 = vset.pattern.permute.xlu0 0
  %5126 = vperm.xlu0 %5125, %v4204
  %v5127 = vpop.permute.xlu0 %5126
  %5130 = vset.pattern.permute.xlu0 0
  %5131 = vperm.xlu0 %5130, %v4205
  %v5132 = vpop.permute.xlu0 %5131
  %5135 = vset.pattern.permute.xlu0 0
  %5136 = vperm.xlu0 %5135, %v4206
  %v5137 = vpop.permute.xlu0 %5136
  %5140 = vset.pattern.permute.xlu0 0
  %5141 = vperm.xlu0 %5140, %v4207
  %v5142 = vpop.permute.xlu0 %5141
  %5145 = vset.pattern.permute.xlu0 0
  %5146 = vperm.xlu0 %5145, %v4208
  %v5147 = vpop.permute.xlu0 %5146
  %5150 = vset.pattern.permute.xlu0 0
  %5151 = vperm.xlu0 %5150, %v4209
  %v5152 = vpop.permute.xlu0 %5151
  %5155 = vset.pattern.permute.xlu0 0
  %5156 = vperm.xlu0 %5155, %v4210
  %v5157 = vpop.permute.xlu0 %5156
  %5160 = vset.pattern.permute.xlu0 0
  %5161 = vperm.xlu0 %5160, %v4211
  %v5162 = vpop.permute.xlu0 %5161
  %5165 = vset.pattern.permute.xlu0 0
  %5166 = vperm.xlu0 %5165, %v4212
  %v5167 = vpop.permute.xlu0 %5166
  %5170 = vset.pattern.permute.xlu0 0
  %5171 = vperm.xlu0 %5170, %v4213
  %v5172 = vpop.permute.xlu0 %5171
  %v5174 = vmul.f32 %v2294, %v4217
  %v5175 = vmul.f32 %v2295, %v4222
  %v5176 = vmul.f32 %v2296, %v4227
  %v5177 = vmul.f32 %v2297, %v4232
  %v5178 = vmul.f32 %v2298, %v4237
  %v5179 = vmul.f32 %v2299, %v4242
  %v5180 = vmul.f32 %v2300, %v4247
  %v5181 = vmul.f32 %v2301, %v4252
  %v5182 = vmul.f32 %v2302, %v4257
  %v5183 = vmul.f32 %v2303, %v4262
  %v5184 = vmul.f32 %v2304, %v4267
  %v5185 = vmul.f32 %v2305, %v4272
  %v5186 = vmul.f32 %v2306, %v4277
  %v5187 = vmul.f32 %v2307, %v4282
  %v5188 = vmul.f32 %v2308, %v4287
  %v5189 = vmul.f32 %v2309, %v4292
  %v5190 = vmul.f32 %v2310, %v4297
  %v5191 = vmul.f32 %v2311, %v4302
  %v5192 = vmul.f32 %v2312, %v4307
  %v5193 = vmul.f32 %v2313, %v4312
  %v5194 = vmul.f32 %v2314, %v4317
  %v5195 = vmul.f32 %v2315, %v4322
  %v5196 = vmul.f32 %v2316, %v4327
  %v5197 = vmul.f32 %v2317, %v4332
  %v5198 = vmul.f32 %v2318, %v4337
  %v5199 = vmul.f32 %v2319, %v4342
  %v5200 = vmul.f32 %v2320, %v4347
  %v5201 = vmul.f32 %v2321, %v4352
  %v5202 = vmul.f32 %v2322, %v4357
  %v5203 = vmul.f32 %v2323, %v4362
  %v5204 = vmul.f32 %v2324, %v4367
  %v5205 = vmul.f32 %v2325, %v4372
  %v5206 = vmul.f32 %v2326, %v4377
  %v5207 = vmul.f32 %v2327, %v4382
  %v5208 = vmul.f32 %v2328, %v4387
  %v5209 = vmul.f32 %v2329, %v4392
  %v5210 = vmul.f32 %v2330, %v4397
  %v5211 = vmul.f32 %v2331, %v4402
  %v5212 = vmul.f32 %v2332, %v4407
  %v5213 = vmul.f32 %v2333, %v4412
  %v5214 = vmul.f32 %v2334, %v4417
  %v5215 = vmul.f32 %v2335, %v4422
  %v5216 = vmul.f32 %v2336, %v4427
  %v5217 = vmul.f32 %v2337, %v4432
  %v5218 = vmul.f32 %v2338, %v4437
  %v5219 = vmul.f32 %v2339, %v4442
  %v5220 = vmul.f32 %v2340, %v4447
  %v5221 = vmul.f32 %v2341, %v4452
  %v5222 = vmul.f32 %v2342, %v4457
  %v5223 = vmul.f32 %v2343, %v4462
  %v5224 = vmul.f32 %v2344, %v4467
  %v5225 = vmul.f32 %v2345, %v4472
  %v5226 = vmul.f32 %v2346, %v4477
  %v5227 = vmul.f32 %v2347, %v4482
  %v5228 = vmul.f32 %v2348, %v4487
  %v5229 = vmul.f32 %v2349, %v4492
  %v5230 = vmul.f32 %v2350, %v4497
  %v5231 = vmul.f32 %v2351, %v4502
  %v5232 = vmul.f32 %v2352, %v4507
  %v5233 = vmul.f32 %v2353, %v4512
  %v5234 = vmul.f32 %v2354, %v4517
  %v5235 = vmul.f32 %v2355, %v4522
  %v5236 = vmul.f32 %v2356, %v4527
  %v5237 = vmul.f32 %v2357, %v4532
  %v5238 = vmul.f32 %v2358, %v4537
  %v5239 = vmul.f32 %v2359, %v4542
  %v5240 = vmul.f32 %v2360, %v4547
  %v5241 = vmul.f32 %v2361, %v4552
  %v5242 = vmul.f32 %v2362, %v4557
  %v5243 = vmul.f32 %v2363, %v4562
  %v5244 = vmul.f32 %v2364, %v4567
  %v5245 = vmul.f32 %v2365, %v4572
  %v5246 = vmul.f32 %v2366, %v4577
  %v5247 = vmul.f32 %v2367, %v4582
  %v5248 = vmul.f32 %v2368, %v4587
  %v5249 = vmul.f32 %v2369, %v4592
  %v5250 = vmul.f32 %v2370, %v4597
  %v5251 = vmul.f32 %v2371, %v4602
  %v5252 = vmul.f32 %v2372, %v4607
  %v5253 = vmul.f32 %v2373, %v4612
  %v5254 = vmul.f32 %v2374, %v4617
  %v5255 = vmul.f32 %v2375, %v4622
  %v5256 = vmul.f32 %v2376, %v4627
  %v5257 = vmul.f32 %v2377, %v4632
  %v5258 = vmul.f32 %v2378, %v4637
  %v5259 = vmul.f32 %v2379, %v4642
  %v5260 = vmul.f32 %v2380, %v4647
  %v5261 = vmul.f32 %v2381, %v4652
  %v5262 = vmul.f32 %v2382, %v4657
  %v5263 = vmul.f32 %v2383, %v4662
  %v5264 = vmul.f32 %v2384, %v4667
  %v5265 = vmul.f32 %v2385, %v4672
  %v5266 = vmul.f32 %v2386, %v4677
  %v5267 = vmul.f32 %v2387, %v4682
  %v5268 = vmul.f32 %v2388, %v4687
  %v5269 = vmul.f32 %v2389, %v4692
  %v5270 = vmul.f32 %v2390, %v4697
  %v5271 = vmul.f32 %v2391, %v4702
  %v5272 = vmul.f32 %v2392, %v4707
  %v5273 = vmul.f32 %v2393, %v4712
  %v5274 = vmul.f32 %v2394, %v4717
  %v5275 = vmul.f32 %v2395, %v4722
  %v5276 = vmul.f32 %v2396, %v4727
  %v5277 = vmul.f32 %v2397, %v4732
  %v5278 = vmul.f32 %v2398, %v4737
  %v5279 = vmul.f32 %v2399, %v4742
  %v5280 = vmul.f32 %v2400, %v4747
  %v5281 = vmul.f32 %v2401, %v4752
  %v5282 = vmul.f32 %v2402, %v4757
  %v5283 = vmul.f32 %v2403, %v4762
  %v5284 = vmul.f32 %v2404, %v4767
  %v5285 = vmul.f32 %v2405, %v4772
  %v5286 = vmul.f32 %v2406, %v4777
  %v5287 = vmul.f32 %v2407, %v4782
  %v5288 = vmul.f32 %v2408, %v4787
  %v5289 = vmul.f32 %v2409, %v4792
  %v5290 = vmul.f32 %v2410, %v4797
  %v5291 = vmul.f32 %v2411, %v4802
  %v5292 = vmul.f32 %v2412, %v4807
  %v5293 = vmul.f32 %v2413, %v4812
  %v5294 = vmul.f32 %v2414, %v4817
  %v5295 = vmul.f32 %v2415, %v4822
  %v5296 = vmul.f32 %v2416, %v4827
  %v5297 = vmul.f32 %v2417, %v4832
  %v5298 = vmul.f32 %v2418, %v4837
  %v5299 = vmul.f32 %v2419, %v4842
  %v5300 = vmul.f32 %v2420, %v4847
  %v5301 = vmul.f32 %v2421, %v4852
  %v5302 = vmul.f32 %v2422, %v4857
  %v5303 = vmul.f32 %v2423, %v4862
  %v5304 = vmul.f32 %v2424, %v4867
  %v5305 = vmul.f32 %v2425, %v4872
  %v5306 = vmul.f32 %v2426, %v4877
  %v5307 = vmul.f32 %v2427, %v4882
  %v5308 = vmul.f32 %v2428, %v4887
  %v5309 = vmul.f32 %v2429, %v4892
  %v5310 = vmul.f32 %v2430, %v4897
  %v5311 = vmul.f32 %v2431, %v4902
  %v5312 = vmul.f32 %v2432, %v4907
  %v5313 = vmul.f32 %v2433, %v4912
  %v5314 = vmul.f32 %v2434, %v4917
  %v5315 = vmul.f32 %v2435, %v4922
  %v5316 = vmul.f32 %v2436, %v4927
  %v5317 = vmul.f32 %v2437, %v4932
  %v5318 = vmul.f32 %v2438, %v4937
  %v5319 = vmul.f32 %v2439, %v4942
  %v5320 = vmul.f32 %v2440, %v4947
  %v5321 = vmul.f32 %v2441, %v4952
  %v5322 = vmul.f32 %v2442, %v4957
  %v5323 = vmul.f32 %v2443, %v4962
  %v5324 = vmul.f32 %v2444, %v4967
  %v5325 = vmul.f32 %v2445, %v4972
  %v5326 = vmul.f32 %v2446, %v4977
  %v5327 = vmul.f32 %v2447, %v4982
  %v5328 = vmul.f32 %v2448, %v4987
  %v5329 = vmul.f32 %v2449, %v4992
  %v5330 = vmul.f32 %v2450, %v4997
  %v5331 = vmul.f32 %v2451, %v5002
  %v5332 = vmul.f32 %v2452, %v5007
  %v5333 = vmul.f32 %v2453, %v5012
  %v5334 = vmul.f32 %v2454, %v5017
  %v5335 = vmul.f32 %v2455, %v5022
  %v5336 = vmul.f32 %v2456, %v5027
  %v5337 = vmul.f32 %v2457, %v5032
  %v5338 = vmul.f32 %v2458, %v5037
  %v5339 = vmul.f32 %v2459, %v5042
  %v5340 = vmul.f32 %v2460, %v5047
  %v5341 = vmul.f32 %v2461, %v5052
  %v5342 = vmul.f32 %v2462, %v5057
  %v5343 = vmul.f32 %v2463, %v5062
  %v5344 = vmul.f32 %v2464, %v5067
  %v5345 = vmul.f32 %v2465, %v5072
  %v5346 = vmul.f32 %v2466, %v5077
  %v5347 = vmul.f32 %v2467, %v5082
  %v5348 = vmul.f32 %v2468, %v5087
  %v5349 = vmul.f32 %v2469, %v5092
  %v5350 = vmul.f32 %v2470, %v5097
  %v5351 = vmul.f32 %v2471, %v5102
  %v5352 = vmul.f32 %v2472, %v5107
  %v5353 = vmul.f32 %v2473, %v5112
  %v5354 = vmul.f32 %v2474, %v5117
  %v5355 = vmul.f32 %v2475, %v5122
  %v5356 = vmul.f32 %v2476, %v5127
  %v5357 = vmul.f32 %v2477, %v5132
  %v5358 = vmul.f32 %v2478, %v5137
  %v5359 = vmul.f32 %v2479, %v5142
  %v5360 = vmul.f32 %v2480, %v5147
  %v5361 = vmul.f32 %v2481, %v5152
  %v5362 = vmul.f32 %v2482, %v5157
  %v5363 = vmul.f32 %v2483, %v5162
  %v5364 = vmul.f32 %v2484, %v5167
  %v5365 = vmul.f32 %v2485, %v5172
  %v5366 = vld [vmem:[%s4] sm:$0xff]
  %v5367 = vld [vmem:[%s4 + $0x8] sm:$0xff]
  %v5368 = vld [vmem:[%s4 + $0x10] sm:$0xff]
  %v5369 = vld [vmem:[%s4 + $0x18] sm:$0xff]
  %v5370 = vld [vmem:[%s4 + $0x20] sm:$0xff]
  %v5371 = vld [vmem:[%s4 + $0x28] sm:$0xff]
  %v5372 = vld [vmem:[%s4 + $0x30] sm:$0xff]
  %v5373 = vld [vmem:[%s4 + $0x38] sm:$0xff]
  %v5374 = vld [vmem:[%s4 + $0x40] sm:$0xff]
  %v5375 = vld [vmem:[%s4 + $0x48] sm:$0xff]
  %v5376 = vld [vmem:[%s4 + $0x50] sm:$0xff]
  %v5377 = vld [vmem:[%s4 + $0x58] sm:$0xff]
  %v5378 = vld [vmem:[%s4 + $0x60] sm:$0xff]
  %v5379 = vld [vmem:[%s4 + $0x68] sm:$0xff]
  %v5380 = vld [vmem:[%s4 + $0x70] sm:$0xff]
  %v5381 = vld [vmem:[%s4 + $0x78] sm:$0xff]
  %v5382 = vld [vmem:[%s4 + $0x80] sm:$0xff]
  %v5383 = vld [vmem:[%s4 + $0x88] sm:$0xff]
  %v5384 = vld [vmem:[%s4 + $0x90] sm:$0xff]
  %v5385 = vld [vmem:[%s4 + $0x98] sm:$0xff]
  %v5386 = vld [vmem:[%s4 + $0xa0] sm:$0xff]
  %v5387 = vld [vmem:[%s4 + $0xa8] sm:$0xff]
  %v5388 = vld [vmem:[%s4 + $0xb0] sm:$0xff]
  %v5389 = vld [vmem:[%s4 + $0xb8] sm:$0xff]
  %v5390 = vld [vmem:[%s4 + $0xc0] sm:$0xff]
  %v5391 = vld [vmem:[%s4 + $0xc8] sm:$0xff]
  %v5392 = vld [vmem:[%s4 + $0xd0] sm:$0xff]
  %v5393 = vld [vmem:[%s4 + $0xd8] sm:$0xff]
  %v5394 = vld [vmem:[%s4 + $0xe0] sm:$0xff]
  %v5395 = vld [vmem:[%s4 + $0xe8] sm:$0xff]
  %v5396 = vld [vmem:[%s4 + $0xf0] sm:$0xff]
  %v5397 = vld [vmem:[%s4 + $0xf8] sm:$0xff]
  %v5398 = vld [vmem:[%s4 + $0x100] sm:$0xff]
  %v5399 = vld [vmem:[%s4 + $0x108] sm:$0xff]
  %v5400 = vld [vmem:[%s4 + $0x110] sm:$0xff]
  %v5401 = vld [vmem:[%s4 + $0x118] sm:$0xff]
  %v5402 = vld [vmem:[%s4 + $0x120] sm:$0xff]
  %v5403 = vld [vmem:[%s4 + $0x128] sm:$0xff]
  %v5404 = vld [vmem:[%s4 + $0x130] sm:$0xff]
  %v5405 = vld [vmem:[%s4 + $0x138] sm:$0xff]
  %v5406 = vld [vmem:[%s4 + $0x140] sm:$0xff]
  %v5407 = vld [vmem:[%s4 + $0x148] sm:$0xff]
  %v5408 = vld [vmem:[%s4 + $0x150] sm:$0xff]
  %v5409 = vld [vmem:[%s4 + $0x158] sm:$0xff]
  %v5410 = vld [vmem:[%s4 + $0x160] sm:$0xff]
  %v5411 = vld [vmem:[%s4 + $0x168] sm:$0xff]
  %v5412 = vld [vmem:[%s4 + $0x170] sm:$0xff]
  %v5413 = vld [vmem:[%s4 + $0x178] sm:$0xff]
  %v5414 = vld [vmem:[%s4 + $0x180] sm:$0xff]
  %v5415 = vld [vmem:[%s4 + $0x188] sm:$0xff]
  %v5416 = vld [vmem:[%s4 + $0x190] sm:$0xff]
  %v5417 = vld [vmem:[%s4 + $0x198] sm:$0xff]
  %v5418 = vld [vmem:[%s4 + $0x1a0] sm:$0xff]
  %v5419 = vld [vmem:[%s4 + $0x1a8] sm:$0xff]
  %v5420 = vld [vmem:[%s4 + $0x1b0] sm:$0xff]
  %v5421 = vld [vmem:[%s4 + $0x1b8] sm:$0xff]
  %v5422 = vld [vmem:[%s4 + $0x1c0] sm:$0xff]
  %v5423 = vld [vmem:[%s4 + $0x1c8] sm:$0xff]
  %v5424 = vld [vmem:[%s4 + $0x1d0] sm:$0xff]
  %v5425 = vld [vmem:[%s4 + $0x1d8] sm:$0xff]
  %v5426 = vld [vmem:[%s4 + $0x1e0] sm:$0xff]
  %v5427 = vld [vmem:[%s4 + $0x1e8] sm:$0xff]
  %v5428 = vld [vmem:[%s4 + $0x1f0] sm:$0xff]
  %v5429 = vld [vmem:[%s4 + $0x1f8] sm:$0xff]
  %v5430 = vld [vmem:[%s4 + $0x200] sm:$0xff]
  %v5431 = vld [vmem:[%s4 + $0x208] sm:$0xff]
  %v5432 = vld [vmem:[%s4 + $0x210] sm:$0xff]
  %v5433 = vld [vmem:[%s4 + $0x218] sm:$0xff]
  %v5434 = vld [vmem:[%s4 + $0x220] sm:$0xff]
  %v5435 = vld [vmem:[%s4 + $0x228] sm:$0xff]
  %v5436 = vld [vmem:[%s4 + $0x230] sm:$0xff]
  %v5437 = vld [vmem:[%s4 + $0x238] sm:$0xff]
  %v5438 = vld [vmem:[%s4 + $0x240] sm:$0xff]
  %v5439 = vld [vmem:[%s4 + $0x248] sm:$0xff]
  %v5440 = vld [vmem:[%s4 + $0x250] sm:$0xff]
  %v5441 = vld [vmem:[%s4 + $0x258] sm:$0xff]
  %v5442 = vld [vmem:[%s4 + $0x260] sm:$0xff]
  %v5443 = vld [vmem:[%s4 + $0x268] sm:$0xff]
  %v5444 = vld [vmem:[%s4 + $0x270] sm:$0xff]
  %v5445 = vld [vmem:[%s4 + $0x278] sm:$0xff]
  %v5446 = vld [vmem:[%s4 + $0x280] sm:$0xff]
  %v5447 = vld [vmem:[%s4 + $0x288] sm:$0xff]
  %v5448 = vld [vmem:[%s4 + $0x290] sm:$0xff]
  %v5449 = vld [vmem:[%s4 + $0x298] sm:$0xff]
  %v5450 = vld [vmem:[%s4 + $0x2a0] sm:$0xff]
  %v5451 = vld [vmem:[%s4 + $0x2a8] sm:$0xff]
  %v5452 = vld [vmem:[%s4 + $0x2b0] sm:$0xff]
  %v5453 = vld [vmem:[%s4 + $0x2b8] sm:$0xff]
  %v5454 = vld [vmem:[%s4 + $0x2c0] sm:$0xff]
  %v5455 = vld [vmem:[%s4 + $0x2c8] sm:$0xff]
  %v5456 = vld [vmem:[%s4 + $0x2d0] sm:$0xff]
  %v5457 = vld [vmem:[%s4 + $0x2d8] sm:$0xff]
  %v5458 = vld [vmem:[%s4 + $0x2e0] sm:$0xff]
  %v5459 = vld [vmem:[%s4 + $0x2e8] sm:$0xff]
  %v5460 = vld [vmem:[%s4 + $0x2f0] sm:$0xff]
  %v5461 = vld [vmem:[%s4 + $0x2f8] sm:$0xff]
  %v5462 = vld [vmem:[%s4 + $0x300] sm:$0xff]
  %v5463 = vld [vmem:[%s4 + $0x308] sm:$0xff]
  %v5464 = vld [vmem:[%s4 + $0x310] sm:$0xff]
  %v5465 = vld [vmem:[%s4 + $0x318] sm:$0xff]
  %v5466 = vld [vmem:[%s4 + $0x320] sm:$0xff]
  %v5467 = vld [vmem:[%s4 + $0x328] sm:$0xff]
  %v5468 = vld [vmem:[%s4 + $0x330] sm:$0xff]
  %v5469 = vld [vmem:[%s4 + $0x338] sm:$0xff]
  %v5470 = vld [vmem:[%s4 + $0x340] sm:$0xff]
  %v5471 = vld [vmem:[%s4 + $0x348] sm:$0xff]
  %v5472 = vld [vmem:[%s4 + $0x350] sm:$0xff]
  %v5473 = vld [vmem:[%s4 + $0x358] sm:$0xff]
  %v5474 = vld [vmem:[%s4 + $0x360] sm:$0xff]
  %v5475 = vld [vmem:[%s4 + $0x368] sm:$0xff]
  %v5476 = vld [vmem:[%s4 + $0x370] sm:$0xff]
  %v5477 = vld [vmem:[%s4 + $0x378] sm:$0xff]
  %v5478 = vld [vmem:[%s4 + $0x380] sm:$0xff]
  %v5479 = vld [vmem:[%s4 + $0x388] sm:$0xff]
  %v5480 = vld [vmem:[%s4 + $0x390] sm:$0xff]
  %v5481 = vld [vmem:[%s4 + $0x398] sm:$0xff]
  %v5482 = vld [vmem:[%s4 + $0x3a0] sm:$0xff]
  %v5483 = vld [vmem:[%s4 + $0x3a8] sm:$0xff]
  %v5484 = vld [vmem:[%s4 + $0x3b0] sm:$0xff]
  %v5485 = vld [vmem:[%s4 + $0x3b8] sm:$0xff]
  %v5486 = vld [vmem:[%s4 + $0x3c0] sm:$0xff]
  %v5487 = vld [vmem:[%s4 + $0x3c8] sm:$0xff]
  %v5488 = vld [vmem:[%s4 + $0x3d0] sm:$0xff]
  %v5489 = vld [vmem:[%s4 + $0x3d8] sm:$0xff]
  %v5490 = vld [vmem:[%s4 + $0x3e0] sm:$0xff]
  %v5491 = vld [vmem:[%s4 + $0x3e8] sm:$0xff]
  %v5492 = vld [vmem:[%s4 + $0x3f0] sm:$0xff]
  %v5493 = vld [vmem:[%s4 + $0x3f8] sm:$0xff]
  %v5494 = vld [vmem:[%s4 + $0x400] sm:$0xff]
  %v5495 = vld [vmem:[%s4 + $0x408] sm:$0xff]
  %v5496 = vld [vmem:[%s4 + $0x410] sm:$0xff]
  %v5497 = vld [vmem:[%s4 + $0x418] sm:$0xff]
  %v5498 = vld [vmem:[%s4 + $0x420] sm:$0xff]
  %v5499 = vld [vmem:[%s4 + $0x428] sm:$0xff]
  %v5500 = vld [vmem:[%s4 + $0x430] sm:$0xff]
  %v5501 = vld [vmem:[%s4 + $0x438] sm:$0xff]
  %v5502 = vld [vmem:[%s4 + $0x440] sm:$0xff]
  %v5503 = vld [vmem:[%s4 + $0x448] sm:$0xff]
  %v5504 = vld [vmem:[%s4 + $0x450] sm:$0xff]
  %v5505 = vld [vmem:[%s4 + $0x458] sm:$0xff]
  %v5506 = vld [vmem:[%s4 + $0x460] sm:$0xff]
  %v5507 = vld [vmem:[%s4 + $0x468] sm:$0xff]
  %v5508 = vld [vmem:[%s4 + $0x470] sm:$0xff]
  %v5509 = vld [vmem:[%s4 + $0x478] sm:$0xff]
  %v5510 = vld [vmem:[%s4 + $0x480] sm:$0xff]
  %v5511 = vld [vmem:[%s4 + $0x488] sm:$0xff]
  %v5512 = vld [vmem:[%s4 + $0x490] sm:$0xff]
  %v5513 = vld [vmem:[%s4 + $0x498] sm:$0xff]
  %v5514 = vld [vmem:[%s4 + $0x4a0] sm:$0xff]
  %v5515 = vld [vmem:[%s4 + $0x4a8] sm:$0xff]
  %v5516 = vld [vmem:[%s4 + $0x4b0] sm:$0xff]
  %v5517 = vld [vmem:[%s4 + $0x4b8] sm:$0xff]
  %v5518 = vld [vmem:[%s4 + $0x4c0] sm:$0xff]
  %v5519 = vld [vmem:[%s4 + $0x4c8] sm:$0xff]
  %v5520 = vld [vmem:[%s4 + $0x4d0] sm:$0xff]
  %v5521 = vld [vmem:[%s4 + $0x4d8] sm:$0xff]
  %v5522 = vld [vmem:[%s4 + $0x4e0] sm:$0xff]
  %v5523 = vld [vmem:[%s4 + $0x4e8] sm:$0xff]
  %v5524 = vld [vmem:[%s4 + $0x4f0] sm:$0xff]
  %v5525 = vld [vmem:[%s4 + $0x4f8] sm:$0xff]
  %v5526 = vld [vmem:[%s4 + $0x500] sm:$0xff]
  %v5527 = vld [vmem:[%s4 + $0x508] sm:$0xff]
  %v5528 = vld [vmem:[%s4 + $0x510] sm:$0xff]
  %v5529 = vld [vmem:[%s4 + $0x518] sm:$0xff]
  %v5530 = vld [vmem:[%s4 + $0x520] sm:$0xff]
  %v5531 = vld [vmem:[%s4 + $0x528] sm:$0xff]
  %v5532 = vld [vmem:[%s4 + $0x530] sm:$0xff]
  %v5533 = vld [vmem:[%s4 + $0x538] sm:$0xff]
  %v5534 = vld [vmem:[%s4 + $0x540] sm:$0xff]
  %v5535 = vld [vmem:[%s4 + $0x548] sm:$0xff]
  %v5536 = vld [vmem:[%s4 + $0x550] sm:$0xff]
  %v5537 = vld [vmem:[%s4 + $0x558] sm:$0xff]
  %v5538 = vld [vmem:[%s4 + $0x560] sm:$0xff]
  %v5539 = vld [vmem:[%s4 + $0x568] sm:$0xff]
  %v5540 = vld [vmem:[%s4 + $0x570] sm:$0xff]
  %v5541 = vld [vmem:[%s4 + $0x578] sm:$0xff]
  %v5542 = vld [vmem:[%s4 + $0x580] sm:$0xff]
  %v5543 = vld [vmem:[%s4 + $0x588] sm:$0xff]
  %v5544 = vld [vmem:[%s4 + $0x590] sm:$0xff]
  %v5545 = vld [vmem:[%s4 + $0x598] sm:$0xff]
  %v5546 = vld [vmem:[%s4 + $0x5a0] sm:$0xff]
  %v5547 = vld [vmem:[%s4 + $0x5a8] sm:$0xff]
  %v5548 = vld [vmem:[%s4 + $0x5b0] sm:$0xff]
  %v5549 = vld [vmem:[%s4 + $0x5b8] sm:$0xff]
  %v5550 = vld [vmem:[%s4 + $0x5c0] sm:$0xff]
  %v5551 = vld [vmem:[%s4 + $0x5c8] sm:$0xff]
  %v5552 = vld [vmem:[%s4 + $0x5d0] sm:$0xff]
  %v5553 = vld [vmem:[%s4 + $0x5d8] sm:$0xff]
  %v5554 = vld [vmem:[%s4 + $0x5e0] sm:$0xff]
  %v5555 = vld [vmem:[%s4 + $0x5e8] sm:$0xff]
  %v5556 = vld [vmem:[%s4 + $0x5f0] sm:$0xff]
  %v5557 = vld [vmem:[%s4 + $0x5f8] sm:$0xff]
  %5559 = vset.pattern.permute.xlu0 0
  %5560 = vperm.xlu0 %5559, %v5366
  %v5561 = vpop.permute.xlu0 %5560
  %5564 = vset.pattern.permute.xlu0 0
  %5565 = vperm.xlu0 %5564, %v5367
  %v5566 = vpop.permute.xlu0 %5565
  %5569 = vset.pattern.permute.xlu0 0
  %5570 = vperm.xlu0 %5569, %v5368
  %v5571 = vpop.permute.xlu0 %5570
  %5574 = vset.pattern.permute.xlu0 0
  %5575 = vperm.xlu0 %5574, %v5369
  %v5576 = vpop.permute.xlu0 %5575
  %5579 = vset.pattern.permute.xlu0 0
  %5580 = vperm.xlu0 %5579, %v5370
  %v5581 = vpop.permute.xlu0 %5580
  %5584 = vset.pattern.permute.xlu0 0
  %5585 = vperm.xlu0 %5584, %v5371
  %v5586 = vpop.permute.xlu0 %5585
  %5589 = vset.pattern.permute.xlu0 0
  %5590 = vperm.xlu0 %5589, %v5372
  %v5591 = vpop.permute.xlu0 %5590
  %5594 = vset.pattern.permute.xlu0 0
  %5595 = vperm.xlu0 %5594, %v5373
  %v5596 = vpop.permute.xlu0 %5595
  %5599 = vset.pattern.permute.xlu0 0
  %5600 = vperm.xlu0 %5599, %v5374
  %v5601 = vpop.permute.xlu0 %5600
  %5604 = vset.pattern.permute.xlu0 0
  %5605 = vperm.xlu0 %5604, %v5375
  %v5606 = vpop.permute.xlu0 %5605
  %5609 = vset.pattern.permute.xlu0 0
  %5610 = vperm.xlu0 %5609, %v5376
  %v5611 = vpop.permute.xlu0 %5610
  %5614 = vset.pattern.permute.xlu0 0
  %5615 = vperm.xlu0 %5614, %v5377
  %v5616 = vpop.permute.xlu0 %5615
  %5619 = vset.pattern.permute.xlu0 0
  %5620 = vperm.xlu0 %5619, %v5378
  %v5621 = vpop.permute.xlu0 %5620
  %5624 = vset.pattern.permute.xlu0 0
  %5625 = vperm.xlu0 %5624, %v5379
  %v5626 = vpop.permute.xlu0 %5625
  %5629 = vset.pattern.permute.xlu0 0
  %5630 = vperm.xlu0 %5629, %v5380
  %v5631 = vpop.permute.xlu0 %5630
  %5634 = vset.pattern.permute.xlu0 0
  %5635 = vperm.xlu0 %5634, %v5381
  %v5636 = vpop.permute.xlu0 %5635
  %5639 = vset.pattern.permute.xlu0 0
  %5640 = vperm.xlu0 %5639, %v5382
  %v5641 = vpop.permute.xlu0 %5640
  %5644 = vset.pattern.permute.xlu0 0
  %5645 = vperm.xlu0 %5644, %v5383
  %v5646 = vpop.permute.xlu0 %5645
  %5649 = vset.pattern.permute.xlu0 0
  %5650 = vperm.xlu0 %5649, %v5384
  %v5651 = vpop.permute.xlu0 %5650
  %5654 = vset.pattern.permute.xlu0 0
  %5655 = vperm.xlu0 %5654, %v5385
  %v5656 = vpop.permute.xlu0 %5655
  %5659 = vset.pattern.permute.xlu0 0
  %5660 = vperm.xlu0 %5659, %v5386
  %v5661 = vpop.permute.xlu0 %5660
  %5664 = vset.pattern.permute.xlu0 0
  %5665 = vperm.xlu0 %5664, %v5387
  %v5666 = vpop.permute.xlu0 %5665
  %5669 = vset.pattern.permute.xlu0 0
  %5670 = vperm.xlu0 %5669, %v5388
  %v5671 = vpop.permute.xlu0 %5670
  %5674 = vset.pattern.permute.xlu0 0
  %5675 = vperm.xlu0 %5674, %v5389
  %v5676 = vpop.permute.xlu0 %5675
  %5679 = vset.pattern.permute.xlu0 0
  %5680 = vperm.xlu0 %5679, %v5390
  %v5681 = vpop.permute.xlu0 %5680
  %5684 = vset.pattern.permute.xlu0 0
  %5685 = vperm.xlu0 %5684, %v5391
  %v5686 = vpop.permute.xlu0 %5685
  %5689 = vset.pattern.permute.xlu0 0
  %5690 = vperm.xlu0 %5689, %v5392
  %v5691 = vpop.permute.xlu0 %5690
  %5694 = vset.pattern.permute.xlu0 0
  %5695 = vperm.xlu0 %5694, %v5393
  %v5696 = vpop.permute.xlu0 %5695
  %5699 = vset.pattern.permute.xlu0 0
  %5700 = vperm.xlu0 %5699, %v5394
  %v5701 = vpop.permute.xlu0 %5700
  %5704 = vset.pattern.permute.xlu0 0
  %5705 = vperm.xlu0 %5704, %v5395
  %v5706 = vpop.permute.xlu0 %5705
  %5709 = vset.pattern.permute.xlu0 0
  %5710 = vperm.xlu0 %5709, %v5396
  %v5711 = vpop.permute.xlu0 %5710
  %5714 = vset.pattern.permute.xlu0 0
  %5715 = vperm.xlu0 %5714, %v5397
  %v5716 = vpop.permute.xlu0 %5715
  %5719 = vset.pattern.permute.xlu0 0
  %5720 = vperm.xlu0 %5719, %v5398
  %v5721 = vpop.permute.xlu0 %5720
  %5724 = vset.pattern.permute.xlu0 0
  %5725 = vperm.xlu0 %5724, %v5399
  %v5726 = vpop.permute.xlu0 %5725
  %5729 = vset.pattern.permute.xlu0 0
  %5730 = vperm.xlu0 %5729, %v5400
  %v5731 = vpop.permute.xlu0 %5730
  %5734 = vset.pattern.permute.xlu0 0
  %5735 = vperm.xlu0 %5734, %v5401
  %v5736 = vpop.permute.xlu0 %5735
  %5739 = vset.pattern.permute.xlu0 0
  %5740 = vperm.xlu0 %5739, %v5402
  %v5741 = vpop.permute.xlu0 %5740
  %5744 = vset.pattern.permute.xlu0 0
  %5745 = vperm.xlu0 %5744, %v5403
  %v5746 = vpop.permute.xlu0 %5745
  %5749 = vset.pattern.permute.xlu0 0
  %5750 = vperm.xlu0 %5749, %v5404
  %v5751 = vpop.permute.xlu0 %5750
  %5754 = vset.pattern.permute.xlu0 0
  %5755 = vperm.xlu0 %5754, %v5405
  %v5756 = vpop.permute.xlu0 %5755
  %5759 = vset.pattern.permute.xlu0 0
  %5760 = vperm.xlu0 %5759, %v5406
  %v5761 = vpop.permute.xlu0 %5760
  %5764 = vset.pattern.permute.xlu0 0
  %5765 = vperm.xlu0 %5764, %v5407
  %v5766 = vpop.permute.xlu0 %5765
  %5769 = vset.pattern.permute.xlu0 0
  %5770 = vperm.xlu0 %5769, %v5408
  %v5771 = vpop.permute.xlu0 %5770
  %5774 = vset.pattern.permute.xlu0 0
  %5775 = vperm.xlu0 %5774, %v5409
  %v5776 = vpop.permute.xlu0 %5775
  %5779 = vset.pattern.permute.xlu0 0
  %5780 = vperm.xlu0 %5779, %v5410
  %v5781 = vpop.permute.xlu0 %5780
  %5784 = vset.pattern.permute.xlu0 0
  %5785 = vperm.xlu0 %5784, %v5411
  %v5786 = vpop.permute.xlu0 %5785
  %5789 = vset.pattern.permute.xlu0 0
  %5790 = vperm.xlu0 %5789, %v5412
  %v5791 = vpop.permute.xlu0 %5790
  %5794 = vset.pattern.permute.xlu0 0
  %5795 = vperm.xlu0 %5794, %v5413
  %v5796 = vpop.permute.xlu0 %5795
  %5799 = vset.pattern.permute.xlu0 0
  %5800 = vperm.xlu0 %5799, %v5414
  %v5801 = vpop.permute.xlu0 %5800
  %5804 = vset.pattern.permute.xlu0 0
  %5805 = vperm.xlu0 %5804, %v5415
  %v5806 = vpop.permute.xlu0 %5805
  %5809 = vset.pattern.permute.xlu0 0
  %5810 = vperm.xlu0 %5809, %v5416
  %v5811 = vpop.permute.xlu0 %5810
  %5814 = vset.pattern.permute.xlu0 0
  %5815 = vperm.xlu0 %5814, %v5417
  %v5816 = vpop.permute.xlu0 %5815
  %5819 = vset.pattern.permute.xlu0 0
  %5820 = vperm.xlu0 %5819, %v5418
  %v5821 = vpop.permute.xlu0 %5820
  %5824 = vset.pattern.permute.xlu0 0
  %5825 = vperm.xlu0 %5824, %v5419
  %v5826 = vpop.permute.xlu0 %5825
  %5829 = vset.pattern.permute.xlu0 0
  %5830 = vperm.xlu0 %5829, %v5420
  %v5831 = vpop.permute.xlu0 %5830
  %5834 = vset.pattern.permute.xlu0 0
  %5835 = vperm.xlu0 %5834, %v5421
  %v5836 = vpop.permute.xlu0 %5835
  %5839 = vset.pattern.permute.xlu0 0
  %5840 = vperm.xlu0 %5839, %v5422
  %v5841 = vpop.permute.xlu0 %5840
  %5844 = vset.pattern.permute.xlu0 0
  %5845 = vperm.xlu0 %5844, %v5423
  %v5846 = vpop.permute.xlu0 %5845
  %5849 = vset.pattern.permute.xlu0 0
  %5850 = vperm.xlu0 %5849, %v5424
  %v5851 = vpop.permute.xlu0 %5850
  %5854 = vset.pattern.permute.xlu0 0
  %5855 = vperm.xlu0 %5854, %v5425
  %v5856 = vpop.permute.xlu0 %5855
  %5859 = vset.pattern.permute.xlu0 0
  %5860 = vperm.xlu0 %5859, %v5426
  %v5861 = vpop.permute.xlu0 %5860
  %5864 = vset.pattern.permute.xlu0 0
  %5865 = vperm.xlu0 %5864, %v5427
  %v5866 = vpop.permute.xlu0 %5865
  %5869 = vset.pattern.permute.xlu0 0
  %5870 = vperm.xlu0 %5869, %v5428
  %v5871 = vpop.permute.xlu0 %5870
  %5874 = vset.pattern.permute.xlu0 0
  %5875 = vperm.xlu0 %5874, %v5429
  %v5876 = vpop.permute.xlu0 %5875
  %5879 = vset.pattern.permute.xlu0 0
  %5880 = vperm.xlu0 %5879, %v5430
  %v5881 = vpop.permute.xlu0 %5880
  %5884 = vset.pattern.permute.xlu0 0
  %5885 = vperm.xlu0 %5884, %v5431
  %v5886 = vpop.permute.xlu0 %5885
  %5889 = vset.pattern.permute.xlu0 0
  %5890 = vperm.xlu0 %5889, %v5432
  %v5891 = vpop.permute.xlu0 %5890
  %5894 = vset.pattern.permute.xlu0 0
  %5895 = vperm.xlu0 %5894, %v5433
  %v5896 = vpop.permute.xlu0 %5895
  %5899 = vset.pattern.permute.xlu0 0
  %5900 = vperm.xlu0 %5899, %v5434
  %v5901 = vpop.permute.xlu0 %5900
  %5904 = vset.pattern.permute.xlu0 0
  %5905 = vperm.xlu0 %5904, %v5435
  %v5906 = vpop.permute.xlu0 %5905
  %5909 = vset.pattern.permute.xlu0 0
  %5910 = vperm.xlu0 %5909, %v5436
  %v5911 = vpop.permute.xlu0 %5910
  %5914 = vset.pattern.permute.xlu0 0
  %5915 = vperm.xlu0 %5914, %v5437
  %v5916 = vpop.permute.xlu0 %5915
  %5919 = vset.pattern.permute.xlu0 0
  %5920 = vperm.xlu0 %5919, %v5438
  %v5921 = vpop.permute.xlu0 %5920
  %5924 = vset.pattern.permute.xlu0 0
  %5925 = vperm.xlu0 %5924, %v5439
  %v5926 = vpop.permute.xlu0 %5925
  %5929 = vset.pattern.permute.xlu0 0
  %5930 = vperm.xlu0 %5929, %v5440
  %v5931 = vpop.permute.xlu0 %5930
  %5934 = vset.pattern.permute.xlu0 0
  %5935 = vperm.xlu0 %5934, %v5441
  %v5936 = vpop.permute.xlu0 %5935
  %5939 = vset.pattern.permute.xlu0 0
  %5940 = vperm.xlu0 %5939, %v5442
  %v5941 = vpop.permute.xlu0 %5940
  %5944 = vset.pattern.permute.xlu0 0
  %5945 = vperm.xlu0 %5944, %v5443
  %v5946 = vpop.permute.xlu0 %5945
  %5949 = vset.pattern.permute.xlu0 0
  %5950 = vperm.xlu0 %5949, %v5444
  %v5951 = vpop.permute.xlu0 %5950
  %5954 = vset.pattern.permute.xlu0 0
  %5955 = vperm.xlu0 %5954, %v5445
  %v5956 = vpop.permute.xlu0 %5955
  %5959 = vset.pattern.permute.xlu0 0
  %5960 = vperm.xlu0 %5959, %v5446
  %v5961 = vpop.permute.xlu0 %5960
  %5964 = vset.pattern.permute.xlu0 0
  %5965 = vperm.xlu0 %5964, %v5447
  %v5966 = vpop.permute.xlu0 %5965
  %5969 = vset.pattern.permute.xlu0 0
  %5970 = vperm.xlu0 %5969, %v5448
  %v5971 = vpop.permute.xlu0 %5970
  %5974 = vset.pattern.permute.xlu0 0
  %5975 = vperm.xlu0 %5974, %v5449
  %v5976 = vpop.permute.xlu0 %5975
  %5979 = vset.pattern.permute.xlu0 0
  %5980 = vperm.xlu0 %5979, %v5450
  %v5981 = vpop.permute.xlu0 %5980
  %5984 = vset.pattern.permute.xlu0 0
  %5985 = vperm.xlu0 %5984, %v5451
  %v5986 = vpop.permute.xlu0 %5985
  %5989 = vset.pattern.permute.xlu0 0
  %5990 = vperm.xlu0 %5989, %v5452
  %v5991 = vpop.permute.xlu0 %5990
  %5994 = vset.pattern.permute.xlu0 0
  %5995 = vperm.xlu0 %5994, %v5453
  %v5996 = vpop.permute.xlu0 %5995
  %5999 = vset.pattern.permute.xlu0 0
  %6000 = vperm.xlu0 %5999, %v5454
  %v6001 = vpop.permute.xlu0 %6000
  %6004 = vset.pattern.permute.xlu0 0
  %6005 = vperm.xlu0 %6004, %v5455
  %v6006 = vpop.permute.xlu0 %6005
  %6009 = vset.pattern.permute.xlu0 0
  %6010 = vperm.xlu0 %6009, %v5456
  %v6011 = vpop.permute.xlu0 %6010
  %6014 = vset.pattern.permute.xlu0 0
  %6015 = vperm.xlu0 %6014, %v5457
  %v6016 = vpop.permute.xlu0 %6015
  %6019 = vset.pattern.permute.xlu0 0
  %6020 = vperm.xlu0 %6019, %v5458
  %v6021 = vpop.permute.xlu0 %6020
  %6024 = vset.pattern.permute.xlu0 0
  %6025 = vperm.xlu0 %6024, %v5459
  %v6026 = vpop.permute.xlu0 %6025
  %6029 = vset.pattern.permute.xlu0 0
  %6030 = vperm.xlu0 %6029, %v5460
  %v6031 = vpop.permute.xlu0 %6030
  %6034 = vset.pattern.permute.xlu0 0
  %6035 = vperm.xlu0 %6034, %v5461
  %v6036 = vpop.permute.xlu0 %6035
  %6039 = vset.pattern.permute.xlu0 0
  %6040 = vperm.xlu0 %6039, %v5462
  %v6041 = vpop.permute.xlu0 %6040
  %6044 = vset.pattern.permute.xlu0 0
  %6045 = vperm.xlu0 %6044, %v5463
  %v6046 = vpop.permute.xlu0 %6045
  %6049 = vset.pattern.permute.xlu0 0
  %6050 = vperm.xlu0 %6049, %v5464
  %v6051 = vpop.permute.xlu0 %6050
  %6054 = vset.pattern.permute.xlu0 0
  %6055 = vperm.xlu0 %6054, %v5465
  %v6056 = vpop.permute.xlu0 %6055
  %6059 = vset.pattern.permute.xlu0 0
  %6060 = vperm.xlu0 %6059, %v5466
  %v6061 = vpop.permute.xlu0 %6060
  %6064 = vset.pattern.permute.xlu0 0
  %6065 = vperm.xlu0 %6064, %v5467
  %v6066 = vpop.permute.xlu0 %6065
  %6069 = vset.pattern.permute.xlu0 0
  %6070 = vperm.xlu0 %6069, %v5468
  %v6071 = vpop.permute.xlu0 %6070
  %6074 = vset.pattern.permute.xlu0 0
  %6075 = vperm.xlu0 %6074, %v5469
  %v6076 = vpop.permute.xlu0 %6075
  %6079 = vset.pattern.permute.xlu0 0
  %6080 = vperm.xlu0 %6079, %v5470
  %v6081 = vpop.permute.xlu0 %6080
  %6084 = vset.pattern.permute.xlu0 0
  %6085 = vperm.xlu0 %6084, %v5471
  %v6086 = vpop.permute.xlu0 %6085
  %6089 = vset.pattern.permute.xlu0 0
  %6090 = vperm.xlu0 %6089, %v5472
  %v6091 = vpop.permute.xlu0 %6090
  %6094 = vset.pattern.permute.xlu0 0
  %6095 = vperm.xlu0 %6094, %v5473
  %v6096 = vpop.permute.xlu0 %6095
  %6099 = vset.pattern.permute.xlu0 0
  %6100 = vperm.xlu0 %6099, %v5474
  %v6101 = vpop.permute.xlu0 %6100
  %6104 = vset.pattern.permute.xlu0 0
  %6105 = vperm.xlu0 %6104, %v5475
  %v6106 = vpop.permute.xlu0 %6105
  %6109 = vset.pattern.permute.xlu0 0
  %6110 = vperm.xlu0 %6109, %v5476
  %v6111 = vpop.permute.xlu0 %6110
  %6114 = vset.pattern.permute.xlu0 0
  %6115 = vperm.xlu0 %6114, %v5477
  %v6116 = vpop.permute.xlu0 %6115
  %6119 = vset.pattern.permute.xlu0 0
  %6120 = vperm.xlu0 %6119, %v5478
  %v6121 = vpop.permute.xlu0 %6120
  %6124 = vset.pattern.permute.xlu0 0
  %6125 = vperm.xlu0 %6124, %v5479
  %v6126 = vpop.permute.xlu0 %6125
  %6129 = vset.pattern.permute.xlu0 0
  %6130 = vperm.xlu0 %6129, %v5480
  %v6131 = vpop.permute.xlu0 %6130
  %6134 = vset.pattern.permute.xlu0 0
  %6135 = vperm.xlu0 %6134, %v5481
  %v6136 = vpop.permute.xlu0 %6135
  %6139 = vset.pattern.permute.xlu0 0
  %6140 = vperm.xlu0 %6139, %v5482
  %v6141 = vpop.permute.xlu0 %6140
  %6144 = vset.pattern.permute.xlu0 0
  %6145 = vperm.xlu0 %6144, %v5483
  %v6146 = vpop.permute.xlu0 %6145
  %6149 = vset.pattern.permute.xlu0 0
  %6150 = vperm.xlu0 %6149, %v5484
  %v6151 = vpop.permute.xlu0 %6150
  %6154 = vset.pattern.permute.xlu0 0
  %6155 = vperm.xlu0 %6154, %v5485
  %v6156 = vpop.permute.xlu0 %6155
  %6159 = vset.pattern.permute.xlu0 0
  %6160 = vperm.xlu0 %6159, %v5486
  %v6161 = vpop.permute.xlu0 %6160
  %6164 = vset.pattern.permute.xlu0 0
  %6165 = vperm.xlu0 %6164, %v5487
  %v6166 = vpop.permute.xlu0 %6165
  %6169 = vset.pattern.permute.xlu0 0
  %6170 = vperm.xlu0 %6169, %v5488
  %v6171 = vpop.permute.xlu0 %6170
  %6174 = vset.pattern.permute.xlu0 0
  %6175 = vperm.xlu0 %6174, %v5489
  %v6176 = vpop.permute.xlu0 %6175
  %6179 = vset.pattern.permute.xlu0 0
  %6180 = vperm.xlu0 %6179, %v5490
  %v6181 = vpop.permute.xlu0 %6180
  %6184 = vset.pattern.permute.xlu0 0
  %6185 = vperm.xlu0 %6184, %v5491
  %v6186 = vpop.permute.xlu0 %6185
  %6189 = vset.pattern.permute.xlu0 0
  %6190 = vperm.xlu0 %6189, %v5492
  %v6191 = vpop.permute.xlu0 %6190
  %6194 = vset.pattern.permute.xlu0 0
  %6195 = vperm.xlu0 %6194, %v5493
  %v6196 = vpop.permute.xlu0 %6195
  %6199 = vset.pattern.permute.xlu0 0
  %6200 = vperm.xlu0 %6199, %v5494
  %v6201 = vpop.permute.xlu0 %6200
  %6204 = vset.pattern.permute.xlu0 0
  %6205 = vperm.xlu0 %6204, %v5495
  %v6206 = vpop.permute.xlu0 %6205
  %6209 = vset.pattern.permute.xlu0 0
  %6210 = vperm.xlu0 %6209, %v5496
  %v6211 = vpop.permute.xlu0 %6210
  %6214 = vset.pattern.permute.xlu0 0
  %6215 = vperm.xlu0 %6214, %v5497
  %v6216 = vpop.permute.xlu0 %6215
  %6219 = vset.pattern.permute.xlu0 0
  %6220 = vperm.xlu0 %6219, %v5498
  %v6221 = vpop.permute.xlu0 %6220
  %6224 = vset.pattern.permute.xlu0 0
  %6225 = vperm.xlu0 %6224, %v5499
  %v6226 = vpop.permute.xlu0 %6225
  %6229 = vset.pattern.permute.xlu0 0
  %6230 = vperm.xlu0 %6229, %v5500
  %v6231 = vpop.permute.xlu0 %6230
  %6234 = vset.pattern.permute.xlu0 0
  %6235 = vperm.xlu0 %6234, %v5501
  %v6236 = vpop.permute.xlu0 %6235
  %6239 = vset.pattern.permute.xlu0 0
  %6240 = vperm.xlu0 %6239, %v5502
  %v6241 = vpop.permute.xlu0 %6240
  %6244 = vset.pattern.permute.xlu0 0
  %6245 = vperm.xlu0 %6244, %v5503
  %v6246 = vpop.permute.xlu0 %6245
  %6249 = vset.pattern.permute.xlu0 0
  %6250 = vperm.xlu0 %6249, %v5504
  %v6251 = vpop.permute.xlu0 %6250
  %6254 = vset.pattern.permute.xlu0 0
  %6255 = vperm.xlu0 %6254, %v5505
  %v6256 = vpop.permute.xlu0 %6255
  %6259 = vset.pattern.permute.xlu0 0
  %6260 = vperm.xlu0 %6259, %v5506
  %v6261 = vpop.permute.xlu0 %6260
  %6264 = vset.pattern.permute.xlu0 0
  %6265 = vperm.xlu0 %6264, %v5507
  %v6266 = vpop.permute.xlu0 %6265
  %6269 = vset.pattern.permute.xlu0 0
  %6270 = vperm.xlu0 %6269, %v5508
  %v6271 = vpop.permute.xlu0 %6270
  %6274 = vset.pattern.permute.xlu0 0
  %6275 = vperm.xlu0 %6274, %v5509
  %v6276 = vpop.permute.xlu0 %6275
  %6279 = vset.pattern.permute.xlu0 0
  %6280 = vperm.xlu0 %6279, %v5510
  %v6281 = vpop.permute.xlu0 %6280
  %6284 = vset.pattern.permute.xlu0 0
  %6285 = vperm.xlu0 %6284, %v5511
  %v6286 = vpop.permute.xlu0 %6285
  %6289 = vset.pattern.permute.xlu0 0
  %6290 = vperm.xlu0 %6289, %v5512
  %v6291 = vpop.permute.xlu0 %6290
  %6294 = vset.pattern.permute.xlu0 0
  %6295 = vperm.xlu0 %6294, %v5513
  %v6296 = vpop.permute.xlu0 %6295
  %6299 = vset.pattern.permute.xlu0 0
  %6300 = vperm.xlu0 %6299, %v5514
  %v6301 = vpop.permute.xlu0 %6300
  %6304 = vset.pattern.permute.xlu0 0
  %6305 = vperm.xlu0 %6304, %v5515
  %v6306 = vpop.permute.xlu0 %6305
  %6309 = vset.pattern.permute.xlu0 0
  %6310 = vperm.xlu0 %6309, %v5516
  %v6311 = vpop.permute.xlu0 %6310
  %6314 = vset.pattern.permute.xlu0 0
  %6315 = vperm.xlu0 %6314, %v5517
  %v6316 = vpop.permute.xlu0 %6315
  %6319 = vset.pattern.permute.xlu0 0
  %6320 = vperm.xlu0 %6319, %v5518
  %v6321 = vpop.permute.xlu0 %6320
  %6324 = vset.pattern.permute.xlu0 0
  %6325 = vperm.xlu0 %6324, %v5519
  %v6326 = vpop.permute.xlu0 %6325
  %6329 = vset.pattern.permute.xlu0 0
  %6330 = vperm.xlu0 %6329, %v5520
  %v6331 = vpop.permute.xlu0 %6330
  %6334 = vset.pattern.permute.xlu0 0
  %6335 = vperm.xlu0 %6334, %v5521
  %v6336 = vpop.permute.xlu0 %6335
  %6339 = vset.pattern.permute.xlu0 0
  %6340 = vperm.xlu0 %6339, %v5522
  %v6341 = vpop.permute.xlu0 %6340
  %6344 = vset.pattern.permute.xlu0 0
  %6345 = vperm.xlu0 %6344, %v5523
  %v6346 = vpop.permute.xlu0 %6345
  %6349 = vset.pattern.permute.xlu0 0
  %6350 = vperm.xlu0 %6349, %v5524
  %v6351 = vpop.permute.xlu0 %6350
  %6354 = vset.pattern.permute.xlu0 0
  %6355 = vperm.xlu0 %6354, %v5525
  %v6356 = vpop.permute.xlu0 %6355
  %6359 = vset.pattern.permute.xlu0 0
  %6360 = vperm.xlu0 %6359, %v5526
  %v6361 = vpop.permute.xlu0 %6360
  %6364 = vset.pattern.permute.xlu0 0
  %6365 = vperm.xlu0 %6364, %v5527
  %v6366 = vpop.permute.xlu0 %6365
  %6369 = vset.pattern.permute.xlu0 0
  %6370 = vperm.xlu0 %6369, %v5528
  %v6371 = vpop.permute.xlu0 %6370
  %6374 = vset.pattern.permute.xlu0 0
  %6375 = vperm.xlu0 %6374, %v5529
  %v6376 = vpop.permute.xlu0 %6375
  %6379 = vset.pattern.permute.xlu0 0
  %6380 = vperm.xlu0 %6379, %v5530
  %v6381 = vpop.permute.xlu0 %6380
  %6384 = vset.pattern.permute.xlu0 0
  %6385 = vperm.xlu0 %6384, %v5531
  %v6386 = vpop.permute.xlu0 %6385
  %6389 = vset.pattern.permute.xlu0 0
  %6390 = vperm.xlu0 %6389, %v5532
  %v6391 = vpop.permute.xlu0 %6390
  %6394 = vset.pattern.permute.xlu0 0
  %6395 = vperm.xlu0 %6394, %v5533
  %v6396 = vpop.permute.xlu0 %6395
  %6399 = vset.pattern.permute.xlu0 0
  %6400 = vperm.xlu0 %6399, %v5534
  %v6401 = vpop.permute.xlu0 %6400
  %6404 = vset.pattern.permute.xlu0 0
  %6405 = vperm.xlu0 %6404, %v5535
  %v6406 = vpop.permute.xlu0 %6405
  %6409 = vset.pattern.permute.xlu0 0
  %6410 = vperm.xlu0 %6409, %v5536
  %v6411 = vpop.permute.xlu0 %6410
  %6414 = vset.pattern.permute.xlu0 0
  %6415 = vperm.xlu0 %6414, %v5537
  %v6416 = vpop.permute.xlu0 %6415
  %6419 = vset.pattern.permute.xlu0 0
  %6420 = vperm.xlu0 %6419, %v5538
  %v6421 = vpop.permute.xlu0 %6420
  %6424 = vset.pattern.permute.xlu0 0
  %6425 = vperm.xlu0 %6424, %v5539
  %v6426 = vpop.permute.xlu0 %6425
  %6429 = vset.pattern.permute.xlu0 0
  %6430 = vperm.xlu0 %6429, %v5540
  %v6431 = vpop.permute.xlu0 %6430
  %6434 = vset.pattern.permute.xlu0 0
  %6435 = vperm.xlu0 %6434, %v5541
  %v6436 = vpop.permute.xlu0 %6435
  %6439 = vset.pattern.permute.xlu0 0
  %6440 = vperm.xlu0 %6439, %v5542
  %v6441 = vpop.permute.xlu0 %6440
  %6444 = vset.pattern.permute.xlu0 0
  %6445 = vperm.xlu0 %6444, %v5543
  %v6446 = vpop.permute.xlu0 %6445
  %6449 = vset.pattern.permute.xlu0 0
  %6450 = vperm.xlu0 %6449, %v5544
  %v6451 = vpop.permute.xlu0 %6450
  %6454 = vset.pattern.permute.xlu0 0
  %6455 = vperm.xlu0 %6454, %v5545
  %v6456 = vpop.permute.xlu0 %6455
  %6459 = vset.pattern.permute.xlu0 0
  %6460 = vperm.xlu0 %6459, %v5546
  %v6461 = vpop.permute.xlu0 %6460
  %6464 = vset.pattern.permute.xlu0 0
  %6465 = vperm.xlu0 %6464, %v5547
  %v6466 = vpop.permute.xlu0 %6465
  %6469 = vset.pattern.permute.xlu0 0
  %6470 = vperm.xlu0 %6469, %v5548
  %v6471 = vpop.permute.xlu0 %6470
  %6474 = vset.pattern.permute.xlu0 0
  %6475 = vperm.xlu0 %6474, %v5549
  %v6476 = vpop.permute.xlu0 %6475
  %6479 = vset.pattern.permute.xlu0 0
  %6480 = vperm.xlu0 %6479, %v5550
  %v6481 = vpop.permute.xlu0 %6480
  %6484 = vset.pattern.permute.xlu0 0
  %6485 = vperm.xlu0 %6484, %v5551
  %v6486 = vpop.permute.xlu0 %6485
  %6489 = vset.pattern.permute.xlu0 0
  %6490 = vperm.xlu0 %6489, %v5552
  %v6491 = vpop.permute.xlu0 %6490
  %6494 = vset.pattern.permute.xlu0 0
  %6495 = vperm.xlu0 %6494, %v5553
  %v6496 = vpop.permute.xlu0 %6495
  %6499 = vset.pattern.permute.xlu0 0
  %6500 = vperm.xlu0 %6499, %v5554
  %v6501 = vpop.permute.xlu0 %6500
  %6504 = vset.pattern.permute.xlu0 0
  %6505 = vperm.xlu0 %6504, %v5555
  %v6506 = vpop.permute.xlu0 %6505
  %6509 = vset.pattern.permute.xlu0 0
  %6510 = vperm.xlu0 %6509, %v5556
  %v6511 = vpop.permute.xlu0 %6510
  %6514 = vset.pattern.permute.xlu0 0
  %6515 = vperm.xlu0 %6514, %v5557
  %v6516 = vpop.permute.xlu0 %6515
  %v6518 = vadd.f32 %v5174, %v5561
  %v6519 = vadd.f32 %v5175, %v5566
  %v6520 = vadd.f32 %v5176, %v5571
  %v6521 = vadd.f32 %v5177, %v5576
  %v6522 = vadd.f32 %v5178, %v5581
  %v6523 = vadd.f32 %v5179, %v5586
  %v6524 = vadd.f32 %v5180, %v5591
  %v6525 = vadd.f32 %v5181, %v5596
  %v6526 = vadd.f32 %v5182, %v5601
  %v6527 = vadd.f32 %v5183, %v5606
  %v6528 = vadd.f32 %v5184, %v5611
  %v6529 = vadd.f32 %v5185, %v5616
  %v6530 = vadd.f32 %v5186, %v5621
  %v6531 = vadd.f32 %v5187, %v5626
  %v6532 = vadd.f32 %v5188, %v5631
  %v6533 = vadd.f32 %v5189, %v5636
  %v6534 = vadd.f32 %v5190, %v5641
  %v6535 = vadd.f32 %v5191, %v5646
  %v6536 = vadd.f32 %v5192, %v5651
  %v6537 = vadd.f32 %v5193, %v5656
  %v6538 = vadd.f32 %v5194, %v5661
  %v6539 = vadd.f32 %v5195, %v5666
  %v6540 = vadd.f32 %v5196, %v5671
  %v6541 = vadd.f32 %v5197, %v5676
  %v6542 = vadd.f32 %v5198, %v5681
  %v6543 = vadd.f32 %v5199, %v5686
  %v6544 = vadd.f32 %v5200, %v5691
  %v6545 = vadd.f32 %v5201, %v5696
  %v6546 = vadd.f32 %v5202, %v5701
  %v6547 = vadd.f32 %v5203, %v5706
  %v6548 = vadd.f32 %v5204, %v5711
  %v6549 = vadd.f32 %v5205, %v5716
  %v6550 = vadd.f32 %v5206, %v5721
  %v6551 = vadd.f32 %v5207, %v5726
  %v6552 = vadd.f32 %v5208, %v5731
  %v6553 = vadd.f32 %v5209, %v5736
  %v6554 = vadd.f32 %v5210, %v5741
  %v6555 = vadd.f32 %v5211, %v5746
  %v6556 = vadd.f32 %v5212, %v5751
  %v6557 = vadd.f32 %v5213, %v5756
  %v6558 = vadd.f32 %v5214, %v5761
  %v6559 = vadd.f32 %v5215, %v5766
  %v6560 = vadd.f32 %v5216, %v5771
  %v6561 = vadd.f32 %v5217, %v5776
  %v6562 = vadd.f32 %v5218, %v5781
  %v6563 = vadd.f32 %v5219, %v5786
  %v6564 = vadd.f32 %v5220, %v5791
  %v6565 = vadd.f32 %v5221, %v5796
  %v6566 = vadd.f32 %v5222, %v5801
  %v6567 = vadd.f32 %v5223, %v5806
  %v6568 = vadd.f32 %v5224, %v5811
  %v6569 = vadd.f32 %v5225, %v5816
  %v6570 = vadd.f32 %v5226, %v5821
  %v6571 = vadd.f32 %v5227, %v5826
  %v6572 = vadd.f32 %v5228, %v5831
  %v6573 = vadd.f32 %v5229, %v5836
  %v6574 = vadd.f32 %v5230, %v5841
  %v6575 = vadd.f32 %v5231, %v5846
  %v6576 = vadd.f32 %v5232, %v5851
  %v6577 = vadd.f32 %v5233, %v5856
  %v6578 = vadd.f32 %v5234, %v5861
  %v6579 = vadd.f32 %v5235, %v5866
  %v6580 = vadd.f32 %v5236, %v5871
  %v6581 = vadd.f32 %v5237, %v5876
  %v6582 = vadd.f32 %v5238, %v5881
  %v6583 = vadd.f32 %v5239, %v5886
  %v6584 = vadd.f32 %v5240, %v5891
  %v6585 = vadd.f32 %v5241, %v5896
  %v6586 = vadd.f32 %v5242, %v5901
  %v6587 = vadd.f32 %v5243, %v5906
  %v6588 = vadd.f32 %v5244, %v5911
  %v6589 = vadd.f32 %v5245, %v5916
  %v6590 = vadd.f32 %v5246, %v5921
  %v6591 = vadd.f32 %v5247, %v5926
  %v6592 = vadd.f32 %v5248, %v5931
  %v6593 = vadd.f32 %v5249, %v5936
  %v6594 = vadd.f32 %v5250, %v5941
  %v6595 = vadd.f32 %v5251, %v5946
  %v6596 = vadd.f32 %v5252, %v5951
  %v6597 = vadd.f32 %v5253, %v5956
  %v6598 = vadd.f32 %v5254, %v5961
  %v6599 = vadd.f32 %v5255, %v5966
  %v6600 = vadd.f32 %v5256, %v5971
  %v6601 = vadd.f32 %v5257, %v5976
  %v6602 = vadd.f32 %v5258, %v5981
  %v6603 = vadd.f32 %v5259, %v5986
  %v6604 = vadd.f32 %v5260, %v5991
  %v6605 = vadd.f32 %v5261, %v5996
  %v6606 = vadd.f32 %v5262, %v6001
  %v6607 = vadd.f32 %v5263, %v6006
  %v6608 = vadd.f32 %v5264, %v6011
  %v6609 = vadd.f32 %v5265, %v6016
  %v6610 = vadd.f32 %v5266, %v6021
  %v6611 = vadd.f32 %v5267, %v6026
  %v6612 = vadd.f32 %v5268, %v6031
  %v6613 = vadd.f32 %v5269, %v6036
  %v6614 = vadd.f32 %v5270, %v6041
  %v6615 = vadd.f32 %v5271, %v6046
  %v6616 = vadd.f32 %v5272, %v6051
  %v6617 = vadd.f32 %v5273, %v6056
  %v6618 = vadd.f32 %v5274, %v6061
  %v6619 = vadd.f32 %v5275, %v6066
  %v6620 = vadd.f32 %v5276, %v6071
  %v6621 = vadd.f32 %v5277, %v6076
  %v6622 = vadd.f32 %v5278, %v6081
  %v6623 = vadd.f32 %v5279, %v6086
  %v6624 = vadd.f32 %v5280, %v6091
  %v6625 = vadd.f32 %v5281, %v6096
  %v6626 = vadd.f32 %v5282, %v6101
  %v6627 = vadd.f32 %v5283, %v6106
  %v6628 = vadd.f32 %v5284, %v6111
  %v6629 = vadd.f32 %v5285, %v6116
  %v6630 = vadd.f32 %v5286, %v6121
  %v6631 = vadd.f32 %v5287, %v6126
  %v6632 = vadd.f32 %v5288, %v6131
  %v6633 = vadd.f32 %v5289, %v6136
  %v6634 = vadd.f32 %v5290, %v6141
  %v6635 = vadd.f32 %v5291, %v6146
  %v6636 = vadd.f32 %v5292, %v6151
  %v6637 = vadd.f32 %v5293, %v6156
  %v6638 = vadd.f32 %v5294, %v6161
  %v6639 = vadd.f32 %v5295, %v6166
  %v6640 = vadd.f32 %v5296, %v6171
  %v6641 = vadd.f32 %v5297, %v6176
  %v6642 = vadd.f32 %v5298, %v6181
  %v6643 = vadd.f32 %v5299, %v6186
  %v6644 = vadd.f32 %v5300, %v6191
  %v6645 = vadd.f32 %v5301, %v6196
  %v6646 = vadd.f32 %v5302, %v6201
  %v6647 = vadd.f32 %v5303, %v6206
  %v6648 = vadd.f32 %v5304, %v6211
  %v6649 = vadd.f32 %v5305, %v6216
  %v6650 = vadd.f32 %v5306, %v6221
  %v6651 = vadd.f32 %v5307, %v6226
  %v6652 = vadd.f32 %v5308, %v6231
  %v6653 = vadd.f32 %v5309, %v6236
  %v6654 = vadd.f32 %v5310, %v6241
  %v6655 = vadd.f32 %v5311, %v6246
  %v6656 = vadd.f32 %v5312, %v6251
  %v6657 = vadd.f32 %v5313, %v6256
  %v6658 = vadd.f32 %v5314, %v6261
  %v6659 = vadd.f32 %v5315, %v6266
  %v6660 = vadd.f32 %v5316, %v6271
  %v6661 = vadd.f32 %v5317, %v6276
  %v6662 = vadd.f32 %v5318, %v6281
  %v6663 = vadd.f32 %v5319, %v6286
  %v6664 = vadd.f32 %v5320, %v6291
  %v6665 = vadd.f32 %v5321, %v6296
  %v6666 = vadd.f32 %v5322, %v6301
  %v6667 = vadd.f32 %v5323, %v6306
  %v6668 = vadd.f32 %v5324, %v6311
  %v6669 = vadd.f32 %v5325, %v6316
  %v6670 = vadd.f32 %v5326, %v6321
  %v6671 = vadd.f32 %v5327, %v6326
  %v6672 = vadd.f32 %v5328, %v6331
  %v6673 = vadd.f32 %v5329, %v6336
  %v6674 = vadd.f32 %v5330, %v6341
  %v6675 = vadd.f32 %v5331, %v6346
  %v6676 = vadd.f32 %v5332, %v6351
  %v6677 = vadd.f32 %v5333, %v6356
  %v6678 = vadd.f32 %v5334, %v6361
  %v6679 = vadd.f32 %v5335, %v6366
  %v6680 = vadd.f32 %v5336, %v6371
  %v6681 = vadd.f32 %v5337, %v6376
  %v6682 = vadd.f32 %v5338, %v6381
  %v6683 = vadd.f32 %v5339, %v6386
  %v6684 = vadd.f32 %v5340, %v6391
  %v6685 = vadd.f32 %v5341, %v6396
  %v6686 = vadd.f32 %v5342, %v6401
  %v6687 = vadd.f32 %v5343, %v6406
  %v6688 = vadd.f32 %v5344, %v6411
  %v6689 = vadd.f32 %v5345, %v6416
  %v6690 = vadd.f32 %v5346, %v6421
  %v6691 = vadd.f32 %v5347, %v6426
  %v6692 = vadd.f32 %v5348, %v6431
  %v6693 = vadd.f32 %v5349, %v6436
  %v6694 = vadd.f32 %v5350, %v6441
  %v6695 = vadd.f32 %v5351, %v6446
  %v6696 = vadd.f32 %v5352, %v6451
  %v6697 = vadd.f32 %v5353, %v6456
  %v6698 = vadd.f32 %v5354, %v6461
  %v6699 = vadd.f32 %v5355, %v6466
  %v6700 = vadd.f32 %v5356, %v6471
  %v6701 = vadd.f32 %v5357, %v6476
  %v6702 = vadd.f32 %v5358, %v6481
  %v6703 = vadd.f32 %v5359, %v6486
  %v6704 = vadd.f32 %v5360, %v6491
  %v6705 = vadd.f32 %v5361, %v6496
  %v6706 = vadd.f32 %v5362, %v6501
  %v6707 = vadd.f32 %v5363, %v6506
  %v6708 = vadd.f32 %v5364, %v6511
  %v6709 = vadd.f32 %v5365, %v6516
  %6710 = vst.msk [vmem:[%s5] sm:$0xff] %vm1525, %v6518
  %6711 = vst.msk [vmem:[%s5 + $0x8] sm:$0xff] %vm1525, %v6519
  %6712 = vst.msk [vmem:[%s5 + $0x10] sm:$0xff] %vm1525, %v6520
  %6713 = vst.msk [vmem:[%s5 + $0x18] sm:$0xff] %vm1525, %v6521
  %6714 = vst.msk [vmem:[%s5 + $0x20] sm:$0xff] %vm1525, %v6522
  %6715 = vst.msk [vmem:[%s5 + $0x28] sm:$0xff] %vm1525, %v6523
  %6716 = vst.msk [vmem:[%s5 + $0x30] sm:$0xff] %vm1525, %v6524
  %6717 = vst.msk [vmem:[%s5 + $0x38] sm:$0xff] %vm1525, %v6525
  %6718 = vst.msk [vmem:[%s5 + $0x40] sm:$0xff] %vm1525, %v6526
  %6719 = vst.msk [vmem:[%s5 + $0x48] sm:$0xff] %vm1525, %v6527
  %6720 = vst.msk [vmem:[%s5 + $0x50] sm:$0xff] %vm1525, %v6528
  %6721 = vst.msk [vmem:[%s5 + $0x58] sm:$0xff] %vm1525, %v6529
  %6722 = vst.msk [vmem:[%s5 + $0x60] sm:$0xff] %vm1525, %v6530
  %6723 = vst.msk [vmem:[%s5 + $0x68] sm:$0xff] %vm1525, %v6531
  %6724 = vst.msk [vmem:[%s5 + $0x70] sm:$0xff] %vm1525, %v6532
  %6725 = vst.msk [vmem:[%s5 + $0x78] sm:$0xff] %vm1525, %v6533
  %6726 = vst.msk [vmem:[%s5 + $0x80] sm:$0xff] %vm1525, %v6534
  %6727 = vst.msk [vmem:[%s5 + $0x88] sm:$0xff] %vm1525, %v6535
  %6728 = vst.msk [vmem:[%s5 + $0x90] sm:$0xff] %vm1525, %v6536
  %6729 = vst.msk [vmem:[%s5 + $0x98] sm:$0xff] %vm1525, %v6537
  %6730 = vst.msk [vmem:[%s5 + $0xa0] sm:$0xff] %vm1525, %v6538
  %6731 = vst.msk [vmem:[%s5 + $0xa8] sm:$0xff] %vm1525, %v6539
  %6732 = vst.msk [vmem:[%s5 + $0xb0] sm:$0xff] %vm1525, %v6540
  %6733 = vst.msk [vmem:[%s5 + $0xb8] sm:$0xff] %vm1525, %v6541
  %6734 = vst.msk [vmem:[%s5 + $0xc0] sm:$0xff] %vm1525, %v6542
  %6735 = vst.msk [vmem:[%s5 + $0xc8] sm:$0xff] %vm1525, %v6543
  %6736 = vst.msk [vmem:[%s5 + $0xd0] sm:$0xff] %vm1525, %v6544
  %6737 = vst.msk [vmem:[%s5 + $0xd8] sm:$0xff] %vm1525, %v6545
  %6738 = vst.msk [vmem:[%s5 + $0xe0] sm:$0xff] %vm1525, %v6546
  %6739 = vst.msk [vmem:[%s5 + $0xe8] sm:$0xff] %vm1525, %v6547
  %6740 = vst.msk [vmem:[%s5 + $0xf0] sm:$0xff] %vm1525, %v6548
  %6741 = vst.msk [vmem:[%s5 + $0xf8] sm:$0xff] %vm1525, %v6549
  %6742 = vst.msk [vmem:[%s5 + $0x100] sm:$0xff] %vm1525, %v6550
  %6743 = vst.msk [vmem:[%s5 + $0x108] sm:$0xff] %vm1525, %v6551
  %6744 = vst.msk [vmem:[%s5 + $0x110] sm:$0xff] %vm1525, %v6552
  %6745 = vst.msk [vmem:[%s5 + $0x118] sm:$0xff] %vm1525, %v6553
  %6746 = vst.msk [vmem:[%s5 + $0x120] sm:$0xff] %vm1525, %v6554
  %6747 = vst.msk [vmem:[%s5 + $0x128] sm:$0xff] %vm1525, %v6555
  %6748 = vst.msk [vmem:[%s5 + $0x130] sm:$0xff] %vm1525, %v6556
  %6749 = vst.msk [vmem:[%s5 + $0x138] sm:$0xff] %vm1525, %v6557
  %6750 = vst.msk [vmem:[%s5 + $0x140] sm:$0xff] %vm1525, %v6558
  %6751 = vst.msk [vmem:[%s5 + $0x148] sm:$0xff] %vm1525, %v6559
  %6752 = vst.msk [vmem:[%s5 + $0x150] sm:$0xff] %vm1525, %v6560
  %6753 = vst.msk [vmem:[%s5 + $0x158] sm:$0xff] %vm1525, %v6561
  %6754 = vst.msk [vmem:[%s5 + $0x160] sm:$0xff] %vm1525, %v6562
  %6755 = vst.msk [vmem:[%s5 + $0x168] sm:$0xff] %vm1525, %v6563
  %6756 = vst.msk [vmem:[%s5 + $0x170] sm:$0xff] %vm1525, %v6564
  %6757 = vst.msk [vmem:[%s5 + $0x178] sm:$0xff] %vm1525, %v6565
  %6758 = vst.msk [vmem:[%s5 + $0x180] sm:$0xff] %vm1525, %v6566
  %6759 = vst.msk [vmem:[%s5 + $0x188] sm:$0xff] %vm1525, %v6567
  %6760 = vst.msk [vmem:[%s5 + $0x190] sm:$0xff] %vm1525, %v6568
  %6761 = vst.msk [vmem:[%s5 + $0x198] sm:$0xff] %vm1525, %v6569
  %6762 = vst.msk [vmem:[%s5 + $0x1a0] sm:$0xff] %vm1525, %v6570
  %6763 = vst.msk [vmem:[%s5 + $0x1a8] sm:$0xff] %vm1525, %v6571
  %6764 = vst.msk [vmem:[%s5 + $0x1b0] sm:$0xff] %vm1525, %v6572
  %6765 = vst.msk [vmem:[%s5 + $0x1b8] sm:$0xff] %vm1525, %v6573
  %6766 = vst.msk [vmem:[%s5 + $0x1c0] sm:$0xff] %vm1525, %v6574
  %6767 = vst.msk [vmem:[%s5 + $0x1c8] sm:$0xff] %vm1525, %v6575
  %6768 = vst.msk [vmem:[%s5 + $0x1d0] sm:$0xff] %vm1525, %v6576
  %6769 = vst.msk [vmem:[%s5 + $0x1d8] sm:$0xff] %vm1525, %v6577
  %6770 = vst.msk [vmem:[%s5 + $0x1e0] sm:$0xff] %vm1525, %v6578
  %6771 = vst.msk [vmem:[%s5 + $0x1e8] sm:$0xff] %vm1525, %v6579
  %6772 = vst.msk [vmem:[%s5 + $0x1f0] sm:$0xff] %vm1525, %v6580
  %6773 = vst.msk [vmem:[%s5 + $0x1f8] sm:$0xff] %vm1525, %v6581
  %6774 = vst.msk [vmem:[%s5 + $0x200] sm:$0xff] %vm1525, %v6582
  %6775 = vst.msk [vmem:[%s5 + $0x208] sm:$0xff] %vm1525, %v6583
  %6776 = vst.msk [vmem:[%s5 + $0x210] sm:$0xff] %vm1525, %v6584
  %6777 = vst.msk [vmem:[%s5 + $0x218] sm:$0xff] %vm1525, %v6585
  %6778 = vst.msk [vmem:[%s5 + $0x220] sm:$0xff] %vm1525, %v6586
  %6779 = vst.msk [vmem:[%s5 + $0x228] sm:$0xff] %vm1525, %v6587
  %6780 = vst.msk [vmem:[%s5 + $0x230] sm:$0xff] %vm1525, %v6588
  %6781 = vst.msk [vmem:[%s5 + $0x238] sm:$0xff] %vm1525, %v6589
  %6782 = vst.msk [vmem:[%s5 + $0x240] sm:$0xff] %vm1525, %v6590
  %6783 = vst.msk [vmem:[%s5 + $0x248] sm:$0xff] %vm1525, %v6591
  %6784 = vst.msk [vmem:[%s5 + $0x250] sm:$0xff] %vm1525, %v6592
  %6785 = vst.msk [vmem:[%s5 + $0x258] sm:$0xff] %vm1525, %v6593
  %6786 = vst.msk [vmem:[%s5 + $0x260] sm:$0xff] %vm1525, %v6594
  %6787 = vst.msk [vmem:[%s5 + $0x268] sm:$0xff] %vm1525, %v6595
  %6788 = vst.msk [vmem:[%s5 + $0x270] sm:$0xff] %vm1525, %v6596
  %6789 = vst.msk [vmem:[%s5 + $0x278] sm:$0xff] %vm1525, %v6597
  %6790 = vst.msk [vmem:[%s5 + $0x280] sm:$0xff] %vm1525, %v6598
  %6791 = vst.msk [vmem:[%s5 + $0x288] sm:$0xff] %vm1525, %v6599
  %6792 = vst.msk [vmem:[%s5 + $0x290] sm:$0xff] %vm1525, %v6600
  %6793 = vst.msk [vmem:[%s5 + $0x298] sm:$0xff] %vm1525, %v6601
  %6794 = vst.msk [vmem:[%s5 + $0x2a0] sm:$0xff] %vm1525, %v6602
  %6795 = vst.msk [vmem:[%s5 + $0x2a8] sm:$0xff] %vm1525, %v6603
  %6796 = vst.msk [vmem:[%s5 + $0x2b0] sm:$0xff] %vm1525, %v6604
  %6797 = vst.msk [vmem:[%s5 + $0x2b8] sm:$0xff] %vm1525, %v6605
  %6798 = vst.msk [vmem:[%s5 + $0x2c0] sm:$0xff] %vm1525, %v6606
  %6799 = vst.msk [vmem:[%s5 + $0x2c8] sm:$0xff] %vm1525, %v6607
  %6800 = vst.msk [vmem:[%s5 + $0x2d0] sm:$0xff] %vm1525, %v6608
  %6801 = vst.msk [vmem:[%s5 + $0x2d8] sm:$0xff] %vm1525, %v6609
  %6802 = vst.msk [vmem:[%s5 + $0x2e0] sm:$0xff] %vm1525, %v6610
  %6803 = vst.msk [vmem:[%s5 + $0x2e8] sm:$0xff] %vm1525, %v6611
  %6804 = vst.msk [vmem:[%s5 + $0x2f0] sm:$0xff] %vm1525, %v6612
  %6805 = vst.msk [vmem:[%s5 + $0x2f8] sm:$0xff] %vm1525, %v6613
  %6806 = vst.msk [vmem:[%s5 + $0x300] sm:$0xff] %vm1525, %v6614
  %6807 = vst.msk [vmem:[%s5 + $0x308] sm:$0xff] %vm1525, %v6615
  %6808 = vst.msk [vmem:[%s5 + $0x310] sm:$0xff] %vm1525, %v6616
  %6809 = vst.msk [vmem:[%s5 + $0x318] sm:$0xff] %vm1525, %v6617
  %6810 = vst.msk [vmem:[%s5 + $0x320] sm:$0xff] %vm1525, %v6618
  %6811 = vst.msk [vmem:[%s5 + $0x328] sm:$0xff] %vm1525, %v6619
  %6812 = vst.msk [vmem:[%s5 + $0x330] sm:$0xff] %vm1525, %v6620
  %6813 = vst.msk [vmem:[%s5 + $0x338] sm:$0xff] %vm1525, %v6621
  %6814 = vst.msk [vmem:[%s5 + $0x340] sm:$0xff] %vm1525, %v6622
  %6815 = vst.msk [vmem:[%s5 + $0x348] sm:$0xff] %vm1525, %v6623
  %6816 = vst.msk [vmem:[%s5 + $0x350] sm:$0xff] %vm1525, %v6624
  %6817 = vst.msk [vmem:[%s5 + $0x358] sm:$0xff] %vm1525, %v6625
  %6818 = vst.msk [vmem:[%s5 + $0x360] sm:$0xff] %vm1525, %v6626
  %6819 = vst.msk [vmem:[%s5 + $0x368] sm:$0xff] %vm1525, %v6627
  %6820 = vst.msk [vmem:[%s5 + $0x370] sm:$0xff] %vm1525, %v6628
  %6821 = vst.msk [vmem:[%s5 + $0x378] sm:$0xff] %vm1525, %v6629
  %6822 = vst.msk [vmem:[%s5 + $0x380] sm:$0xff] %vm1525, %v6630
  %6823 = vst.msk [vmem:[%s5 + $0x388] sm:$0xff] %vm1525, %v6631
  %6824 = vst.msk [vmem:[%s5 + $0x390] sm:$0xff] %vm1525, %v6632
  %6825 = vst.msk [vmem:[%s5 + $0x398] sm:$0xff] %vm1525, %v6633
  %6826 = vst.msk [vmem:[%s5 + $0x3a0] sm:$0xff] %vm1525, %v6634
  %6827 = vst.msk [vmem:[%s5 + $0x3a8] sm:$0xff] %vm1525, %v6635
  %6828 = vst.msk [vmem:[%s5 + $0x3b0] sm:$0xff] %vm1525, %v6636
  %6829 = vst.msk [vmem:[%s5 + $0x3b8] sm:$0xff] %vm1525, %v6637
  %6830 = vst.msk [vmem:[%s5 + $0x3c0] sm:$0xff] %vm1525, %v6638
  %6831 = vst.msk [vmem:[%s5 + $0x3c8] sm:$0xff] %vm1525, %v6639
  %6832 = vst.msk [vmem:[%s5 + $0x3d0] sm:$0xff] %vm1525, %v6640
  %6833 = vst.msk [vmem:[%s5 + $0x3d8] sm:$0xff] %vm1525, %v6641
  %6834 = vst.msk [vmem:[%s5 + $0x3e0] sm:$0xff] %vm1525, %v6642
  %6835 = vst.msk [vmem:[%s5 + $0x3e8] sm:$0xff] %vm1525, %v6643
  %6836 = vst.msk [vmem:[%s5 + $0x3f0] sm:$0xff] %vm1525, %v6644
  %6837 = vst.msk [vmem:[%s5 + $0x3f8] sm:$0xff] %vm1525, %v6645
  %6838 = vst.msk [vmem:[%s5 + $0x400] sm:$0xff] %vm1525, %v6646
  %6839 = vst.msk [vmem:[%s5 + $0x408] sm:$0xff] %vm1525, %v6647
  %6840 = vst.msk [vmem:[%s5 + $0x410] sm:$0xff] %vm1525, %v6648
  %6841 = vst.msk [vmem:[%s5 + $0x418] sm:$0xff] %vm1525, %v6649
  %6842 = vst.msk [vmem:[%s5 + $0x420] sm:$0xff] %vm1525, %v6650
  %6843 = vst.msk [vmem:[%s5 + $0x428] sm:$0xff] %vm1525, %v6651
  %6844 = vst.msk [vmem:[%s5 + $0x430] sm:$0xff] %vm1525, %v6652
  %6845 = vst.msk [vmem:[%s5 + $0x438] sm:$0xff] %vm1525, %v6653
  %6846 = vst.msk [vmem:[%s5 + $0x440] sm:$0xff] %vm1525, %v6654
  %6847 = vst.msk [vmem:[%s5 + $0x448] sm:$0xff] %vm1525, %v6655
  %6848 = vst.msk [vmem:[%s5 + $0x450] sm:$0xff] %vm1525, %v6656
  %6849 = vst.msk [vmem:[%s5 + $0x458] sm:$0xff] %vm1525, %v6657
  %6850 = vst.msk [vmem:[%s5 + $0x460] sm:$0xff] %vm1525, %v6658
  %6851 = vst.msk [vmem:[%s5 + $0x468] sm:$0xff] %vm1525, %v6659
  %6852 = vst.msk [vmem:[%s5 + $0x470] sm:$0xff] %vm1525, %v6660
  %6853 = vst.msk [vmem:[%s5 + $0x478] sm:$0xff] %vm1525, %v6661
  %6854 = vst.msk [vmem:[%s5 + $0x480] sm:$0xff] %vm1525, %v6662
  %6855 = vst.msk [vmem:[%s5 + $0x488] sm:$0xff] %vm1525, %v6663
  %6856 = vst.msk [vmem:[%s5 + $0x490] sm:$0xff] %vm1525, %v6664
  %6857 = vst.msk [vmem:[%s5 + $0x498] sm:$0xff] %vm1525, %v6665
  %6858 = vst.msk [vmem:[%s5 + $0x4a0] sm:$0xff] %vm1525, %v6666
  %6859 = vst.msk [vmem:[%s5 + $0x4a8] sm:$0xff] %vm1525, %v6667
  %6860 = vst.msk [vmem:[%s5 + $0x4b0] sm:$0xff] %vm1525, %v6668
  %6861 = vst.msk [vmem:[%s5 + $0x4b8] sm:$0xff] %vm1525, %v6669
  %6862 = vst.msk [vmem:[%s5 + $0x4c0] sm:$0xff] %vm1525, %v6670
  %6863 = vst.msk [vmem:[%s5 + $0x4c8] sm:$0xff] %vm1525, %v6671
  %6864 = vst.msk [vmem:[%s5 + $0x4d0] sm:$0xff] %vm1525, %v6672
  %6865 = vst.msk [vmem:[%s5 + $0x4d8] sm:$0xff] %vm1525, %v6673
  %6866 = vst.msk [vmem:[%s5 + $0x4e0] sm:$0xff] %vm1525, %v6674
  %6867 = vst.msk [vmem:[%s5 + $0x4e8] sm:$0xff] %vm1525, %v6675
  %6868 = vst.msk [vmem:[%s5 + $0x4f0] sm:$0xff] %vm1525, %v6676
  %6869 = vst.msk [vmem:[%s5 + $0x4f8] sm:$0xff] %vm1525, %v6677
  %6870 = vst.msk [vmem:[%s5 + $0x500] sm:$0xff] %vm1525, %v6678
  %6871 = vst.msk [vmem:[%s5 + $0x508] sm:$0xff] %vm1525, %v6679
  %6872 = vst.msk [vmem:[%s5 + $0x510] sm:$0xff] %vm1525, %v6680
  %6873 = vst.msk [vmem:[%s5 + $0x518] sm:$0xff] %vm1525, %v6681
  %6874 = vst.msk [vmem:[%s5 + $0x520] sm:$0xff] %vm1525, %v6682
  %6875 = vst.msk [vmem:[%s5 + $0x528] sm:$0xff] %vm1525, %v6683
  %6876 = vst.msk [vmem:[%s5 + $0x530] sm:$0xff] %vm1525, %v6684
  %6877 = vst.msk [vmem:[%s5 + $0x538] sm:$0xff] %vm1525, %v6685
  %6878 = vst.msk [vmem:[%s5 + $0x540] sm:$0xff] %vm1525, %v6686
  %6879 = vst.msk [vmem:[%s5 + $0x548] sm:$0xff] %vm1525, %v6687
  %6880 = vst.msk [vmem:[%s5 + $0x550] sm:$0xff] %vm1525, %v6688
  %6881 = vst.msk [vmem:[%s5 + $0x558] sm:$0xff] %vm1525, %v6689
  %6882 = vst.msk [vmem:[%s5 + $0x560] sm:$0xff] %vm1525, %v6690
  %6883 = vst.msk [vmem:[%s5 + $0x568] sm:$0xff] %vm1525, %v6691
  %6884 = vst.msk [vmem:[%s5 + $0x570] sm:$0xff] %vm1525, %v6692
  %6885 = vst.msk [vmem:[%s5 + $0x578] sm:$0xff] %vm1525, %v6693
  %6886 = vst.msk [vmem:[%s5 + $0x580] sm:$0xff] %vm1525, %v6694
  %6887 = vst.msk [vmem:[%s5 + $0x588] sm:$0xff] %vm1525, %v6695
  %6888 = vst.msk [vmem:[%s5 + $0x590] sm:$0xff] %vm1525, %v6696
  %6889 = vst.msk [vmem:[%s5 + $0x598] sm:$0xff] %vm1525, %v6697
  %6890 = vst.msk [vmem:[%s5 + $0x5a0] sm:$0xff] %vm1525, %v6698
  %6891 = vst.msk [vmem:[%s5 + $0x5a8] sm:$0xff] %vm1525, %v6699
  %6892 = vst.msk [vmem:[%s5 + $0x5b0] sm:$0xff] %vm1525, %v6700
  %6893 = vst.msk [vmem:[%s5 + $0x5b8] sm:$0xff] %vm1525, %v6701
  %6894 = vst.msk [vmem:[%s5 + $0x5c0] sm:$0xff] %vm1525, %v6702
  %6895 = vst.msk [vmem:[%s5 + $0x5c8] sm:$0xff] %vm1525, %v6703
  %6896 = vst.msk [vmem:[%s5 + $0x5d0] sm:$0xff] %vm1525, %v6704
  %6897 = vst.msk [vmem:[%s5 + $0x5d8] sm:$0xff] %vm1525, %v6705
  %6898 = vst.msk [vmem:[%s5 + $0x5e0] sm:$0xff] %vm1525, %v6706
  %6899 = vst.msk [vmem:[%s5 + $0x5e8] sm:$0xff] %vm1525, %v6707
  %6900 = vst.msk [vmem:[%s5 + $0x5f0] sm:$0xff] %vm1525, %v6708
  %6901 = vst.msk [vmem:[%s5 + $0x5f8] sm:$0xff] %vm1525, %v6709
  // Predicated region
  $region22: #{fused_add_conv1x1_bn.1} parent=0 // pred_check
    _
  $region23: #{fused_add_conv1x1_bn.1} parent=0 // pred_check_branch
    %6903 = sbr.rel (0) target = $region25
  $region24: #{fused_add_conv1x1_bn.1} parent=0 // pred_region
    _
  $region25: #{fused_add_conv1x1_bn.1} parent=0 // pred_fallthru
    _
  // Predicated region
  $region26: #{fused_add_conv1x1_bn.1} parent=0 // pred_check
    _
  $region27: #{fused_add_conv1x1_bn.1} parent=0 // pred_check_branch
    %6905 = sbr.rel (0) target = $region29
  $region28: #{fused_add_conv1x1_bn.1} parent=0 // pred_region
    _
  $region29: #{fused_add_conv1x1_bn.1} parent=0 // pred_fallthru
    _

</llo_original>
